<compile_context>
chip_gen: v7x
topology: tpu7x:2x2x1
jax: 0.10.0
libtpu: 0.0.40
codegen_flags: <defaults>
</compile_context>

<pallas_src>
import functools
import math

import jax
import jax.numpy as jnp
from jax import lax
from jax.experimental import pallas as pl
from jax.experimental.pallas import tpu as pltpu

_INV_SQRT2 = 0.7071067811865476
_LN_EPS = 1e-5


# ----------------------------- math helpers -------------------------------

def _erf_f32(x):
    # Abramowitz & Stegun 7.1.26, |err| < 1.5e-7 (exact at f32 precision).
    # Kept instead of lax.erf: Mosaic does not guarantee an erf_p lowering;
    # the exp goes to the EUP so only a small Horner poly lands on the VALU.
    p = 0.3275911
    a1, a2, a3, a4, a5 = (0.254829592, -0.284496736, 1.421413741,
                          -1.453152027, 1.061405429)
    s = jnp.where(x >= 0.0, 1.0, -1.0)
    z = jnp.abs(x)
    t = 1.0 / (1.0 + p * z)
    poly = t * (a1 + t * (a2 + t * (a3 + t * (a4 + t * a5))))
    return s * (1.0 - poly * jnp.exp(-z * z))


def _gelu_exact(x):
    # nn.GELU() default (erf-based) semantics.
    return 0.5 * x * (1.0 + _erf_f32(x * _INV_SQRT2))


# ----------------------------- fused kernel -------------------------------

def _body_kernel(x_ref,
                 fit_in_w_ref, fit_in_b_ref,
                 transor_w_ref, transor_b_ref,
                 mem_w_ref, mem_b_ref,
                 qkv_w_ref, qkv_b_ref,
                 o_w_ref, o_b_ref,
                 fit_hw_ref, fit_mw_ref, fit_b_ref,
                 ln_g_ref, ln_b_ref,
                 fit_out_w_ref, fit_out_b_ref,
                 out_ref,
                 *, n_layers, hidden, attn_scale):
    f32 = jnp.float32

    def dot(a, b):
        return jnp.dot(a, b, preferred_element_type=f32)

    x = x_ref[...]                                        # (S, in_size)
    h = dot(x, fit_in_w_ref[...]) + fit_in_b_ref[...]     # (S, H)

    # Static unroll over layers: each layer has its own weights (static index).
    for l in range(n_layers):
        # x = self.transor(x)
        t = dot(h, transor_w_ref[l]) + transor_b_ref[l]
        # mind = self.memory(x)     (stand-in: tanh linear memory)
        mind = jnp.tanh(dot(t, mem_w_ref[l]) + mem_b_ref[l])
        # mind = self.thought(mind) (stand-in: single-head softmax self-attn)
        qkv = dot(mind, qkv_w_ref[l]) + qkv_b_ref[l]      # fused QKV, (S, 3H)
        q = qkv[:, :hidden]
        k = qkv[:, hidden:2 * hidden]
        v = qkv[:, 2 * hidden:]
        s = lax.dot_general(q, k, (((1,), (1,)), ((), ())),
                            preferred_element_type=f32) * attn_scale  # (S, S)
        s = s - jnp.max(s, axis=-1, keepdims=True)
        p = jnp.exp(s)
        p = p * pl.reciprocal(jnp.sum(p, axis=-1, keepdims=True), approx=True)
        attn = dot(p, v)
        mind = dot(attn, o_w_ref[l]) + o_b_ref[l]
        # fit(cat([x, mind], -1)) == x @ W_h + mind @ W_mind + b   (no concat)
        y = dot(t, fit_hw_ref[l]) + dot(mind, fit_mw_ref[l]) + fit_b_ref[l]
        # LayerNorm (biased variance, torch semantics) + exact-erf GELU
        mean = jnp.mean(y, axis=-1, keepdims=True)
        var = jnp.mean((y - mean) ** 2, axis=-1, keepdims=True)
        yhat = (y - mean) * lax.rsqrt(var + _LN_EPS)
        h = _gelu_exact(yhat * ln_g_ref[l] + ln_b_ref[l])

    out_ref[...] = dot(h, fit_out_w_ref[...]) + fit_out_b_ref[...]


def body_forward_fused(params, x):
    B, S, in_size = x.shape
    hidden = params["fit_in_w"].shape[1]
    out_size = params["fit_out_w"].shape[1]
    n_layers = params["transor_w"].shape[0]

    weights = [
        params["fit_in_w"], params["fit_in_b"],
        params["transor_w"], params["transor_b"],
        params["mem_w"], params["mem_b"],
        params["qkv_w"], params["qkv_b"],
        params["o_w"], params["o_b"],
        params["fit_h_w"], params["fit_m_w"], params["fit_b"],
        params["ln_g"], params["ln_b"],
        params["fit_out_w"], params["fit_out_b"],
    ]

    def _full_spec(a):
        nd = a.ndim
        return pl.BlockSpec(a.shape, lambda b, _nd=nd: (0,) * _nd)

    kern = functools.partial(_body_kernel, n_layers=n_layers, hidden=hidden,
                             attn_scale=1.0 / math.sqrt(hidden))

    return pl.pallas_call(
        kern,
        out_shape=jax.ShapeDtypeStruct((B, S, out_size), jnp.float32),
        grid=(B,),
        in_specs=([pl.BlockSpec((None, S, in_size), lambda b: (b, 0, 0))]
                  + [_full_spec(a) for a in weights]),
        out_specs=pl.BlockSpec((None, S, out_size), lambda b: (b, 0, 0)),
        compiler_params=pltpu.CompilerParams(
            dimension_semantics=("parallel",)),
    )(x, *weights)


# ----------------------------- parameters ---------------------------------

def _init_linear(key, fan_in, fan_out):
    # Mimics torch.nn.Linear default init: U(-1/sqrt(fan_in), 1/sqrt(fan_in)).
    kw, kb = jax.random.split(key)
    bound = 1.0 / math.sqrt(fan_in)
    w = jax.random.uniform(kw, (fan_in, fan_out), jnp.float32, -bound, bound)
    b = jax.random.uniform(kb, (1, fan_out), jnp.float32, -bound, bound)
    return w, b


def _init_sim_body(key, size, hidden):
    ks = jax.random.split(key, 7)
    transor_w, transor_b = _init_linear(ks[0], size, hidden)
    mem_w, mem_b = _init_linear(ks[1], hidden, hidden)          # Memory stand-in
    q_w, q_b = _init_linear(ks[2], hidden, hidden)              # LocalAttention stand-in
    k_w, k_b = _init_linear(ks[3], hidden, hidden)
    v_w, v_b = _init_linear(ks[4], hidden, hidden)
    o_w, o_b = _init_linear(ks[5], hidden, hidden)
    fit_w, fit_b = _init_linear(ks[6], size + hidden, size)
    return dict(
        transor_w=transor_w, transor_b=transor_b,
        mem_w=mem_w, mem_b=mem_b,
        qkv_w=jnp.concatenate([q_w, k_w, v_w], axis=1),   # (H, 3H) fused QKV
        qkv_b=jnp.concatenate([q_b, k_b, v_b], axis=1),   # (1, 3H)
        o_w=o_w, o_b=o_b,
        fit_h_w=fit_w[:size],        # acts on x (h) part of the cat
        fit_m_w=fit_w[size:],        # acts on mind part of the cat
        fit_b=fit_b,
        ln_g=jnp.ones((1, size), jnp.float32),    # torch LayerNorm default init
        ln_b=jnp.zeros((1, size), jnp.float32),
    )


def init_body_params(key, in_size, out_size, hidden, scale):
    ks = jax.random.split(key, scale + 2)
    params = {}
    params["fit_in_w"], params["fit_in_b"] = _init_linear(ks[0], in_size, hidden)
    params["fit_out_w"], params["fit_out_b"] = _init_linear(ks[1], hidden, out_size)
    layers = [_init_sim_body(ks[2 + i], hidden, hidden) for i in range(scale)]
    for name in layers[0]:
        params[name] = jnp.stack([lyr[name] for lyr in layers], axis=0)
    return params


# ----------------------------- driver --------------------------------------

if __name__ == "__main__":
    B, S = 2, 8
    in_size, out_size, hidden, scale = 16, 16, 32, 8

    key = jax.random.PRNGKey(0)
    pkey, xkey = jax.random.split(key)
    params = init_body_params(pkey, in_size, out_size, hidden, scale)
    x = jax.random.normal(xkey, (B, S, in_size), dtype=jnp.float32)

    fwd = jax.jit(body_forward_fused)
    y = jax.block_until_ready(fwd(params, x))

    assert y.shape == (B, S, out_size), y.shape
    assert bool(jnp.all(jnp.isfinite(y)))
    print("KERNEL_OK")
</pallas_src>

<mosaic_0001>
module attributes {stable_mosaic.version = 11 : i64} {
  func.func @_body_kernel(%arg0: i32, %arg1: memref<1x8x16xf32, #tpu.memory_space<vmem>>, %arg2: memref<16x32xf32, #tpu.memory_space<vmem>>, %arg3: memref<1x32xf32, #tpu.memory_space<vmem>>, %arg4: memref<8x32x32xf32, #tpu.memory_space<vmem>>, %arg5: memref<8x1x32xf32, #tpu.memory_space<vmem>>, %arg6: memref<8x32x32xf32, #tpu.memory_space<vmem>>, %arg7: memref<8x1x32xf32, #tpu.memory_space<vmem>>, %arg8: memref<8x32x96xf32, #tpu.memory_space<vmem>>, %arg9: memref<8x1x96xf32, #tpu.memory_space<vmem>>, %arg10: memref<8x32x32xf32, #tpu.memory_space<vmem>>, %arg11: memref<8x1x32xf32, #tpu.memory_space<vmem>>, %arg12: memref<8x32x32xf32, #tpu.memory_space<vmem>>, %arg13: memref<8x32x32xf32, #tpu.memory_space<vmem>>, %arg14: memref<8x1x32xf32, #tpu.memory_space<vmem>>, %arg15: memref<8x1x32xf32, #tpu.memory_space<vmem>>, %arg16: memref<8x1x32xf32, #tpu.memory_space<vmem>>, %arg17: memref<32x16xf32, #tpu.memory_space<vmem>>, %arg18: memref<1x16xf32, #tpu.memory_space<vmem>>, %arg19: memref<1x8x16xf32, #tpu.memory_space<vmem>>) attributes {dimension_semantics = [#tpu.dimension_semantics<parallel>], iteration_bounds = array<i64: 2>, scalar_prefetch = 0 : i64, scratch_operands = 0 : i64, tpu.core_type = #tpu.core_type<tc>, window_params = [{transform_indices = @transform_0, window_bounds = array<i64: 1, 8, 16>}, {pipeline_mode = #tpu.pipeline_mode<synchronous>, transform_indices = @transform_1, window_bounds = array<i64: 16, 32>}, {pipeline_mode = #tpu.pipeline_mode<synchronous>, transform_indices = @transform_2, window_bounds = array<i64: 1, 32>}, {pipeline_mode = #tpu.pipeline_mode<synchronous>, transform_indices = @transform_3, window_bounds = array<i64: 8, 32, 32>}, {pipeline_mode = #tpu.pipeline_mode<synchronous>, transform_indices = @transform_4, window_bounds = array<i64: 8, 1, 32>}, {pipeline_mode = #tpu.pipeline_mode<synchronous>, transform_indices = @transform_5, window_bounds = array<i64: 8, 32, 32>}, {pipeline_mode = #tpu.pipeline_mode<synchronous>, transform_indices = @transform_6, window_bounds = array<i64: 8, 1, 32>}, {pipeline_mode = #tpu.pipeline_mode<synchronous>, transform_indices = @transform_7, window_bounds = array<i64: 8, 32, 96>}, {pipeline_mode = #tpu.pipeline_mode<synchronous>, transform_indices = @transform_8, window_bounds = array<i64: 8, 1, 96>}, {pipeline_mode = #tpu.pipeline_mode<synchronous>, transform_indices = @transform_9, window_bounds = array<i64: 8, 32, 32>}, {pipeline_mode = #tpu.pipeline_mode<synchronous>, transform_indices = @transform_10, window_bounds = array<i64: 8, 1, 32>}, {pipeline_mode = #tpu.pipeline_mode<synchronous>, transform_indices = @transform_11, window_bounds = array<i64: 8, 32, 32>}, {pipeline_mode = #tpu.pipeline_mode<synchronous>, transform_indices = @transform_12, window_bounds = array<i64: 8, 32, 32>}, {pipeline_mode = #tpu.pipeline_mode<synchronous>, transform_indices = @transform_13, window_bounds = array<i64: 8, 1, 32>}, {pipeline_mode = #tpu.pipeline_mode<synchronous>, transform_indices = @transform_14, window_bounds = array<i64: 8, 1, 32>}, {pipeline_mode = #tpu.pipeline_mode<synchronous>, transform_indices = @transform_15, window_bounds = array<i64: 8, 1, 32>}, {pipeline_mode = #tpu.pipeline_mode<synchronous>, transform_indices = @transform_16, window_bounds = array<i64: 32, 16>}, {pipeline_mode = #tpu.pipeline_mode<synchronous>, transform_indices = @transform_17, window_bounds = array<i64: 1, 16>}, {transform_indices = @transform_18, window_bounds = array<i64: 1, 8, 16>}]} {
    %c0 = arith.constant 0 : index
    %c0_0 = arith.constant 0 : index
    %c0_1 = arith.constant 0 : index
    %0 = vector.load %arg1[%c0, %c0_0, %c0_1] : memref<1x8x16xf32, #tpu.memory_space<vmem>>, vector<1x8x16xf32>
    %1 = vector.shape_cast %0 : vector<1x8x16xf32> to vector<8x16xf32>
    %c0_2 = arith.constant 0 : index
    %c0_3 = arith.constant 0 : index
    %2 = vector.load %arg2[%c0_2, %c0_3] : memref<16x32xf32, #tpu.memory_space<vmem>>, vector<16x32xf32>
    %cst = arith.constant dense<0.000000e+00> : vector<8x32xf32>
    %3 = tpu.matmul %1, %2, %cst {dimension_numbers = #tpu.dot_dimension_numbers<[1], [0], [0], [1], [0, 0, 1, 1], [], []>} : vector<8x16xf32>, vector<16x32xf32>, vector<8x32xf32> -> vector<8x32xf32>
    %c0_4 = arith.constant 0 : index
    %c0_5 = arith.constant 0 : index
    %4 = vector.load %arg3[%c0_4, %c0_5] : memref<1x32xf32, #tpu.memory_space<vmem>>, vector<1x32xf32>
    %5 = vector.broadcast %4 : vector<1x32xf32> to vector<8x32xf32>
    %6 = arith.addf %3, %5 : vector<8x32xf32>
    %c0_6 = arith.constant 0 : index
    %c0_7 = arith.constant 0 : index
    %c0_8 = arith.constant 0 : index
    %7 = vector.load %arg4[%c0_6, %c0_7, %c0_8] : memref<8x32x32xf32, #tpu.memory_space<vmem>>, vector<1x32x32xf32>
    %8 = vector.shape_cast %7 : vector<1x32x32xf32> to vector<32x32xf32>
    %cst_9 = arith.constant dense<0.000000e+00> : vector<8x32xf32>
    %9 = tpu.matmul %6, %8, %cst_9 {dimension_numbers = #tpu.dot_dimension_numbers<[1], [0], [0], [1], [0, 0, 1, 1], [], []>} : vector<8x32xf32>, vector<32x32xf32>, vector<8x32xf32> -> vector<8x32xf32>
    %c0_10 = arith.constant 0 : index
    %c0_11 = arith.constant 0 : index
    %c0_12 = arith.constant 0 : index
    %10 = vector.load %arg5[%c0_10, %c0_11, %c0_12] : memref<8x1x32xf32, #tpu.memory_space<vmem>>, vector<1x1x32xf32>
    %11 = vector.shape_cast %10 : vector<1x1x32xf32> to vector<1x32xf32>
    %12 = vector.broadcast %11 : vector<1x32xf32> to vector<8x32xf32>
    %13 = arith.addf %9, %12 : vector<8x32xf32>
    %c0_13 = arith.constant 0 : index
    %c0_14 = arith.constant 0 : index
    %c0_15 = arith.constant 0 : index
    %14 = vector.load %arg6[%c0_13, %c0_14, %c0_15] : memref<8x32x32xf32, #tpu.memory_space<vmem>>, vector<1x32x32xf32>
    %15 = vector.shape_cast %14 : vector<1x32x32xf32> to vector<32x32xf32>
    %cst_16 = arith.constant dense<0.000000e+00> : vector<8x32xf32>
    %16 = tpu.matmul %13, %15, %cst_16 {dimension_numbers = #tpu.dot_dimension_numbers<[1], [0], [0], [1], [0, 0, 1, 1], [], []>} : vector<8x32xf32>, vector<32x32xf32>, vector<8x32xf32> -> vector<8x32xf32>
    %c0_17 = arith.constant 0 : index
    %c0_18 = arith.constant 0 : index
    %c0_19 = arith.constant 0 : index
    %17 = vector.load %arg7[%c0_17, %c0_18, %c0_19] : memref<8x1x32xf32, #tpu.memory_space<vmem>>, vector<1x1x32xf32>
    %18 = vector.shape_cast %17 : vector<1x1x32xf32> to vector<1x32xf32>
    %19 = vector.broadcast %18 : vector<1x32xf32> to vector<8x32xf32>
    %20 = arith.addf %16, %19 : vector<8x32xf32>
    %21 = math.tanh %20 : vector<8x32xf32>
    %c0_20 = arith.constant 0 : index
    %c0_21 = arith.constant 0 : index
    %c0_22 = arith.constant 0 : index
    %22 = vector.load %arg8[%c0_20, %c0_21, %c0_22] : memref<8x32x96xf32, #tpu.memory_space<vmem>>, vector<1x32x96xf32>
    %23 = vector.shape_cast %22 : vector<1x32x96xf32> to vector<32x96xf32>
    %cst_23 = arith.constant dense<0.000000e+00> : vector<8x96xf32>
    %24 = tpu.matmul %21, %23, %cst_23 {dimension_numbers = #tpu.dot_dimension_numbers<[1], [0], [0], [1], [0, 0, 1, 1], [], []>} : vector<8x32xf32>, vector<32x96xf32>, vector<8x96xf32> -> vector<8x96xf32>
    %c0_24 = arith.constant 0 : index
    %c0_25 = arith.constant 0 : index
    %c0_26 = arith.constant 0 : index
    %25 = vector.load %arg9[%c0_24, %c0_25, %c0_26] : memref<8x1x96xf32, #tpu.memory_space<vmem>>, vector<1x1x96xf32>
    %26 = vector.shape_cast %25 : vector<1x1x96xf32> to vector<1x96xf32>
    %27 = vector.broadcast %26 : vector<1x96xf32> to vector<8x96xf32>
    %28 = arith.addf %24, %27 : vector<8x96xf32>
    %29 = vector.extract_strided_slice %28 {offsets = [0, 0], sizes = [8, 32], strides = [1, 1]} : vector<8x96xf32> to vector<8x32xf32>
    %30 = vector.extract_strided_slice %28 {offsets = [0, 32], sizes = [8, 32], strides = [1, 1]} : vector<8x96xf32> to vector<8x32xf32>
    %31 = vector.extract_strided_slice %28 {offsets = [0, 64], sizes = [8, 32], strides = [1, 1]} : vector<8x96xf32> to vector<8x32xf32>
    %cst_27 = arith.constant dense<0.000000e+00> : vector<8x8xf32>
    %32 = tpu.matmul %29, %30, %cst_27 {dimension_numbers = #tpu.dot_dimension_numbers<[1], [1], [0], [0], [0, 0, 1, 0], [], []>} : vector<8x32xf32>, vector<8x32xf32>, vector<8x8xf32> -> vector<8x8xf32>
    %cst_28 = arith.constant 0.176776692 : f32
    %33 = vector.broadcast %cst_28 : f32 to vector<8x8xf32>
    %34 = arith.mulf %32, %33 : vector<8x8xf32>
    %cst_29 = arith.constant dense<0xFF800000> : vector<8xf32>
    %35 = vector.multi_reduction <maximumf>, %34, %cst_29 [1] : vector<8x8xf32> to vector<8xf32>
    %36 = vector.shape_cast %35 : vector<8xf32> to vector<8x1xf32>
    %37 = vector.broadcast %36 : vector<8x1xf32> to vector<8x8xf32>
    %38 = arith.subf %34, %37 : vector<8x8xf32>
    %39 = math.exp %38 : vector<8x8xf32>
    %cst_30 = arith.constant dense<0.000000e+00> : vector<8xf32>
    %40 = vector.multi_reduction <add>, %39, %cst_30 [1] : vector<8x8xf32> to vector<8xf32>
    %41 = vector.shape_cast %40 : vector<8xf32> to vector<8x1xf32>
    %42 = tpu.reciprocal %41 {approx = true} : vector<8x1xf32> -> vector<8x1xf32>
    %43 = vector.broadcast %42 : vector<8x1xf32> to vector<8x8xf32>
    %44 = arith.mulf %39, %43 : vector<8x8xf32>
    %cst_31 = arith.constant dense<0.000000e+00> : vector<8x32xf32>
    %45 = tpu.matmul %44, %31, %cst_31 {dimension_numbers = #tpu.dot_dimension_numbers<[1], [0], [0], [1], [0, 0, 1, 1], [], []>} : vector<8x8xf32>, vector<8x32xf32>, vector<8x32xf32> -> vector<8x32xf32>
    %c0_32 = arith.constant 0 : index
    %c0_33 = arith.constant 0 : index
    %c0_34 = arith.constant 0 : index
    %46 = vector.load %arg10[%c0_32, %c0_33, %c0_34] : memref<8x32x32xf32, #tpu.memory_space<vmem>>, vector<1x32x32xf32>
    %47 = vector.shape_cast %46 : vector<1x32x32xf32> to vector<32x32xf32>
    %cst_35 = arith.constant dense<0.000000e+00> : vector<8x32xf32>
    %48 = tpu.matmul %45, %47, %cst_35 {dimension_numbers = #tpu.dot_dimension_numbers<[1], [0], [0], [1], [0, 0, 1, 1], [], []>} : vector<8x32xf32>, vector<32x32xf32>, vector<8x32xf32> -> vector<8x32xf32>
    %c0_36 = arith.constant 0 : index
    %c0_37 = arith.constant 0 : index
    %c0_38 = arith.constant 0 : index
    %49 = vector.load %arg11[%c0_36, %c0_37, %c0_38] : memref<8x1x32xf32, #tpu.memory_space<vmem>>, vector<1x1x32xf32>
    %50 = vector.shape_cast %49 : vector<1x1x32xf32> to vector<1x32xf32>
    %51 = vector.broadcast %50 : vector<1x32xf32> to vector<8x32xf32>
    %52 = arith.addf %48, %51 : vector<8x32xf32>
    %c0_39 = arith.constant 0 : index
    %c0_40 = arith.constant 0 : index
    %c0_41 = arith.constant 0 : index
    %53 = vector.load %arg12[%c0_39, %c0_40, %c0_41] : memref<8x32x32xf32, #tpu.memory_space<vmem>>, vector<1x32x32xf32>
    %54 = vector.shape_cast %53 : vector<1x32x32xf32> to vector<32x32xf32>
    %cst_42 = arith.constant dense<0.000000e+00> : vector<8x32xf32>
    %55 = tpu.matmul %13, %54, %cst_42 {dimension_numbers = #tpu.dot_dimension_numbers<[1], [0], [0], [1], [0, 0, 1, 1], [], []>} : vector<8x32xf32>, vector<32x32xf32>, vector<8x32xf32> -> vector<8x32xf32>
    %c0_43 = arith.constant 0 : index
    %c0_44 = arith.constant 0 : index
    %c0_45 = arith.constant 0 : index
    %56 = vector.load %arg13[%c0_43, %c0_44, %c0_45] : memref<8x32x32xf32, #tpu.memory_space<vmem>>, vector<1x32x32xf32>
    %57 = vector.shape_cast %56 : vector<1x32x32xf32> to vector<32x32xf32>
    %cst_46 = arith.constant dense<0.000000e+00> : vector<8x32xf32>
    %58 = tpu.matmul %52, %57, %cst_46 {dimension_numbers = #tpu.dot_dimension_numbers<[1], [0], [0], [1], [0, 0, 1, 1], [], []>} : vector<8x32xf32>, vector<32x32xf32>, vector<8x32xf32> -> vector<8x32xf32>
    %59 = arith.addf %55, %58 : vector<8x32xf32>
    %c0_47 = arith.constant 0 : index
    %c0_48 = arith.constant 0 : index
    %c0_49 = arith.constant 0 : index
    %60 = vector.load %arg14[%c0_47, %c0_48, %c0_49] : memref<8x1x32xf32, #tpu.memory_space<vmem>>, vector<1x1x32xf32>
    %61 = vector.shape_cast %60 : vector<1x1x32xf32> to vector<1x32xf32>
    %62 = vector.broadcast %61 : vector<1x32xf32> to vector<8x32xf32>
    %63 = arith.addf %59, %62 : vector<8x32xf32>
    %cst_50 = arith.constant dense<0.000000e+00> : vector<8xf32>
    %64 = vector.multi_reduction <add>, %63, %cst_50 [1] : vector<8x32xf32> to vector<8xf32>
    %65 = vector.shape_cast %64 : vector<8xf32> to vector<8x1xf32>
    %cst_51 = arith.constant 3.200000e+01 : f32
    %66 = vector.broadcast %cst_51 : f32 to vector<8x1xf32>
    %67 = arith.divf %65, %66 : vector<8x1xf32>
    %68 = vector.broadcast %67 : vector<8x1xf32> to vector<8x32xf32>
    %69 = arith.subf %63, %68 : vector<8x32xf32>
    %70 = arith.mulf %69, %69 : vector<8x32xf32>
    %cst_52 = arith.constant dense<0.000000e+00> : vector<8xf32>
    %71 = vector.multi_reduction <add>, %70, %cst_52 [1] : vector<8x32xf32> to vector<8xf32>
    %72 = vector.shape_cast %71 : vector<8xf32> to vector<8x1xf32>
    %cst_53 = arith.constant 3.200000e+01 : f32
    %73 = vector.broadcast %cst_53 : f32 to vector<8x1xf32>
    %74 = arith.divf %72, %73 : vector<8x1xf32>
    %75 = vector.broadcast %67 : vector<8x1xf32> to vector<8x32xf32>
    %76 = arith.subf %63, %75 : vector<8x32xf32>
    %cst_54 = arith.constant 9.99999974E-6 : f32
    %77 = vector.broadcast %cst_54 : f32 to vector<8x1xf32>
    %78 = arith.addf %74, %77 : vector<8x1xf32>
    %79 = math.rsqrt %78 : vector<8x1xf32>
    %80 = vector.broadcast %79 : vector<8x1xf32> to vector<8x32xf32>
    %81 = arith.mulf %76, %80 : vector<8x32xf32>
    %c0_55 = arith.constant 0 : index
    %c0_56 = arith.constant 0 : index
    %c0_57 = arith.constant 0 : index
    %82 = vector.load %arg15[%c0_55, %c0_56, %c0_57] : memref<8x1x32xf32, #tpu.memory_space<vmem>>, vector<1x1x32xf32>
    %83 = vector.shape_cast %82 : vector<1x1x32xf32> to vector<1x32xf32>
    %84 = vector.broadcast %83 : vector<1x32xf32> to vector<8x32xf32>
    %85 = arith.mulf %81, %84 : vector<8x32xf32>
    %c0_58 = arith.constant 0 : index
    %c0_59 = arith.constant 0 : index
    %c0_60 = arith.constant 0 : index
    %86 = vector.load %arg16[%c0_58, %c0_59, %c0_60] : memref<8x1x32xf32, #tpu.memory_space<vmem>>, vector<1x1x32xf32>
    %87 = vector.shape_cast %86 : vector<1x1x32xf32> to vector<1x32xf32>
    %88 = vector.broadcast %87 : vector<1x32xf32> to vector<8x32xf32>
    %89 = arith.addf %85, %88 : vector<8x32xf32>
    %cst_61 = arith.constant 5.000000e-01 : f32
    %90 = vector.broadcast %cst_61 : f32 to vector<8x32xf32>
    %91 = arith.mulf %90, %89 : vector<8x32xf32>
    %cst_62 = arith.constant 0.707106769 : f32
    %92 = vector.broadcast %cst_62 : f32 to vector<8x32xf32>
    %93 = arith.mulf %89, %92 : vector<8x32xf32>
    %cst_63 = arith.constant 0.000000e+00 : f32
    %94 = vector.broadcast %cst_63 : f32 to vector<8x32xf32>
    %95 = arith.cmpf oge, %93, %94 : vector<8x32xf32>
    %cst_64 = arith.constant 1.000000e+00 : f32
    %cst_65 = arith.constant -1.000000e+00 : f32
    %96 = vector.broadcast %cst_64 : f32 to vector<8x32xf32>
    %97 = vector.broadcast %cst_65 : f32 to vector<8x32xf32>
    %98 = arith.select %95, %96, %97 : vector<8x32xi1>, vector<8x32xf32>
    %99 = math.absf %93 : vector<8x32xf32>
    %cst_66 = arith.constant 0.327591091 : f32
    %100 = vector.broadcast %cst_66 : f32 to vector<8x32xf32>
    %101 = arith.mulf %100, %99 : vector<8x32xf32>
    %cst_67 = arith.constant 1.000000e+00 : f32
    %102 = vector.broadcast %cst_67 : f32 to vector<8x32xf32>
    %103 = arith.addf %102, %101 : vector<8x32xf32>
    %cst_68 = arith.constant 1.000000e+00 : f32
    %104 = vector.broadcast %cst_68 : f32 to vector<8x32xf32>
    %105 = arith.divf %104, %103 : vector<8x32xf32>
    %cst_69 = arith.constant 1.06140542 : f32
    %106 = vector.broadcast %cst_69 : f32 to vector<8x32xf32>
    %107 = arith.mulf %105, %106 : vector<8x32xf32>
    %cst_70 = arith.constant -1.45315206 : f32
    %108 = vector.broadcast %cst_70 : f32 to vector<8x32xf32>
    %109 = arith.addf %108, %107 : vector<8x32xf32>
    %110 = arith.mulf %105, %109 : vector<8x32xf32>
    %cst_71 = arith.constant 1.42141378 : f32
    %111 = vector.broadcast %cst_71 : f32 to vector<8x32xf32>
    %112 = arith.addf %111, %110 : vector<8x32xf32>
    %113 = arith.mulf %105, %112 : vector<8x32xf32>
    %cst_72 = arith.constant -0.284496725 : f32
    %114 = vector.broadcast %cst_72 : f32 to vector<8x32xf32>
    %115 = arith.addf %114, %113 : vector<8x32xf32>
    %116 = arith.mulf %105, %115 : vector<8x32xf32>
    %cst_73 = arith.constant 0.254829586 : f32
    %117 = vector.broadcast %cst_73 : f32 to vector<8x32xf32>
    %118 = arith.addf %117, %116 : vector<8x32xf32>
    %119 = arith.mulf %105, %118 : vector<8x32xf32>
    %cst_74 = arith.constant 0.000000e+00 : f32
    %120 = vector.broadcast %cst_74 : f32 to vector<8x32xf32>
    %121 = arith.subf %120, %99 : vector<8x32xf32>
    %122 = arith.mulf %121, %99 : vector<8x32xf32>
    %123 = math.exp %122 : vector<8x32xf32>
    %124 = arith.mulf %119, %123 : vector<8x32xf32>
    %cst_75 = arith.constant 1.000000e+00 : f32
    %125 = vector.broadcast %cst_75 : f32 to vector<8x32xf32>
    %126 = arith.subf %125, %124 : vector<8x32xf32>
    %127 = arith.mulf %98, %126 : vector<8x32xf32>
    %cst_76 = arith.constant 1.000000e+00 : f32
    %128 = vector.broadcast %cst_76 : f32 to vector<8x32xf32>
    %129 = arith.addf %128, %127 : vector<8x32xf32>
    %130 = arith.mulf %91, %129 : vector<8x32xf32>
    %c1 = arith.constant 1 : index
    %c0_77 = arith.constant 0 : index
    %c0_78 = arith.constant 0 : index
    %131 = vector.load %arg4[%c1, %c0_77, %c0_78] : memref<8x32x32xf32, #tpu.memory_space<vmem>>, vector<1x32x32xf32>
    %132 = vector.shape_cast %131 : vector<1x32x32xf32> to vector<32x32xf32>
    %cst_79 = arith.constant dense<0.000000e+00> : vector<8x32xf32>
    %133 = tpu.matmul %130, %132, %cst_79 {dimension_numbers = #tpu.dot_dimension_numbers<[1], [0], [0], [1], [0, 0, 1, 1], [], []>} : vector<8x32xf32>, vector<32x32xf32>, vector<8x32xf32> -> vector<8x32xf32>
    %c1_80 = arith.constant 1 : index
    %c0_81 = arith.constant 0 : index
    %c0_82 = arith.constant 0 : index
    %134 = vector.load %arg5[%c1_80, %c0_81, %c0_82] : memref<8x1x32xf32, #tpu.memory_space<vmem>>, vector<1x1x32xf32>
    %135 = vector.shape_cast %134 : vector<1x1x32xf32> to vector<1x32xf32>
    %136 = vector.broadcast %135 : vector<1x32xf32> to vector<8x32xf32>
    %137 = arith.addf %133, %136 : vector<8x32xf32>
    %c1_83 = arith.constant 1 : index
    %c0_84 = arith.constant 0 : index
    %c0_85 = arith.constant 0 : index
    %138 = vector.load %arg6[%c1_83, %c0_84, %c0_85] : memref<8x32x32xf32, #tpu.memory_space<vmem>>, vector<1x32x32xf32>
    %139 = vector.shape_cast %138 : vector<1x32x32xf32> to vector<32x32xf32>
    %cst_86 = arith.constant dense<0.000000e+00> : vector<8x32xf32>
    %140 = tpu.matmul %137, %139, %cst_86 {dimension_numbers = #tpu.dot_dimension_numbers<[1], [0], [0], [1], [0, 0, 1, 1], [], []>} : vector<8x32xf32>, vector<32x32xf32>, vector<8x32xf32> -> vector<8x32xf32>
    %c1_87 = arith.constant 1 : index
    %c0_88 = arith.constant 0 : index
    %c0_89 = arith.constant 0 : index
    %141 = vector.load %arg7[%c1_87, %c0_88, %c0_89] : memref<8x1x32xf32, #tpu.memory_space<vmem>>, vector<1x1x32xf32>
    %142 = vector.shape_cast %141 : vector<1x1x32xf32> to vector<1x32xf32>
    %143 = vector.broadcast %142 : vector<1x32xf32> to vector<8x32xf32>
    %144 = arith.addf %140, %143 : vector<8x32xf32>
    %145 = math.tanh %144 : vector<8x32xf32>
    %c1_90 = arith.constant 1 : index
    %c0_91 = arith.constant 0 : index
    %c0_92 = arith.constant 0 : index
    %146 = vector.load %arg8[%c1_90, %c0_91, %c0_92] : memref<8x32x96xf32, #tpu.memory_space<vmem>>, vector<1x32x96xf32>
    %147 = vector.shape_cast %146 : vector<1x32x96xf32> to vector<32x96xf32>
    %cst_93 = arith.constant dense<0.000000e+00> : vector<8x96xf32>
    %148 = tpu.matmul %145, %147, %cst_93 {dimension_numbers = #tpu.dot_dimension_numbers<[1], [0], [0], [1], [0, 0, 1, 1], [], []>} : vector<8x32xf32>, vector<32x96xf32>, vector<8x96xf32> -> vector<8x96xf32>
    %c1_94 = arith.constant 1 : index
    %c0_95 = arith.constant 0 : index
    %c0_96 = arith.constant 0 : index
    %149 = vector.load %arg9[%c1_94, %c0_95, %c0_96] : memref<8x1x96xf32, #tpu.memory_space<vmem>>, vector<1x1x96xf32>
    %150 = vector.shape_cast %149 : vector<1x1x96xf32> to vector<1x96xf32>
    %151 = vector.broadcast %150 : vector<1x96xf32> to vector<8x96xf32>
    %152 = arith.addf %148, %151 : vector<8x96xf32>
    %153 = vector.extract_strided_slice %152 {offsets = [0, 0], sizes = [8, 32], strides = [1, 1]} : vector<8x96xf32> to vector<8x32xf32>
    %154 = vector.extract_strided_slice %152 {offsets = [0, 32], sizes = [8, 32], strides = [1, 1]} : vector<8x96xf32> to vector<8x32xf32>
    %155 = vector.extract_strided_slice %152 {offsets = [0, 64], sizes = [8, 32], strides = [1, 1]} : vector<8x96xf32> to vector<8x32xf32>
    %cst_97 = arith.constant dense<0.000000e+00> : vector<8x8xf32>
    %156 = tpu.matmul %153, %154, %cst_97 {dimension_numbers = #tpu.dot_dimension_numbers<[1], [1], [0], [0], [0, 0, 1, 0], [], []>} : vector<8x32xf32>, vector<8x32xf32>, vector<8x8xf32> -> vector<8x8xf32>
    %cst_98 = arith.constant 0.176776692 : f32
    %157 = vector.broadcast %cst_98 : f32 to vector<8x8xf32>
    %158 = arith.mulf %156, %157 : vector<8x8xf32>
    %cst_99 = arith.constant dense<0xFF800000> : vector<8xf32>
    %159 = vector.multi_reduction <maximumf>, %158, %cst_99 [1] : vector<8x8xf32> to vector<8xf32>
    %160 = vector.shape_cast %159 : vector<8xf32> to vector<8x1xf32>
    %161 = vector.broadcast %160 : vector<8x1xf32> to vector<8x8xf32>
    %162 = arith.subf %158, %161 : vector<8x8xf32>
    %163 = math.exp %162 : vector<8x8xf32>
    %cst_100 = arith.constant dense<0.000000e+00> : vector<8xf32>
    %164 = vector.multi_reduction <add>, %163, %cst_100 [1] : vector<8x8xf32> to vector<8xf32>
    %165 = vector.shape_cast %164 : vector<8xf32> to vector<8x1xf32>
    %166 = tpu.reciprocal %165 {approx = true} : vector<8x1xf32> -> vector<8x1xf32>
    %167 = vector.broadcast %166 : vector<8x1xf32> to vector<8x8xf32>
    %168 = arith.mulf %163, %167 : vector<8x8xf32>
    %cst_101 = arith.constant dense<0.000000e+00> : vector<8x32xf32>
    %169 = tpu.matmul %168, %155, %cst_101 {dimension_numbers = #tpu.dot_dimension_numbers<[1], [0], [0], [1], [0, 0, 1, 1], [], []>} : vector<8x8xf32>, vector<8x32xf32>, vector<8x32xf32> -> vector<8x32xf32>
    %c1_102 = arith.constant 1 : index
    %c0_103 = arith.constant 0 : index
    %c0_104 = arith.constant 0 : index
    %170 = vector.load %arg10[%c1_102, %c0_103, %c0_104] : memref<8x32x32xf32, #tpu.memory_space<vmem>>, vector<1x32x32xf32>
    %171 = vector.shape_cast %170 : vector<1x32x32xf32> to vector<32x32xf32>
    %cst_105 = arith.constant dense<0.000000e+00> : vector<8x32xf32>
    %172 = tpu.matmul %169, %171, %cst_105 {dimension_numbers = #tpu.dot_dimension_numbers<[1], [0], [0], [1], [0, 0, 1, 1], [], []>} : vector<8x32xf32>, vector<32x32xf32>, vector<8x32xf32> -> vector<8x32xf32>
    %c1_106 = arith.constant 1 : index
    %c0_107 = arith.constant 0 : index
    %c0_108 = arith.constant 0 : index
    %173 = vector.load %arg11[%c1_106, %c0_107, %c0_108] : memref<8x1x32xf32, #tpu.memory_space<vmem>>, vector<1x1x32xf32>
    %174 = vector.shape_cast %173 : vector<1x1x32xf32> to vector<1x32xf32>
    %175 = vector.broadcast %174 : vector<1x32xf32> to vector<8x32xf32>
    %176 = arith.addf %172, %175 : vector<8x32xf32>
    %c1_109 = arith.constant 1 : index
    %c0_110 = arith.constant 0 : index
    %c0_111 = arith.constant 0 : index
    %177 = vector.load %arg12[%c1_109, %c0_110, %c0_111] : memref<8x32x32xf32, #tpu.memory_space<vmem>>, vector<1x32x32xf32>
    %178 = vector.shape_cast %177 : vector<1x32x32xf32> to vector<32x32xf32>
    %cst_112 = arith.constant dense<0.000000e+00> : vector<8x32xf32>
    %179 = tpu.matmul %137, %178, %cst_112 {dimension_numbers = #tpu.dot_dimension_numbers<[1], [0], [0], [1], [0, 0, 1, 1], [], []>} : vector<8x32xf32>, vector<32x32xf32>, vector<8x32xf32> -> vector<8x32xf32>
    %c1_113 = arith.constant 1 : index
    %c0_114 = arith.constant 0 : index
    %c0_115 = arith.constant 0 : index
    %180 = vector.load %arg13[%c1_113, %c0_114, %c0_115] : memref<8x32x32xf32, #tpu.memory_space<vmem>>, vector<1x32x32xf32>
    %181 = vector.shape_cast %180 : vector<1x32x32xf32> to vector<32x32xf32>
    %cst_116 = arith.constant dense<0.000000e+00> : vector<8x32xf32>
    %182 = tpu.matmul %176, %181, %cst_116 {dimension_numbers = #tpu.dot_dimension_numbers<[1], [0], [0], [1], [0, 0, 1, 1], [], []>} : vector<8x32xf32>, vector<32x32xf32>, vector<8x32xf32> -> vector<8x32xf32>
    %183 = arith.addf %179, %182 : vector<8x32xf32>
    %c1_117 = arith.constant 1 : index
    %c0_118 = arith.constant 0 : index
    %c0_119 = arith.constant 0 : index
    %184 = vector.load %arg14[%c1_117, %c0_118, %c0_119] : memref<8x1x32xf32, #tpu.memory_space<vmem>>, vector<1x1x32xf32>
    %185 = vector.shape_cast %184 : vector<1x1x32xf32> to vector<1x32xf32>
    %186 = vector.broadcast %185 : vector<1x32xf32> to vector<8x32xf32>
    %187 = arith.addf %183, %186 : vector<8x32xf32>
    %cst_120 = arith.constant dense<0.000000e+00> : vector<8xf32>
    %188 = vector.multi_reduction <add>, %187, %cst_120 [1] : vector<8x32xf32> to vector<8xf32>
    %189 = vector.shape_cast %188 : vector<8xf32> to vector<8x1xf32>
    %cst_121 = arith.constant 3.200000e+01 : f32
    %190 = vector.broadcast %cst_121 : f32 to vector<8x1xf32>
    %191 = arith.divf %189, %190 : vector<8x1xf32>
    %192 = vector.broadcast %191 : vector<8x1xf32> to vector<8x32xf32>
    %193 = arith.subf %187, %192 : vector<8x32xf32>
    %194 = arith.mulf %193, %193 : vector<8x32xf32>
    %cst_122 = arith.constant dense<0.000000e+00> : vector<8xf32>
    %195 = vector.multi_reduction <add>, %194, %cst_122 [1] : vector<8x32xf32> to vector<8xf32>
    %196 = vector.shape_cast %195 : vector<8xf32> to vector<8x1xf32>
    %cst_123 = arith.constant 3.200000e+01 : f32
    %197 = vector.broadcast %cst_123 : f32 to vector<8x1xf32>
    %198 = arith.divf %196, %197 : vector<8x1xf32>
    %199 = vector.broadcast %191 : vector<8x1xf32> to vector<8x32xf32>
    %200 = arith.subf %187, %199 : vector<8x32xf32>
    %cst_124 = arith.constant 9.99999974E-6 : f32
    %201 = vector.broadcast %cst_124 : f32 to vector<8x1xf32>
    %202 = arith.addf %198, %201 : vector<8x1xf32>
    %203 = math.rsqrt %202 : vector<8x1xf32>
    %204 = vector.broadcast %203 : vector<8x1xf32> to vector<8x32xf32>
    %205 = arith.mulf %200, %204 : vector<8x32xf32>
    %c1_125 = arith.constant 1 : index
    %c0_126 = arith.constant 0 : index
    %c0_127 = arith.constant 0 : index
    %206 = vector.load %arg15[%c1_125, %c0_126, %c0_127] : memref<8x1x32xf32, #tpu.memory_space<vmem>>, vector<1x1x32xf32>
    %207 = vector.shape_cast %206 : vector<1x1x32xf32> to vector<1x32xf32>
    %208 = vector.broadcast %207 : vector<1x32xf32> to vector<8x32xf32>
    %209 = arith.mulf %205, %208 : vector<8x32xf32>
    %c1_128 = arith.constant 1 : index
    %c0_129 = arith.constant 0 : index
    %c0_130 = arith.constant 0 : index
    %210 = vector.load %arg16[%c1_128, %c0_129, %c0_130] : memref<8x1x32xf32, #tpu.memory_space<vmem>>, vector<1x1x32xf32>
    %211 = vector.shape_cast %210 : vector<1x1x32xf32> to vector<1x32xf32>
    %212 = vector.broadcast %211 : vector<1x32xf32> to vector<8x32xf32>
    %213 = arith.addf %209, %212 : vector<8x32xf32>
    %cst_131 = arith.constant 5.000000e-01 : f32
    %214 = vector.broadcast %cst_131 : f32 to vector<8x32xf32>
    %215 = arith.mulf %214, %213 : vector<8x32xf32>
    %cst_132 = arith.constant 0.707106769 : f32
    %216 = vector.broadcast %cst_132 : f32 to vector<8x32xf32>
    %217 = arith.mulf %213, %216 : vector<8x32xf32>
    %cst_133 = arith.constant 0.000000e+00 : f32
    %218 = vector.broadcast %cst_133 : f32 to vector<8x32xf32>
    %219 = arith.cmpf oge, %217, %218 : vector<8x32xf32>
    %cst_134 = arith.constant 1.000000e+00 : f32
    %cst_135 = arith.constant -1.000000e+00 : f32
    %220 = vector.broadcast %cst_134 : f32 to vector<8x32xf32>
    %221 = vector.broadcast %cst_135 : f32 to vector<8x32xf32>
    %222 = arith.select %219, %220, %221 : vector<8x32xi1>, vector<8x32xf32>
    %223 = math.absf %217 : vector<8x32xf32>
    %cst_136 = arith.constant 0.327591091 : f32
    %224 = vector.broadcast %cst_136 : f32 to vector<8x32xf32>
    %225 = arith.mulf %224, %223 : vector<8x32xf32>
    %cst_137 = arith.constant 1.000000e+00 : f32
    %226 = vector.broadcast %cst_137 : f32 to vector<8x32xf32>
    %227 = arith.addf %226, %225 : vector<8x32xf32>
    %cst_138 = arith.constant 1.000000e+00 : f32
    %228 = vector.broadcast %cst_138 : f32 to vector<8x32xf32>
    %229 = arith.divf %228, %227 : vector<8x32xf32>
    %cst_139 = arith.constant 1.06140542 : f32
    %230 = vector.broadcast %cst_139 : f32 to vector<8x32xf32>
    %231 = arith.mulf %229, %230 : vector<8x32xf32>
    %cst_140 = arith.constant -1.45315206 : f32
    %232 = vector.broadcast %cst_140 : f32 to vector<8x32xf32>
    %233 = arith.addf %232, %231 : vector<8x32xf32>
    %234 = arith.mulf %229, %233 : vector<8x32xf32>
    %cst_141 = arith.constant 1.42141378 : f32
    %235 = vector.broadcast %cst_141 : f32 to vector<8x32xf32>
    %236 = arith.addf %235, %234 : vector<8x32xf32>
    %237 = arith.mulf %229, %236 : vector<8x32xf32>
    %cst_142 = arith.constant -0.284496725 : f32
    %238 = vector.broadcast %cst_142 : f32 to vector<8x32xf32>
    %239 = arith.addf %238, %237 : vector<8x32xf32>
    %240 = arith.mulf %229, %239 : vector<8x32xf32>
    %cst_143 = arith.constant 0.254829586 : f32
    %241 = vector.broadcast %cst_143 : f32 to vector<8x32xf32>
    %242 = arith.addf %241, %240 : vector<8x32xf32>
    %243 = arith.mulf %229, %242 : vector<8x32xf32>
    %cst_144 = arith.constant 0.000000e+00 : f32
    %244 = vector.broadcast %cst_144 : f32 to vector<8x32xf32>
    %245 = arith.subf %244, %223 : vector<8x32xf32>
    %246 = arith.mulf %245, %223 : vector<8x32xf32>
    %247 = math.exp %246 : vector<8x32xf32>
    %248 = arith.mulf %243, %247 : vector<8x32xf32>
    %cst_145 = arith.constant 1.000000e+00 : f32
    %249 = vector.broadcast %cst_145 : f32 to vector<8x32xf32>
    %250 = arith.subf %249, %248 : vector<8x32xf32>
    %251 = arith.mulf %222, %250 : vector<8x32xf32>
    %cst_146 = arith.constant 1.000000e+00 : f32
    %252 = vector.broadcast %cst_146 : f32 to vector<8x32xf32>
    %253 = arith.addf %252, %251 : vector<8x32xf32>
    %254 = arith.mulf %215, %253 : vector<8x32xf32>
    %c2 = arith.constant 2 : index
    %c0_147 = arith.constant 0 : index
    %c0_148 = arith.constant 0 : index
    %255 = vector.load %arg4[%c2, %c0_147, %c0_148] : memref<8x32x32xf32, #tpu.memory_space<vmem>>, vector<1x32x32xf32>
    %256 = vector.shape_cast %255 : vector<1x32x32xf32> to vector<32x32xf32>
    %cst_149 = arith.constant dense<0.000000e+00> : vector<8x32xf32>
    %257 = tpu.matmul %254, %256, %cst_149 {dimension_numbers = #tpu.dot_dimension_numbers<[1], [0], [0], [1], [0, 0, 1, 1], [], []>} : vector<8x32xf32>, vector<32x32xf32>, vector<8x32xf32> -> vector<8x32xf32>
    %c2_150 = arith.constant 2 : index
    %c0_151 = arith.constant 0 : index
    %c0_152 = arith.constant 0 : index
    %258 = vector.load %arg5[%c2_150, %c0_151, %c0_152] : memref<8x1x32xf32, #tpu.memory_space<vmem>>, vector<1x1x32xf32>
    %259 = vector.shape_cast %258 : vector<1x1x32xf32> to vector<1x32xf32>
    %260 = vector.broadcast %259 : vector<1x32xf32> to vector<8x32xf32>
    %261 = arith.addf %257, %260 : vector<8x32xf32>
    %c2_153 = arith.constant 2 : index
    %c0_154 = arith.constant 0 : index
    %c0_155 = arith.constant 0 : index
    %262 = vector.load %arg6[%c2_153, %c0_154, %c0_155] : memref<8x32x32xf32, #tpu.memory_space<vmem>>, vector<1x32x32xf32>
    %263 = vector.shape_cast %262 : vector<1x32x32xf32> to vector<32x32xf32>
    %cst_156 = arith.constant dense<0.000000e+00> : vector<8x32xf32>
    %264 = tpu.matmul %261, %263, %cst_156 {dimension_numbers = #tpu.dot_dimension_numbers<[1], [0], [0], [1], [0, 0, 1, 1], [], []>} : vector<8x32xf32>, vector<32x32xf32>, vector<8x32xf32> -> vector<8x32xf32>
    %c2_157 = arith.constant 2 : index
    %c0_158 = arith.constant 0 : index
    %c0_159 = arith.constant 0 : index
    %265 = vector.load %arg7[%c2_157, %c0_158, %c0_159] : memref<8x1x32xf32, #tpu.memory_space<vmem>>, vector<1x1x32xf32>
    %266 = vector.shape_cast %265 : vector<1x1x32xf32> to vector<1x32xf32>
    %267 = vector.broadcast %266 : vector<1x32xf32> to vector<8x32xf32>
    %268 = arith.addf %264, %267 : vector<8x32xf32>
    %269 = math.tanh %268 : vector<8x32xf32>
    %c2_160 = arith.constant 2 : index
    %c0_161 = arith.constant 0 : index
    %c0_162 = arith.constant 0 : index
    %270 = vector.load %arg8[%c2_160, %c0_161, %c0_162] : memref<8x32x96xf32, #tpu.memory_space<vmem>>, vector<1x32x96xf32>
    %271 = vector.shape_cast %270 : vector<1x32x96xf32> to vector<32x96xf32>
    %cst_163 = arith.constant dense<0.000000e+00> : vector<8x96xf32>
    %272 = tpu.matmul %269, %271, %cst_163 {dimension_numbers = #tpu.dot_dimension_numbers<[1], [0], [0], [1], [0, 0, 1, 1], [], []>} : vector<8x32xf32>, vector<32x96xf32>, vector<8x96xf32> -> vector<8x96xf32>
    %c2_164 = arith.constant 2 : index
    %c0_165 = arith.constant 0 : index
    %c0_166 = arith.constant 0 : index
    %273 = vector.load %arg9[%c2_164, %c0_165, %c0_166] : memref<8x1x96xf32, #tpu.memory_space<vmem>>, vector<1x1x96xf32>
    %274 = vector.shape_cast %273 : vector<1x1x96xf32> to vector<1x96xf32>
    %275 = vector.broadcast %274 : vector<1x96xf32> to vector<8x96xf32>
    %276 = arith.addf %272, %275 : vector<8x96xf32>
    %277 = vector.extract_strided_slice %276 {offsets = [0, 0], sizes = [8, 32], strides = [1, 1]} : vector<8x96xf32> to vector<8x32xf32>
    %278 = vector.extract_strided_slice %276 {offsets = [0, 32], sizes = [8, 32], strides = [1, 1]} : vector<8x96xf32> to vector<8x32xf32>
    %279 = vector.extract_strided_slice %276 {offsets = [0, 64], sizes = [8, 32], strides = [1, 1]} : vector<8x96xf32> to vector<8x32xf32>
    %cst_167 = arith.constant dense<0.000000e+00> : vector<8x8xf32>
    %280 = tpu.matmul %277, %278, %cst_167 {dimension_numbers = #tpu.dot_dimension_numbers<[1], [1], [0], [0], [0, 0, 1, 0], [], []>} : vector<8x32xf32>, vector<8x32xf32>, vector<8x8xf32> -> vector<8x8xf32>
    %cst_168 = arith.constant 0.176776692 : f32
    %281 = vector.broadcast %cst_168 : f32 to vector<8x8xf32>
    %282 = arith.mulf %280, %281 : vector<8x8xf32>
    %cst_169 = arith.constant dense<0xFF800000> : vector<8xf32>
    %283 = vector.multi_reduction <maximumf>, %282, %cst_169 [1] : vector<8x8xf32> to vector<8xf32>
    %284 = vector.shape_cast %283 : vector<8xf32> to vector<8x1xf32>
    %285 = vector.broadcast %284 : vector<8x1xf32> to vector<8x8xf32>
    %286 = arith.subf %282, %285 : vector<8x8xf32>
    %287 = math.exp %286 : vector<8x8xf32>
    %cst_170 = arith.constant dense<0.000000e+00> : vector<8xf32>
    %288 = vector.multi_reduction <add>, %287, %cst_170 [1] : vector<8x8xf32> to vector<8xf32>
    %289 = vector.shape_cast %288 : vector<8xf32> to vector<8x1xf32>
    %290 = tpu.reciprocal %289 {approx = true} : vector<8x1xf32> -> vector<8x1xf32>
    %291 = vector.broadcast %290 : vector<8x1xf32> to vector<8x8xf32>
    %292 = arith.mulf %287, %291 : vector<8x8xf32>
    %cst_171 = arith.constant dense<0.000000e+00> : vector<8x32xf32>
    %293 = tpu.matmul %292, %279, %cst_171 {dimension_numbers = #tpu.dot_dimension_numbers<[1], [0], [0], [1], [0, 0, 1, 1], [], []>} : vector<8x8xf32>, vector<8x32xf32>, vector<8x32xf32> -> vector<8x32xf32>
    %c2_172 = arith.constant 2 : index
    %c0_173 = arith.constant 0 : index
    %c0_174 = arith.constant 0 : index
    %294 = vector.load %arg10[%c2_172, %c0_173, %c0_174] : memref<8x32x32xf32, #tpu.memory_space<vmem>>, vector<1x32x32xf32>
    %295 = vector.shape_cast %294 : vector<1x32x32xf32> to vector<32x32xf32>
    %cst_175 = arith.constant dense<0.000000e+00> : vector<8x32xf32>
    %296 = tpu.matmul %293, %295, %cst_175 {dimension_numbers = #tpu.dot_dimension_numbers<[1], [0], [0], [1], [0, 0, 1, 1], [], []>} : vector<8x32xf32>, vector<32x32xf32>, vector<8x32xf32> -> vector<8x32xf32>
    %c2_176 = arith.constant 2 : index
    %c0_177 = arith.constant 0 : index
    %c0_178 = arith.constant 0 : index
    %297 = vector.load %arg11[%c2_176, %c0_177, %c0_178] : memref<8x1x32xf32, #tpu.memory_space<vmem>>, vector<1x1x32xf32>
    %298 = vector.shape_cast %297 : vector<1x1x32xf32> to vector<1x32xf32>
    %299 = vector.broadcast %298 : vector<1x32xf32> to vector<8x32xf32>
    %300 = arith.addf %296, %299 : vector<8x32xf32>
    %c2_179 = arith.constant 2 : index
    %c0_180 = arith.constant 0 : index
    %c0_181 = arith.constant 0 : index
    %301 = vector.load %arg12[%c2_179, %c0_180, %c0_181] : memref<8x32x32xf32, #tpu.memory_space<vmem>>, vector<1x32x32xf32>
    %302 = vector.shape_cast %301 : vector<1x32x32xf32> to vector<32x32xf32>
    %cst_182 = arith.constant dense<0.000000e+00> : vector<8x32xf32>
    %303 = tpu.matmul %261, %302, %cst_182 {dimension_numbers = #tpu.dot_dimension_numbers<[1], [0], [0], [1], [0, 0, 1, 1], [], []>} : vector<8x32xf32>, vector<32x32xf32>, vector<8x32xf32> -> vector<8x32xf32>
    %c2_183 = arith.constant 2 : index
    %c0_184 = arith.constant 0 : index
    %c0_185 = arith.constant 0 : index
    %304 = vector.load %arg13[%c2_183, %c0_184, %c0_185] : memref<8x32x32xf32, #tpu.memory_space<vmem>>, vector<1x32x32xf32>
    %305 = vector.shape_cast %304 : vector<1x32x32xf32> to vector<32x32xf32>
    %cst_186 = arith.constant dense<0.000000e+00> : vector<8x32xf32>
    %306 = tpu.matmul %300, %305, %cst_186 {dimension_numbers = #tpu.dot_dimension_numbers<[1], [0], [0], [1], [0, 0, 1, 1], [], []>} : vector<8x32xf32>, vector<32x32xf32>, vector<8x32xf32> -> vector<8x32xf32>
    %307 = arith.addf %303, %306 : vector<8x32xf32>
    %c2_187 = arith.constant 2 : index
    %c0_188 = arith.constant 0 : index
    %c0_189 = arith.constant 0 : index
    %308 = vector.load %arg14[%c2_187, %c0_188, %c0_189] : memref<8x1x32xf32, #tpu.memory_space<vmem>>, vector<1x1x32xf32>
    %309 = vector.shape_cast %308 : vector<1x1x32xf32> to vector<1x32xf32>
    %310 = vector.broadcast %309 : vector<1x32xf32> to vector<8x32xf32>
    %311 = arith.addf %307, %310 : vector<8x32xf32>
    %cst_190 = arith.constant dense<0.000000e+00> : vector<8xf32>
    %312 = vector.multi_reduction <add>, %311, %cst_190 [1] : vector<8x32xf32> to vector<8xf32>
    %313 = vector.shape_cast %312 : vector<8xf32> to vector<8x1xf32>
    %cst_191 = arith.constant 3.200000e+01 : f32
    %314 = vector.broadcast %cst_191 : f32 to vector<8x1xf32>
    %315 = arith.divf %313, %314 : vector<8x1xf32>
    %316 = vector.broadcast %315 : vector<8x1xf32> to vector<8x32xf32>
    %317 = arith.subf %311, %316 : vector<8x32xf32>
    %318 = arith.mulf %317, %317 : vector<8x32xf32>
    %cst_192 = arith.constant dense<0.000000e+00> : vector<8xf32>
    %319 = vector.multi_reduction <add>, %318, %cst_192 [1] : vector<8x32xf32> to vector<8xf32>
    %320 = vector.shape_cast %319 : vector<8xf32> to vector<8x1xf32>
    %cst_193 = arith.constant 3.200000e+01 : f32
    %321 = vector.broadcast %cst_193 : f32 to vector<8x1xf32>
    %322 = arith.divf %320, %321 : vector<8x1xf32>
    %323 = vector.broadcast %315 : vector<8x1xf32> to vector<8x32xf32>
    %324 = arith.subf %311, %323 : vector<8x32xf32>
    %cst_194 = arith.constant 9.99999974E-6 : f32
    %325 = vector.broadcast %cst_194 : f32 to vector<8x1xf32>
    %326 = arith.addf %322, %325 : vector<8x1xf32>
    %327 = math.rsqrt %326 : vector<8x1xf32>
    %328 = vector.broadcast %327 : vector<8x1xf32> to vector<8x32xf32>
    %329 = arith.mulf %324, %328 : vector<8x32xf32>
    %c2_195 = arith.constant 2 : index
    %c0_196 = arith.constant 0 : index
    %c0_197 = arith.constant 0 : index
    %330 = vector.load %arg15[%c2_195, %c0_196, %c0_197] : memref<8x1x32xf32, #tpu.memory_space<vmem>>, vector<1x1x32xf32>
    %331 = vector.shape_cast %330 : vector<1x1x32xf32> to vector<1x32xf32>
    %332 = vector.broadcast %331 : vector<1x32xf32> to vector<8x32xf32>
    %333 = arith.mulf %329, %332 : vector<8x32xf32>
    %c2_198 = arith.constant 2 : index
    %c0_199 = arith.constant 0 : index
    %c0_200 = arith.constant 0 : index
    %334 = vector.load %arg16[%c2_198, %c0_199, %c0_200] : memref<8x1x32xf32, #tpu.memory_space<vmem>>, vector<1x1x32xf32>
    %335 = vector.shape_cast %334 : vector<1x1x32xf32> to vector<1x32xf32>
    %336 = vector.broadcast %335 : vector<1x32xf32> to vector<8x32xf32>
    %337 = arith.addf %333, %336 : vector<8x32xf32>
    %cst_201 = arith.constant 5.000000e-01 : f32
    %338 = vector.broadcast %cst_201 : f32 to vector<8x32xf32>
    %339 = arith.mulf %338, %337 : vector<8x32xf32>
    %cst_202 = arith.constant 0.707106769 : f32
    %340 = vector.broadcast %cst_202 : f32 to vector<8x32xf32>
    %341 = arith.mulf %337, %340 : vector<8x32xf32>
    %cst_203 = arith.constant 0.000000e+00 : f32
    %342 = vector.broadcast %cst_203 : f32 to vector<8x32xf32>
    %343 = arith.cmpf oge, %341, %342 : vector<8x32xf32>
    %cst_204 = arith.constant 1.000000e+00 : f32
    %cst_205 = arith.constant -1.000000e+00 : f32
    %344 = vector.broadcast %cst_204 : f32 to vector<8x32xf32>
    %345 = vector.broadcast %cst_205 : f32 to vector<8x32xf32>
    %346 = arith.select %343, %344, %345 : vector<8x32xi1>, vector<8x32xf32>
    %347 = math.absf %341 : vector<8x32xf32>
    %cst_206 = arith.constant 0.327591091 : f32
    %348 = vector.broadcast %cst_206 : f32 to vector<8x32xf32>
    %349 = arith.mulf %348, %347 : vector<8x32xf32>
    %cst_207 = arith.constant 1.000000e+00 : f32
    %350 = vector.broadcast %cst_207 : f32 to vector<8x32xf32>
    %351 = arith.addf %350, %349 : vector<8x32xf32>
    %cst_208 = arith.constant 1.000000e+00 : f32
    %352 = vector.broadcast %cst_208 : f32 to vector<8x32xf32>
    %353 = arith.divf %352, %351 : vector<8x32xf32>
    %cst_209 = arith.constant 1.06140542 : f32
    %354 = vector.broadcast %cst_209 : f32 to vector<8x32xf32>
    %355 = arith.mulf %353, %354 : vector<8x32xf32>
    %cst_210 = arith.constant -1.45315206 : f32
    %356 = vector.broadcast %cst_210 : f32 to vector<8x32xf32>
    %357 = arith.addf %356, %355 : vector<8x32xf32>
    %358 = arith.mulf %353, %357 : vector<8x32xf32>
    %cst_211 = arith.constant 1.42141378 : f32
    %359 = vector.broadcast %cst_211 : f32 to vector<8x32xf32>
    %360 = arith.addf %359, %358 : vector<8x32xf32>
    %361 = arith.mulf %353, %360 : vector<8x32xf32>
    %cst_212 = arith.constant -0.284496725 : f32
    %362 = vector.broadcast %cst_212 : f32 to vector<8x32xf32>
    %363 = arith.addf %362, %361 : vector<8x32xf32>
    %364 = arith.mulf %353, %363 : vector<8x32xf32>
    %cst_213 = arith.constant 0.254829586 : f32
    %365 = vector.broadcast %cst_213 : f32 to vector<8x32xf32>
    %366 = arith.addf %365, %364 : vector<8x32xf32>
    %367 = arith.mulf %353, %366 : vector<8x32xf32>
    %cst_214 = arith.constant 0.000000e+00 : f32
    %368 = vector.broadcast %cst_214 : f32 to vector<8x32xf32>
    %369 = arith.subf %368, %347 : vector<8x32xf32>
    %370 = arith.mulf %369, %347 : vector<8x32xf32>
    %371 = math.exp %370 : vector<8x32xf32>
    %372 = arith.mulf %367, %371 : vector<8x32xf32>
    %cst_215 = arith.constant 1.000000e+00 : f32
    %373 = vector.broadcast %cst_215 : f32 to vector<8x32xf32>
    %374 = arith.subf %373, %372 : vector<8x32xf32>
    %375 = arith.mulf %346, %374 : vector<8x32xf32>
    %cst_216 = arith.constant 1.000000e+00 : f32
    %376 = vector.broadcast %cst_216 : f32 to vector<8x32xf32>
    %377 = arith.addf %376, %375 : vector<8x32xf32>
    %378 = arith.mulf %339, %377 : vector<8x32xf32>
    %c3 = arith.constant 3 : index
    %c0_217 = arith.constant 0 : index
    %c0_218 = arith.constant 0 : index
    %379 = vector.load %arg4[%c3, %c0_217, %c0_218] : memref<8x32x32xf32, #tpu.memory_space<vmem>>, vector<1x32x32xf32>
    %380 = vector.shape_cast %379 : vector<1x32x32xf32> to vector<32x32xf32>
    %cst_219 = arith.constant dense<0.000000e+00> : vector<8x32xf32>
    %381 = tpu.matmul %378, %380, %cst_219 {dimension_numbers = #tpu.dot_dimension_numbers<[1], [0], [0], [1], [0, 0, 1, 1], [], []>} : vector<8x32xf32>, vector<32x32xf32>, vector<8x32xf32> -> vector<8x32xf32>
    %c3_220 = arith.constant 3 : index
    %c0_221 = arith.constant 0 : index
    %c0_222 = arith.constant 0 : index
    %382 = vector.load %arg5[%c3_220, %c0_221, %c0_222] : memref<8x1x32xf32, #tpu.memory_space<vmem>>, vector<1x1x32xf32>
    %383 = vector.shape_cast %382 : vector<1x1x32xf32> to vector<1x32xf32>
    %384 = vector.broadcast %383 : vector<1x32xf32> to vector<8x32xf32>
    %385 = arith.addf %381, %384 : vector<8x32xf32>
    %c3_223 = arith.constant 3 : index
    %c0_224 = arith.constant 0 : index
    %c0_225 = arith.constant 0 : index
    %386 = vector.load %arg6[%c3_223, %c0_224, %c0_225] : memref<8x32x32xf32, #tpu.memory_space<vmem>>, vector<1x32x32xf32>
    %387 = vector.shape_cast %386 : vector<1x32x32xf32> to vector<32x32xf32>
    %cst_226 = arith.constant dense<0.000000e+00> : vector<8x32xf32>
    %388 = tpu.matmul %385, %387, %cst_226 {dimension_numbers = #tpu.dot_dimension_numbers<[1], [0], [0], [1], [0, 0, 1, 1], [], []>} : vector<8x32xf32>, vector<32x32xf32>, vector<8x32xf32> -> vector<8x32xf32>
    %c3_227 = arith.constant 3 : index
    %c0_228 = arith.constant 0 : index
    %c0_229 = arith.constant 0 : index
    %389 = vector.load %arg7[%c3_227, %c0_228, %c0_229] : memref<8x1x32xf32, #tpu.memory_space<vmem>>, vector<1x1x32xf32>
    %390 = vector.shape_cast %389 : vector<1x1x32xf32> to vector<1x32xf32>
    %391 = vector.broadcast %390 : vector<1x32xf32> to vector<8x32xf32>
    %392 = arith.addf %388, %391 : vector<8x32xf32>
    %393 = math.tanh %392 : vector<8x32xf32>
    %c3_230 = arith.constant 3 : index
    %c0_231 = arith.constant 0 : index
    %c0_232 = arith.constant 0 : index
    %394 = vector.load %arg8[%c3_230, %c0_231, %c0_232] : memref<8x32x96xf32, #tpu.memory_space<vmem>>, vector<1x32x96xf32>
    %395 = vector.shape_cast %394 : vector<1x32x96xf32> to vector<32x96xf32>
    %cst_233 = arith.constant dense<0.000000e+00> : vector<8x96xf32>
    %396 = tpu.matmul %393, %395, %cst_233 {dimension_numbers = #tpu.dot_dimension_numbers<[1], [0], [0], [1], [0, 0, 1, 1], [], []>} : vector<8x32xf32>, vector<32x96xf32>, vector<8x96xf32> -> vector<8x96xf32>
    %c3_234 = arith.constant 3 : index
    %c0_235 = arith.constant 0 : index
    %c0_236 = arith.constant 0 : index
    %397 = vector.load %arg9[%c3_234, %c0_235, %c0_236] : memref<8x1x96xf32, #tpu.memory_space<vmem>>, vector<1x1x96xf32>
    %398 = vector.shape_cast %397 : vector<1x1x96xf32> to vector<1x96xf32>
    %399 = vector.broadcast %398 : vector<1x96xf32> to vector<8x96xf32>
    %400 = arith.addf %396, %399 : vector<8x96xf32>
    %401 = vector.extract_strided_slice %400 {offsets = [0, 0], sizes = [8, 32], strides = [1, 1]} : vector<8x96xf32> to vector<8x32xf32>
    %402 = vector.extract_strided_slice %400 {offsets = [0, 32], sizes = [8, 32], strides = [1, 1]} : vector<8x96xf32> to vector<8x32xf32>
    %403 = vector.extract_strided_slice %400 {offsets = [0, 64], sizes = [8, 32], strides = [1, 1]} : vector<8x96xf32> to vector<8x32xf32>
    %cst_237 = arith.constant dense<0.000000e+00> : vector<8x8xf32>
    %404 = tpu.matmul %401, %402, %cst_237 {dimension_numbers = #tpu.dot_dimension_numbers<[1], [1], [0], [0], [0, 0, 1, 0], [], []>} : vector<8x32xf32>, vector<8x32xf32>, vector<8x8xf32> -> vector<8x8xf32>
    %cst_238 = arith.constant 0.176776692 : f32
    %405 = vector.broadcast %cst_238 : f32 to vector<8x8xf32>
    %406 = arith.mulf %404, %405 : vector<8x8xf32>
    %cst_239 = arith.constant dense<0xFF800000> : vector<8xf32>
    %407 = vector.multi_reduction <maximumf>, %406, %cst_239 [1] : vector<8x8xf32> to vector<8xf32>
    %408 = vector.shape_cast %407 : vector<8xf32> to vector<8x1xf32>
    %409 = vector.broadcast %408 : vector<8x1xf32> to vector<8x8xf32>
    %410 = arith.subf %406, %409 : vector<8x8xf32>
    %411 = math.exp %410 : vector<8x8xf32>
    %cst_240 = arith.constant dense<0.000000e+00> : vector<8xf32>
    %412 = vector.multi_reduction <add>, %411, %cst_240 [1] : vector<8x8xf32> to vector<8xf32>
    %413 = vector.shape_cast %412 : vector<8xf32> to vector<8x1xf32>
    %414 = tpu.reciprocal %413 {approx = true} : vector<8x1xf32> -> vector<8x1xf32>
    %415 = vector.broadcast %414 : vector<8x1xf32> to vector<8x8xf32>
    %416 = arith.mulf %411, %415 : vector<8x8xf32>
    %cst_241 = arith.constant dense<0.000000e+00> : vector<8x32xf32>
    %417 = tpu.matmul %416, %403, %cst_241 {dimension_numbers = #tpu.dot_dimension_numbers<[1], [0], [0], [1], [0, 0, 1, 1], [], []>} : vector<8x8xf32>, vector<8x32xf32>, vector<8x32xf32> -> vector<8x32xf32>
    %c3_242 = arith.constant 3 : index
    %c0_243 = arith.constant 0 : index
    %c0_244 = arith.constant 0 : index
    %418 = vector.load %arg10[%c3_242, %c0_243, %c0_244] : memref<8x32x32xf32, #tpu.memory_space<vmem>>, vector<1x32x32xf32>
    %419 = vector.shape_cast %418 : vector<1x32x32xf32> to vector<32x32xf32>
    %cst_245 = arith.constant dense<0.000000e+00> : vector<8x32xf32>
    %420 = tpu.matmul %417, %419, %cst_245 {dimension_numbers = #tpu.dot_dimension_numbers<[1], [0], [0], [1], [0, 0, 1, 1], [], []>} : vector<8x32xf32>, vector<32x32xf32>, vector<8x32xf32> -> vector<8x32xf32>
    %c3_246 = arith.constant 3 : index
    %c0_247 = arith.constant 0 : index
    %c0_248 = arith.constant 0 : index
    %421 = vector.load %arg11[%c3_246, %c0_247, %c0_248] : memref<8x1x32xf32, #tpu.memory_space<vmem>>, vector<1x1x32xf32>
    %422 = vector.shape_cast %421 : vector<1x1x32xf32> to vector<1x32xf32>
    %423 = vector.broadcast %422 : vector<1x32xf32> to vector<8x32xf32>
    %424 = arith.addf %420, %423 : vector<8x32xf32>
    %c3_249 = arith.constant 3 : index
    %c0_250 = arith.constant 0 : index
    %c0_251 = arith.constant 0 : index
    %425 = vector.load %arg12[%c3_249, %c0_250, %c0_251] : memref<8x32x32xf32, #tpu.memory_space<vmem>>, vector<1x32x32xf32>
    %426 = vector.shape_cast %425 : vector<1x32x32xf32> to vector<32x32xf32>
    %cst_252 = arith.constant dense<0.000000e+00> : vector<8x32xf32>
    %427 = tpu.matmul %385, %426, %cst_252 {dimension_numbers = #tpu.dot_dimension_numbers<[1], [0], [0], [1], [0, 0, 1, 1], [], []>} : vector<8x32xf32>, vector<32x32xf32>, vector<8x32xf32> -> vector<8x32xf32>
    %c3_253 = arith.constant 3 : index
    %c0_254 = arith.constant 0 : index
    %c0_255 = arith.constant 0 : index
    %428 = vector.load %arg13[%c3_253, %c0_254, %c0_255] : memref<8x32x32xf32, #tpu.memory_space<vmem>>, vector<1x32x32xf32>
    %429 = vector.shape_cast %428 : vector<1x32x32xf32> to vector<32x32xf32>
    %cst_256 = arith.constant dense<0.000000e+00> : vector<8x32xf32>
    %430 = tpu.matmul %424, %429, %cst_256 {dimension_numbers = #tpu.dot_dimension_numbers<[1], [0], [0], [1], [0, 0, 1, 1], [], []>} : vector<8x32xf32>, vector<32x32xf32>, vector<8x32xf32> -> vector<8x32xf32>
    %431 = arith.addf %427, %430 : vector<8x32xf32>
    %c3_257 = arith.constant 3 : index
    %c0_258 = arith.constant 0 : index
    %c0_259 = arith.constant 0 : index
    %432 = vector.load %arg14[%c3_257, %c0_258, %c0_259] : memref<8x1x32xf32, #tpu.memory_space<vmem>>, vector<1x1x32xf32>
    %433 = vector.shape_cast %432 : vector<1x1x32xf32> to vector<1x32xf32>
    %434 = vector.broadcast %433 : vector<1x32xf32> to vector<8x32xf32>
    %435 = arith.addf %431, %434 : vector<8x32xf32>
    %cst_260 = arith.constant dense<0.000000e+00> : vector<8xf32>
    %436 = vector.multi_reduction <add>, %435, %cst_260 [1] : vector<8x32xf32> to vector<8xf32>
    %437 = vector.shape_cast %436 : vector<8xf32> to vector<8x1xf32>
    %cst_261 = arith.constant 3.200000e+01 : f32
    %438 = vector.broadcast %cst_261 : f32 to vector<8x1xf32>
    %439 = arith.divf %437, %438 : vector<8x1xf32>
    %440 = vector.broadcast %439 : vector<8x1xf32> to vector<8x32xf32>
    %441 = arith.subf %435, %440 : vector<8x32xf32>
    %442 = arith.mulf %441, %441 : vector<8x32xf32>
    %cst_262 = arith.constant dense<0.000000e+00> : vector<8xf32>
    %443 = vector.multi_reduction <add>, %442, %cst_262 [1] : vector<8x32xf32> to vector<8xf32>
    %444 = vector.shape_cast %443 : vector<8xf32> to vector<8x1xf32>
    %cst_263 = arith.constant 3.200000e+01 : f32
    %445 = vector.broadcast %cst_263 : f32 to vector<8x1xf32>
    %446 = arith.divf %444, %445 : vector<8x1xf32>
    %447 = vector.broadcast %439 : vector<8x1xf32> to vector<8x32xf32>
    %448 = arith.subf %435, %447 : vector<8x32xf32>
    %cst_264 = arith.constant 9.99999974E-6 : f32
    %449 = vector.broadcast %cst_264 : f32 to vector<8x1xf32>
    %450 = arith.addf %446, %449 : vector<8x1xf32>
    %451 = math.rsqrt %450 : vector<8x1xf32>
    %452 = vector.broadcast %451 : vector<8x1xf32> to vector<8x32xf32>
    %453 = arith.mulf %448, %452 : vector<8x32xf32>
    %c3_265 = arith.constant 3 : index
    %c0_266 = arith.constant 0 : index
    %c0_267 = arith.constant 0 : index
    %454 = vector.load %arg15[%c3_265, %c0_266, %c0_267] : memref<8x1x32xf32, #tpu.memory_space<vmem>>, vector<1x1x32xf32>
    %455 = vector.shape_cast %454 : vector<1x1x32xf32> to vector<1x32xf32>
    %456 = vector.broadcast %455 : vector<1x32xf32> to vector<8x32xf32>
    %457 = arith.mulf %453, %456 : vector<8x32xf32>
    %c3_268 = arith.constant 3 : index
    %c0_269 = arith.constant 0 : index
    %c0_270 = arith.constant 0 : index
    %458 = vector.load %arg16[%c3_268, %c0_269, %c0_270] : memref<8x1x32xf32, #tpu.memory_space<vmem>>, vector<1x1x32xf32>
    %459 = vector.shape_cast %458 : vector<1x1x32xf32> to vector<1x32xf32>
    %460 = vector.broadcast %459 : vector<1x32xf32> to vector<8x32xf32>
    %461 = arith.addf %457, %460 : vector<8x32xf32>
    %cst_271 = arith.constant 5.000000e-01 : f32
    %462 = vector.broadcast %cst_271 : f32 to vector<8x32xf32>
    %463 = arith.mulf %462, %461 : vector<8x32xf32>
    %cst_272 = arith.constant 0.707106769 : f32
    %464 = vector.broadcast %cst_272 : f32 to vector<8x32xf32>
    %465 = arith.mulf %461, %464 : vector<8x32xf32>
    %cst_273 = arith.constant 0.000000e+00 : f32
    %466 = vector.broadcast %cst_273 : f32 to vector<8x32xf32>
    %467 = arith.cmpf oge, %465, %466 : vector<8x32xf32>
    %cst_274 = arith.constant 1.000000e+00 : f32
    %cst_275 = arith.constant -1.000000e+00 : f32
    %468 = vector.broadcast %cst_274 : f32 to vector<8x32xf32>
    %469 = vector.broadcast %cst_275 : f32 to vector<8x32xf32>
    %470 = arith.select %467, %468, %469 : vector<8x32xi1>, vector<8x32xf32>
    %471 = math.absf %465 : vector<8x32xf32>
    %cst_276 = arith.constant 0.327591091 : f32
    %472 = vector.broadcast %cst_276 : f32 to vector<8x32xf32>
    %473 = arith.mulf %472, %471 : vector<8x32xf32>
    %cst_277 = arith.constant 1.000000e+00 : f32
    %474 = vector.broadcast %cst_277 : f32 to vector<8x32xf32>
    %475 = arith.addf %474, %473 : vector<8x32xf32>
    %cst_278 = arith.constant 1.000000e+00 : f32
    %476 = vector.broadcast %cst_278 : f32 to vector<8x32xf32>
    %477 = arith.divf %476, %475 : vector<8x32xf32>
    %cst_279 = arith.constant 1.06140542 : f32
    %478 = vector.broadcast %cst_279 : f32 to vector<8x32xf32>
    %479 = arith.mulf %477, %478 : vector<8x32xf32>
    %cst_280 = arith.constant -1.45315206 : f32
    %480 = vector.broadcast %cst_280 : f32 to vector<8x32xf32>
    %481 = arith.addf %480, %479 : vector<8x32xf32>
    %482 = arith.mulf %477, %481 : vector<8x32xf32>
    %cst_281 = arith.constant 1.42141378 : f32
    %483 = vector.broadcast %cst_281 : f32 to vector<8x32xf32>
    %484 = arith.addf %483, %482 : vector<8x32xf32>
    %485 = arith.mulf %477, %484 : vector<8x32xf32>
    %cst_282 = arith.constant -0.284496725 : f32
    %486 = vector.broadcast %cst_282 : f32 to vector<8x32xf32>
    %487 = arith.addf %486, %485 : vector<8x32xf32>
    %488 = arith.mulf %477, %487 : vector<8x32xf32>
    %cst_283 = arith.constant 0.254829586 : f32
    %489 = vector.broadcast %cst_283 : f32 to vector<8x32xf32>
    %490 = arith.addf %489, %488 : vector<8x32xf32>
    %491 = arith.mulf %477, %490 : vector<8x32xf32>
    %cst_284 = arith.constant 0.000000e+00 : f32
    %492 = vector.broadcast %cst_284 : f32 to vector<8x32xf32>
    %493 = arith.subf %492, %471 : vector<8x32xf32>
    %494 = arith.mulf %493, %471 : vector<8x32xf32>
    %495 = math.exp %494 : vector<8x32xf32>
    %496 = arith.mulf %491, %495 : vector<8x32xf32>
    %cst_285 = arith.constant 1.000000e+00 : f32
    %497 = vector.broadcast %cst_285 : f32 to vector<8x32xf32>
    %498 = arith.subf %497, %496 : vector<8x32xf32>
    %499 = arith.mulf %470, %498 : vector<8x32xf32>
    %cst_286 = arith.constant 1.000000e+00 : f32
    %500 = vector.broadcast %cst_286 : f32 to vector<8x32xf32>
    %501 = arith.addf %500, %499 : vector<8x32xf32>
    %502 = arith.mulf %463, %501 : vector<8x32xf32>
    %c4 = arith.constant 4 : index
    %c0_287 = arith.constant 0 : index
    %c0_288 = arith.constant 0 : index
    %503 = vector.load %arg4[%c4, %c0_287, %c0_288] : memref<8x32x32xf32, #tpu.memory_space<vmem>>, vector<1x32x32xf32>
    %504 = vector.shape_cast %503 : vector<1x32x32xf32> to vector<32x32xf32>
    %cst_289 = arith.constant dense<0.000000e+00> : vector<8x32xf32>
    %505 = tpu.matmul %502, %504, %cst_289 {dimension_numbers = #tpu.dot_dimension_numbers<[1], [0], [0], [1], [0, 0, 1, 1], [], []>} : vector<8x32xf32>, vector<32x32xf32>, vector<8x32xf32> -> vector<8x32xf32>
    %c4_290 = arith.constant 4 : index
    %c0_291 = arith.constant 0 : index
    %c0_292 = arith.constant 0 : index
    %506 = vector.load %arg5[%c4_290, %c0_291, %c0_292] : memref<8x1x32xf32, #tpu.memory_space<vmem>>, vector<1x1x32xf32>
    %507 = vector.shape_cast %506 : vector<1x1x32xf32> to vector<1x32xf32>
    %508 = vector.broadcast %507 : vector<1x32xf32> to vector<8x32xf32>
    %509 = arith.addf %505, %508 : vector<8x32xf32>
    %c4_293 = arith.constant 4 : index
    %c0_294 = arith.constant 0 : index
    %c0_295 = arith.constant 0 : index
    %510 = vector.load %arg6[%c4_293, %c0_294, %c0_295] : memref<8x32x32xf32, #tpu.memory_space<vmem>>, vector<1x32x32xf32>
    %511 = vector.shape_cast %510 : vector<1x32x32xf32> to vector<32x32xf32>
    %cst_296 = arith.constant dense<0.000000e+00> : vector<8x32xf32>
    %512 = tpu.matmul %509, %511, %cst_296 {dimension_numbers = #tpu.dot_dimension_numbers<[1], [0], [0], [1], [0, 0, 1, 1], [], []>} : vector<8x32xf32>, vector<32x32xf32>, vector<8x32xf32> -> vector<8x32xf32>
    %c4_297 = arith.constant 4 : index
    %c0_298 = arith.constant 0 : index
    %c0_299 = arith.constant 0 : index
    %513 = vector.load %arg7[%c4_297, %c0_298, %c0_299] : memref<8x1x32xf32, #tpu.memory_space<vmem>>, vector<1x1x32xf32>
    %514 = vector.shape_cast %513 : vector<1x1x32xf32> to vector<1x32xf32>
    %515 = vector.broadcast %514 : vector<1x32xf32> to vector<8x32xf32>
    %516 = arith.addf %512, %515 : vector<8x32xf32>
    %517 = math.tanh %516 : vector<8x32xf32>
    %c4_300 = arith.constant 4 : index
    %c0_301 = arith.constant 0 : index
    %c0_302 = arith.constant 0 : index
    %518 = vector.load %arg8[%c4_300, %c0_301, %c0_302] : memref<8x32x96xf32, #tpu.memory_space<vmem>>, vector<1x32x96xf32>
    %519 = vector.shape_cast %518 : vector<1x32x96xf32> to vector<32x96xf32>
    %cst_303 = arith.constant dense<0.000000e+00> : vector<8x96xf32>
    %520 = tpu.matmul %517, %519, %cst_303 {dimension_numbers = #tpu.dot_dimension_numbers<[1], [0], [0], [1], [0, 0, 1, 1], [], []>} : vector<8x32xf32>, vector<32x96xf32>, vector<8x96xf32> -> vector<8x96xf32>
    %c4_304 = arith.constant 4 : index
    %c0_305 = arith.constant 0 : index
    %c0_306 = arith.constant 0 : index
    %521 = vector.load %arg9[%c4_304, %c0_305, %c0_306] : memref<8x1x96xf32, #tpu.memory_space<vmem>>, vector<1x1x96xf32>
    %522 = vector.shape_cast %521 : vector<1x1x96xf32> to vector<1x96xf32>
    %523 = vector.broadcast %522 : vector<1x96xf32> to vector<8x96xf32>
    %524 = arith.addf %520, %523 : vector<8x96xf32>
    %525 = vector.extract_strided_slice %524 {offsets = [0, 0], sizes = [8, 32], strides = [1, 1]} : vector<8x96xf32> to vector<8x32xf32>
    %526 = vector.extract_strided_slice %524 {offsets = [0, 32], sizes = [8, 32], strides = [1, 1]} : vector<8x96xf32> to vector<8x32xf32>
    %527 = vector.extract_strided_slice %524 {offsets = [0, 64], sizes = [8, 32], strides = [1, 1]} : vector<8x96xf32> to vector<8x32xf32>
    %cst_307 = arith.constant dense<0.000000e+00> : vector<8x8xf32>
    %528 = tpu.matmul %525, %526, %cst_307 {dimension_numbers = #tpu.dot_dimension_numbers<[1], [1], [0], [0], [0, 0, 1, 0], [], []>} : vector<8x32xf32>, vector<8x32xf32>, vector<8x8xf32> -> vector<8x8xf32>
    %cst_308 = arith.constant 0.176776692 : f32
    %529 = vector.broadcast %cst_308 : f32 to vector<8x8xf32>
    %530 = arith.mulf %528, %529 : vector<8x8xf32>
    %cst_309 = arith.constant dense<0xFF800000> : vector<8xf32>
    %531 = vector.multi_reduction <maximumf>, %530, %cst_309 [1] : vector<8x8xf32> to vector<8xf32>
    %532 = vector.shape_cast %531 : vector<8xf32> to vector<8x1xf32>
    %533 = vector.broadcast %532 : vector<8x1xf32> to vector<8x8xf32>
    %534 = arith.subf %530, %533 : vector<8x8xf32>
    %535 = math.exp %534 : vector<8x8xf32>
    %cst_310 = arith.constant dense<0.000000e+00> : vector<8xf32>
    %536 = vector.multi_reduction <add>, %535, %cst_310 [1] : vector<8x8xf32> to vector<8xf32>
    %537 = vector.shape_cast %536 : vector<8xf32> to vector<8x1xf32>
    %538 = tpu.reciprocal %537 {approx = true} : vector<8x1xf32> -> vector<8x1xf32>
    %539 = vector.broadcast %538 : vector<8x1xf32> to vector<8x8xf32>
    %540 = arith.mulf %535, %539 : vector<8x8xf32>
    %cst_311 = arith.constant dense<0.000000e+00> : vector<8x32xf32>
    %541 = tpu.matmul %540, %527, %cst_311 {dimension_numbers = #tpu.dot_dimension_numbers<[1], [0], [0], [1], [0, 0, 1, 1], [], []>} : vector<8x8xf32>, vector<8x32xf32>, vector<8x32xf32> -> vector<8x32xf32>
    %c4_312 = arith.constant 4 : index
    %c0_313 = arith.constant 0 : index
    %c0_314 = arith.constant 0 : index
    %542 = vector.load %arg10[%c4_312, %c0_313, %c0_314] : memref<8x32x32xf32, #tpu.memory_space<vmem>>, vector<1x32x32xf32>
    %543 = vector.shape_cast %542 : vector<1x32x32xf32> to vector<32x32xf32>
    %cst_315 = arith.constant dense<0.000000e+00> : vector<8x32xf32>
    %544 = tpu.matmul %541, %543, %cst_315 {dimension_numbers = #tpu.dot_dimension_numbers<[1], [0], [0], [1], [0, 0, 1, 1], [], []>} : vector<8x32xf32>, vector<32x32xf32>, vector<8x32xf32> -> vector<8x32xf32>
    %c4_316 = arith.constant 4 : index
    %c0_317 = arith.constant 0 : index
    %c0_318 = arith.constant 0 : index
    %545 = vector.load %arg11[%c4_316, %c0_317, %c0_318] : memref<8x1x32xf32, #tpu.memory_space<vmem>>, vector<1x1x32xf32>
    %546 = vector.shape_cast %545 : vector<1x1x32xf32> to vector<1x32xf32>
    %547 = vector.broadcast %546 : vector<1x32xf32> to vector<8x32xf32>
    %548 = arith.addf %544, %547 : vector<8x32xf32>
    %c4_319 = arith.constant 4 : index
    %c0_320 = arith.constant 0 : index
    %c0_321 = arith.constant 0 : index
    %549 = vector.load %arg12[%c4_319, %c0_320, %c0_321] : memref<8x32x32xf32, #tpu.memory_space<vmem>>, vector<1x32x32xf32>
    %550 = vector.shape_cast %549 : vector<1x32x32xf32> to vector<32x32xf32>
    %cst_322 = arith.constant dense<0.000000e+00> : vector<8x32xf32>
    %551 = tpu.matmul %509, %550, %cst_322 {dimension_numbers = #tpu.dot_dimension_numbers<[1], [0], [0], [1], [0, 0, 1, 1], [], []>} : vector<8x32xf32>, vector<32x32xf32>, vector<8x32xf32> -> vector<8x32xf32>
    %c4_323 = arith.constant 4 : index
    %c0_324 = arith.constant 0 : index
    %c0_325 = arith.constant 0 : index
    %552 = vector.load %arg13[%c4_323, %c0_324, %c0_325] : memref<8x32x32xf32, #tpu.memory_space<vmem>>, vector<1x32x32xf32>
    %553 = vector.shape_cast %552 : vector<1x32x32xf32> to vector<32x32xf32>
    %cst_326 = arith.constant dense<0.000000e+00> : vector<8x32xf32>
    %554 = tpu.matmul %548, %553, %cst_326 {dimension_numbers = #tpu.dot_dimension_numbers<[1], [0], [0], [1], [0, 0, 1, 1], [], []>} : vector<8x32xf32>, vector<32x32xf32>, vector<8x32xf32> -> vector<8x32xf32>
    %555 = arith.addf %551, %554 : vector<8x32xf32>
    %c4_327 = arith.constant 4 : index
    %c0_328 = arith.constant 0 : index
    %c0_329 = arith.constant 0 : index
    %556 = vector.load %arg14[%c4_327, %c0_328, %c0_329] : memref<8x1x32xf32, #tpu.memory_space<vmem>>, vector<1x1x32xf32>
    %557 = vector.shape_cast %556 : vector<1x1x32xf32> to vector<1x32xf32>
    %558 = vector.broadcast %557 : vector<1x32xf32> to vector<8x32xf32>
    %559 = arith.addf %555, %558 : vector<8x32xf32>
    %cst_330 = arith.constant dense<0.000000e+00> : vector<8xf32>
    %560 = vector.multi_reduction <add>, %559, %cst_330 [1] : vector<8x32xf32> to vector<8xf32>
    %561 = vector.shape_cast %560 : vector<8xf32> to vector<8x1xf32>
    %cst_331 = arith.constant 3.200000e+01 : f32
    %562 = vector.broadcast %cst_331 : f32 to vector<8x1xf32>
    %563 = arith.divf %561, %562 : vector<8x1xf32>
    %564 = vector.broadcast %563 : vector<8x1xf32> to vector<8x32xf32>
    %565 = arith.subf %559, %564 : vector<8x32xf32>
    %566 = arith.mulf %565, %565 : vector<8x32xf32>
    %cst_332 = arith.constant dense<0.000000e+00> : vector<8xf32>
    %567 = vector.multi_reduction <add>, %566, %cst_332 [1] : vector<8x32xf32> to vector<8xf32>
    %568 = vector.shape_cast %567 : vector<8xf32> to vector<8x1xf32>
    %cst_333 = arith.constant 3.200000e+01 : f32
    %569 = vector.broadcast %cst_333 : f32 to vector<8x1xf32>
    %570 = arith.divf %568, %569 : vector<8x1xf32>
    %571 = vector.broadcast %563 : vector<8x1xf32> to vector<8x32xf32>
    %572 = arith.subf %559, %571 : vector<8x32xf32>
    %cst_334 = arith.constant 9.99999974E-6 : f32
    %573 = vector.broadcast %cst_334 : f32 to vector<8x1xf32>
    %574 = arith.addf %570, %573 : vector<8x1xf32>
    %575 = math.rsqrt %574 : vector<8x1xf32>
    %576 = vector.broadcast %575 : vector<8x1xf32> to vector<8x32xf32>
    %577 = arith.mulf %572, %576 : vector<8x32xf32>
    %c4_335 = arith.constant 4 : index
    %c0_336 = arith.constant 0 : index
    %c0_337 = arith.constant 0 : index
    %578 = vector.load %arg15[%c4_335, %c0_336, %c0_337] : memref<8x1x32xf32, #tpu.memory_space<vmem>>, vector<1x1x32xf32>
    %579 = vector.shape_cast %578 : vector<1x1x32xf32> to vector<1x32xf32>
    %580 = vector.broadcast %579 : vector<1x32xf32> to vector<8x32xf32>
    %581 = arith.mulf %577, %580 : vector<8x32xf32>
    %c4_338 = arith.constant 4 : index
    %c0_339 = arith.constant 0 : index
    %c0_340 = arith.constant 0 : index
    %582 = vector.load %arg16[%c4_338, %c0_339, %c0_340] : memref<8x1x32xf32, #tpu.memory_space<vmem>>, vector<1x1x32xf32>
    %583 = vector.shape_cast %582 : vector<1x1x32xf32> to vector<1x32xf32>
    %584 = vector.broadcast %583 : vector<1x32xf32> to vector<8x32xf32>
    %585 = arith.addf %581, %584 : vector<8x32xf32>
    %cst_341 = arith.constant 5.000000e-01 : f32
    %586 = vector.broadcast %cst_341 : f32 to vector<8x32xf32>
    %587 = arith.mulf %586, %585 : vector<8x32xf32>
    %cst_342 = arith.constant 0.707106769 : f32
    %588 = vector.broadcast %cst_342 : f32 to vector<8x32xf32>
    %589 = arith.mulf %585, %588 : vector<8x32xf32>
    %cst_343 = arith.constant 0.000000e+00 : f32
    %590 = vector.broadcast %cst_343 : f32 to vector<8x32xf32>
    %591 = arith.cmpf oge, %589, %590 : vector<8x32xf32>
    %cst_344 = arith.constant 1.000000e+00 : f32
    %cst_345 = arith.constant -1.000000e+00 : f32
    %592 = vector.broadcast %cst_344 : f32 to vector<8x32xf32>
    %593 = vector.broadcast %cst_345 : f32 to vector<8x32xf32>
    %594 = arith.select %591, %592, %593 : vector<8x32xi1>, vector<8x32xf32>
    %595 = math.absf %589 : vector<8x32xf32>
    %cst_346 = arith.constant 0.327591091 : f32
    %596 = vector.broadcast %cst_346 : f32 to vector<8x32xf32>
    %597 = arith.mulf %596, %595 : vector<8x32xf32>
    %cst_347 = arith.constant 1.000000e+00 : f32
    %598 = vector.broadcast %cst_347 : f32 to vector<8x32xf32>
    %599 = arith.addf %598, %597 : vector<8x32xf32>
    %cst_348 = arith.constant 1.000000e+00 : f32
    %600 = vector.broadcast %cst_348 : f32 to vector<8x32xf32>
    %601 = arith.divf %600, %599 : vector<8x32xf32>
    %cst_349 = arith.constant 1.06140542 : f32
    %602 = vector.broadcast %cst_349 : f32 to vector<8x32xf32>
    %603 = arith.mulf %601, %602 : vector<8x32xf32>
    %cst_350 = arith.constant -1.45315206 : f32
    %604 = vector.broadcast %cst_350 : f32 to vector<8x32xf32>
    %605 = arith.addf %604, %603 : vector<8x32xf32>
    %606 = arith.mulf %601, %605 : vector<8x32xf32>
    %cst_351 = arith.constant 1.42141378 : f32
    %607 = vector.broadcast %cst_351 : f32 to vector<8x32xf32>
    %608 = arith.addf %607, %606 : vector<8x32xf32>
    %609 = arith.mulf %601, %608 : vector<8x32xf32>
    %cst_352 = arith.constant -0.284496725 : f32
    %610 = vector.broadcast %cst_352 : f32 to vector<8x32xf32>
    %611 = arith.addf %610, %609 : vector<8x32xf32>
    %612 = arith.mulf %601, %611 : vector<8x32xf32>
    %cst_353 = arith.constant 0.254829586 : f32
    %613 = vector.broadcast %cst_353 : f32 to vector<8x32xf32>
    %614 = arith.addf %613, %612 : vector<8x32xf32>
    %615 = arith.mulf %601, %614 : vector<8x32xf32>
    %cst_354 = arith.constant 0.000000e+00 : f32
    %616 = vector.broadcast %cst_354 : f32 to vector<8x32xf32>
    %617 = arith.subf %616, %595 : vector<8x32xf32>
    %618 = arith.mulf %617, %595 : vector<8x32xf32>
    %619 = math.exp %618 : vector<8x32xf32>
    %620 = arith.mulf %615, %619 : vector<8x32xf32>
    %cst_355 = arith.constant 1.000000e+00 : f32
    %621 = vector.broadcast %cst_355 : f32 to vector<8x32xf32>
    %622 = arith.subf %621, %620 : vector<8x32xf32>
    %623 = arith.mulf %594, %622 : vector<8x32xf32>
    %cst_356 = arith.constant 1.000000e+00 : f32
    %624 = vector.broadcast %cst_356 : f32 to vector<8x32xf32>
    %625 = arith.addf %624, %623 : vector<8x32xf32>
    %626 = arith.mulf %587, %625 : vector<8x32xf32>
    %c5 = arith.constant 5 : index
    %c0_357 = arith.constant 0 : index
    %c0_358 = arith.constant 0 : index
    %627 = vector.load %arg4[%c5, %c0_357, %c0_358] : memref<8x32x32xf32, #tpu.memory_space<vmem>>, vector<1x32x32xf32>
    %628 = vector.shape_cast %627 : vector<1x32x32xf32> to vector<32x32xf32>
    %cst_359 = arith.constant dense<0.000000e+00> : vector<8x32xf32>
    %629 = tpu.matmul %626, %628, %cst_359 {dimension_numbers = #tpu.dot_dimension_numbers<[1], [0], [0], [1], [0, 0, 1, 1], [], []>} : vector<8x32xf32>, vector<32x32xf32>, vector<8x32xf32> -> vector<8x32xf32>
    %c5_360 = arith.constant 5 : index
    %c0_361 = arith.constant 0 : index
    %c0_362 = arith.constant 0 : index
    %630 = vector.load %arg5[%c5_360, %c0_361, %c0_362] : memref<8x1x32xf32, #tpu.memory_space<vmem>>, vector<1x1x32xf32>
    %631 = vector.shape_cast %630 : vector<1x1x32xf32> to vector<1x32xf32>
    %632 = vector.broadcast %631 : vector<1x32xf32> to vector<8x32xf32>
    %633 = arith.addf %629, %632 : vector<8x32xf32>
    %c5_363 = arith.constant 5 : index
    %c0_364 = arith.constant 0 : index
    %c0_365 = arith.constant 0 : index
    %634 = vector.load %arg6[%c5_363, %c0_364, %c0_365] : memref<8x32x32xf32, #tpu.memory_space<vmem>>, vector<1x32x32xf32>
    %635 = vector.shape_cast %634 : vector<1x32x32xf32> to vector<32x32xf32>
    %cst_366 = arith.constant dense<0.000000e+00> : vector<8x32xf32>
    %636 = tpu.matmul %633, %635, %cst_366 {dimension_numbers = #tpu.dot_dimension_numbers<[1], [0], [0], [1], [0, 0, 1, 1], [], []>} : vector<8x32xf32>, vector<32x32xf32>, vector<8x32xf32> -> vector<8x32xf32>
    %c5_367 = arith.constant 5 : index
    %c0_368 = arith.constant 0 : index
    %c0_369 = arith.constant 0 : index
    %637 = vector.load %arg7[%c5_367, %c0_368, %c0_369] : memref<8x1x32xf32, #tpu.memory_space<vmem>>, vector<1x1x32xf32>
    %638 = vector.shape_cast %637 : vector<1x1x32xf32> to vector<1x32xf32>
    %639 = vector.broadcast %638 : vector<1x32xf32> to vector<8x32xf32>
    %640 = arith.addf %636, %639 : vector<8x32xf32>
    %641 = math.tanh %640 : vector<8x32xf32>
    %c5_370 = arith.constant 5 : index
    %c0_371 = arith.constant 0 : index
    %c0_372 = arith.constant 0 : index
    %642 = vector.load %arg8[%c5_370, %c0_371, %c0_372] : memref<8x32x96xf32, #tpu.memory_space<vmem>>, vector<1x32x96xf32>
    %643 = vector.shape_cast %642 : vector<1x32x96xf32> to vector<32x96xf32>
    %cst_373 = arith.constant dense<0.000000e+00> : vector<8x96xf32>
    %644 = tpu.matmul %641, %643, %cst_373 {dimension_numbers = #tpu.dot_dimension_numbers<[1], [0], [0], [1], [0, 0, 1, 1], [], []>} : vector<8x32xf32>, vector<32x96xf32>, vector<8x96xf32> -> vector<8x96xf32>
    %c5_374 = arith.constant 5 : index
    %c0_375 = arith.constant 0 : index
    %c0_376 = arith.constant 0 : index
    %645 = vector.load %arg9[%c5_374, %c0_375, %c0_376] : memref<8x1x96xf32, #tpu.memory_space<vmem>>, vector<1x1x96xf32>
    %646 = vector.shape_cast %645 : vector<1x1x96xf32> to vector<1x96xf32>
    %647 = vector.broadcast %646 : vector<1x96xf32> to vector<8x96xf32>
    %648 = arith.addf %644, %647 : vector<8x96xf32>
    %649 = vector.extract_strided_slice %648 {offsets = [0, 0], sizes = [8, 32], strides = [1, 1]} : vector<8x96xf32> to vector<8x32xf32>
    %650 = vector.extract_strided_slice %648 {offsets = [0, 32], sizes = [8, 32], strides = [1, 1]} : vector<8x96xf32> to vector<8x32xf32>
    %651 = vector.extract_strided_slice %648 {offsets = [0, 64], sizes = [8, 32], strides = [1, 1]} : vector<8x96xf32> to vector<8x32xf32>
    %cst_377 = arith.constant dense<0.000000e+00> : vector<8x8xf32>
    %652 = tpu.matmul %649, %650, %cst_377 {dimension_numbers = #tpu.dot_dimension_numbers<[1], [1], [0], [0], [0, 0, 1, 0], [], []>} : vector<8x32xf32>, vector<8x32xf32>, vector<8x8xf32> -> vector<8x8xf32>
    %cst_378 = arith.constant 0.176776692 : f32
    %653 = vector.broadcast %cst_378 : f32 to vector<8x8xf32>
    %654 = arith.mulf %652, %653 : vector<8x8xf32>
    %cst_379 = arith.constant dense<0xFF800000> : vector<8xf32>
    %655 = vector.multi_reduction <maximumf>, %654, %cst_379 [1] : vector<8x8xf32> to vector<8xf32>
    %656 = vector.shape_cast %655 : vector<8xf32> to vector<8x1xf32>
    %657 = vector.broadcast %656 : vector<8x1xf32> to vector<8x8xf32>
    %658 = arith.subf %654, %657 : vector<8x8xf32>
    %659 = math.exp %658 : vector<8x8xf32>
    %cst_380 = arith.constant dense<0.000000e+00> : vector<8xf32>
    %660 = vector.multi_reduction <add>, %659, %cst_380 [1] : vector<8x8xf32> to vector<8xf32>
    %661 = vector.shape_cast %660 : vector<8xf32> to vector<8x1xf32>
    %662 = tpu.reciprocal %661 {approx = true} : vector<8x1xf32> -> vector<8x1xf32>
    %663 = vector.broadcast %662 : vector<8x1xf32> to vector<8x8xf32>
    %664 = arith.mulf %659, %663 : vector<8x8xf32>
    %cst_381 = arith.constant dense<0.000000e+00> : vector<8x32xf32>
    %665 = tpu.matmul %664, %651, %cst_381 {dimension_numbers = #tpu.dot_dimension_numbers<[1], [0], [0], [1], [0, 0, 1, 1], [], []>} : vector<8x8xf32>, vector<8x32xf32>, vector<8x32xf32> -> vector<8x32xf32>
    %c5_382 = arith.constant 5 : index
    %c0_383 = arith.constant 0 : index
    %c0_384 = arith.constant 0 : index
    %666 = vector.load %arg10[%c5_382, %c0_383, %c0_384] : memref<8x32x32xf32, #tpu.memory_space<vmem>>, vector<1x32x32xf32>
    %667 = vector.shape_cast %666 : vector<1x32x32xf32> to vector<32x32xf32>
    %cst_385 = arith.constant dense<0.000000e+00> : vector<8x32xf32>
    %668 = tpu.matmul %665, %667, %cst_385 {dimension_numbers = #tpu.dot_dimension_numbers<[1], [0], [0], [1], [0, 0, 1, 1], [], []>} : vector<8x32xf32>, vector<32x32xf32>, vector<8x32xf32> -> vector<8x32xf32>
    %c5_386 = arith.constant 5 : index
    %c0_387 = arith.constant 0 : index
    %c0_388 = arith.constant 0 : index
    %669 = vector.load %arg11[%c5_386, %c0_387, %c0_388] : memref<8x1x32xf32, #tpu.memory_space<vmem>>, vector<1x1x32xf32>
    %670 = vector.shape_cast %669 : vector<1x1x32xf32> to vector<1x32xf32>
    %671 = vector.broadcast %670 : vector<1x32xf32> to vector<8x32xf32>
    %672 = arith.addf %668, %671 : vector<8x32xf32>
    %c5_389 = arith.constant 5 : index
    %c0_390 = arith.constant 0 : index
    %c0_391 = arith.constant 0 : index
    %673 = vector.load %arg12[%c5_389, %c0_390, %c0_391] : memref<8x32x32xf32, #tpu.memory_space<vmem>>, vector<1x32x32xf32>
    %674 = vector.shape_cast %673 : vector<1x32x32xf32> to vector<32x32xf32>
    %cst_392 = arith.constant dense<0.000000e+00> : vector<8x32xf32>
    %675 = tpu.matmul %633, %674, %cst_392 {dimension_numbers = #tpu.dot_dimension_numbers<[1], [0], [0], [1], [0, 0, 1, 1], [], []>} : vector<8x32xf32>, vector<32x32xf32>, vector<8x32xf32> -> vector<8x32xf32>
    %c5_393 = arith.constant 5 : index
    %c0_394 = arith.constant 0 : index
    %c0_395 = arith.constant 0 : index
    %676 = vector.load %arg13[%c5_393, %c0_394, %c0_395] : memref<8x32x32xf32, #tpu.memory_space<vmem>>, vector<1x32x32xf32>
    %677 = vector.shape_cast %676 : vector<1x32x32xf32> to vector<32x32xf32>
    %cst_396 = arith.constant dense<0.000000e+00> : vector<8x32xf32>
    %678 = tpu.matmul %672, %677, %cst_396 {dimension_numbers = #tpu.dot_dimension_numbers<[1], [0], [0], [1], [0, 0, 1, 1], [], []>} : vector<8x32xf32>, vector<32x32xf32>, vector<8x32xf32> -> vector<8x32xf32>
    %679 = arith.addf %675, %678 : vector<8x32xf32>
    %c5_397 = arith.constant 5 : index
    %c0_398 = arith.constant 0 : index
    %c0_399 = arith.constant 0 : index
    %680 = vector.load %arg14[%c5_397, %c0_398, %c0_399] : memref<8x1x32xf32, #tpu.memory_space<vmem>>, vector<1x1x32xf32>
    %681 = vector.shape_cast %680 : vector<1x1x32xf32> to vector<1x32xf32>
    %682 = vector.broadcast %681 : vector<1x32xf32> to vector<8x32xf32>
    %683 = arith.addf %679, %682 : vector<8x32xf32>
    %cst_400 = arith.constant dense<0.000000e+00> : vector<8xf32>
    %684 = vector.multi_reduction <add>, %683, %cst_400 [1] : vector<8x32xf32> to vector<8xf32>
    %685 = vector.shape_cast %684 : vector<8xf32> to vector<8x1xf32>
    %cst_401 = arith.constant 3.200000e+01 : f32
    %686 = vector.broadcast %cst_401 : f32 to vector<8x1xf32>
    %687 = arith.divf %685, %686 : vector<8x1xf32>
    %688 = vector.broadcast %687 : vector<8x1xf32> to vector<8x32xf32>
    %689 = arith.subf %683, %688 : vector<8x32xf32>
    %690 = arith.mulf %689, %689 : vector<8x32xf32>
    %cst_402 = arith.constant dense<0.000000e+00> : vector<8xf32>
    %691 = vector.multi_reduction <add>, %690, %cst_402 [1] : vector<8x32xf32> to vector<8xf32>
    %692 = vector.shape_cast %691 : vector<8xf32> to vector<8x1xf32>
    %cst_403 = arith.constant 3.200000e+01 : f32
    %693 = vector.broadcast %cst_403 : f32 to vector<8x1xf32>
    %694 = arith.divf %692, %693 : vector<8x1xf32>
    %695 = vector.broadcast %687 : vector<8x1xf32> to vector<8x32xf32>
    %696 = arith.subf %683, %695 : vector<8x32xf32>
    %cst_404 = arith.constant 9.99999974E-6 : f32
    %697 = vector.broadcast %cst_404 : f32 to vector<8x1xf32>
    %698 = arith.addf %694, %697 : vector<8x1xf32>
    %699 = math.rsqrt %698 : vector<8x1xf32>
    %700 = vector.broadcast %699 : vector<8x1xf32> to vector<8x32xf32>
    %701 = arith.mulf %696, %700 : vector<8x32xf32>
    %c5_405 = arith.constant 5 : index
    %c0_406 = arith.constant 0 : index
    %c0_407 = arith.constant 0 : index
    %702 = vector.load %arg15[%c5_405, %c0_406, %c0_407] : memref<8x1x32xf32, #tpu.memory_space<vmem>>, vector<1x1x32xf32>
    %703 = vector.shape_cast %702 : vector<1x1x32xf32> to vector<1x32xf32>
    %704 = vector.broadcast %703 : vector<1x32xf32> to vector<8x32xf32>
    %705 = arith.mulf %701, %704 : vector<8x32xf32>
    %c5_408 = arith.constant 5 : index
    %c0_409 = arith.constant 0 : index
    %c0_410 = arith.constant 0 : index
    %706 = vector.load %arg16[%c5_408, %c0_409, %c0_410] : memref<8x1x32xf32, #tpu.memory_space<vmem>>, vector<1x1x32xf32>
    %707 = vector.shape_cast %706 : vector<1x1x32xf32> to vector<1x32xf32>
    %708 = vector.broadcast %707 : vector<1x32xf32> to vector<8x32xf32>
    %709 = arith.addf %705, %708 : vector<8x32xf32>
    %cst_411 = arith.constant 5.000000e-01 : f32
    %710 = vector.broadcast %cst_411 : f32 to vector<8x32xf32>
    %711 = arith.mulf %710, %709 : vector<8x32xf32>
    %cst_412 = arith.constant 0.707106769 : f32
    %712 = vector.broadcast %cst_412 : f32 to vector<8x32xf32>
    %713 = arith.mulf %709, %712 : vector<8x32xf32>
    %cst_413 = arith.constant 0.000000e+00 : f32
    %714 = vector.broadcast %cst_413 : f32 to vector<8x32xf32>
    %715 = arith.cmpf oge, %713, %714 : vector<8x32xf32>
    %cst_414 = arith.constant 1.000000e+00 : f32
    %cst_415 = arith.constant -1.000000e+00 : f32
    %716 = vector.broadcast %cst_414 : f32 to vector<8x32xf32>
    %717 = vector.broadcast %cst_415 : f32 to vector<8x32xf32>
    %718 = arith.select %715, %716, %717 : vector<8x32xi1>, vector<8x32xf32>
    %719 = math.absf %713 : vector<8x32xf32>
    %cst_416 = arith.constant 0.327591091 : f32
    %720 = vector.broadcast %cst_416 : f32 to vector<8x32xf32>
    %721 = arith.mulf %720, %719 : vector<8x32xf32>
    %cst_417 = arith.constant 1.000000e+00 : f32
    %722 = vector.broadcast %cst_417 : f32 to vector<8x32xf32>
    %723 = arith.addf %722, %721 : vector<8x32xf32>
    %cst_418 = arith.constant 1.000000e+00 : f32
    %724 = vector.broadcast %cst_418 : f32 to vector<8x32xf32>
    %725 = arith.divf %724, %723 : vector<8x32xf32>
    %cst_419 = arith.constant 1.06140542 : f32
    %726 = vector.broadcast %cst_419 : f32 to vector<8x32xf32>
    %727 = arith.mulf %725, %726 : vector<8x32xf32>
    %cst_420 = arith.constant -1.45315206 : f32
    %728 = vector.broadcast %cst_420 : f32 to vector<8x32xf32>
    %729 = arith.addf %728, %727 : vector<8x32xf32>
    %730 = arith.mulf %725, %729 : vector<8x32xf32>
    %cst_421 = arith.constant 1.42141378 : f32
    %731 = vector.broadcast %cst_421 : f32 to vector<8x32xf32>
    %732 = arith.addf %731, %730 : vector<8x32xf32>
    %733 = arith.mulf %725, %732 : vector<8x32xf32>
    %cst_422 = arith.constant -0.284496725 : f32
    %734 = vector.broadcast %cst_422 : f32 to vector<8x32xf32>
    %735 = arith.addf %734, %733 : vector<8x32xf32>
    %736 = arith.mulf %725, %735 : vector<8x32xf32>
    %cst_423 = arith.constant 0.254829586 : f32
    %737 = vector.broadcast %cst_423 : f32 to vector<8x32xf32>
    %738 = arith.addf %737, %736 : vector<8x32xf32>
    %739 = arith.mulf %725, %738 : vector<8x32xf32>
    %cst_424 = arith.constant 0.000000e+00 : f32
    %740 = vector.broadcast %cst_424 : f32 to vector<8x32xf32>
    %741 = arith.subf %740, %719 : vector<8x32xf32>
    %742 = arith.mulf %741, %719 : vector<8x32xf32>
    %743 = math.exp %742 : vector<8x32xf32>
    %744 = arith.mulf %739, %743 : vector<8x32xf32>
    %cst_425 = arith.constant 1.000000e+00 : f32
    %745 = vector.broadcast %cst_425 : f32 to vector<8x32xf32>
    %746 = arith.subf %745, %744 : vector<8x32xf32>
    %747 = arith.mulf %718, %746 : vector<8x32xf32>
    %cst_426 = arith.constant 1.000000e+00 : f32
    %748 = vector.broadcast %cst_426 : f32 to vector<8x32xf32>
    %749 = arith.addf %748, %747 : vector<8x32xf32>
    %750 = arith.mulf %711, %749 : vector<8x32xf32>
    %c6 = arith.constant 6 : index
    %c0_427 = arith.constant 0 : index
    %c0_428 = arith.constant 0 : index
    %751 = vector.load %arg4[%c6, %c0_427, %c0_428] : memref<8x32x32xf32, #tpu.memory_space<vmem>>, vector<1x32x32xf32>
    %752 = vector.shape_cast %751 : vector<1x32x32xf32> to vector<32x32xf32>
    %cst_429 = arith.constant dense<0.000000e+00> : vector<8x32xf32>
    %753 = tpu.matmul %750, %752, %cst_429 {dimension_numbers = #tpu.dot_dimension_numbers<[1], [0], [0], [1], [0, 0, 1, 1], [], []>} : vector<8x32xf32>, vector<32x32xf32>, vector<8x32xf32> -> vector<8x32xf32>
    %c6_430 = arith.constant 6 : index
    %c0_431 = arith.constant 0 : index
    %c0_432 = arith.constant 0 : index
    %754 = vector.load %arg5[%c6_430, %c0_431, %c0_432] : memref<8x1x32xf32, #tpu.memory_space<vmem>>, vector<1x1x32xf32>
    %755 = vector.shape_cast %754 : vector<1x1x32xf32> to vector<1x32xf32>
    %756 = vector.broadcast %755 : vector<1x32xf32> to vector<8x32xf32>
    %757 = arith.addf %753, %756 : vector<8x32xf32>
    %c6_433 = arith.constant 6 : index
    %c0_434 = arith.constant 0 : index
    %c0_435 = arith.constant 0 : index
    %758 = vector.load %arg6[%c6_433, %c0_434, %c0_435] : memref<8x32x32xf32, #tpu.memory_space<vmem>>, vector<1x32x32xf32>
    %759 = vector.shape_cast %758 : vector<1x32x32xf32> to vector<32x32xf32>
    %cst_436 = arith.constant dense<0.000000e+00> : vector<8x32xf32>
    %760 = tpu.matmul %757, %759, %cst_436 {dimension_numbers = #tpu.dot_dimension_numbers<[1], [0], [0], [1], [0, 0, 1, 1], [], []>} : vector<8x32xf32>, vector<32x32xf32>, vector<8x32xf32> -> vector<8x32xf32>
    %c6_437 = arith.constant 6 : index
    %c0_438 = arith.constant 0 : index
    %c0_439 = arith.constant 0 : index
    %761 = vector.load %arg7[%c6_437, %c0_438, %c0_439] : memref<8x1x32xf32, #tpu.memory_space<vmem>>, vector<1x1x32xf32>
    %762 = vector.shape_cast %761 : vector<1x1x32xf32> to vector<1x32xf32>
    %763 = vector.broadcast %762 : vector<1x32xf32> to vector<8x32xf32>
    %764 = arith.addf %760, %763 : vector<8x32xf32>
    %765 = math.tanh %764 : vector<8x32xf32>
    %c6_440 = arith.constant 6 : index
    %c0_441 = arith.constant 0 : index
    %c0_442 = arith.constant 0 : index
    %766 = vector.load %arg8[%c6_440, %c0_441, %c0_442] : memref<8x32x96xf32, #tpu.memory_space<vmem>>, vector<1x32x96xf32>
    %767 = vector.shape_cast %766 : vector<1x32x96xf32> to vector<32x96xf32>
    %cst_443 = arith.constant dense<0.000000e+00> : vector<8x96xf32>
    %768 = tpu.matmul %765, %767, %cst_443 {dimension_numbers = #tpu.dot_dimension_numbers<[1], [0], [0], [1], [0, 0, 1, 1], [], []>} : vector<8x32xf32>, vector<32x96xf32>, vector<8x96xf32> -> vector<8x96xf32>
    %c6_444 = arith.constant 6 : index
    %c0_445 = arith.constant 0 : index
    %c0_446 = arith.constant 0 : index
    %769 = vector.load %arg9[%c6_444, %c0_445, %c0_446] : memref<8x1x96xf32, #tpu.memory_space<vmem>>, vector<1x1x96xf32>
    %770 = vector.shape_cast %769 : vector<1x1x96xf32> to vector<1x96xf32>
    %771 = vector.broadcast %770 : vector<1x96xf32> to vector<8x96xf32>
    %772 = arith.addf %768, %771 : vector<8x96xf32>
    %773 = vector.extract_strided_slice %772 {offsets = [0, 0], sizes = [8, 32], strides = [1, 1]} : vector<8x96xf32> to vector<8x32xf32>
    %774 = vector.extract_strided_slice %772 {offsets = [0, 32], sizes = [8, 32], strides = [1, 1]} : vector<8x96xf32> to vector<8x32xf32>
    %775 = vector.extract_strided_slice %772 {offsets = [0, 64], sizes = [8, 32], strides = [1, 1]} : vector<8x96xf32> to vector<8x32xf32>
    %cst_447 = arith.constant dense<0.000000e+00> : vector<8x8xf32>
    %776 = tpu.matmul %773, %774, %cst_447 {dimension_numbers = #tpu.dot_dimension_numbers<[1], [1], [0], [0], [0, 0, 1, 0], [], []>} : vector<8x32xf32>, vector<8x32xf32>, vector<8x8xf32> -> vector<8x8xf32>
    %cst_448 = arith.constant 0.176776692 : f32
    %777 = vector.broadcast %cst_448 : f32 to vector<8x8xf32>
    %778 = arith.mulf %776, %777 : vector<8x8xf32>
    %cst_449 = arith.constant dense<0xFF800000> : vector<8xf32>
    %779 = vector.multi_reduction <maximumf>, %778, %cst_449 [1] : vector<8x8xf32> to vector<8xf32>
    %780 = vector.shape_cast %779 : vector<8xf32> to vector<8x1xf32>
    %781 = vector.broadcast %780 : vector<8x1xf32> to vector<8x8xf32>
    %782 = arith.subf %778, %781 : vector<8x8xf32>
    %783 = math.exp %782 : vector<8x8xf32>
    %cst_450 = arith.constant dense<0.000000e+00> : vector<8xf32>
    %784 = vector.multi_reduction <add>, %783, %cst_450 [1] : vector<8x8xf32> to vector<8xf32>
    %785 = vector.shape_cast %784 : vector<8xf32> to vector<8x1xf32>
    %786 = tpu.reciprocal %785 {approx = true} : vector<8x1xf32> -> vector<8x1xf32>
    %787 = vector.broadcast %786 : vector<8x1xf32> to vector<8x8xf32>
    %788 = arith.mulf %783, %787 : vector<8x8xf32>
    %cst_451 = arith.constant dense<0.000000e+00> : vector<8x32xf32>
    %789 = tpu.matmul %788, %775, %cst_451 {dimension_numbers = #tpu.dot_dimension_numbers<[1], [0], [0], [1], [0, 0, 1, 1], [], []>} : vector<8x8xf32>, vector<8x32xf32>, vector<8x32xf32> -> vector<8x32xf32>
    %c6_452 = arith.constant 6 : index
    %c0_453 = arith.constant 0 : index
    %c0_454 = arith.constant 0 : index
    %790 = vector.load %arg10[%c6_452, %c0_453, %c0_454] : memref<8x32x32xf32, #tpu.memory_space<vmem>>, vector<1x32x32xf32>
    %791 = vector.shape_cast %790 : vector<1x32x32xf32> to vector<32x32xf32>
    %cst_455 = arith.constant dense<0.000000e+00> : vector<8x32xf32>
    %792 = tpu.matmul %789, %791, %cst_455 {dimension_numbers = #tpu.dot_dimension_numbers<[1], [0], [0], [1], [0, 0, 1, 1], [], []>} : vector<8x32xf32>, vector<32x32xf32>, vector<8x32xf32> -> vector<8x32xf32>
    %c6_456 = arith.constant 6 : index
    %c0_457 = arith.constant 0 : index
    %c0_458 = arith.constant 0 : index
    %793 = vector.load %arg11[%c6_456, %c0_457, %c0_458] : memref<8x1x32xf32, #tpu.memory_space<vmem>>, vector<1x1x32xf32>
    %794 = vector.shape_cast %793 : vector<1x1x32xf32> to vector<1x32xf32>
    %795 = vector.broadcast %794 : vector<1x32xf32> to vector<8x32xf32>
    %796 = arith.addf %792, %795 : vector<8x32xf32>
    %c6_459 = arith.constant 6 : index
    %c0_460 = arith.constant 0 : index
    %c0_461 = arith.constant 0 : index
    %797 = vector.load %arg12[%c6_459, %c0_460, %c0_461] : memref<8x32x32xf32, #tpu.memory_space<vmem>>, vector<1x32x32xf32>
    %798 = vector.shape_cast %797 : vector<1x32x32xf32> to vector<32x32xf32>
    %cst_462 = arith.constant dense<0.000000e+00> : vector<8x32xf32>
    %799 = tpu.matmul %757, %798, %cst_462 {dimension_numbers = #tpu.dot_dimension_numbers<[1], [0], [0], [1], [0, 0, 1, 1], [], []>} : vector<8x32xf32>, vector<32x32xf32>, vector<8x32xf32> -> vector<8x32xf32>
    %c6_463 = arith.constant 6 : index
    %c0_464 = arith.constant 0 : index
    %c0_465 = arith.constant 0 : index
    %800 = vector.load %arg13[%c6_463, %c0_464, %c0_465] : memref<8x32x32xf32, #tpu.memory_space<vmem>>, vector<1x32x32xf32>
    %801 = vector.shape_cast %800 : vector<1x32x32xf32> to vector<32x32xf32>
    %cst_466 = arith.constant dense<0.000000e+00> : vector<8x32xf32>
    %802 = tpu.matmul %796, %801, %cst_466 {dimension_numbers = #tpu.dot_dimension_numbers<[1], [0], [0], [1], [0, 0, 1, 1], [], []>} : vector<8x32xf32>, vector<32x32xf32>, vector<8x32xf32> -> vector<8x32xf32>
    %803 = arith.addf %799, %802 : vector<8x32xf32>
    %c6_467 = arith.constant 6 : index
    %c0_468 = arith.constant 0 : index
    %c0_469 = arith.constant 0 : index
    %804 = vector.load %arg14[%c6_467, %c0_468, %c0_469] : memref<8x1x32xf32, #tpu.memory_space<vmem>>, vector<1x1x32xf32>
    %805 = vector.shape_cast %804 : vector<1x1x32xf32> to vector<1x32xf32>
    %806 = vector.broadcast %805 : vector<1x32xf32> to vector<8x32xf32>
    %807 = arith.addf %803, %806 : vector<8x32xf32>
    %cst_470 = arith.constant dense<0.000000e+00> : vector<8xf32>
    %808 = vector.multi_reduction <add>, %807, %cst_470 [1] : vector<8x32xf32> to vector<8xf32>
    %809 = vector.shape_cast %808 : vector<8xf32> to vector<8x1xf32>
    %cst_471 = arith.constant 3.200000e+01 : f32
    %810 = vector.broadcast %cst_471 : f32 to vector<8x1xf32>
    %811 = arith.divf %809, %810 : vector<8x1xf32>
    %812 = vector.broadcast %811 : vector<8x1xf32> to vector<8x32xf32>
    %813 = arith.subf %807, %812 : vector<8x32xf32>
    %814 = arith.mulf %813, %813 : vector<8x32xf32>
    %cst_472 = arith.constant dense<0.000000e+00> : vector<8xf32>
    %815 = vector.multi_reduction <add>, %814, %cst_472 [1] : vector<8x32xf32> to vector<8xf32>
    %816 = vector.shape_cast %815 : vector<8xf32> to vector<8x1xf32>
    %cst_473 = arith.constant 3.200000e+01 : f32
    %817 = vector.broadcast %cst_473 : f32 to vector<8x1xf32>
    %818 = arith.divf %816, %817 : vector<8x1xf32>
    %819 = vector.broadcast %811 : vector<8x1xf32> to vector<8x32xf32>
    %820 = arith.subf %807, %819 : vector<8x32xf32>
    %cst_474 = arith.constant 9.99999974E-6 : f32
    %821 = vector.broadcast %cst_474 : f32 to vector<8x1xf32>
    %822 = arith.addf %818, %821 : vector<8x1xf32>
    %823 = math.rsqrt %822 : vector<8x1xf32>
    %824 = vector.broadcast %823 : vector<8x1xf32> to vector<8x32xf32>
    %825 = arith.mulf %820, %824 : vector<8x32xf32>
    %c6_475 = arith.constant 6 : index
    %c0_476 = arith.constant 0 : index
    %c0_477 = arith.constant 0 : index
    %826 = vector.load %arg15[%c6_475, %c0_476, %c0_477] : memref<8x1x32xf32, #tpu.memory_space<vmem>>, vector<1x1x32xf32>
    %827 = vector.shape_cast %826 : vector<1x1x32xf32> to vector<1x32xf32>
    %828 = vector.broadcast %827 : vector<1x32xf32> to vector<8x32xf32>
    %829 = arith.mulf %825, %828 : vector<8x32xf32>
    %c6_478 = arith.constant 6 : index
    %c0_479 = arith.constant 0 : index
    %c0_480 = arith.constant 0 : index
    %830 = vector.load %arg16[%c6_478, %c0_479, %c0_480] : memref<8x1x32xf32, #tpu.memory_space<vmem>>, vector<1x1x32xf32>
    %831 = vector.shape_cast %830 : vector<1x1x32xf32> to vector<1x32xf32>
    %832 = vector.broadcast %831 : vector<1x32xf32> to vector<8x32xf32>
    %833 = arith.addf %829, %832 : vector<8x32xf32>
    %cst_481 = arith.constant 5.000000e-01 : f32
    %834 = vector.broadcast %cst_481 : f32 to vector<8x32xf32>
    %835 = arith.mulf %834, %833 : vector<8x32xf32>
    %cst_482 = arith.constant 0.707106769 : f32
    %836 = vector.broadcast %cst_482 : f32 to vector<8x32xf32>
    %837 = arith.mulf %833, %836 : vector<8x32xf32>
    %cst_483 = arith.constant 0.000000e+00 : f32
    %838 = vector.broadcast %cst_483 : f32 to vector<8x32xf32>
    %839 = arith.cmpf oge, %837, %838 : vector<8x32xf32>
    %cst_484 = arith.constant 1.000000e+00 : f32
    %cst_485 = arith.constant -1.000000e+00 : f32
    %840 = vector.broadcast %cst_484 : f32 to vector<8x32xf32>
    %841 = vector.broadcast %cst_485 : f32 to vector<8x32xf32>
    %842 = arith.select %839, %840, %841 : vector<8x32xi1>, vector<8x32xf32>
    %843 = math.absf %837 : vector<8x32xf32>
    %cst_486 = arith.constant 0.327591091 : f32
    %844 = vector.broadcast %cst_486 : f32 to vector<8x32xf32>
    %845 = arith.mulf %844, %843 : vector<8x32xf32>
    %cst_487 = arith.constant 1.000000e+00 : f32
    %846 = vector.broadcast %cst_487 : f32 to vector<8x32xf32>
    %847 = arith.addf %846, %845 : vector<8x32xf32>
    %cst_488 = arith.constant 1.000000e+00 : f32
    %848 = vector.broadcast %cst_488 : f32 to vector<8x32xf32>
    %849 = arith.divf %848, %847 : vector<8x32xf32>
    %cst_489 = arith.constant 1.06140542 : f32
    %850 = vector.broadcast %cst_489 : f32 to vector<8x32xf32>
    %851 = arith.mulf %849, %850 : vector<8x32xf32>
    %cst_490 = arith.constant -1.45315206 : f32
    %852 = vector.broadcast %cst_490 : f32 to vector<8x32xf32>
    %853 = arith.addf %852, %851 : vector<8x32xf32>
    %854 = arith.mulf %849, %853 : vector<8x32xf32>
    %cst_491 = arith.constant 1.42141378 : f32
    %855 = vector.broadcast %cst_491 : f32 to vector<8x32xf32>
    %856 = arith.addf %855, %854 : vector<8x32xf32>
    %857 = arith.mulf %849, %856 : vector<8x32xf32>
    %cst_492 = arith.constant -0.284496725 : f32
    %858 = vector.broadcast %cst_492 : f32 to vector<8x32xf32>
    %859 = arith.addf %858, %857 : vector<8x32xf32>
    %860 = arith.mulf %849, %859 : vector<8x32xf32>
    %cst_493 = arith.constant 0.254829586 : f32
    %861 = vector.broadcast %cst_493 : f32 to vector<8x32xf32>
    %862 = arith.addf %861, %860 : vector<8x32xf32>
    %863 = arith.mulf %849, %862 : vector<8x32xf32>
    %cst_494 = arith.constant 0.000000e+00 : f32
    %864 = vector.broadcast %cst_494 : f32 to vector<8x32xf32>
    %865 = arith.subf %864, %843 : vector<8x32xf32>
    %866 = arith.mulf %865, %843 : vector<8x32xf32>
    %867 = math.exp %866 : vector<8x32xf32>
    %868 = arith.mulf %863, %867 : vector<8x32xf32>
    %cst_495 = arith.constant 1.000000e+00 : f32
    %869 = vector.broadcast %cst_495 : f32 to vector<8x32xf32>
    %870 = arith.subf %869, %868 : vector<8x32xf32>
    %871 = arith.mulf %842, %870 : vector<8x32xf32>
    %cst_496 = arith.constant 1.000000e+00 : f32
    %872 = vector.broadcast %cst_496 : f32 to vector<8x32xf32>
    %873 = arith.addf %872, %871 : vector<8x32xf32>
    %874 = arith.mulf %835, %873 : vector<8x32xf32>
    %c7 = arith.constant 7 : index
    %c0_497 = arith.constant 0 : index
    %c0_498 = arith.constant 0 : index
    %875 = vector.load %arg4[%c7, %c0_497, %c0_498] : memref<8x32x32xf32, #tpu.memory_space<vmem>>, vector<1x32x32xf32>
    %876 = vector.shape_cast %875 : vector<1x32x32xf32> to vector<32x32xf32>
    %cst_499 = arith.constant dense<0.000000e+00> : vector<8x32xf32>
    %877 = tpu.matmul %874, %876, %cst_499 {dimension_numbers = #tpu.dot_dimension_numbers<[1], [0], [0], [1], [0, 0, 1, 1], [], []>} : vector<8x32xf32>, vector<32x32xf32>, vector<8x32xf32> -> vector<8x32xf32>
    %c7_500 = arith.constant 7 : index
    %c0_501 = arith.constant 0 : index
    %c0_502 = arith.constant 0 : index
    %878 = vector.load %arg5[%c7_500, %c0_501, %c0_502] : memref<8x1x32xf32, #tpu.memory_space<vmem>>, vector<1x1x32xf32>
    %879 = vector.shape_cast %878 : vector<1x1x32xf32> to vector<1x32xf32>
    %880 = vector.broadcast %879 : vector<1x32xf32> to vector<8x32xf32>
    %881 = arith.addf %877, %880 : vector<8x32xf32>
    %c7_503 = arith.constant 7 : index
    %c0_504 = arith.constant 0 : index
    %c0_505 = arith.constant 0 : index
    %882 = vector.load %arg6[%c7_503, %c0_504, %c0_505] : memref<8x32x32xf32, #tpu.memory_space<vmem>>, vector<1x32x32xf32>
    %883 = vector.shape_cast %882 : vector<1x32x32xf32> to vector<32x32xf32>
    %cst_506 = arith.constant dense<0.000000e+00> : vector<8x32xf32>
    %884 = tpu.matmul %881, %883, %cst_506 {dimension_numbers = #tpu.dot_dimension_numbers<[1], [0], [0], [1], [0, 0, 1, 1], [], []>} : vector<8x32xf32>, vector<32x32xf32>, vector<8x32xf32> -> vector<8x32xf32>
    %c7_507 = arith.constant 7 : index
    %c0_508 = arith.constant 0 : index
    %c0_509 = arith.constant 0 : index
    %885 = vector.load %arg7[%c7_507, %c0_508, %c0_509] : memref<8x1x32xf32, #tpu.memory_space<vmem>>, vector<1x1x32xf32>
    %886 = vector.shape_cast %885 : vector<1x1x32xf32> to vector<1x32xf32>
    %887 = vector.broadcast %886 : vector<1x32xf32> to vector<8x32xf32>
    %888 = arith.addf %884, %887 : vector<8x32xf32>
    %889 = math.tanh %888 : vector<8x32xf32>
    %c7_510 = arith.constant 7 : index
    %c0_511 = arith.constant 0 : index
    %c0_512 = arith.constant 0 : index
    %890 = vector.load %arg8[%c7_510, %c0_511, %c0_512] : memref<8x32x96xf32, #tpu.memory_space<vmem>>, vector<1x32x96xf32>
    %891 = vector.shape_cast %890 : vector<1x32x96xf32> to vector<32x96xf32>
    %cst_513 = arith.constant dense<0.000000e+00> : vector<8x96xf32>
    %892 = tpu.matmul %889, %891, %cst_513 {dimension_numbers = #tpu.dot_dimension_numbers<[1], [0], [0], [1], [0, 0, 1, 1], [], []>} : vector<8x32xf32>, vector<32x96xf32>, vector<8x96xf32> -> vector<8x96xf32>
    %c7_514 = arith.constant 7 : index
    %c0_515 = arith.constant 0 : index
    %c0_516 = arith.constant 0 : index
    %893 = vector.load %arg9[%c7_514, %c0_515, %c0_516] : memref<8x1x96xf32, #tpu.memory_space<vmem>>, vector<1x1x96xf32>
    %894 = vector.shape_cast %893 : vector<1x1x96xf32> to vector<1x96xf32>
    %895 = vector.broadcast %894 : vector<1x96xf32> to vector<8x96xf32>
    %896 = arith.addf %892, %895 : vector<8x96xf32>
    %897 = vector.extract_strided_slice %896 {offsets = [0, 0], sizes = [8, 32], strides = [1, 1]} : vector<8x96xf32> to vector<8x32xf32>
    %898 = vector.extract_strided_slice %896 {offsets = [0, 32], sizes = [8, 32], strides = [1, 1]} : vector<8x96xf32> to vector<8x32xf32>
    %899 = vector.extract_strided_slice %896 {offsets = [0, 64], sizes = [8, 32], strides = [1, 1]} : vector<8x96xf32> to vector<8x32xf32>
    %cst_517 = arith.constant dense<0.000000e+00> : vector<8x8xf32>
    %900 = tpu.matmul %897, %898, %cst_517 {dimension_numbers = #tpu.dot_dimension_numbers<[1], [1], [0], [0], [0, 0, 1, 0], [], []>} : vector<8x32xf32>, vector<8x32xf32>, vector<8x8xf32> -> vector<8x8xf32>
    %cst_518 = arith.constant 0.176776692 : f32
    %901 = vector.broadcast %cst_518 : f32 to vector<8x8xf32>
    %902 = arith.mulf %900, %901 : vector<8x8xf32>
    %cst_519 = arith.constant dense<0xFF800000> : vector<8xf32>
    %903 = vector.multi_reduction <maximumf>, %902, %cst_519 [1] : vector<8x8xf32> to vector<8xf32>
    %904 = vector.shape_cast %903 : vector<8xf32> to vector<8x1xf32>
    %905 = vector.broadcast %904 : vector<8x1xf32> to vector<8x8xf32>
    %906 = arith.subf %902, %905 : vector<8x8xf32>
    %907 = math.exp %906 : vector<8x8xf32>
    %cst_520 = arith.constant dense<0.000000e+00> : vector<8xf32>
    %908 = vector.multi_reduction <add>, %907, %cst_520 [1] : vector<8x8xf32> to vector<8xf32>
    %909 = vector.shape_cast %908 : vector<8xf32> to vector<8x1xf32>
    %910 = tpu.reciprocal %909 {approx = true} : vector<8x1xf32> -> vector<8x1xf32>
    %911 = vector.broadcast %910 : vector<8x1xf32> to vector<8x8xf32>
    %912 = arith.mulf %907, %911 : vector<8x8xf32>
    %cst_521 = arith.constant dense<0.000000e+00> : vector<8x32xf32>
    %913 = tpu.matmul %912, %899, %cst_521 {dimension_numbers = #tpu.dot_dimension_numbers<[1], [0], [0], [1], [0, 0, 1, 1], [], []>} : vector<8x8xf32>, vector<8x32xf32>, vector<8x32xf32> -> vector<8x32xf32>
    %c7_522 = arith.constant 7 : index
    %c0_523 = arith.constant 0 : index
    %c0_524 = arith.constant 0 : index
    %914 = vector.load %arg10[%c7_522, %c0_523, %c0_524] : memref<8x32x32xf32, #tpu.memory_space<vmem>>, vector<1x32x32xf32>
    %915 = vector.shape_cast %914 : vector<1x32x32xf32> to vector<32x32xf32>
    %cst_525 = arith.constant dense<0.000000e+00> : vector<8x32xf32>
    %916 = tpu.matmul %913, %915, %cst_525 {dimension_numbers = #tpu.dot_dimension_numbers<[1], [0], [0], [1], [0, 0, 1, 1], [], []>} : vector<8x32xf32>, vector<32x32xf32>, vector<8x32xf32> -> vector<8x32xf32>
    %c7_526 = arith.constant 7 : index
    %c0_527 = arith.constant 0 : index
    %c0_528 = arith.constant 0 : index
    %917 = vector.load %arg11[%c7_526, %c0_527, %c0_528] : memref<8x1x32xf32, #tpu.memory_space<vmem>>, vector<1x1x32xf32>
    %918 = vector.shape_cast %917 : vector<1x1x32xf32> to vector<1x32xf32>
    %919 = vector.broadcast %918 : vector<1x32xf32> to vector<8x32xf32>
    %920 = arith.addf %916, %919 : vector<8x32xf32>
    %c7_529 = arith.constant 7 : index
    %c0_530 = arith.constant 0 : index
    %c0_531 = arith.constant 0 : index
    %921 = vector.load %arg12[%c7_529, %c0_530, %c0_531] : memref<8x32x32xf32, #tpu.memory_space<vmem>>, vector<1x32x32xf32>
    %922 = vector.shape_cast %921 : vector<1x32x32xf32> to vector<32x32xf32>
    %cst_532 = arith.constant dense<0.000000e+00> : vector<8x32xf32>
    %923 = tpu.matmul %881, %922, %cst_532 {dimension_numbers = #tpu.dot_dimension_numbers<[1], [0], [0], [1], [0, 0, 1, 1], [], []>} : vector<8x32xf32>, vector<32x32xf32>, vector<8x32xf32> -> vector<8x32xf32>
    %c7_533 = arith.constant 7 : index
    %c0_534 = arith.constant 0 : index
    %c0_535 = arith.constant 0 : index
    %924 = vector.load %arg13[%c7_533, %c0_534, %c0_535] : memref<8x32x32xf32, #tpu.memory_space<vmem>>, vector<1x32x32xf32>
    %925 = vector.shape_cast %924 : vector<1x32x32xf32> to vector<32x32xf32>
    %cst_536 = arith.constant dense<0.000000e+00> : vector<8x32xf32>
    %926 = tpu.matmul %920, %925, %cst_536 {dimension_numbers = #tpu.dot_dimension_numbers<[1], [0], [0], [1], [0, 0, 1, 1], [], []>} : vector<8x32xf32>, vector<32x32xf32>, vector<8x32xf32> -> vector<8x32xf32>
    %927 = arith.addf %923, %926 : vector<8x32xf32>
    %c7_537 = arith.constant 7 : index
    %c0_538 = arith.constant 0 : index
    %c0_539 = arith.constant 0 : index
    %928 = vector.load %arg14[%c7_537, %c0_538, %c0_539] : memref<8x1x32xf32, #tpu.memory_space<vmem>>, vector<1x1x32xf32>
    %929 = vector.shape_cast %928 : vector<1x1x32xf32> to vector<1x32xf32>
    %930 = vector.broadcast %929 : vector<1x32xf32> to vector<8x32xf32>
    %931 = arith.addf %927, %930 : vector<8x32xf32>
    %cst_540 = arith.constant dense<0.000000e+00> : vector<8xf32>
    %932 = vector.multi_reduction <add>, %931, %cst_540 [1] : vector<8x32xf32> to vector<8xf32>
    %933 = vector.shape_cast %932 : vector<8xf32> to vector<8x1xf32>
    %cst_541 = arith.constant 3.200000e+01 : f32
    %934 = vector.broadcast %cst_541 : f32 to vector<8x1xf32>
    %935 = arith.divf %933, %934 : vector<8x1xf32>
    %936 = vector.broadcast %935 : vector<8x1xf32> to vector<8x32xf32>
    %937 = arith.subf %931, %936 : vector<8x32xf32>
    %938 = arith.mulf %937, %937 : vector<8x32xf32>
    %cst_542 = arith.constant dense<0.000000e+00> : vector<8xf32>
    %939 = vector.multi_reduction <add>, %938, %cst_542 [1] : vector<8x32xf32> to vector<8xf32>
    %940 = vector.shape_cast %939 : vector<8xf32> to vector<8x1xf32>
    %cst_543 = arith.constant 3.200000e+01 : f32
    %941 = vector.broadcast %cst_543 : f32 to vector<8x1xf32>
    %942 = arith.divf %940, %941 : vector<8x1xf32>
    %943 = vector.broadcast %935 : vector<8x1xf32> to vector<8x32xf32>
    %944 = arith.subf %931, %943 : vector<8x32xf32>
    %cst_544 = arith.constant 9.99999974E-6 : f32
    %945 = vector.broadcast %cst_544 : f32 to vector<8x1xf32>
    %946 = arith.addf %942, %945 : vector<8x1xf32>
    %947 = math.rsqrt %946 : vector<8x1xf32>
    %948 = vector.broadcast %947 : vector<8x1xf32> to vector<8x32xf32>
    %949 = arith.mulf %944, %948 : vector<8x32xf32>
    %c7_545 = arith.constant 7 : index
    %c0_546 = arith.constant 0 : index
    %c0_547 = arith.constant 0 : index
    %950 = vector.load %arg15[%c7_545, %c0_546, %c0_547] : memref<8x1x32xf32, #tpu.memory_space<vmem>>, vector<1x1x32xf32>
    %951 = vector.shape_cast %950 : vector<1x1x32xf32> to vector<1x32xf32>
    %952 = vector.broadcast %951 : vector<1x32xf32> to vector<8x32xf32>
    %953 = arith.mulf %949, %952 : vector<8x32xf32>
    %c7_548 = arith.constant 7 : index
    %c0_549 = arith.constant 0 : index
    %c0_550 = arith.constant 0 : index
    %954 = vector.load %arg16[%c7_548, %c0_549, %c0_550] : memref<8x1x32xf32, #tpu.memory_space<vmem>>, vector<1x1x32xf32>
    %955 = vector.shape_cast %954 : vector<1x1x32xf32> to vector<1x32xf32>
    %956 = vector.broadcast %955 : vector<1x32xf32> to vector<8x32xf32>
    %957 = arith.addf %953, %956 : vector<8x32xf32>
    %cst_551 = arith.constant 5.000000e-01 : f32
    %958 = vector.broadcast %cst_551 : f32 to vector<8x32xf32>
    %959 = arith.mulf %958, %957 : vector<8x32xf32>
    %cst_552 = arith.constant 0.707106769 : f32
    %960 = vector.broadcast %cst_552 : f32 to vector<8x32xf32>
    %961 = arith.mulf %957, %960 : vector<8x32xf32>
    %cst_553 = arith.constant 0.000000e+00 : f32
    %962 = vector.broadcast %cst_553 : f32 to vector<8x32xf32>
    %963 = arith.cmpf oge, %961, %962 : vector<8x32xf32>
    %cst_554 = arith.constant 1.000000e+00 : f32
    %cst_555 = arith.constant -1.000000e+00 : f32
    %964 = vector.broadcast %cst_554 : f32 to vector<8x32xf32>
    %965 = vector.broadcast %cst_555 : f32 to vector<8x32xf32>
    %966 = arith.select %963, %964, %965 : vector<8x32xi1>, vector<8x32xf32>
    %967 = math.absf %961 : vector<8x32xf32>
    %cst_556 = arith.constant 0.327591091 : f32
    %968 = vector.broadcast %cst_556 : f32 to vector<8x32xf32>
    %969 = arith.mulf %968, %967 : vector<8x32xf32>
    %cst_557 = arith.constant 1.000000e+00 : f32
    %970 = vector.broadcast %cst_557 : f32 to vector<8x32xf32>
    %971 = arith.addf %970, %969 : vector<8x32xf32>
    %cst_558 = arith.constant 1.000000e+00 : f32
    %972 = vector.broadcast %cst_558 : f32 to vector<8x32xf32>
    %973 = arith.divf %972, %971 : vector<8x32xf32>
    %cst_559 = arith.constant 1.06140542 : f32
    %974 = vector.broadcast %cst_559 : f32 to vector<8x32xf32>
    %975 = arith.mulf %973, %974 : vector<8x32xf32>
    %cst_560 = arith.constant -1.45315206 : f32
    %976 = vector.broadcast %cst_560 : f32 to vector<8x32xf32>
    %977 = arith.addf %976, %975 : vector<8x32xf32>
    %978 = arith.mulf %973, %977 : vector<8x32xf32>
    %cst_561 = arith.constant 1.42141378 : f32
    %979 = vector.broadcast %cst_561 : f32 to vector<8x32xf32>
    %980 = arith.addf %979, %978 : vector<8x32xf32>
    %981 = arith.mulf %973, %980 : vector<8x32xf32>
    %cst_562 = arith.constant -0.284496725 : f32
    %982 = vector.broadcast %cst_562 : f32 to vector<8x32xf32>
    %983 = arith.addf %982, %981 : vector<8x32xf32>
    %984 = arith.mulf %973, %983 : vector<8x32xf32>
    %cst_563 = arith.constant 0.254829586 : f32
    %985 = vector.broadcast %cst_563 : f32 to vector<8x32xf32>
    %986 = arith.addf %985, %984 : vector<8x32xf32>
    %987 = arith.mulf %973, %986 : vector<8x32xf32>
    %cst_564 = arith.constant 0.000000e+00 : f32
    %988 = vector.broadcast %cst_564 : f32 to vector<8x32xf32>
    %989 = arith.subf %988, %967 : vector<8x32xf32>
    %990 = arith.mulf %989, %967 : vector<8x32xf32>
    %991 = math.exp %990 : vector<8x32xf32>
    %992 = arith.mulf %987, %991 : vector<8x32xf32>
    %cst_565 = arith.constant 1.000000e+00 : f32
    %993 = vector.broadcast %cst_565 : f32 to vector<8x32xf32>
    %994 = arith.subf %993, %992 : vector<8x32xf32>
    %995 = arith.mulf %966, %994 : vector<8x32xf32>
    %cst_566 = arith.constant 1.000000e+00 : f32
    %996 = vector.broadcast %cst_566 : f32 to vector<8x32xf32>
    %997 = arith.addf %996, %995 : vector<8x32xf32>
    %998 = arith.mulf %959, %997 : vector<8x32xf32>
    %c0_567 = arith.constant 0 : index
    %c0_568 = arith.constant 0 : index
    %999 = vector.load %arg17[%c0_567, %c0_568] : memref<32x16xf32, #tpu.memory_space<vmem>>, vector<32x16xf32>
    %cst_569 = arith.constant dense<0.000000e+00> : vector<8x16xf32>
    %1000 = tpu.matmul %998, %999, %cst_569 {dimension_numbers = #tpu.dot_dimension_numbers<[1], [0], [0], [1], [0, 0, 1, 1], [], []>} : vector<8x32xf32>, vector<32x16xf32>, vector<8x16xf32> -> vector<8x16xf32>
    %c0_570 = arith.constant 0 : index
    %c0_571 = arith.constant 0 : index
    %1001 = vector.load %arg18[%c0_570, %c0_571] : memref<1x16xf32, #tpu.memory_space<vmem>>, vector<1x16xf32>
    %1002 = vector.broadcast %1001 : vector<1x16xf32> to vector<8x16xf32>
    %1003 = arith.addf %1000, %1002 : vector<8x16xf32>
    %c0_572 = arith.constant 0 : index
    %c0_573 = arith.constant 0 : index
    %c0_574 = arith.constant 0 : index
    %1004 = vector.load %arg19[%c0_572, %c0_573, %c0_574] : memref<1x8x16xf32, #tpu.memory_space<vmem>>, vector<1x8x16xf32>
    %1005 = vector.shape_cast %1004 : vector<1x8x16xf32> to vector<8x16xf32>
    %1006 = vector.shape_cast %1003 : vector<8x16xf32> to vector<1x8x16xf32>
    tpu.vector_store %arg19[%c0_572, %c0_573, %c0_574], %1006 {strides = array<i32>} : memref<1x8x16xf32, #tpu.memory_space<vmem>>, vector<1x8x16xf32>,
    return
  }
  func.func @transform_0(%arg0: i32) -> (i32, i32, i32) {
    %c0_i32 = arith.constant 0 : i32
    %c0_i32_0 = arith.constant 0 : i32
    %c0_i32_1 = arith.constant 0 : i32
    return %arg0, %c0_i32, %c0_i32_0 : i32, i32, i32
  }
  func.func @transform_1(%arg0: i32) -> (i32, i32) {
    %c0_i32 = arith.constant 0 : i32
    %c0_i32_0 = arith.constant 0 : i32
    %c0_i32_1 = arith.constant 0 : i32
    return %c0_i32, %c0_i32_0 : i32, i32
  }
  func.func @transform_2(%arg0: i32) -> (i32, i32) {
    %c0_i32 = arith.constant 0 : i32
    %c0_i32_0 = arith.constant 0 : i32
    %c0_i32_1 = arith.constant 0 : i32
    return %c0_i32, %c0_i32_0 : i32, i32
  }
  func.func @transform_3(%arg0: i32) -> (i32, i32, i32) {
    %c0_i32 = arith.constant 0 : i32
    %c0_i32_0 = arith.constant 0 : i32
    %c0_i32_1 = arith.constant 0 : i32
    %c0_i32_2 = arith.constant 0 : i32
    return %c0_i32, %c0_i32_0, %c0_i32_1 : i32, i32, i32
  }
  func.func @transform_4(%arg0: i32) -> (i32, i32, i32) {
    %c0_i32 = arith.constant 0 : i32
    %c0_i32_0 = arith.constant 0 : i32
    %c0_i32_1 = arith.constant 0 : i32
    %c0_i32_2 = arith.constant 0 : i32
    return %c0_i32, %c0_i32_0, %c0_i32_1 : i32, i32, i32
  }
  func.func @transform_5(%arg0: i32) -> (i32, i32, i32) {
    %c0_i32 = arith.constant 0 : i32
    %c0_i32_0 = arith.constant 0 : i32
    %c0_i32_1 = arith.constant 0 : i32
    %c0_i32_2 = arith.constant 0 : i32
    return %c0_i32, %c0_i32_0, %c0_i32_1 : i32, i32, i32
  }
  func.func @transform_6(%arg0: i32) -> (i32, i32, i32) {
    %c0_i32 = arith.constant 0 : i32
    %c0_i32_0 = arith.constant 0 : i32
    %c0_i32_1 = arith.constant 0 : i32
    %c0_i32_2 = arith.constant 0 : i32
    return %c0_i32, %c0_i32_0, %c0_i32_1 : i32, i32, i32
  }
  func.func @transform_7(%arg0: i32) -> (i32, i32, i32) {
    %c0_i32 = arith.constant 0 : i32
    %c0_i32_0 = arith.constant 0 : i32
    %c0_i32_1 = arith.constant 0 : i32
    %c0_i32_2 = arith.constant 0 : i32
    return %c0_i32, %c0_i32_0, %c0_i32_1 : i32, i32, i32
  }
  func.func @transform_8(%arg0: i32) -> (i32, i32, i32) {
    %c0_i32 = arith.constant 0 : i32
    %c0_i32_0 = arith.constant 0 : i32
    %c0_i32_1 = arith.constant 0 : i32
    %c0_i32_2 = arith.constant 0 : i32
    return %c0_i32, %c0_i32_0, %c0_i32_1 : i32, i32, i32
  }
  func.func @transform_9(%arg0: i32) -> (i32, i32, i32) {
    %c0_i32 = arith.constant 0 : i32
    %c0_i32_0 = arith.constant 0 : i32
    %c0_i32_1 = arith.constant 0 : i32
    %c0_i32_2 = arith.constant 0 : i32
    return %c0_i32, %c0_i32_0, %c0_i32_1 : i32, i32, i32
  }
  func.func @transform_10(%arg0: i32) -> (i32, i32, i32) {
    %c0_i32 = arith.constant 0 : i32
    %c0_i32_0 = arith.constant 0 : i32
    %c0_i32_1 = arith.constant 0 : i32
    %c0_i32_2 = arith.constant 0 : i32
    return %c0_i32, %c0_i32_0, %c0_i32_1 : i32, i32, i32
  }
  func.func @transform_11(%arg0: i32) -> (i32, i32, i32) {
    %c0_i32 = arith.constant 0 : i32
    %c0_i32_0 = arith.constant 0 : i32
    %c0_i32_1 = arith.constant 0 : i32
    %c0_i32_2 = arith.constant 0 : i32
    return %c0_i32, %c0_i32_0, %c0_i32_1 : i32, i32, i32
  }
  func.func @transform_12(%arg0: i32) -> (i32, i32, i32) {
    %c0_i32 = arith.constant 0 : i32
    %c0_i32_0 = arith.constant 0 : i32
    %c0_i32_1 = arith.constant 0 : i32
    %c0_i32_2 = arith.constant 0 : i32
    return %c0_i32, %c0_i32_0, %c0_i32_1 : i32, i32, i32
  }
  func.func @transform_13(%arg0: i32) -> (i32, i32, i32) {
    %c0_i32 = arith.constant 0 : i32
    %c0_i32_0 = arith.constant 0 : i32
    %c0_i32_1 = arith.constant 0 : i32
    %c0_i32_2 = arith.constant 0 : i32
    return %c0_i32, %c0_i32_0, %c0_i32_1 : i32, i32, i32
  }
  func.func @transform_14(%arg0: i32) -> (i32, i32, i32) {
    %c0_i32 = arith.constant 0 : i32
    %c0_i32_0 = arith.constant 0 : i32
    %c0_i32_1 = arith.constant 0 : i32
    %c0_i32_2 = arith.constant 0 : i32
    return %c0_i32, %c0_i32_0, %c0_i32_1 : i32, i32, i32
  }
  func.func @transform_15(%arg0: i32) -> (i32, i32, i32) {
    %c0_i32 = arith.constant 0 : i32
    %c0_i32_0 = arith.constant 0 : i32
    %c0_i32_1 = arith.constant 0 : i32
    %c0_i32_2 = arith.constant 0 : i32
    return %c0_i32, %c0_i32_0, %c0_i32_1 : i32, i32, i32
  }
  func.func @transform_16(%arg0: i32) -> (i32, i32) {
    %c0_i32 = arith.constant 0 : i32
    %c0_i32_0 = arith.constant 0 : i32
    %c0_i32_1 = arith.constant 0 : i32
    return %c0_i32, %c0_i32_0 : i32, i32
  }
  func.func @transform_17(%arg0: i32) -> (i32, i32) {
    %c0_i32 = arith.constant 0 : i32
    %c0_i32_0 = arith.constant 0 : i32
    %c0_i32_1 = arith.constant 0 : i32
    return %c0_i32, %c0_i32_0 : i32, i32
  }
  func.func @transform_18(%arg0: i32) -> (i32, i32, i32) {
    %c0_i32 = arith.constant 0 : i32
    %c0_i32_0 = arith.constant 0 : i32
    %c0_i32_1 = arith.constant 0 : i32
    return %arg0, %c0_i32, %c0_i32_0 : i32, i32, i32
  }
}

</mosaic_0001>

<llo_original>
// kernel: body_forward_fused.1
$region0: #{body_forward_fused.1}
  #allocation0 [shape = 'u32[]', space=smem, size = 0x4, offset = 0x4, fixed_abs, tag = 'smem constant byte address 0x4 - core index']
  #allocation1 [shape = 'u32[144,128]{1,0:T(1,128)}', space=vmem, size = 0x12000, scoped, tag = 'internal scratch']
  %s0 = inlined_call_operand.vmem [shape: f32[2,8,16], index: 0, kind: input, shape index: {}]
  %s1 = inlined_call_operand.vmem [shape: f32[16,32], index: 1, kind: input, shape index: {}]
  %s2 = inlined_call_operand.vmem [shape: f32[1,32], index: 2, kind: input, shape index: {}]
  %s3 = inlined_call_operand.hbm [shape: f32[8,32,32], index: 3, kind: input, shape index: {}]
  %s4 = inlined_call_operand.vmem [shape: f32[8,1,32], index: 4, kind: input, shape index: {}]
  %s5 = inlined_call_operand.hbm [shape: f32[8,32,32], index: 5, kind: input, shape index: {}]
  %s6 = inlined_call_operand.vmem [shape: f32[8,1,32], index: 6, kind: input, shape index: {}]
  %s7 = inlined_call_operand.hbm [shape: f32[8,32,96], index: 7, kind: input, shape index: {}]
  %s8 = inlined_call_operand.vmem [shape: f32[8,1,96], index: 8, kind: input, shape index: {}]
  %s9 = inlined_call_operand.hbm [shape: f32[8,32,32], index: 9, kind: input, shape index: {}]
  %s10 = inlined_call_operand.vmem [shape: f32[8,1,32], index: 10, kind: input, shape index: {}]
  %s11 = inlined_call_operand.hbm [shape: f32[8,32,32], index: 11, kind: input, shape index: {}]
  %s12 = inlined_call_operand.hbm [shape: f32[8,32,32], index: 12, kind: input, shape index: {}]
  %s13 = inlined_call_operand.hbm [shape: f32[8,1,32], index: 13, kind: input, shape index: {}]
  %s14 = inlined_call_operand.hbm [shape: f32[8,1,32], index: 14, kind: input, shape index: {}]
  %s15 = inlined_call_operand.hbm [shape: f32[8,1,32], index: 15, kind: input, shape index: {}]
  %s16 = inlined_call_operand.vmem [shape: f32[32,16], index: 16, kind: input, shape index: {}]
  %s17 = inlined_call_operand.vmem [shape: f32[1,16], index: 17, kind: input, shape index: {}]
  %s18 = inlined_call_operand.hbm [shape: f32[2,8,16], index: 18, kind: output, shape index: {}]
  %s19 = sld [smem:[#allocation0]]
  $region141: #{body_forward_fused.1} parent=0
    _
  %s21 = ssub.s32 1, %s19
  %s22 = scalar_select 0, %s21, %s19
  $region1: #{body_forward_fused.1} parent=0
    #allocation2 [shape = 'u8[131072]{0}', space=vmem, size = 0x20000, scoped, tag = 'input window, operand 3, single buffered']
    #allocation3 [shape = 's32[2]{0}', space=sflag, size = 0x8, scoped, tag = 'scoped memory for body_forward_fused.1']
    #allocation4 [shape = 's32[2]{0}', space=sflag, size = 0x8, scoped, tag = 'scoped memory for body_forward_fused.1']
    #allocation5 [shape = 'u8[131072]{0}', space=vmem, size = 0x20000, scoped, tag = 'input window, operand 5, single buffered']
    #allocation6 [shape = 's32[1]{0}', space=sflag, size = 0x4, scoped, tag = 'scoped memory for body_forward_fused.1']
    #allocation7 [shape = 'u8[131072]{0}', space=vmem, size = 0x20000, scoped, tag = 'input window, operand 7, single buffered']
    #allocation8 [shape = 'u8[131072]{0}', space=vmem, size = 0x20000, scoped, tag = 'input window, operand 9, single buffered']
    #allocation9 [shape = 's32[1]{0}', space=sflag, size = 0x4, scoped, tag = 'scoped memory for body_forward_fused.1']
    #allocation10 [shape = 'u8[131072]{0}', space=vmem, size = 0x20000, scoped, tag = 'input window, operand 11, single buffered']
    #allocation11 [shape = 'u8[131072]{0}', space=vmem, size = 0x20000, scoped, tag = 'input window, operand 12, single buffered']
    #allocation12 [shape = 's32[1]{0}', space=sflag, size = 0x4, scoped, tag = 'scoped memory for body_forward_fused.1']
    #allocation13 [shape = 'u8[4096]{0}', space=vmem, size = 0x1000, scoped, tag = 'input window, operand 13, single buffered']
    #allocation14 [shape = 'u8[4096]{0}', space=vmem, size = 0x1000, scoped, tag = 'input window, operand 14, single buffered']
    #allocation15 [shape = 's32[1]{0}', space=sflag, size = 0x4, scoped, tag = 'scoped memory for body_forward_fused.1']
    #allocation16 [shape = 'u8[4096]{0}', space=vmem, size = 0x1000, scoped, tag = 'input window, operand 15, single buffered']
    #allocation17 [shape = 'u8[8192]{0}', space=vmem, size = 0x2000, scoped, tag = 'output window, operand 0']
    %23 = vsyncpa [#allocation3], 0
    %24 = vsyncpa [#allocation6], 0
    %25 = vsyncpa [#allocation9], 0
    %26 = vsyncpa [#allocation12], 0
    %27 = vsyncpa [#allocation15], 0
    %28 = vsyncpa [#allocation4], 0
    %s29 = scalar_lea.sflag [#allocation4], 1
    %30 = vsyncpa %s29, 0
    loop: start=0, step=1, limit=4
    $region2: #{body_forward_fused.1} parent=1 // loop_pre_header
      _
    $region3: #{body_forward_fused.1} parent=1 // loop_header
      %s32 = sphi 0, %s36
      %p33 = scmp.ge.s32.totalorder %s32, 4
      %s42 = sphi 0, %s44
      %s45 = sphi 0, %s42
      %s46 = sphi 0, %s45
      %s62 = sphi 0, %s46
      %s66 = sphi 0, %s66
      %s68 = sphi 0, %s66
      %s69 = sphi 0, %s68
      %s83 = sphi 0, %s69
      %s87 = sphi 0, %s87
      %s89 = sphi 0, %s87
      %s90 = sphi 0, %s89
      %s104 = sphi 0, %s90
      %s108 = sphi 0, %s108
      %s110 = sphi 0, %s108
      %s111 = sphi 0, %s110
      %s125 = sphi 0, %s111
      %s129 = sphi 0, %s129
      %s131 = sphi 0, %s129
      %s132 = sphi 0, %s131
      %s146 = sphi 0, %s132
      %s150 = sphi 0, %s150
      %s152 = sphi 0, %s150
      %s153 = sphi 0, %s152
      %s167 = sphi 0, %s153
      %s171 = sphi 0, %s171
      %s173 = sphi 0, %s171
      %s174 = sphi 0, %s173
      %s188 = sphi 0, %s174
      %s192 = sphi 0, %s192
      %s194 = sphi 0, %s192
      %s195 = sphi 0, %s194
      %s209 = sphi 0, %s195
      %s213 = sphi 0, %s213
      %s215 = sphi 0, %s213
      %s216 = sphi 0, %s215
      %s230 = sphi 0, %s216
      %s234 = sphi 0, %s234
      %s236 = sphi 0, %s234
      %s237 = sphi 0, %s236
      %s251 = sphi 0, %s237
      %s255 = sphi 0, %s255
      %s257 = sphi 0, %s255
      %s258 = sphi 0, %s257
      %s272 = sphi 0, %s258
      %s276 = sphi 0, %s276
      %s278 = sphi 0, %s276
      %s279 = sphi 0, %s278
      %s293 = sphi 0, %s279
      %s297 = sphi 0, %s297
      %s299 = sphi 0, %s297
      %s300 = sphi 0, %s299
      %s314 = sphi 0, %s300
      %s318 = sphi 0, %s318
      %s320 = sphi 0, %s318
      %s321 = sphi 0, %s320
      %s335 = sphi 0, %s321
      %s339 = sphi 0, %s339
      %s341 = sphi 0, %s339
      %s342 = sphi 0, %s341
      %s356 = sphi 0, %s342
      %s360 = sphi 0, %s360
      %s362 = sphi 0, %s360
      %s363 = sphi 0, %s362
      %s377 = sphi 0, %s363
      %s381 = sphi 0, %s381
      %s383 = sphi 0, %s381
      %s384 = sphi 0, %s383
      %s398 = sphi 0, %s384
      %s402 = sphi 0, %s402
      %s404 = sphi 0, %s402
      %s405 = sphi 0, %s404
      %s419 = sphi 0, %s405
      %s425 = sphi 0, %s427
      %s428 = sphi 0, %s425
      %s429 = sphi 0, %s428
      %s445 = sphi 0, %s429
    $region4: #{body_forward_fused.1} parent=1 // loop_header_branch
      %35 = sbr.rel (%p33) target = $region8
    $region5: #{body_forward_fused.1} parent=1 // loop_body
      %s37 = ssub.s32 %s32, 1
      %s38 = ssub.s32 %s32, 2
      %s39 = sadd.s32 %s32, 1
      %s40 = ssub.s32 %s32, %s39
      %p41 = scmp.eq.s32.totalorder %s40, 0
      %s43 = sadd.s32 %s42, 1
      %s44 = scalar_select %p41, %s42, %s43
      %p47 = pneg %p41
      %p48 = scmp.eq.s32.totalorder %s32, 1
      %p49 = por %p47, %p48
      %p50 = scmp.ne.s32.totalorder %s42, %s45
      %p51 = scmp.eq.s32.totalorder %s32, 0
      %p52 = por %p50, %p51
      %p53 = scmp.ne.s32.totalorder %s42, %s45
      %p54 = scmp.eq.s32.totalorder %s37, 1
      %p55 = por %p53, %p54
      %p56 = scmp.ne.s32.totalorder %s45, %s46
      %p57 = scmp.eq.s32.totalorder %s37, 0
      %p58 = por %p56, %p57
      %p59 = scmp.ne.s32.totalorder %s45, %s46
      %p60 = scmp.eq.s32.totalorder %s38, 1
      %p61 = por %p59, %p60
      %p63 = scmp.ne.s32.totalorder %s46, %s62
      %p64 = scmp.eq.s32.totalorder %s38, 0
      %p65 = por %p63, %p64
      %s67 = sadd.s32 %s66, 1
      %p70 = scmp.eq.s32.totalorder %s32, 1
      %p71 = scmp.ne.s32.totalorder %s66, %s68
      %p72 = scmp.eq.s32.totalorder %s32, 0
      %p73 = por %p71, %p72
      %p74 = scmp.ne.s32.totalorder %s66, %s68
      %p75 = scmp.eq.s32.totalorder %s37, 1
      %p76 = por %p74, %p75
      %p77 = scmp.ne.s32.totalorder %s68, %s69
      %p78 = scmp.eq.s32.totalorder %s37, 0
      %p79 = por %p77, %p78
      %p80 = scmp.ne.s32.totalorder %s68, %s69
      %p81 = scmp.eq.s32.totalorder %s38, 1
      %p82 = por %p80, %p81
      %p84 = scmp.ne.s32.totalorder %s69, %s83
      %p85 = scmp.eq.s32.totalorder %s38, 0
      %p86 = por %p84, %p85
      %s88 = sadd.s32 %s87, 1
      %p91 = scmp.eq.s32.totalorder %s32, 1
      %p92 = scmp.ne.s32.totalorder %s87, %s89
      %p93 = scmp.eq.s32.totalorder %s32, 0
      %p94 = por %p92, %p93
      %p95 = scmp.ne.s32.totalorder %s87, %s89
      %p96 = scmp.eq.s32.totalorder %s37, 1
      %p97 = por %p95, %p96
      %p98 = scmp.ne.s32.totalorder %s89, %s90
      %p99 = scmp.eq.s32.totalorder %s37, 0
      %p100 = por %p98, %p99
      %p101 = scmp.ne.s32.totalorder %s89, %s90
      %p102 = scmp.eq.s32.totalorder %s38, 1
      %p103 = por %p101, %p102
      %p105 = scmp.ne.s32.totalorder %s90, %s104
      %p106 = scmp.eq.s32.totalorder %s38, 0
      %p107 = por %p105, %p106
      %s109 = sadd.s32 %s108, 1
      %p112 = scmp.eq.s32.totalorder %s32, 1
      %p113 = scmp.ne.s32.totalorder %s108, %s110
      %p114 = scmp.eq.s32.totalorder %s32, 0
      %p115 = por %p113, %p114
      %p116 = scmp.ne.s32.totalorder %s108, %s110
      %p117 = scmp.eq.s32.totalorder %s37, 1
      %p118 = por %p116, %p117
      %p119 = scmp.ne.s32.totalorder %s110, %s111
      %p120 = scmp.eq.s32.totalorder %s37, 0
      %p121 = por %p119, %p120
      %p122 = scmp.ne.s32.totalorder %s110, %s111
      %p123 = scmp.eq.s32.totalorder %s38, 1
      %p124 = por %p122, %p123
      %p126 = scmp.ne.s32.totalorder %s111, %s125
      %p127 = scmp.eq.s32.totalorder %s38, 0
      %p128 = por %p126, %p127
      %s130 = sadd.s32 %s129, 1
      %p133 = scmp.eq.s32.totalorder %s32, 1
      %p134 = scmp.ne.s32.totalorder %s129, %s131
      %p135 = scmp.eq.s32.totalorder %s32, 0
      %p136 = por %p134, %p135
      %p137 = scmp.ne.s32.totalorder %s129, %s131
      %p138 = scmp.eq.s32.totalorder %s37, 1
      %p139 = por %p137, %p138
      %p140 = scmp.ne.s32.totalorder %s131, %s132
      %p141 = scmp.eq.s32.totalorder %s37, 0
      %p142 = por %p140, %p141
      %p143 = scmp.ne.s32.totalorder %s131, %s132
      %p144 = scmp.eq.s32.totalorder %s38, 1
      %p145 = por %p143, %p144
      %p147 = scmp.ne.s32.totalorder %s132, %s146
      %p148 = scmp.eq.s32.totalorder %s38, 0
      %p149 = por %p147, %p148
      %s151 = sadd.s32 %s150, 1
      %p154 = scmp.eq.s32.totalorder %s32, 1
      %p155 = scmp.ne.s32.totalorder %s150, %s152
      %p156 = scmp.eq.s32.totalorder %s32, 0
      %p157 = por %p155, %p156
      %p158 = scmp.ne.s32.totalorder %s150, %s152
      %p159 = scmp.eq.s32.totalorder %s37, 1
      %p160 = por %p158, %p159
      %p161 = scmp.ne.s32.totalorder %s152, %s153
      %p162 = scmp.eq.s32.totalorder %s37, 0
      %p163 = por %p161, %p162
      %p164 = scmp.ne.s32.totalorder %s152, %s153
      %p165 = scmp.eq.s32.totalorder %s38, 1
      %p166 = por %p164, %p165
      %p168 = scmp.ne.s32.totalorder %s153, %s167
      %p169 = scmp.eq.s32.totalorder %s38, 0
      %p170 = por %p168, %p169
      %s172 = sadd.s32 %s171, 1
      %p175 = scmp.eq.s32.totalorder %s32, 1
      %p176 = scmp.ne.s32.totalorder %s171, %s173
      %p177 = scmp.eq.s32.totalorder %s32, 0
      %p178 = por %p176, %p177
      %p179 = scmp.ne.s32.totalorder %s171, %s173
      %p180 = scmp.eq.s32.totalorder %s37, 1
      %p181 = por %p179, %p180
      %p182 = scmp.ne.s32.totalorder %s173, %s174
      %p183 = scmp.eq.s32.totalorder %s37, 0
      %p184 = por %p182, %p183
      %p185 = scmp.ne.s32.totalorder %s173, %s174
      %p186 = scmp.eq.s32.totalorder %s38, 1
      %p187 = por %p185, %p186
      %p189 = scmp.ne.s32.totalorder %s174, %s188
      %p190 = scmp.eq.s32.totalorder %s38, 0
      %p191 = por %p189, %p190
      %s193 = sadd.s32 %s192, 1
      %p196 = scmp.eq.s32.totalorder %s32, 1
      %p197 = scmp.ne.s32.totalorder %s192, %s194
      %p198 = scmp.eq.s32.totalorder %s32, 0
      %p199 = por %p197, %p198
      %p200 = scmp.ne.s32.totalorder %s192, %s194
      %p201 = scmp.eq.s32.totalorder %s37, 1
      %p202 = por %p200, %p201
      %p203 = scmp.ne.s32.totalorder %s194, %s195
      %p204 = scmp.eq.s32.totalorder %s37, 0
      %p205 = por %p203, %p204
      %p206 = scmp.ne.s32.totalorder %s194, %s195
      %p207 = scmp.eq.s32.totalorder %s38, 1
      %p208 = por %p206, %p207
      %p210 = scmp.ne.s32.totalorder %s195, %s209
      %p211 = scmp.eq.s32.totalorder %s38, 0
      %p212 = por %p210, %p211
      %s214 = sadd.s32 %s213, 1
      %p217 = scmp.eq.s32.totalorder %s32, 1
      %p218 = scmp.ne.s32.totalorder %s213, %s215
      %p219 = scmp.eq.s32.totalorder %s32, 0
      %p220 = por %p218, %p219
      %p221 = scmp.ne.s32.totalorder %s213, %s215
      %p222 = scmp.eq.s32.totalorder %s37, 1
      %p223 = por %p221, %p222
      %p224 = scmp.ne.s32.totalorder %s215, %s216
      %p225 = scmp.eq.s32.totalorder %s37, 0
      %p226 = por %p224, %p225
      %p227 = scmp.ne.s32.totalorder %s215, %s216
      %p228 = scmp.eq.s32.totalorder %s38, 1
      %p229 = por %p227, %p228
      %p231 = scmp.ne.s32.totalorder %s216, %s230
      %p232 = scmp.eq.s32.totalorder %s38, 0
      %p233 = por %p231, %p232
      %s235 = sadd.s32 %s234, 1
      %p238 = scmp.eq.s32.totalorder %s32, 1
      %p239 = scmp.ne.s32.totalorder %s234, %s236
      %p240 = scmp.eq.s32.totalorder %s32, 0
      %p241 = por %p239, %p240
      %p242 = scmp.ne.s32.totalorder %s234, %s236
      %p243 = scmp.eq.s32.totalorder %s37, 1
      %p244 = por %p242, %p243
      %p245 = scmp.ne.s32.totalorder %s236, %s237
      %p246 = scmp.eq.s32.totalorder %s37, 0
      %p247 = por %p245, %p246
      %p248 = scmp.ne.s32.totalorder %s236, %s237
      %p249 = scmp.eq.s32.totalorder %s38, 1
      %p250 = por %p248, %p249
      %p252 = scmp.ne.s32.totalorder %s237, %s251
      %p253 = scmp.eq.s32.totalorder %s38, 0
      %p254 = por %p252, %p253
      %s256 = sadd.s32 %s255, 1
      %p259 = scmp.eq.s32.totalorder %s32, 1
      %p260 = scmp.ne.s32.totalorder %s255, %s257
      %p261 = scmp.eq.s32.totalorder %s32, 0
      %p262 = por %p260, %p261
      %p263 = scmp.ne.s32.totalorder %s255, %s257
      %p264 = scmp.eq.s32.totalorder %s37, 1
      %p265 = por %p263, %p264
      %p266 = scmp.ne.s32.totalorder %s257, %s258
      %p267 = scmp.eq.s32.totalorder %s37, 0
      %p268 = por %p266, %p267
      %p269 = scmp.ne.s32.totalorder %s257, %s258
      %p270 = scmp.eq.s32.totalorder %s38, 1
      %p271 = por %p269, %p270
      %p273 = scmp.ne.s32.totalorder %s258, %s272
      %p274 = scmp.eq.s32.totalorder %s38, 0
      %p275 = por %p273, %p274
      %s277 = sadd.s32 %s276, 1
      %p280 = scmp.eq.s32.totalorder %s32, 1
      %p281 = scmp.ne.s32.totalorder %s276, %s278
      %p282 = scmp.eq.s32.totalorder %s32, 0
      %p283 = por %p281, %p282
      %p284 = scmp.ne.s32.totalorder %s276, %s278
      %p285 = scmp.eq.s32.totalorder %s37, 1
      %p286 = por %p284, %p285
      %p287 = scmp.ne.s32.totalorder %s278, %s279
      %p288 = scmp.eq.s32.totalorder %s37, 0
      %p289 = por %p287, %p288
      %p290 = scmp.ne.s32.totalorder %s278, %s279
      %p291 = scmp.eq.s32.totalorder %s38, 1
      %p292 = por %p290, %p291
      %p294 = scmp.ne.s32.totalorder %s279, %s293
      %p295 = scmp.eq.s32.totalorder %s38, 0
      %p296 = por %p294, %p295
      %s298 = sadd.s32 %s297, 1
      %p301 = scmp.eq.s32.totalorder %s32, 1
      %p302 = scmp.ne.s32.totalorder %s297, %s299
      %p303 = scmp.eq.s32.totalorder %s32, 0
      %p304 = por %p302, %p303
      %p305 = scmp.ne.s32.totalorder %s297, %s299
      %p306 = scmp.eq.s32.totalorder %s37, 1
      %p307 = por %p305, %p306
      %p308 = scmp.ne.s32.totalorder %s299, %s300
      %p309 = scmp.eq.s32.totalorder %s37, 0
      %p310 = por %p308, %p309
      %p311 = scmp.ne.s32.totalorder %s299, %s300
      %p312 = scmp.eq.s32.totalorder %s38, 1
      %p313 = por %p311, %p312
      %p315 = scmp.ne.s32.totalorder %s300, %s314
      %p316 = scmp.eq.s32.totalorder %s38, 0
      %p317 = por %p315, %p316
      %s319 = sadd.s32 %s318, 1
      %p322 = scmp.eq.s32.totalorder %s32, 1
      %p323 = scmp.ne.s32.totalorder %s318, %s320
      %p324 = scmp.eq.s32.totalorder %s32, 0
      %p325 = por %p323, %p324
      %p326 = scmp.ne.s32.totalorder %s318, %s320
      %p327 = scmp.eq.s32.totalorder %s37, 1
      %p328 = por %p326, %p327
      %p329 = scmp.ne.s32.totalorder %s320, %s321
      %p330 = scmp.eq.s32.totalorder %s37, 0
      %p331 = por %p329, %p330
      %p332 = scmp.ne.s32.totalorder %s320, %s321
      %p333 = scmp.eq.s32.totalorder %s38, 1
      %p334 = por %p332, %p333
      %p336 = scmp.ne.s32.totalorder %s321, %s335
      %p337 = scmp.eq.s32.totalorder %s38, 0
      %p338 = por %p336, %p337
      %s340 = sadd.s32 %s339, 1
      %p343 = scmp.eq.s32.totalorder %s32, 1
      %p344 = scmp.ne.s32.totalorder %s339, %s341
      %p345 = scmp.eq.s32.totalorder %s32, 0
      %p346 = por %p344, %p345
      %p347 = scmp.ne.s32.totalorder %s339, %s341
      %p348 = scmp.eq.s32.totalorder %s37, 1
      %p349 = por %p347, %p348
      %p350 = scmp.ne.s32.totalorder %s341, %s342
      %p351 = scmp.eq.s32.totalorder %s37, 0
      %p352 = por %p350, %p351
      %p353 = scmp.ne.s32.totalorder %s341, %s342
      %p354 = scmp.eq.s32.totalorder %s38, 1
      %p355 = por %p353, %p354
      %p357 = scmp.ne.s32.totalorder %s342, %s356
      %p358 = scmp.eq.s32.totalorder %s38, 0
      %p359 = por %p357, %p358
      %s361 = sadd.s32 %s360, 1
      %p364 = scmp.eq.s32.totalorder %s32, 1
      %p365 = scmp.ne.s32.totalorder %s360, %s362
      %p366 = scmp.eq.s32.totalorder %s32, 0
      %p367 = por %p365, %p366
      %p368 = scmp.ne.s32.totalorder %s360, %s362
      %p369 = scmp.eq.s32.totalorder %s37, 1
      %p370 = por %p368, %p369
      %p371 = scmp.ne.s32.totalorder %s362, %s363
      %p372 = scmp.eq.s32.totalorder %s37, 0
      %p373 = por %p371, %p372
      %p374 = scmp.ne.s32.totalorder %s362, %s363
      %p375 = scmp.eq.s32.totalorder %s38, 1
      %p376 = por %p374, %p375
      %p378 = scmp.ne.s32.totalorder %s363, %s377
      %p379 = scmp.eq.s32.totalorder %s38, 0
      %p380 = por %p378, %p379
      %s382 = sadd.s32 %s381, 1
      %p385 = scmp.eq.s32.totalorder %s32, 1
      %p386 = scmp.ne.s32.totalorder %s381, %s383
      %p387 = scmp.eq.s32.totalorder %s32, 0
      %p388 = por %p386, %p387
      %p389 = scmp.ne.s32.totalorder %s381, %s383
      %p390 = scmp.eq.s32.totalorder %s37, 1
      %p391 = por %p389, %p390
      %p392 = scmp.ne.s32.totalorder %s383, %s384
      %p393 = scmp.eq.s32.totalorder %s37, 0
      %p394 = por %p392, %p393
      %p395 = scmp.ne.s32.totalorder %s383, %s384
      %p396 = scmp.eq.s32.totalorder %s38, 1
      %p397 = por %p395, %p396
      %p399 = scmp.ne.s32.totalorder %s384, %s398
      %p400 = scmp.eq.s32.totalorder %s38, 0
      %p401 = por %p399, %p400
      %s403 = sadd.s32 %s402, 1
      %p406 = scmp.eq.s32.totalorder %s32, 1
      %p407 = scmp.ne.s32.totalorder %s402, %s404
      %p408 = scmp.eq.s32.totalorder %s32, 0
      %p409 = por %p407, %p408
      %p410 = scmp.ne.s32.totalorder %s402, %s404
      %p411 = scmp.eq.s32.totalorder %s37, 1
      %p412 = por %p410, %p411
      %p413 = scmp.ne.s32.totalorder %s404, %s405
      %p414 = scmp.eq.s32.totalorder %s37, 0
      %p415 = por %p413, %p414
      %p416 = scmp.ne.s32.totalorder %s404, %s405
      %p417 = scmp.eq.s32.totalorder %s38, 1
      %p418 = por %p416, %p417
      %p420 = scmp.ne.s32.totalorder %s405, %s419
      %p421 = scmp.eq.s32.totalorder %s38, 0
      %p422 = por %p420, %p421
      %s423 = ssub.s32 %s32, %s39
      %p424 = scmp.eq.s32.totalorder %s423, 0
      %s426 = sadd.s32 %s425, 1
      %s427 = scalar_select %p424, %s425, %s426
      %p430 = pneg %p424
      %p431 = scmp.eq.s32.totalorder %s32, 1
      %p432 = por %p430, %p431
      %p433 = scmp.ne.s32.totalorder %s425, %s428
      %p434 = scmp.eq.s32.totalorder %s32, 0
      %p435 = por %p433, %p434
      %p436 = scmp.ne.s32.totalorder %s425, %s428
      %p437 = scmp.eq.s32.totalorder %s37, 1
      %p438 = por %p436, %p437
      %p439 = scmp.ne.s32.totalorder %s428, %s429
      %p440 = scmp.eq.s32.totalorder %s37, 0
      %p441 = por %p439, %p440
      %p442 = scmp.ne.s32.totalorder %s428, %s429
      %p443 = scmp.eq.s32.totalorder %s38, 1
      %p444 = por %p442, %p443
      %p446 = scmp.ne.s32.totalorder %s429, %s445
      %p447 = scmp.eq.s32.totalorder %s38, 0
      %p448 = por %p446, %p447
      %p449 = scmp.le.s32.totalorder 1, %s32
      %p450 = scmp.lt.s32.totalorder %s32, 3
      %p451 = pnand %p449, %p450
      %p452 = pneg %p451
      // Predicated region
      $region9: #{body_forward_fused.1} parent=5 // pred_check
        _
      $region10: #{body_forward_fused.1} parent=5 // pred_check_branch
        %454 = sbr.rel (%p451) target = $region12
      $region11: #{body_forward_fused.1} parent=5 // pred_region
        %s455 = ssub.s32 %s32, 1
        // Predicated region
        $region13: #{body_forward_fused.1} parent=11 // pred_check
          %p456 = pneg %p79
        $region14: #{body_forward_fused.1} parent=11 // pred_check_branch
          %458 = sbr.rel (%p456) target = $region16
        $region15: #{body_forward_fused.1} parent=11 // pred_region
          _
        $region16: #{body_forward_fused.1} parent=11 // pred_fallthru
          _
        // Predicated region
        $region17: #{body_forward_fused.1} parent=11 // pred_check
          %p459 = pneg %p100
        $region18: #{body_forward_fused.1} parent=11 // pred_check_branch
          %461 = sbr.rel (%p459) target = $region20
        $region19: #{body_forward_fused.1} parent=11 // pred_region
          _
        $region20: #{body_forward_fused.1} parent=11 // pred_fallthru
          _
        // Predicated region
        $region21: #{body_forward_fused.1} parent=11 // pred_check
          %p462 = pneg %p121
        $region22: #{body_forward_fused.1} parent=11 // pred_check_branch
          %464 = sbr.rel (%p462) target = $region24
        $region23: #{body_forward_fused.1} parent=11 // pred_region
          %s466 = ssub.s32 4096, 4096
          %467 = vsyncadd [#allocation3], %s466
          %s468 = sshll.u32 [#allocation2], 4
          %s469 = int_to_ptr.vmem [resolvable:$true] %s468
          %474 = dma.hbm_to_vmem [thread:$0]  %s3, 4096, %s469, [#allocation3], 128, 128, 8
        $region24: #{body_forward_fused.1} parent=11 // pred_fallthru
          _
        // Predicated region
        $region25: #{body_forward_fused.1} parent=11 // pred_check
          %p475 = pneg %p142
        $region26: #{body_forward_fused.1} parent=11 // pred_check_branch
          %477 = sbr.rel (%p475) target = $region28
        $region27: #{body_forward_fused.1} parent=11 // pred_region
          _
        $region28: #{body_forward_fused.1} parent=11 // pred_fallthru
          _
        // Predicated region
        $region29: #{body_forward_fused.1} parent=11 // pred_check
          %p478 = pneg %p163
        $region30: #{body_forward_fused.1} parent=11 // pred_check_branch
          %480 = sbr.rel (%p478) target = $region32
        $region31: #{body_forward_fused.1} parent=11 // pred_region
          %s482 = ssub.s32 4096, 4096
          %483 = vsyncadd [#allocation6], %s482
          %s484 = sshll.u32 [#allocation5], 4
          %s485 = int_to_ptr.vmem [resolvable:$true] %s484
          %490 = dma.hbm_to_vmem [thread:$0]  %s5, 4096, %s485, [#allocation6], 128, 128, 8
        $region32: #{body_forward_fused.1} parent=11 // pred_fallthru
          _
        // Predicated region
        $region33: #{body_forward_fused.1} parent=11 // pred_check
          %p491 = pneg %p184
        $region34: #{body_forward_fused.1} parent=11 // pred_check_branch
          %493 = sbr.rel (%p491) target = $region36
        $region35: #{body_forward_fused.1} parent=11 // pred_region
          _
        $region36: #{body_forward_fused.1} parent=11 // pred_fallthru
          _
        // Predicated region
        $region37: #{body_forward_fused.1} parent=11 // pred_check
          %p494 = pneg %p205
        $region38: #{body_forward_fused.1} parent=11 // pred_check_branch
          %496 = sbr.rel (%p494) target = $region40
        $region39: #{body_forward_fused.1} parent=11 // pred_region
          %s498 = ssub.s32 4096, 4096
          %499 = vsyncadd [#allocation6], %s498
          %s500 = sshll.u32 [#allocation7], 4
          %s501 = int_to_ptr.vmem [resolvable:$true] %s500
          %506 = dma.hbm_to_vmem [thread:$0]  %s7, 4096, %s501, [#allocation6], 128, 128, 8
        $region40: #{body_forward_fused.1} parent=11 // pred_fallthru
          _
        // Predicated region
        $region41: #{body_forward_fused.1} parent=11 // pred_check
          %p507 = pneg %p226
        $region42: #{body_forward_fused.1} parent=11 // pred_check_branch
          %509 = sbr.rel (%p507) target = $region44
        $region43: #{body_forward_fused.1} parent=11 // pred_region
          _
        $region44: #{body_forward_fused.1} parent=11 // pred_fallthru
          _
        // Predicated region
        $region45: #{body_forward_fused.1} parent=11 // pred_check
          %p510 = pneg %p247
        $region46: #{body_forward_fused.1} parent=11 // pred_check_branch
          %512 = sbr.rel (%p510) target = $region48
        $region47: #{body_forward_fused.1} parent=11 // pred_region
          %s514 = ssub.s32 4096, 4096
          %515 = vsyncadd [#allocation9], %s514
          %s516 = sshll.u32 [#allocation8], 4
          %s517 = int_to_ptr.vmem [resolvable:$true] %s516
          %522 = dma.hbm_to_vmem [thread:$0]  %s9, 4096, %s517, [#allocation9], 128, 128, 8
        $region48: #{body_forward_fused.1} parent=11 // pred_fallthru
          _
        // Predicated region
        $region49: #{body_forward_fused.1} parent=11 // pred_check
          %p523 = pneg %p268
        $region50: #{body_forward_fused.1} parent=11 // pred_check_branch
          %525 = sbr.rel (%p523) target = $region52
        $region51: #{body_forward_fused.1} parent=11 // pred_region
          _
        $region52: #{body_forward_fused.1} parent=11 // pred_fallthru
          _
        // Predicated region
        $region53: #{body_forward_fused.1} parent=11 // pred_check
          %p526 = pneg %p289
        $region54: #{body_forward_fused.1} parent=11 // pred_check_branch
          %528 = sbr.rel (%p526) target = $region56
        $region55: #{body_forward_fused.1} parent=11 // pred_region
          %s530 = ssub.s32 4096, 4096
          %531 = vsyncadd [#allocation9], %s530
          %s532 = sshll.u32 [#allocation10], 4
          %s533 = int_to_ptr.vmem [resolvable:$true] %s532
          %538 = dma.hbm_to_vmem [thread:$0]  %s11, 4096, %s533, [#allocation9], 128, 128, 8
        $region56: #{body_forward_fused.1} parent=11 // pred_fallthru
          _
        // Predicated region
        $region57: #{body_forward_fused.1} parent=11 // pred_check
          %p539 = pneg %p310
        $region58: #{body_forward_fused.1} parent=11 // pred_check_branch
          %541 = sbr.rel (%p539) target = $region60
        $region59: #{body_forward_fused.1} parent=11 // pred_region
          %s543 = ssub.s32 4096, 4096
          %544 = vsyncadd [#allocation12], %s543
          %s545 = sshll.u32 [#allocation11], 4
          %s546 = int_to_ptr.vmem [resolvable:$true] %s545
          %551 = dma.hbm_to_vmem [thread:$0]  %s12, 4096, %s546, [#allocation12], 128, 128, 8
        $region60: #{body_forward_fused.1} parent=11 // pred_fallthru
          _
        // Predicated region
        $region61: #{body_forward_fused.1} parent=11 // pred_check
          %p552 = pneg %p331
        $region62: #{body_forward_fused.1} parent=11 // pred_check_branch
          %554 = sbr.rel (%p552) target = $region64
        $region63: #{body_forward_fused.1} parent=11 // pred_region
          %s556 = ssub.s32 128, 128
          %557 = vsyncadd [#allocation12], %s556
          %s558 = sshll.u32 [#allocation13], 4
          %s559 = int_to_ptr.vmem [resolvable:$true] %s558
          %564 = dma.hbm_to_vmem [thread:$0]  %s13, 128, %s559, [#allocation12], 16, 16, 1
        $region64: #{body_forward_fused.1} parent=11 // pred_fallthru
          _
        // Predicated region
        $region65: #{body_forward_fused.1} parent=11 // pred_check
          %p565 = pneg %p352
        $region66: #{body_forward_fused.1} parent=11 // pred_check_branch
          %567 = sbr.rel (%p565) target = $region68
        $region67: #{body_forward_fused.1} parent=11 // pred_region
          %s569 = ssub.s32 128, 128
          %570 = vsyncadd [#allocation15], %s569
          %s571 = sshll.u32 [#allocation14], 4
          %s572 = int_to_ptr.vmem [resolvable:$true] %s571
          %577 = dma.hbm_to_vmem [thread:$0]  %s14, 128, %s572, [#allocation15], 16, 16, 1
        $region68: #{body_forward_fused.1} parent=11 // pred_fallthru
          _
        // Predicated region
        $region69: #{body_forward_fused.1} parent=11 // pred_check
          %p578 = pneg %p373
        $region70: #{body_forward_fused.1} parent=11 // pred_check_branch
          %580 = sbr.rel (%p578) target = $region72
        $region71: #{body_forward_fused.1} parent=11 // pred_region
          %s582 = ssub.s32 128, 128
          %583 = vsyncadd [#allocation15], %s582
          %s584 = sshll.u32 [#allocation16], 4
          %s585 = int_to_ptr.vmem [resolvable:$true] %s584
          %590 = dma.hbm_to_vmem [thread:$0]  %s15, 128, %s585, [#allocation15], 16, 16, 1
        $region72: #{body_forward_fused.1} parent=11 // pred_fallthru
          _
        // Predicated region
        $region73: #{body_forward_fused.1} parent=11 // pred_check
          %p591 = pneg %p394
        $region74: #{body_forward_fused.1} parent=11 // pred_check_branch
          %593 = sbr.rel (%p591) target = $region76
        $region75: #{body_forward_fused.1} parent=11 // pred_region
          _
        $region76: #{body_forward_fused.1} parent=11 // pred_fallthru
          _
        // Predicated region
        $region77: #{body_forward_fused.1} parent=11 // pred_check
          %p594 = pneg %p415
        $region78: #{body_forward_fused.1} parent=11 // pred_check_branch
          %596 = sbr.rel (%p594) target = $region80
        $region79: #{body_forward_fused.1} parent=11 // pred_region
          _
        $region80: #{body_forward_fused.1} parent=11 // pred_fallthru
          _
      $region12: #{body_forward_fused.1} parent=5 // pred_fallthru
        _
      %p597 = scmp.lt.s32.totalorder %s32, 2
      // Predicated region
      $region81: #{body_forward_fused.1} parent=5 // pred_check
        %p598 = pneg %p597
      $region82: #{body_forward_fused.1} parent=5 // pred_check_branch
        %600 = sbr.rel (%p598) target = $region84
      $region83: #{body_forward_fused.1} parent=5 // pred_region
        // Predicated region
        $region85: #{body_forward_fused.1} parent=83 // pred_check
          %p601 = pneg %p52
        $region86: #{body_forward_fused.1} parent=83 // pred_check_branch
          %603 = sbr.rel (%p601) target = $region88
        $region87: #{body_forward_fused.1} parent=83 // pred_region
          %p604 = scmp.lt.s32.totalorder %s32, 1
          %s605 = scalar_select %p604, %s32, 1
          %s606 = smul.addr %s605, 8
          %s607 = scalar_lea.vmem %s0, %s606
        $region88: #{body_forward_fused.1} parent=83 // pred_fallthru
          _
      $region84: #{body_forward_fused.1} parent=5 // pred_fallthru
        _
      %p608 = scmp.le.s32.totalorder 1, %s32
      %p609 = scmp.lt.s32.totalorder %s32, 3
      %p610 = pnand %p608, %p609
      %p611 = pneg %p610
      // Predicated region
      $region89: #{body_forward_fused.1} parent=5 // pred_check
        _
      $region90: #{body_forward_fused.1} parent=5 // pred_check_branch
        %613 = sbr.rel (%p610) target = $region92
      $region91: #{body_forward_fused.1} parent=5 // pred_region
        %s614 = ssub.s32 %s32, 1
        // Predicated region
        $region93: #{body_forward_fused.1} parent=91 // pred_check
          %p615 = pneg %p121
        $region94: #{body_forward_fused.1} parent=91 // pred_check_branch
          %617 = sbr.rel (%p615) target = $region96
        $region95: #{body_forward_fused.1} parent=91 // pred_region
          %618 = dma.done [#allocation3], 4096
        $region96: #{body_forward_fused.1} parent=91 // pred_fallthru
          _
        // Predicated region
        $region97: #{body_forward_fused.1} parent=91 // pred_check
          %p619 = pneg %p163
        $region98: #{body_forward_fused.1} parent=91 // pred_check_branch
          %621 = sbr.rel (%p619) target = $region100
        $region99: #{body_forward_fused.1} parent=91 // pred_region
          %622 = dma.done [#allocation6], 4096
        $region100: #{body_forward_fused.1} parent=91 // pred_fallthru
          _
        // Predicated region
        $region101: #{body_forward_fused.1} parent=91 // pred_check
          %p623 = pneg %p205
        $region102: #{body_forward_fused.1} parent=91 // pred_check_branch
          %625 = sbr.rel (%p623) target = $region104
        $region103: #{body_forward_fused.1} parent=91 // pred_region
          %626 = dma.done [#allocation6], 4096
        $region104: #{body_forward_fused.1} parent=91 // pred_fallthru
          _
        // Predicated region
        $region105: #{body_forward_fused.1} parent=91 // pred_check
          %p627 = pneg %p247
        $region106: #{body_forward_fused.1} parent=91 // pred_check_branch
          %629 = sbr.rel (%p627) target = $region108
        $region107: #{body_forward_fused.1} parent=91 // pred_region
          %630 = dma.done [#allocation9], 4096
        $region108: #{body_forward_fused.1} parent=91 // pred_fallthru
          _
        // Predicated region
        $region109: #{body_forward_fused.1} parent=91 // pred_check
          %p631 = pneg %p289
        $region110: #{body_forward_fused.1} parent=91 // pred_check_branch
          %633 = sbr.rel (%p631) target = $region112
        $region111: #{body_forward_fused.1} parent=91 // pred_region
          %634 = dma.done [#allocation9], 4096
        $region112: #{body_forward_fused.1} parent=91 // pred_fallthru
          _
        // Predicated region
        $region113: #{body_forward_fused.1} parent=91 // pred_check
          %p635 = pneg %p310
        $region114: #{body_forward_fused.1} parent=91 // pred_check_branch
          %637 = sbr.rel (%p635) target = $region116
        $region115: #{body_forward_fused.1} parent=91 // pred_region
          %638 = dma.done [#allocation12], 4096
        $region116: #{body_forward_fused.1} parent=91 // pred_fallthru
          _
        // Predicated region
        $region117: #{body_forward_fused.1} parent=91 // pred_check
          %p639 = pneg %p331
        $region118: #{body_forward_fused.1} parent=91 // pred_check_branch
          %641 = sbr.rel (%p639) target = $region120
        $region119: #{body_forward_fused.1} parent=91 // pred_region
          %642 = dma.done [#allocation12], 128
        $region120: #{body_forward_fused.1} parent=91 // pred_fallthru
          _
        // Predicated region
        $region121: #{body_forward_fused.1} parent=91 // pred_check
          %p643 = pneg %p352
        $region122: #{body_forward_fused.1} parent=91 // pred_check_branch
          %645 = sbr.rel (%p643) target = $region124
        $region123: #{body_forward_fused.1} parent=91 // pred_region
          %646 = dma.done [#allocation15], 128
        $region124: #{body_forward_fused.1} parent=91 // pred_fallthru
          _
        // Predicated region
        $region125: #{body_forward_fused.1} parent=91 // pred_check
          %p647 = pneg %p373
        $region126: #{body_forward_fused.1} parent=91 // pred_check_branch
          %649 = sbr.rel (%p647) target = $region128
        $region127: #{body_forward_fused.1} parent=91 // pred_region
          %650 = dma.done [#allocation15], 128
        $region128: #{body_forward_fused.1} parent=91 // pred_fallthru
          _
        %p651 = scmp.lt.s32.totalorder %s37, 1
        %s652 = scalar_select %p651, %s37, 1
        %s653 = smul.addr %s652, 8
        %s654 = scalar_lea.vmem %s0, %s653
        %p655 = pneg %p58
        %p656 = pneg %p55
        %p657 = pneg %p79
        %p658 = pneg %p76
        %p659 = pneg %p100
        %p660 = pneg %p97
        %p661 = pneg %p121
        %p662 = pneg %p118
        %p663 = pneg %p142
        %p664 = pneg %p139
        %p665 = pneg %p163
        %p666 = pneg %p160
        %p667 = pneg %p184
        %p668 = pneg %p181
        %p669 = pneg %p205
        %p670 = pneg %p202
        %p671 = pneg %p226
        %p672 = pneg %p223
        %p673 = pneg %p247
        %p674 = pneg %p244
        %p675 = pneg %p268
        %p676 = pneg %p265
        %p677 = pneg %p289
        %p678 = pneg %p286
        %p679 = pneg %p310
        %p680 = pneg %p307
        %p681 = pneg %p331
        %p682 = pneg %p328
        %p683 = pneg %p352
        %p684 = pneg %p349
        %p685 = pneg %p373
        %p686 = pneg %p370
        %p687 = pneg %p394
        %p688 = pneg %p391
        %p689 = pneg %p415
        %p690 = pneg %p412
        %p691 = pneg %p441
        %p692 = pneg %p438
        %s693 = sand.u32 %s428, 1
        %s694 = scalar_lea.sflag [#allocation4], %s693
        %s695 = sand.u32 %s428, 1
        %s696 = smul.addr %s695, 8
        %s697 = scalar_lea.vmem [#allocation17], %s696
        %p698 = scmp.lt.s32.totalorder %s37, 1
        %s699 = scalar_select %p698, %s37, 1
        %s700 = smul.addr %s699, 8
        %s701 = scalar_lea.vmem %s0, %s700
        %v702 = vld [vmem:[%s701] sm:$0xff]
        %v703 = vld [vmem:[%s1] sm:$0xff]
        %v704 = vld [vmem:[%s1 + $0x8] sm:$0xff]
        %v705 = vld [vmem:[%s2] sm:$0x1]
        %v707 = vlaneseq
        %v708 = vshrl.u32 %v707, 7
        %v709 = vsub.s32 0, %v708
        %v710 = vrot.slane %v705, %v709
        %vm712 = vcmask 130048
        %v714 = vsel %vm712, %v702, 0
        %716 = vmatprep.subr.mxu0 0.0
        %717 = vmatpush1.msra.mxu0 %v703
        %718 = vmatprep.subr.mxu0 0.0
        %719 = vmatpush1.msra.mxu0 %v704
        %720 = vmatprep.subr.mxu0 0.0
        %721 = vmatpush1.msra.mxu0 0.0
        %722 = vmatprep.subr.mxu0 0.0
        %723 = vmatpush1.msra.mxu0 0.0
        %724 = vmatprep.subr.mxu0 0.0
        %725 = vmatpush1.msra.mxu0 0.0
        %726 = vmatprep.subr.mxu0 0.0
        %727 = vmatpush1.msra.mxu0 0.0
        %728 = vmatprep.subr.mxu0 0.0
        %729 = vmatpush1.msra.mxu0 0.0
        %730 = vmatprep.subr.mxu0 0.0
        %731 = vmatpush1.msra.mxu0 0.0
        %732 = vmatprep.subr.mxu0 0.0
        %733 = vmatpush1.msra.mxu0 0.0
        %734 = vmatprep.subr.mxu0 0.0
        %735 = vmatpush1.msra.mxu0 0.0
        %736 = vmatprep.subr.mxu0 0.0
        %737 = vmatpush1.msra.mxu0 0.0
        %738 = vmatprep.subr.mxu0 0.0
        %739 = vmatpush1.msra.mxu0 0.0
        %740 = vmatprep.subr.mxu0 0.0
        %741 = vmatpush1.msra.mxu0 0.0
        %742 = vmatprep.subr.mxu0 0.0
        %743 = vmatpush1.msra.mxu0 0.0
        %744 = vmatprep.subr.mxu0 0.0
        %745 = vmatpush1.msra.mxu0 0.0
        %746 = vmatprep.subr.mxu0 0.0
        %747 = vmatpush1.msra.mxu0 0.0
        %748 = vmatprep.subr.mxu0 0.0
        %749 = vmatpush1.msra.mxu0 0.0
        %750 = vmatprep.subr.mxu0 0.0
        %751 = vmatpush1.msra.mxu0 0.0
        %752 = vmatprep.subr.mxu0 0.0
        %753 = vmatpush1.msra.mxu0 0.0
        %754 = vmatprep.subr.mxu0 0.0
        %755 = vmatpush1.msra.mxu0 0.0
        %756 = vmatprep.subr.mxu0 0.0
        %757 = vmatpush1.msra.mxu0 0.0
        %758 = vmatprep.subr.mxu0 0.0
        %759 = vmatpush1.msra.mxu0 0.0
        %760 = vmatprep.subr.mxu0 0.0
        %761 = vmatpush1.msra.mxu0 0.0
        %762 = vmatprep.subr.mxu0 0.0
        %763 = vmatpush1.msra.mxu0 0.0
        %764 = vmatprep.subr.mxu0 0.0
        %765 = vmatpush1.msra.mxu0 0.0
        %766 = vmatprep.subr.mxu0 0.0
        %767 = vmatpush1.msra.mxu0 0.0
        %768 = vmatprep.subr.mxu0 0.0
        %769 = vmatpush1.msra.mxu0 0.0
        %770 = vmatprep.subr.mxu0 0.0
        %771 = vmatpush1.msra.mxu0 0.0
        %772 = vmatprep.subr.mxu0 0.0
        %773 = vmatpush1.msra.mxu0 0.0
        %774 = vmatprep.subr.mxu0 0.0
        %775 = vmatpush1.msra.mxu0 0.0
        %776 = vmatprep.subr.mxu0 0.0
        %777 = vmatpush1.msra.mxu0 0.0
        %778 = vmatprep.subr.mxu0 0.0
        %779 = vmatpush1.msra.mxu0 0.0
        %780 = vmatprep.mubr.f32.mxu0 0.0
        %781 = vmatmul.mubr.f32.gmra.mrb[0].mxu0 %v714
        %v782 = vpop.f32.mrb[0].mxu0
        %v783 = vadd.f32 %v710, %v782
        %v784 = vpop.f32.mrb[0].mxu0
        %785 = vdwg.mxu0
        %v786 = vld [vmem:[#allocation2] sm:$0xff]
        %v787 = vld [vmem:[#allocation2 + $0x8] sm:$0xff]
        %v788 = vld [vmem:[#allocation2 + $0x10] sm:$0xff]
        %v789 = vld [vmem:[#allocation2 + $0x18] sm:$0xff]
        %v790 = vld [vmem:[%s4] sm:$0x1]
        %v792 = vlaneseq
        %v793 = vshrl.u32 %v792, 7
        %v794 = vsub.s32 0, %v793
        %v795 = vrot.slane %v790, %v794
        %vm797 = vcmask 261120
        %v799 = vsel %vm797, %v783, 0
        %801 = vmatprep.subr.mxu0 0.0
        %802 = vmatpush1.msra.mxu0 %v786
        %803 = vmatprep.subr.mxu0 0.0
        %804 = vmatpush1.msra.mxu0 %v787
        %805 = vmatprep.subr.mxu0 0.0
        %806 = vmatpush1.msra.mxu0 %v788
        %807 = vmatprep.subr.mxu0 0.0
        %808 = vmatpush1.msra.mxu0 %v789
        %809 = vmatprep.subr.mxu0 0.0
        %810 = vmatpush1.msra.mxu0 0.0
        %811 = vmatprep.subr.mxu0 0.0
        %812 = vmatpush1.msra.mxu0 0.0
        %813 = vmatprep.subr.mxu0 0.0
        %814 = vmatpush1.msra.mxu0 0.0
        %815 = vmatprep.subr.mxu0 0.0
        %816 = vmatpush1.msra.mxu0 0.0
        %817 = vmatprep.subr.mxu0 0.0
        %818 = vmatpush1.msra.mxu0 0.0
        %819 = vmatprep.subr.mxu0 0.0
        %820 = vmatpush1.msra.mxu0 0.0
        %821 = vmatprep.subr.mxu0 0.0
        %822 = vmatpush1.msra.mxu0 0.0
        %823 = vmatprep.subr.mxu0 0.0
        %824 = vmatpush1.msra.mxu0 0.0
        %825 = vmatprep.subr.mxu0 0.0
        %826 = vmatpush1.msra.mxu0 0.0
        %827 = vmatprep.subr.mxu0 0.0
        %828 = vmatpush1.msra.mxu0 0.0
        %829 = vmatprep.subr.mxu0 0.0
        %830 = vmatpush1.msra.mxu0 0.0
        %831 = vmatprep.subr.mxu0 0.0
        %832 = vmatpush1.msra.mxu0 0.0
        %833 = vmatprep.subr.mxu0 0.0
        %834 = vmatpush1.msra.mxu0 0.0
        %835 = vmatprep.subr.mxu0 0.0
        %836 = vmatpush1.msra.mxu0 0.0
        %837 = vmatprep.subr.mxu0 0.0
        %838 = vmatpush1.msra.mxu0 0.0
        %839 = vmatprep.subr.mxu0 0.0
        %840 = vmatpush1.msra.mxu0 0.0
        %841 = vmatprep.subr.mxu0 0.0
        %842 = vmatpush1.msra.mxu0 0.0
        %843 = vmatprep.subr.mxu0 0.0
        %844 = vmatpush1.msra.mxu0 0.0
        %845 = vmatprep.subr.mxu0 0.0
        %846 = vmatpush1.msra.mxu0 0.0
        %847 = vmatprep.subr.mxu0 0.0
        %848 = vmatpush1.msra.mxu0 0.0
        %849 = vmatprep.subr.mxu0 0.0
        %850 = vmatpush1.msra.mxu0 0.0
        %851 = vmatprep.subr.mxu0 0.0
        %852 = vmatpush1.msra.mxu0 0.0
        %853 = vmatprep.subr.mxu0 0.0
        %854 = vmatpush1.msra.mxu0 0.0
        %855 = vmatprep.subr.mxu0 0.0
        %856 = vmatpush1.msra.mxu0 0.0
        %857 = vmatprep.subr.mxu0 0.0
        %858 = vmatpush1.msra.mxu0 0.0
        %859 = vmatprep.subr.mxu0 0.0
        %860 = vmatpush1.msra.mxu0 0.0
        %861 = vmatprep.subr.mxu0 0.0
        %862 = vmatpush1.msra.mxu0 0.0
        %863 = vmatprep.subr.mxu0 0.0
        %864 = vmatpush1.msra.mxu0 0.0
        %865 = vmatprep.mubr.f32.mxu0 0.0
        %866 = vmatmul.mubr.f32.gmra.mrb[0].mxu0 %v799
        %v867 = vpop.f32.mrb[0].mxu0
        %v868 = vadd.f32 %v795, %v867
        %v869 = vpop.f32.mrb[0].mxu0
        %870 = vdwg.mxu0
        %v871 = vld [vmem:[#allocation5] sm:$0xff]
        %v872 = vld [vmem:[#allocation5 + $0x8] sm:$0xff]
        %v873 = vld [vmem:[#allocation5 + $0x10] sm:$0xff]
        %v874 = vld [vmem:[#allocation5 + $0x18] sm:$0xff]
        %v875 = vld [vmem:[%s6] sm:$0x1]
        %v877 = vlaneseq
        %v878 = vshrl.u32 %v877, 7
        %v879 = vsub.s32 0, %v878
        %v880 = vrot.slane %v875, %v879
        %v883 = vsel %vm797, %v868, 0
        %885 = vmatprep.subr.mxu0 0.0
        %886 = vmatpush1.msra.mxu0 %v871
        %887 = vmatprep.subr.mxu0 0.0
        %888 = vmatpush1.msra.mxu0 %v872
        %889 = vmatprep.subr.mxu0 0.0
        %890 = vmatpush1.msra.mxu0 %v873
        %891 = vmatprep.subr.mxu0 0.0
        %892 = vmatpush1.msra.mxu0 %v874
        %893 = vmatprep.subr.mxu0 0.0
        %894 = vmatpush1.msra.mxu0 0.0
        %895 = vmatprep.subr.mxu0 0.0
        %896 = vmatpush1.msra.mxu0 0.0
        %897 = vmatprep.subr.mxu0 0.0
        %898 = vmatpush1.msra.mxu0 0.0
        %899 = vmatprep.subr.mxu0 0.0
        %900 = vmatpush1.msra.mxu0 0.0
        %901 = vmatprep.subr.mxu0 0.0
        %902 = vmatpush1.msra.mxu0 0.0
        %903 = vmatprep.subr.mxu0 0.0
        %904 = vmatpush1.msra.mxu0 0.0
        %905 = vmatprep.subr.mxu0 0.0
        %906 = vmatpush1.msra.mxu0 0.0
        %907 = vmatprep.subr.mxu0 0.0
        %908 = vmatpush1.msra.mxu0 0.0
        %909 = vmatprep.subr.mxu0 0.0
        %910 = vmatpush1.msra.mxu0 0.0
        %911 = vmatprep.subr.mxu0 0.0
        %912 = vmatpush1.msra.mxu0 0.0
        %913 = vmatprep.subr.mxu0 0.0
        %914 = vmatpush1.msra.mxu0 0.0
        %915 = vmatprep.subr.mxu0 0.0
        %916 = vmatpush1.msra.mxu0 0.0
        %917 = vmatprep.subr.mxu0 0.0
        %918 = vmatpush1.msra.mxu0 0.0
        %919 = vmatprep.subr.mxu0 0.0
        %920 = vmatpush1.msra.mxu0 0.0
        %921 = vmatprep.subr.mxu0 0.0
        %922 = vmatpush1.msra.mxu0 0.0
        %923 = vmatprep.subr.mxu0 0.0
        %924 = vmatpush1.msra.mxu0 0.0
        %925 = vmatprep.subr.mxu0 0.0
        %926 = vmatpush1.msra.mxu0 0.0
        %927 = vmatprep.subr.mxu0 0.0
        %928 = vmatpush1.msra.mxu0 0.0
        %929 = vmatprep.subr.mxu0 0.0
        %930 = vmatpush1.msra.mxu0 0.0
        %931 = vmatprep.subr.mxu0 0.0
        %932 = vmatpush1.msra.mxu0 0.0
        %933 = vmatprep.subr.mxu0 0.0
        %934 = vmatpush1.msra.mxu0 0.0
        %935 = vmatprep.subr.mxu0 0.0
        %936 = vmatpush1.msra.mxu0 0.0
        %937 = vmatprep.subr.mxu0 0.0
        %938 = vmatpush1.msra.mxu0 0.0
        %939 = vmatprep.subr.mxu0 0.0
        %940 = vmatpush1.msra.mxu0 0.0
        %941 = vmatprep.subr.mxu0 0.0
        %942 = vmatpush1.msra.mxu0 0.0
        %943 = vmatprep.subr.mxu0 0.0
        %944 = vmatpush1.msra.mxu0 0.0
        %945 = vmatprep.subr.mxu0 0.0
        %946 = vmatpush1.msra.mxu0 0.0
        %947 = vmatprep.subr.mxu0 0.0
        %948 = vmatpush1.msra.mxu0 0.0
        %949 = vmatprep.mubr.f32.mxu0 0.0
        %950 = vmatmul.mubr.f32.gmra.mrb[0].mxu0 %v883
        %v951 = vpop.f32.mrb[0].mxu0
        %v952 = vadd.f32 %v880, %v951
        %v953 = vpop.f32.mrb[0].mxu0
        %954 = vdwg.mxu0
        %v955 = vtanh.pop %v952
        %v956 = vld [vmem:[#allocation7] sm:$0xff]
        %v957 = vld [vmem:[#allocation7 + $0x8] sm:$0xff]
        %v958 = vld [vmem:[#allocation7 + $0x10] sm:$0xff]
        %v959 = vld [vmem:[#allocation7 + $0x18] sm:$0xff]
        %v960 = vld [vmem:[%s8] sm:$0x1]
        %v962 = vlaneseq
        %v963 = vshrl.u32 %v962, 7
        %v964 = vsub.s32 0, %v963
        %v965 = vrot.slane %v960, %v964
        %v968 = vsel %vm797, %v955, 0
        %970 = vmatprep.subr.mxu0 0.0
        %971 = vmatpush1.msra.mxu0 %v956
        %972 = vmatprep.subr.mxu0 0.0
        %973 = vmatpush1.msra.mxu0 %v957
        %974 = vmatprep.subr.mxu0 0.0
        %975 = vmatpush1.msra.mxu0 %v958
        %976 = vmatprep.subr.mxu0 0.0
        %977 = vmatpush1.msra.mxu0 %v959
        %978 = vmatprep.subr.mxu0 0.0
        %979 = vmatpush1.msra.mxu0 0.0
        %980 = vmatprep.subr.mxu0 0.0
        %981 = vmatpush1.msra.mxu0 0.0
        %982 = vmatprep.subr.mxu0 0.0
        %983 = vmatpush1.msra.mxu0 0.0
        %984 = vmatprep.subr.mxu0 0.0
        %985 = vmatpush1.msra.mxu0 0.0
        %986 = vmatprep.subr.mxu0 0.0
        %987 = vmatpush1.msra.mxu0 0.0
        %988 = vmatprep.subr.mxu0 0.0
        %989 = vmatpush1.msra.mxu0 0.0
        %990 = vmatprep.subr.mxu0 0.0
        %991 = vmatpush1.msra.mxu0 0.0
        %992 = vmatprep.subr.mxu0 0.0
        %993 = vmatpush1.msra.mxu0 0.0
        %994 = vmatprep.subr.mxu0 0.0
        %995 = vmatpush1.msra.mxu0 0.0
        %996 = vmatprep.subr.mxu0 0.0
        %997 = vmatpush1.msra.mxu0 0.0
        %998 = vmatprep.subr.mxu0 0.0
        %999 = vmatpush1.msra.mxu0 0.0
        %1000 = vmatprep.subr.mxu0 0.0
        %1001 = vmatpush1.msra.mxu0 0.0
        %1002 = vmatprep.subr.mxu0 0.0
        %1003 = vmatpush1.msra.mxu0 0.0
        %1004 = vmatprep.subr.mxu0 0.0
        %1005 = vmatpush1.msra.mxu0 0.0
        %1006 = vmatprep.subr.mxu0 0.0
        %1007 = vmatpush1.msra.mxu0 0.0
        %1008 = vmatprep.subr.mxu0 0.0
        %1009 = vmatpush1.msra.mxu0 0.0
        %1010 = vmatprep.subr.mxu0 0.0
        %1011 = vmatpush1.msra.mxu0 0.0
        %1012 = vmatprep.subr.mxu0 0.0
        %1013 = vmatpush1.msra.mxu0 0.0
        %1014 = vmatprep.subr.mxu0 0.0
        %1015 = vmatpush1.msra.mxu0 0.0
        %1016 = vmatprep.subr.mxu0 0.0
        %1017 = vmatpush1.msra.mxu0 0.0
        %1018 = vmatprep.subr.mxu0 0.0
        %1019 = vmatpush1.msra.mxu0 0.0
        %1020 = vmatprep.subr.mxu0 0.0
        %1021 = vmatpush1.msra.mxu0 0.0
        %1022 = vmatprep.subr.mxu0 0.0
        %1023 = vmatpush1.msra.mxu0 0.0
        %1024 = vmatprep.subr.mxu0 0.0
        %1025 = vmatpush1.msra.mxu0 0.0
        %1026 = vmatprep.subr.mxu0 0.0
        %1027 = vmatpush1.msra.mxu0 0.0
        %1028 = vmatprep.subr.mxu0 0.0
        %1029 = vmatpush1.msra.mxu0 0.0
        %1030 = vmatprep.subr.mxu0 0.0
        %1031 = vmatpush1.msra.mxu0 0.0
        %1032 = vmatprep.subr.mxu0 0.0
        %1033 = vmatpush1.msra.mxu0 0.0
        %1034 = vmatprep.mubr.f32.mxu0 0.0
        %1035 = vmatmul.mubr.f32.gmra.mrb[0].mxu0 %v968
        %v1036 = vpop.f32.mrb[0].mxu0
        %v1037 = vadd.f32 %v965, %v1036
        %v1038 = vpop.f32.mrb[0].mxu0
        %1039 = vdwg.mxu0
        %1041 = vrot.lane.b32.xlu0 %v1037, 96
        %v1042 = vpop.permute.xlu0 %1041
        %v1043 = vsel %vm797, %v1037, 0
        %v1045 = vsel %vm797, %v1042, 0
        %1047 = vmatprep.subr.mxu0 0.0
        %1048 = vmatpush1.xpose.msra.mxu0 %v1045
        %1049 = vmatprep.subr.mxu0 0.0
        %1050 = vmatpush1.xpose.msra.mxu0 0.0
        %1051 = vmatprep.subr.mxu0 0.0
        %1052 = vmatpush1.xpose.msra.mxu0 0.0
        %1053 = vmatprep.subr.mxu0 0.0
        %1054 = vmatpush1.xpose.msra.mxu0 0.0
        %1055 = vmatprep.subr.mxu0 0.0
        %1056 = vmatpush1.xpose.msra.mxu0 0.0
        %1057 = vmatprep.subr.mxu0 0.0
        %1058 = vmatpush1.xpose.msra.mxu0 0.0
        %1059 = vmatprep.subr.mxu0 0.0
        %1060 = vmatpush1.xpose.msra.mxu0 0.0
        %1061 = vmatprep.subr.mxu0 0.0
        %1062 = vmatpush1.xpose.msra.mxu0 0.0
        %1063 = vmatprep.subr.mxu0 0.0
        %1064 = vmatpush1.xpose.msra.mxu0 0.0
        %1065 = vmatprep.subr.mxu0 0.0
        %1066 = vmatpush1.xpose.msra.mxu0 0.0
        %1067 = vmatprep.subr.mxu0 0.0
        %1068 = vmatpush1.xpose.msra.mxu0 0.0
        %1069 = vmatprep.subr.mxu0 0.0
        %1070 = vmatpush1.xpose.msra.mxu0 0.0
        %1071 = vmatprep.subr.mxu0 0.0
        %1072 = vmatpush1.xpose.msra.mxu0 0.0
        %1073 = vmatprep.subr.mxu0 0.0
        %1074 = vmatpush1.xpose.msra.mxu0 0.0
        %1075 = vmatprep.subr.mxu0 0.0
        %1076 = vmatpush1.xpose.msra.mxu0 0.0
        %1077 = vmatprep.subr.mxu0 0.0
        %1078 = vmatpush1.xpose.msra.mxu0 0.0
        %1079 = vmatprep.subr.mxu0 0.0
        %1080 = vmatpush1.xpose.msra.mxu0 0.0
        %1081 = vmatprep.subr.mxu0 0.0
        %1082 = vmatpush1.xpose.msra.mxu0 0.0
        %1083 = vmatprep.subr.mxu0 0.0
        %1084 = vmatpush1.xpose.msra.mxu0 0.0
        %1085 = vmatprep.subr.mxu0 0.0
        %1086 = vmatpush1.xpose.msra.mxu0 0.0
        %1087 = vmatprep.subr.mxu0 0.0
        %1088 = vmatpush1.xpose.msra.mxu0 0.0
        %1089 = vmatprep.subr.mxu0 0.0
        %1090 = vmatpush1.xpose.msra.mxu0 0.0
        %1091 = vmatprep.subr.mxu0 0.0
        %1092 = vmatpush1.xpose.msra.mxu0 0.0
        %1093 = vmatprep.subr.mxu0 0.0
        %1094 = vmatpush1.xpose.msra.mxu0 0.0
        %1095 = vmatprep.subr.mxu0 0.0
        %1096 = vmatpush1.xpose.msra.mxu0 0.0
        %1097 = vmatprep.subr.mxu0 0.0
        %1098 = vmatpush1.xpose.msra.mxu0 0.0
        %1099 = vmatprep.subr.mxu0 0.0
        %1100 = vmatpush1.xpose.msra.mxu0 0.0
        %1101 = vmatprep.subr.mxu0 0.0
        %1102 = vmatpush1.xpose.msra.mxu0 0.0
        %1103 = vmatprep.subr.mxu0 0.0
        %1104 = vmatpush1.xpose.msra.mxu0 0.0
        %1105 = vmatprep.subr.mxu0 0.0
        %1106 = vmatpush1.xpose.msra.mxu0 0.0
        %1107 = vmatprep.subr.mxu0 0.0
        %1108 = vmatpush1.xpose.msra.mxu0 0.0
        %1109 = vmatprep.subr.mxu0 0.0
        %1110 = vmatpush1.xpose.msra.mxu0 0.0
        %1111 = vmatprep.mubr.f32.mxu0 0.0
        %1112 = vmatmul.mubr.f32.gmra.mrb[0].mxu0 %v1043
        %v1113 = vpop.f32.mrb[0].mxu0
        %v1114 = vadd.f32 0.0, %v1113
        %v1115 = vpop.f32.mrb[0].mxu0
        %1116 = vdwg.mxu0
        %v1117 = vmul.f32 %v1114, 0.17677669
        %vm1118 = vcmask 64512
        %v1119 = vsel %vm1118, %v1117, -inf
        %1120 = vmax.xlane.f32.xlu0 %v1119
        %v1121 = vpop.xlane.xlu0 %1120
        %v1122 = vsub.f32 %v1117, %v1121
        %v1123 = vmul.f32 %v1122, 1.442695
        %v1124 = vpow.pop %v1123
        %v1125 = vsel %vm1118, %v1124, 0.0
        %1126 = vadd.xlane.f32.xlu0 %v1125
        %v1127 = vpop.xlane.xlu0 %1126
        %v1128 = vrcp.pop %v1127
        %v1129 = vmul.f32 %v1124, %v1128
        %1130 = vrot.lane.b32.xlu0 %v1037, 64
        %v1131 = vpop.permute.xlu0 %1130
        %v1134 = vsel %vm1118, %v1129, 0
        %1136 = vmatprep.subr.mxu0 0.0
        %1137 = vmatpush1.msra.mxu0 %v1131
        %1138 = vmatprep.subr.mxu0 0.0
        %1139 = vmatpush1.msra.mxu0 0.0
        %1140 = vmatprep.subr.mxu0 0.0
        %1141 = vmatpush1.msra.mxu0 0.0
        %1142 = vmatprep.subr.mxu0 0.0
        %1143 = vmatpush1.msra.mxu0 0.0
        %1144 = vmatprep.subr.mxu0 0.0
        %1145 = vmatpush1.msra.mxu0 0.0
        %1146 = vmatprep.subr.mxu0 0.0
        %1147 = vmatpush1.msra.mxu0 0.0
        %1148 = vmatprep.subr.mxu0 0.0
        %1149 = vmatpush1.msra.mxu0 0.0
        %1150 = vmatprep.subr.mxu0 0.0
        %1151 = vmatpush1.msra.mxu0 0.0
        %1152 = vmatprep.subr.mxu0 0.0
        %1153 = vmatpush1.msra.mxu0 0.0
        %1154 = vmatprep.subr.mxu0 0.0
        %1155 = vmatpush1.msra.mxu0 0.0
        %1156 = vmatprep.subr.mxu0 0.0
        %1157 = vmatpush1.msra.mxu0 0.0
        %1158 = vmatprep.subr.mxu0 0.0
        %1159 = vmatpush1.msra.mxu0 0.0
        %1160 = vmatprep.subr.mxu0 0.0
        %1161 = vmatpush1.msra.mxu0 0.0
        %1162 = vmatprep.subr.mxu0 0.0
        %1163 = vmatpush1.msra.mxu0 0.0
        %1164 = vmatprep.subr.mxu0 0.0
        %1165 = vmatpush1.msra.mxu0 0.0
        %1166 = vmatprep.subr.mxu0 0.0
        %1167 = vmatpush1.msra.mxu0 0.0
        %1168 = vmatprep.subr.mxu0 0.0
        %1169 = vmatpush1.msra.mxu0 0.0
        %1170 = vmatprep.subr.mxu0 0.0
        %1171 = vmatpush1.msra.mxu0 0.0
        %1172 = vmatprep.subr.mxu0 0.0
        %1173 = vmatpush1.msra.mxu0 0.0
        %1174 = vmatprep.subr.mxu0 0.0
        %1175 = vmatpush1.msra.mxu0 0.0
        %1176 = vmatprep.subr.mxu0 0.0
        %1177 = vmatpush1.msra.mxu0 0.0
        %1178 = vmatprep.subr.mxu0 0.0
        %1179 = vmatpush1.msra.mxu0 0.0
        %1180 = vmatprep.subr.mxu0 0.0
        %1181 = vmatpush1.msra.mxu0 0.0
        %1182 = vmatprep.subr.mxu0 0.0
        %1183 = vmatpush1.msra.mxu0 0.0
        %1184 = vmatprep.subr.mxu0 0.0
        %1185 = vmatpush1.msra.mxu0 0.0
        %1186 = vmatprep.subr.mxu0 0.0
        %1187 = vmatpush1.msra.mxu0 0.0
        %1188 = vmatprep.subr.mxu0 0.0
        %1189 = vmatpush1.msra.mxu0 0.0
        %1190 = vmatprep.subr.mxu0 0.0
        %1191 = vmatpush1.msra.mxu0 0.0
        %1192 = vmatprep.subr.mxu0 0.0
        %1193 = vmatpush1.msra.mxu0 0.0
        %1194 = vmatprep.subr.mxu0 0.0
        %1195 = vmatpush1.msra.mxu0 0.0
        %1196 = vmatprep.subr.mxu0 0.0
        %1197 = vmatpush1.msra.mxu0 0.0
        %1198 = vmatprep.subr.mxu0 0.0
        %1199 = vmatpush1.msra.mxu0 0.0
        %1200 = vmatprep.mubr.f32.mxu0 0.0
        %1201 = vmatmul.mubr.f32.gmra.mrb[0].mxu0 %v1134
        %v1202 = vpop.f32.mrb[0].mxu0
        %v1203 = vadd.f32 0.0, %v1202
        %v1204 = vpop.f32.mrb[0].mxu0
        %1205 = vdwg.mxu0
        %v1206 = vld [vmem:[#allocation8] sm:$0xff]
        %v1207 = vld [vmem:[#allocation8 + $0x8] sm:$0xff]
        %v1208 = vld [vmem:[#allocation8 + $0x10] sm:$0xff]
        %v1209 = vld [vmem:[#allocation8 + $0x18] sm:$0xff]
        %v1210 = vld [vmem:[%s10] sm:$0x1]
        %v1212 = vlaneseq
        %v1213 = vshrl.u32 %v1212, 7
        %v1214 = vsub.s32 0, %v1213
        %v1215 = vrot.slane %v1210, %v1214
        %v1218 = vsel %vm797, %v1203, 0
        %1220 = vmatprep.subr.mxu0 0.0
        %1221 = vmatpush1.msra.mxu0 %v1206
        %1222 = vmatprep.subr.mxu0 0.0
        %1223 = vmatpush1.msra.mxu0 %v1207
        %1224 = vmatprep.subr.mxu0 0.0
        %1225 = vmatpush1.msra.mxu0 %v1208
        %1226 = vmatprep.subr.mxu0 0.0
        %1227 = vmatpush1.msra.mxu0 %v1209
        %1228 = vmatprep.subr.mxu0 0.0
        %1229 = vmatpush1.msra.mxu0 0.0
        %1230 = vmatprep.subr.mxu0 0.0
        %1231 = vmatpush1.msra.mxu0 0.0
        %1232 = vmatprep.subr.mxu0 0.0
        %1233 = vmatpush1.msra.mxu0 0.0
        %1234 = vmatprep.subr.mxu0 0.0
        %1235 = vmatpush1.msra.mxu0 0.0
        %1236 = vmatprep.subr.mxu0 0.0
        %1237 = vmatpush1.msra.mxu0 0.0
        %1238 = vmatprep.subr.mxu0 0.0
        %1239 = vmatpush1.msra.mxu0 0.0
        %1240 = vmatprep.subr.mxu0 0.0
        %1241 = vmatpush1.msra.mxu0 0.0
        %1242 = vmatprep.subr.mxu0 0.0
        %1243 = vmatpush1.msra.mxu0 0.0
        %1244 = vmatprep.subr.mxu0 0.0
        %1245 = vmatpush1.msra.mxu0 0.0
        %1246 = vmatprep.subr.mxu0 0.0
        %1247 = vmatpush1.msra.mxu0 0.0
        %1248 = vmatprep.subr.mxu0 0.0
        %1249 = vmatpush1.msra.mxu0 0.0
        %1250 = vmatprep.subr.mxu0 0.0
        %1251 = vmatpush1.msra.mxu0 0.0
        %1252 = vmatprep.subr.mxu0 0.0
        %1253 = vmatpush1.msra.mxu0 0.0
        %1254 = vmatprep.subr.mxu0 0.0
        %1255 = vmatpush1.msra.mxu0 0.0
        %1256 = vmatprep.subr.mxu0 0.0
        %1257 = vmatpush1.msra.mxu0 0.0
        %1258 = vmatprep.subr.mxu0 0.0
        %1259 = vmatpush1.msra.mxu0 0.0
        %1260 = vmatprep.subr.mxu0 0.0
        %1261 = vmatpush1.msra.mxu0 0.0
        %1262 = vmatprep.subr.mxu0 0.0
        %1263 = vmatpush1.msra.mxu0 0.0
        %1264 = vmatprep.subr.mxu0 0.0
        %1265 = vmatpush1.msra.mxu0 0.0
        %1266 = vmatprep.subr.mxu0 0.0
        %1267 = vmatpush1.msra.mxu0 0.0
        %1268 = vmatprep.subr.mxu0 0.0
        %1269 = vmatpush1.msra.mxu0 0.0
        %1270 = vmatprep.subr.mxu0 0.0
        %1271 = vmatpush1.msra.mxu0 0.0
        %1272 = vmatprep.subr.mxu0 0.0
        %1273 = vmatpush1.msra.mxu0 0.0
        %1274 = vmatprep.subr.mxu0 0.0
        %1275 = vmatpush1.msra.mxu0 0.0
        %1276 = vmatprep.subr.mxu0 0.0
        %1277 = vmatpush1.msra.mxu0 0.0
        %1278 = vmatprep.subr.mxu0 0.0
        %1279 = vmatpush1.msra.mxu0 0.0
        %1280 = vmatprep.subr.mxu0 0.0
        %1281 = vmatpush1.msra.mxu0 0.0
        %1282 = vmatprep.subr.mxu0 0.0
        %1283 = vmatpush1.msra.mxu0 0.0
        %1284 = vmatprep.mubr.f32.mxu0 0.0
        %1285 = vmatmul.mubr.f32.gmra.mrb[0].mxu0 %v1218
        %v1286 = vpop.f32.mrb[0].mxu0
        %v1287 = vadd.f32 %v1215, %v1286
        %v1288 = vpop.f32.mrb[0].mxu0
        %1289 = vdwg.mxu0
        %v1290 = vld [vmem:[#allocation10] sm:$0xff]
        %v1291 = vld [vmem:[#allocation10 + $0x8] sm:$0xff]
        %v1292 = vld [vmem:[#allocation10 + $0x10] sm:$0xff]
        %v1293 = vld [vmem:[#allocation10 + $0x18] sm:$0xff]
        %v1294 = vld [vmem:[#allocation11] sm:$0xff]
        %v1295 = vld [vmem:[#allocation11 + $0x8] sm:$0xff]
        %v1296 = vld [vmem:[#allocation11 + $0x10] sm:$0xff]
        %v1297 = vld [vmem:[#allocation11 + $0x18] sm:$0xff]
        %v1299 = vsel %vm797, %v1287, 0
        %1301 = vmatprep.subr.mxu0 0.0
        %1302 = vmatpush1.msra.mxu0 %v1294
        %1303 = vmatprep.subr.mxu0 0.0
        %1304 = vmatpush1.msra.mxu0 %v1295
        %1305 = vmatprep.subr.mxu0 0.0
        %1306 = vmatpush1.msra.mxu0 %v1296
        %1307 = vmatprep.subr.mxu0 0.0
        %1308 = vmatpush1.msra.mxu0 %v1297
        %1309 = vmatprep.subr.mxu0 0.0
        %1310 = vmatpush1.msra.mxu0 0.0
        %1311 = vmatprep.subr.mxu0 0.0
        %1312 = vmatpush1.msra.mxu0 0.0
        %1313 = vmatprep.subr.mxu0 0.0
        %1314 = vmatpush1.msra.mxu0 0.0
        %1315 = vmatprep.subr.mxu0 0.0
        %1316 = vmatpush1.msra.mxu0 0.0
        %1317 = vmatprep.subr.mxu0 0.0
        %1318 = vmatpush1.msra.mxu0 0.0
        %1319 = vmatprep.subr.mxu0 0.0
        %1320 = vmatpush1.msra.mxu0 0.0
        %1321 = vmatprep.subr.mxu0 0.0
        %1322 = vmatpush1.msra.mxu0 0.0
        %1323 = vmatprep.subr.mxu0 0.0
        %1324 = vmatpush1.msra.mxu0 0.0
        %1325 = vmatprep.subr.mxu0 0.0
        %1326 = vmatpush1.msra.mxu0 0.0
        %1327 = vmatprep.subr.mxu0 0.0
        %1328 = vmatpush1.msra.mxu0 0.0
        %1329 = vmatprep.subr.mxu0 0.0
        %1330 = vmatpush1.msra.mxu0 0.0
        %1331 = vmatprep.subr.mxu0 0.0
        %1332 = vmatpush1.msra.mxu0 0.0
        %1333 = vmatprep.subr.mxu0 0.0
        %1334 = vmatpush1.msra.mxu0 0.0
        %1335 = vmatprep.subr.mxu0 0.0
        %1336 = vmatpush1.msra.mxu0 0.0
        %1337 = vmatprep.subr.mxu0 0.0
        %1338 = vmatpush1.msra.mxu0 0.0
        %1339 = vmatprep.subr.mxu0 0.0
        %1340 = vmatpush1.msra.mxu0 0.0
        %1341 = vmatprep.subr.mxu0 0.0
        %1342 = vmatpush1.msra.mxu0 0.0
        %1343 = vmatprep.subr.mxu0 0.0
        %1344 = vmatpush1.msra.mxu0 0.0
        %1345 = vmatprep.subr.mxu0 0.0
        %1346 = vmatpush1.msra.mxu0 0.0
        %1347 = vmatprep.subr.mxu0 0.0
        %1348 = vmatpush1.msra.mxu0 0.0
        %1349 = vmatprep.subr.mxu0 0.0
        %1350 = vmatpush1.msra.mxu0 0.0
        %1351 = vmatprep.subr.mxu0 0.0
        %1352 = vmatpush1.msra.mxu0 0.0
        %1353 = vmatprep.subr.mxu0 0.0
        %1354 = vmatpush1.msra.mxu0 0.0
        %1355 = vmatprep.subr.mxu0 0.0
        %1356 = vmatpush1.msra.mxu0 0.0
        %1357 = vmatprep.subr.mxu0 0.0
        %1358 = vmatpush1.msra.mxu0 0.0
        %1359 = vmatprep.subr.mxu0 0.0
        %1360 = vmatpush1.msra.mxu0 0.0
        %1361 = vmatprep.subr.mxu0 0.0
        %1362 = vmatpush1.msra.mxu0 0.0
        %1363 = vmatprep.subr.mxu0 0.0
        %1364 = vmatpush1.msra.mxu0 0.0
        %1365 = vmatprep.mubr.f32.mxu0 0.0
        %1366 = vmatmul.mubr.f32.gmra.mrb[0].mxu0 %v1299
        %v1367 = vpop.f32.mrb[0].mxu0
        %v1368 = vadd.f32 0.0, %v1367
        %v1369 = vpop.f32.mrb[0].mxu0
        %1370 = vdwg.mxu0
        %1371 = vmatprep.subr.mxu0 0.0
        %1372 = vmatpush1.msra.mxu0 %v1290
        %1373 = vmatprep.subr.mxu0 0.0
        %1374 = vmatpush1.msra.mxu0 %v1291
        %1375 = vmatprep.subr.mxu0 0.0
        %1376 = vmatpush1.msra.mxu0 %v1292
        %1377 = vmatprep.subr.mxu0 0.0
        %1378 = vmatpush1.msra.mxu0 %v1293
        %1379 = vmatprep.subr.mxu0 0.0
        %1380 = vmatpush1.msra.mxu0 0.0
        %1381 = vmatprep.subr.mxu0 0.0
        %1382 = vmatpush1.msra.mxu0 0.0
        %1383 = vmatprep.subr.mxu0 0.0
        %1384 = vmatpush1.msra.mxu0 0.0
        %1385 = vmatprep.subr.mxu0 0.0
        %1386 = vmatpush1.msra.mxu0 0.0
        %1387 = vmatprep.subr.mxu0 0.0
        %1388 = vmatpush1.msra.mxu0 0.0
        %1389 = vmatprep.subr.mxu0 0.0
        %1390 = vmatpush1.msra.mxu0 0.0
        %1391 = vmatprep.subr.mxu0 0.0
        %1392 = vmatpush1.msra.mxu0 0.0
        %1393 = vmatprep.subr.mxu0 0.0
        %1394 = vmatpush1.msra.mxu0 0.0
        %1395 = vmatprep.subr.mxu0 0.0
        %1396 = vmatpush1.msra.mxu0 0.0
        %1397 = vmatprep.subr.mxu0 0.0
        %1398 = vmatpush1.msra.mxu0 0.0
        %1399 = vmatprep.subr.mxu0 0.0
        %1400 = vmatpush1.msra.mxu0 0.0
        %1401 = vmatprep.subr.mxu0 0.0
        %1402 = vmatpush1.msra.mxu0 0.0
        %1403 = vmatprep.subr.mxu0 0.0
        %1404 = vmatpush1.msra.mxu0 0.0
        %1405 = vmatprep.subr.mxu0 0.0
        %1406 = vmatpush1.msra.mxu0 0.0
        %1407 = vmatprep.subr.mxu0 0.0
        %1408 = vmatpush1.msra.mxu0 0.0
        %1409 = vmatprep.subr.mxu0 0.0
        %1410 = vmatpush1.msra.mxu0 0.0
        %1411 = vmatprep.subr.mxu0 0.0
        %1412 = vmatpush1.msra.mxu0 0.0
        %1413 = vmatprep.subr.mxu0 0.0
        %1414 = vmatpush1.msra.mxu0 0.0
        %1415 = vmatprep.subr.mxu0 0.0
        %1416 = vmatpush1.msra.mxu0 0.0
        %1417 = vmatprep.subr.mxu0 0.0
        %1418 = vmatpush1.msra.mxu0 0.0
        %1419 = vmatprep.subr.mxu0 0.0
        %1420 = vmatpush1.msra.mxu0 0.0
        %1421 = vmatprep.subr.mxu0 0.0
        %1422 = vmatpush1.msra.mxu0 0.0
        %1423 = vmatprep.subr.mxu0 0.0
        %1424 = vmatpush1.msra.mxu0 0.0
        %1425 = vmatprep.subr.mxu0 0.0
        %1426 = vmatpush1.msra.mxu0 0.0
        %1427 = vmatprep.subr.mxu0 0.0
        %1428 = vmatpush1.msra.mxu0 0.0
        %1429 = vmatprep.subr.mxu0 0.0
        %1430 = vmatpush1.msra.mxu0 0.0
        %1431 = vmatprep.subr.mxu0 0.0
        %1432 = vmatpush1.msra.mxu0 0.0
        %1433 = vmatprep.subr.mxu0 0.0
        %1434 = vmatpush1.msra.mxu0 0.0
        %1435 = vmatprep.mubr.f32.mxu0 0.0
        %1436 = vmatmul.mubr.f32.gmra.mrb[0].mxu0 %v883
        %v1437 = vpop.f32.mrb[0].mxu0
        %v1438 = vadd.f32 %v1368, %v1437
        %v1439 = vpop.f32.mrb[0].mxu0
        %1440 = vdwg.mxu0
        %v1441 = vld [vmem:[#allocation13] sm:$0x1]
        %v1443 = vlaneseq
        %v1444 = vshrl.u32 %v1443, 7
        %v1445 = vsub.s32 0, %v1444
        %v1446 = vrot.slane %v1441, %v1445
        %v1448 = vadd.f32 %v1438, %v1446
        %v1449 = vsel %vm797, %v1448, 0.0
        %1450 = vadd.xlane.f32.xlu0 %v1449
        %v1451 = vpop.xlane.xlu0 %1450
        %v1452 = vrcp.pop 32.0
        %v1453 = vmul.f32 %v1451, %v1452
        %v1454 = vsub.f32 %v1448, %v1453
        %v1455 = vmul.f32 %v1454, %v1454
        %v1456 = vsel %vm797, %v1455, 0.0
        %1457 = vadd.xlane.f32.xlu0 %v1456
        %v1458 = vpop.xlane.xlu0 %1457
        %v1459 = vmul.f32 %v1458, %v1452
        %v1460 = vadd.f32 %v1459, 1e-05
        %v1461 = vrsqrt.pop %v1460
        %v1462 = vmul.f32 %v1454, %v1461
        %v1463 = vld [vmem:[#allocation14] sm:$0x1]
        %v1465 = vlaneseq
        %v1466 = vshrl.u32 %v1465, 7
        %v1467 = vsub.s32 0, %v1466
        %v1468 = vrot.slane %v1463, %v1467
        %v1470 = vmul.f32 %v1462, %v1468
        %v1471 = vld [vmem:[#allocation16] sm:$0x1]
        %v1473 = vlaneseq
        %v1474 = vshrl.u32 %v1473, 7
        %v1475 = vsub.s32 0, %v1474
        %v1476 = vrot.slane %v1471, %v1475
        %v1478 = vadd.f32 %v1470, %v1476
        %v1479 = vmul.f32 %v1478, 0.5
        %v1480 = vmul.f32 %v1478, 0.70710677
        %vm1481 = vcmp.ge.f32.partialorder %v1480, 0.0
        %v1482 = vsel %vm1481, 1.0, -1.0
        %v1483 = vand.u32 2147483647, %v1480
        %v1484 = vmul.f32 %v1483, 0.3275911
        %v1485 = vadd.f32 %v1484, 1.0
        %v1486 = vrcp.pop %v1485
        %v1487 = vmul.f32 1.0, %v1486
        %v1488 = vmul.f32 %v1487, 1.0614054
        %v1489 = vadd.f32 %v1488, -1.4531521
        %v1490 = vmul.f32 %v1487, %v1489
        %v1491 = vadd.f32 %v1490, 1.4214138
        %v1492 = vmul.f32 %v1487, %v1491
        %v1493 = vadd.f32 %v1492, -0.28449672
        %v1494 = vmul.f32 %v1487, %v1493
        %v1495 = vadd.f32 %v1494, 0.2548296
        %v1496 = vmul.f32 %v1487, %v1495
        %v1497 = vsub.f32 0.0, %v1483
        %v1498 = vmul.f32 %v1497, %v1483
        %v1499 = vmul.f32 %v1498, 1.442695
        %v1500 = vpow.pop %v1499
        %v1501 = vmul.f32 %v1496, %v1500
        %v1502 = vsub.f32 1.0, %v1501
        %v1503 = vmul.f32 %v1482, %v1502
        %v1504 = vadd.f32 %v1503, 1.0
        %v1505 = vmul.f32 %v1479, %v1504
        %s1506 = scalar_lea.vmem [#allocation2], 32
        %v1507 = vld [vmem:[%s1506] sm:$0xff]
        %v1508 = vld [vmem:[%s1506 + $0x8] sm:$0xff]
        %v1509 = vld [vmem:[%s1506 + $0x10] sm:$0xff]
        %v1510 = vld [vmem:[%s1506 + $0x18] sm:$0xff]
        %s1511 = scalar_lea.vmem %s4, 1
        %v1512 = vld [vmem:[%s1511] sm:$0x1]
        %v1514 = vlaneseq
        %v1515 = vshrl.u32 %v1514, 7
        %v1516 = vsub.s32 0, %v1515
        %v1517 = vrot.slane %v1512, %v1516
        %v1520 = vsel %vm797, %v1505, 0
        %1522 = vmatprep.subr.mxu0 0.0
        %1523 = vmatpush1.msra.mxu0 %v1507
        %1524 = vmatprep.subr.mxu0 0.0
        %1525 = vmatpush1.msra.mxu0 %v1508
        %1526 = vmatprep.subr.mxu0 0.0
        %1527 = vmatpush1.msra.mxu0 %v1509
        %1528 = vmatprep.subr.mxu0 0.0
        %1529 = vmatpush1.msra.mxu0 %v1510
        %1530 = vmatprep.subr.mxu0 0.0
        %1531 = vmatpush1.msra.mxu0 0.0
        %1532 = vmatprep.subr.mxu0 0.0
        %1533 = vmatpush1.msra.mxu0 0.0
        %1534 = vmatprep.subr.mxu0 0.0
        %1535 = vmatpush1.msra.mxu0 0.0
        %1536 = vmatprep.subr.mxu0 0.0
        %1537 = vmatpush1.msra.mxu0 0.0
        %1538 = vmatprep.subr.mxu0 0.0
        %1539 = vmatpush1.msra.mxu0 0.0
        %1540 = vmatprep.subr.mxu0 0.0
        %1541 = vmatpush1.msra.mxu0 0.0
        %1542 = vmatprep.subr.mxu0 0.0
        %1543 = vmatpush1.msra.mxu0 0.0
        %1544 = vmatprep.subr.mxu0 0.0
        %1545 = vmatpush1.msra.mxu0 0.0
        %1546 = vmatprep.subr.mxu0 0.0
        %1547 = vmatpush1.msra.mxu0 0.0
        %1548 = vmatprep.subr.mxu0 0.0
        %1549 = vmatpush1.msra.mxu0 0.0
        %1550 = vmatprep.subr.mxu0 0.0
        %1551 = vmatpush1.msra.mxu0 0.0
        %1552 = vmatprep.subr.mxu0 0.0
        %1553 = vmatpush1.msra.mxu0 0.0
        %1554 = vmatprep.subr.mxu0 0.0
        %1555 = vmatpush1.msra.mxu0 0.0
        %1556 = vmatprep.subr.mxu0 0.0
        %1557 = vmatpush1.msra.mxu0 0.0
        %1558 = vmatprep.subr.mxu0 0.0
        %1559 = vmatpush1.msra.mxu0 0.0
        %1560 = vmatprep.subr.mxu0 0.0
        %1561 = vmatpush1.msra.mxu0 0.0
        %1562 = vmatprep.subr.mxu0 0.0
        %1563 = vmatpush1.msra.mxu0 0.0
        %1564 = vmatprep.subr.mxu0 0.0
        %1565 = vmatpush1.msra.mxu0 0.0
        %1566 = vmatprep.subr.mxu0 0.0
        %1567 = vmatpush1.msra.mxu0 0.0
        %1568 = vmatprep.subr.mxu0 0.0
        %1569 = vmatpush1.msra.mxu0 0.0
        %1570 = vmatprep.subr.mxu0 0.0
        %1571 = vmatpush1.msra.mxu0 0.0
        %1572 = vmatprep.subr.mxu0 0.0
        %1573 = vmatpush1.msra.mxu0 0.0
        %1574 = vmatprep.subr.mxu0 0.0
        %1575 = vmatpush1.msra.mxu0 0.0
        %1576 = vmatprep.subr.mxu0 0.0
        %1577 = vmatpush1.msra.mxu0 0.0
        %1578 = vmatprep.subr.mxu0 0.0
        %1579 = vmatpush1.msra.mxu0 0.0
        %1580 = vmatprep.subr.mxu0 0.0
        %1581 = vmatpush1.msra.mxu0 0.0
        %1582 = vmatprep.subr.mxu0 0.0
        %1583 = vmatpush1.msra.mxu0 0.0
        %1584 = vmatprep.subr.mxu0 0.0
        %1585 = vmatpush1.msra.mxu0 0.0
        %1586 = vmatprep.mubr.f32.mxu0 0.0
        %1587 = vmatmul.mubr.f32.gmra.mrb[0].mxu0 %v1520
        %v1588 = vpop.f32.mrb[0].mxu0
        %v1589 = vadd.f32 %v1517, %v1588
        %v1590 = vpop.f32.mrb[0].mxu0
        %1591 = vdwg.mxu0
        %s1592 = scalar_lea.vmem [#allocation5], 32
        %v1593 = vld [vmem:[%s1592] sm:$0xff]
        %v1594 = vld [vmem:[%s1592 + $0x8] sm:$0xff]
        %v1595 = vld [vmem:[%s1592 + $0x10] sm:$0xff]
        %v1596 = vld [vmem:[%s1592 + $0x18] sm:$0xff]
        %s1597 = scalar_lea.vmem %s6, 1
        %v1598 = vld [vmem:[%s1597] sm:$0x1]
        %v1600 = vlaneseq
        %v1601 = vshrl.u32 %v1600, 7
        %v1602 = vsub.s32 0, %v1601
        %v1603 = vrot.slane %v1598, %v1602
        %v1606 = vsel %vm797, %v1589, 0
        %1608 = vmatprep.subr.mxu0 0.0
        %1609 = vmatpush1.msra.mxu0 %v1593
        %1610 = vmatprep.subr.mxu0 0.0
        %1611 = vmatpush1.msra.mxu0 %v1594
        %1612 = vmatprep.subr.mxu0 0.0
        %1613 = vmatpush1.msra.mxu0 %v1595
        %1614 = vmatprep.subr.mxu0 0.0
        %1615 = vmatpush1.msra.mxu0 %v1596
        %1616 = vmatprep.subr.mxu0 0.0
        %1617 = vmatpush1.msra.mxu0 0.0
        %1618 = vmatprep.subr.mxu0 0.0
        %1619 = vmatpush1.msra.mxu0 0.0
        %1620 = vmatprep.subr.mxu0 0.0
        %1621 = vmatpush1.msra.mxu0 0.0
        %1622 = vmatprep.subr.mxu0 0.0
        %1623 = vmatpush1.msra.mxu0 0.0
        %1624 = vmatprep.subr.mxu0 0.0
        %1625 = vmatpush1.msra.mxu0 0.0
        %1626 = vmatprep.subr.mxu0 0.0
        %1627 = vmatpush1.msra.mxu0 0.0
        %1628 = vmatprep.subr.mxu0 0.0
        %1629 = vmatpush1.msra.mxu0 0.0
        %1630 = vmatprep.subr.mxu0 0.0
        %1631 = vmatpush1.msra.mxu0 0.0
        %1632 = vmatprep.subr.mxu0 0.0
        %1633 = vmatpush1.msra.mxu0 0.0
        %1634 = vmatprep.subr.mxu0 0.0
        %1635 = vmatpush1.msra.mxu0 0.0
        %1636 = vmatprep.subr.mxu0 0.0
        %1637 = vmatpush1.msra.mxu0 0.0
        %1638 = vmatprep.subr.mxu0 0.0
        %1639 = vmatpush1.msra.mxu0 0.0
        %1640 = vmatprep.subr.mxu0 0.0
        %1641 = vmatpush1.msra.mxu0 0.0
        %1642 = vmatprep.subr.mxu0 0.0
        %1643 = vmatpush1.msra.mxu0 0.0
        %1644 = vmatprep.subr.mxu0 0.0
        %1645 = vmatpush1.msra.mxu0 0.0
        %1646 = vmatprep.subr.mxu0 0.0
        %1647 = vmatpush1.msra.mxu0 0.0
        %1648 = vmatprep.subr.mxu0 0.0
        %1649 = vmatpush1.msra.mxu0 0.0
        %1650 = vmatprep.subr.mxu0 0.0
        %1651 = vmatpush1.msra.mxu0 0.0
        %1652 = vmatprep.subr.mxu0 0.0
        %1653 = vmatpush1.msra.mxu0 0.0
        %1654 = vmatprep.subr.mxu0 0.0
        %1655 = vmatpush1.msra.mxu0 0.0
        %1656 = vmatprep.subr.mxu0 0.0
        %1657 = vmatpush1.msra.mxu0 0.0
        %1658 = vmatprep.subr.mxu0 0.0
        %1659 = vmatpush1.msra.mxu0 0.0
        %1660 = vmatprep.subr.mxu0 0.0
        %1661 = vmatpush1.msra.mxu0 0.0
        %1662 = vmatprep.subr.mxu0 0.0
        %1663 = vmatpush1.msra.mxu0 0.0
        %1664 = vmatprep.subr.mxu0 0.0
        %1665 = vmatpush1.msra.mxu0 0.0
        %1666 = vmatprep.subr.mxu0 0.0
        %1667 = vmatpush1.msra.mxu0 0.0
        %1668 = vmatprep.subr.mxu0 0.0
        %1669 = vmatpush1.msra.mxu0 0.0
        %1670 = vmatprep.subr.mxu0 0.0
        %1671 = vmatpush1.msra.mxu0 0.0
        %1672 = vmatprep.mubr.f32.mxu0 0.0
        %1673 = vmatmul.mubr.f32.gmra.mrb[0].mxu0 %v1606
        %v1674 = vpop.f32.mrb[0].mxu0
        %v1675 = vadd.f32 %v1603, %v1674
        %v1676 = vpop.f32.mrb[0].mxu0
        %1677 = vdwg.mxu0
        %v1678 = vtanh.pop %v1675
        %s1679 = scalar_lea.vmem [#allocation7], 32
        %v1680 = vld [vmem:[%s1679] sm:$0xff]
        %v1681 = vld [vmem:[%s1679 + $0x8] sm:$0xff]
        %v1682 = vld [vmem:[%s1679 + $0x10] sm:$0xff]
        %v1683 = vld [vmem:[%s1679 + $0x18] sm:$0xff]
        %s1684 = scalar_lea.vmem %s8, 1
        %v1685 = vld [vmem:[%s1684] sm:$0x1]
        %v1687 = vlaneseq
        %v1688 = vshrl.u32 %v1687, 7
        %v1689 = vsub.s32 0, %v1688
        %v1690 = vrot.slane %v1685, %v1689
        %v1693 = vsel %vm797, %v1678, 0
        %1695 = vmatprep.subr.mxu0 0.0
        %1696 = vmatpush1.msra.mxu0 %v1680
        %1697 = vmatprep.subr.mxu0 0.0
        %1698 = vmatpush1.msra.mxu0 %v1681
        %1699 = vmatprep.subr.mxu0 0.0
        %1700 = vmatpush1.msra.mxu0 %v1682
        %1701 = vmatprep.subr.mxu0 0.0
        %1702 = vmatpush1.msra.mxu0 %v1683
        %1703 = vmatprep.subr.mxu0 0.0
        %1704 = vmatpush1.msra.mxu0 0.0
        %1705 = vmatprep.subr.mxu0 0.0
        %1706 = vmatpush1.msra.mxu0 0.0
        %1707 = vmatprep.subr.mxu0 0.0
        %1708 = vmatpush1.msra.mxu0 0.0
        %1709 = vmatprep.subr.mxu0 0.0
        %1710 = vmatpush1.msra.mxu0 0.0
        %1711 = vmatprep.subr.mxu0 0.0
        %1712 = vmatpush1.msra.mxu0 0.0
        %1713 = vmatprep.subr.mxu0 0.0
        %1714 = vmatpush1.msra.mxu0 0.0
        %1715 = vmatprep.subr.mxu0 0.0
        %1716 = vmatpush1.msra.mxu0 0.0
        %1717 = vmatprep.subr.mxu0 0.0
        %1718 = vmatpush1.msra.mxu0 0.0
        %1719 = vmatprep.subr.mxu0 0.0
        %1720 = vmatpush1.msra.mxu0 0.0
        %1721 = vmatprep.subr.mxu0 0.0
        %1722 = vmatpush1.msra.mxu0 0.0
        %1723 = vmatprep.subr.mxu0 0.0
        %1724 = vmatpush1.msra.mxu0 0.0
        %1725 = vmatprep.subr.mxu0 0.0
        %1726 = vmatpush1.msra.mxu0 0.0
        %1727 = vmatprep.subr.mxu0 0.0
        %1728 = vmatpush1.msra.mxu0 0.0
        %1729 = vmatprep.subr.mxu0 0.0
        %1730 = vmatpush1.msra.mxu0 0.0
        %1731 = vmatprep.subr.mxu0 0.0
        %1732 = vmatpush1.msra.mxu0 0.0
        %1733 = vmatprep.subr.mxu0 0.0
        %1734 = vmatpush1.msra.mxu0 0.0
        %1735 = vmatprep.subr.mxu0 0.0
        %1736 = vmatpush1.msra.mxu0 0.0
        %1737 = vmatprep.subr.mxu0 0.0
        %1738 = vmatpush1.msra.mxu0 0.0
        %1739 = vmatprep.subr.mxu0 0.0
        %1740 = vmatpush1.msra.mxu0 0.0
        %1741 = vmatprep.subr.mxu0 0.0
        %1742 = vmatpush1.msra.mxu0 0.0
        %1743 = vmatprep.subr.mxu0 0.0
        %1744 = vmatpush1.msra.mxu0 0.0
        %1745 = vmatprep.subr.mxu0 0.0
        %1746 = vmatpush1.msra.mxu0 0.0
        %1747 = vmatprep.subr.mxu0 0.0
        %1748 = vmatpush1.msra.mxu0 0.0
        %1749 = vmatprep.subr.mxu0 0.0
        %1750 = vmatpush1.msra.mxu0 0.0
        %1751 = vmatprep.subr.mxu0 0.0
        %1752 = vmatpush1.msra.mxu0 0.0
        %1753 = vmatprep.subr.mxu0 0.0
        %1754 = vmatpush1.msra.mxu0 0.0
        %1755 = vmatprep.subr.mxu0 0.0
        %1756 = vmatpush1.msra.mxu0 0.0
        %1757 = vmatprep.subr.mxu0 0.0
        %1758 = vmatpush1.msra.mxu0 0.0
        %1759 = vmatprep.mubr.f32.mxu0 0.0
        %1760 = vmatmul.mubr.f32.gmra.mrb[0].mxu0 %v1693
        %v1761 = vpop.f32.mrb[0].mxu0
        %v1762 = vadd.f32 %v1690, %v1761
        %v1763 = vpop.f32.mrb[0].mxu0
        %1764 = vdwg.mxu0
        %1766 = vrot.lane.b32.xlu0 %v1762, 96
        %v1767 = vpop.permute.xlu0 %1766
        %v1768 = vsel %vm797, %v1762, 0
        %v1770 = vsel %vm797, %v1767, 0
        %1772 = vmatprep.subr.mxu0 0.0
        %1773 = vmatpush1.xpose.msra.mxu0 %v1770
        %1774 = vmatprep.subr.mxu0 0.0
        %1775 = vmatpush1.xpose.msra.mxu0 0.0
        %1776 = vmatprep.subr.mxu0 0.0
        %1777 = vmatpush1.xpose.msra.mxu0 0.0
        %1778 = vmatprep.subr.mxu0 0.0
        %1779 = vmatpush1.xpose.msra.mxu0 0.0
        %1780 = vmatprep.subr.mxu0 0.0
        %1781 = vmatpush1.xpose.msra.mxu0 0.0
        %1782 = vmatprep.subr.mxu0 0.0
        %1783 = vmatpush1.xpose.msra.mxu0 0.0
        %1784 = vmatprep.subr.mxu0 0.0
        %1785 = vmatpush1.xpose.msra.mxu0 0.0
        %1786 = vmatprep.subr.mxu0 0.0
        %1787 = vmatpush1.xpose.msra.mxu0 0.0
        %1788 = vmatprep.subr.mxu0 0.0
        %1789 = vmatpush1.xpose.msra.mxu0 0.0
        %1790 = vmatprep.subr.mxu0 0.0
        %1791 = vmatpush1.xpose.msra.mxu0 0.0
        %1792 = vmatprep.subr.mxu0 0.0
        %1793 = vmatpush1.xpose.msra.mxu0 0.0
        %1794 = vmatprep.subr.mxu0 0.0
        %1795 = vmatpush1.xpose.msra.mxu0 0.0
        %1796 = vmatprep.subr.mxu0 0.0
        %1797 = vmatpush1.xpose.msra.mxu0 0.0
        %1798 = vmatprep.subr.mxu0 0.0
        %1799 = vmatpush1.xpose.msra.mxu0 0.0
        %1800 = vmatprep.subr.mxu0 0.0
        %1801 = vmatpush1.xpose.msra.mxu0 0.0
        %1802 = vmatprep.subr.mxu0 0.0
        %1803 = vmatpush1.xpose.msra.mxu0 0.0
        %1804 = vmatprep.subr.mxu0 0.0
        %1805 = vmatpush1.xpose.msra.mxu0 0.0
        %1806 = vmatprep.subr.mxu0 0.0
        %1807 = vmatpush1.xpose.msra.mxu0 0.0
        %1808 = vmatprep.subr.mxu0 0.0
        %1809 = vmatpush1.xpose.msra.mxu0 0.0
        %1810 = vmatprep.subr.mxu0 0.0
        %1811 = vmatpush1.xpose.msra.mxu0 0.0
        %1812 = vmatprep.subr.mxu0 0.0
        %1813 = vmatpush1.xpose.msra.mxu0 0.0
        %1814 = vmatprep.subr.mxu0 0.0
        %1815 = vmatpush1.xpose.msra.mxu0 0.0
        %1816 = vmatprep.subr.mxu0 0.0
        %1817 = vmatpush1.xpose.msra.mxu0 0.0
        %1818 = vmatprep.subr.mxu0 0.0
        %1819 = vmatpush1.xpose.msra.mxu0 0.0
        %1820 = vmatprep.subr.mxu0 0.0
        %1821 = vmatpush1.xpose.msra.mxu0 0.0
        %1822 = vmatprep.subr.mxu0 0.0
        %1823 = vmatpush1.xpose.msra.mxu0 0.0
        %1824 = vmatprep.subr.mxu0 0.0
        %1825 = vmatpush1.xpose.msra.mxu0 0.0
        %1826 = vmatprep.subr.mxu0 0.0
        %1827 = vmatpush1.xpose.msra.mxu0 0.0
        %1828 = vmatprep.subr.mxu0 0.0
        %1829 = vmatpush1.xpose.msra.mxu0 0.0
        %1830 = vmatprep.subr.mxu0 0.0
        %1831 = vmatpush1.xpose.msra.mxu0 0.0
        %1832 = vmatprep.subr.mxu0 0.0
        %1833 = vmatpush1.xpose.msra.mxu0 0.0
        %1834 = vmatprep.subr.mxu0 0.0
        %1835 = vmatpush1.xpose.msra.mxu0 0.0
        %1836 = vmatprep.mubr.f32.mxu0 0.0
        %1837 = vmatmul.mubr.f32.gmra.mrb[0].mxu0 %v1768
        %v1838 = vpop.f32.mrb[0].mxu0
        %v1839 = vadd.f32 0.0, %v1838
        %v1840 = vpop.f32.mrb[0].mxu0
        %1841 = vdwg.mxu0
        %v1842 = vmul.f32 %v1839, 0.17677669
        %v1843 = vsel %vm1118, %v1842, -inf
        %1844 = vmax.xlane.f32.xlu0 %v1843
        %v1845 = vpop.xlane.xlu0 %1844
        %v1846 = vsub.f32 %v1842, %v1845
        %v1847 = vmul.f32 %v1846, 1.442695
        %v1848 = vpow.pop %v1847
        %v1849 = vsel %vm1118, %v1848, 0.0
        %1850 = vadd.xlane.f32.xlu0 %v1849
        %v1851 = vpop.xlane.xlu0 %1850
        %v1852 = vrcp.pop %v1851
        %v1853 = vmul.f32 %v1848, %v1852
        %1854 = vrot.lane.b32.xlu0 %v1762, 64
        %v1855 = vpop.permute.xlu0 %1854
        %v1858 = vsel %vm1118, %v1853, 0
        %1860 = vmatprep.subr.mxu0 0.0
        %1861 = vmatpush1.msra.mxu0 %v1855
        %1862 = vmatprep.subr.mxu0 0.0
        %1863 = vmatpush1.msra.mxu0 0.0
        %1864 = vmatprep.subr.mxu0 0.0
        %1865 = vmatpush1.msra.mxu0 0.0
        %1866 = vmatprep.subr.mxu0 0.0
        %1867 = vmatpush1.msra.mxu0 0.0
        %1868 = vmatprep.subr.mxu0 0.0
        %1869 = vmatpush1.msra.mxu0 0.0
        %1870 = vmatprep.subr.mxu0 0.0
        %1871 = vmatpush1.msra.mxu0 0.0
        %1872 = vmatprep.subr.mxu0 0.0
        %1873 = vmatpush1.msra.mxu0 0.0
        %1874 = vmatprep.subr.mxu0 0.0
        %1875 = vmatpush1.msra.mxu0 0.0
        %1876 = vmatprep.subr.mxu0 0.0
        %1877 = vmatpush1.msra.mxu0 0.0
        %1878 = vmatprep.subr.mxu0 0.0
        %1879 = vmatpush1.msra.mxu0 0.0
        %1880 = vmatprep.subr.mxu0 0.0
        %1881 = vmatpush1.msra.mxu0 0.0
        %1882 = vmatprep.subr.mxu0 0.0
        %1883 = vmatpush1.msra.mxu0 0.0
        %1884 = vmatprep.subr.mxu0 0.0
        %1885 = vmatpush1.msra.mxu0 0.0
        %1886 = vmatprep.subr.mxu0 0.0
        %1887 = vmatpush1.msra.mxu0 0.0
        %1888 = vmatprep.subr.mxu0 0.0
        %1889 = vmatpush1.msra.mxu0 0.0
        %1890 = vmatprep.subr.mxu0 0.0
        %1891 = vmatpush1.msra.mxu0 0.0
        %1892 = vmatprep.subr.mxu0 0.0
        %1893 = vmatpush1.msra.mxu0 0.0
        %1894 = vmatprep.subr.mxu0 0.0
        %1895 = vmatpush1.msra.mxu0 0.0
        %1896 = vmatprep.subr.mxu0 0.0
        %1897 = vmatpush1.msra.mxu0 0.0
        %1898 = vmatprep.subr.mxu0 0.0
        %1899 = vmatpush1.msra.mxu0 0.0
        %1900 = vmatprep.subr.mxu0 0.0
        %1901 = vmatpush1.msra.mxu0 0.0
        %1902 = vmatprep.subr.mxu0 0.0
        %1903 = vmatpush1.msra.mxu0 0.0
        %1904 = vmatprep.subr.mxu0 0.0
        %1905 = vmatpush1.msra.mxu0 0.0
        %1906 = vmatprep.subr.mxu0 0.0
        %1907 = vmatpush1.msra.mxu0 0.0
        %1908 = vmatprep.subr.mxu0 0.0
        %1909 = vmatpush1.msra.mxu0 0.0
        %1910 = vmatprep.subr.mxu0 0.0
        %1911 = vmatpush1.msra.mxu0 0.0
        %1912 = vmatprep.subr.mxu0 0.0
        %1913 = vmatpush1.msra.mxu0 0.0
        %1914 = vmatprep.subr.mxu0 0.0
        %1915 = vmatpush1.msra.mxu0 0.0
        %1916 = vmatprep.subr.mxu0 0.0
        %1917 = vmatpush1.msra.mxu0 0.0
        %1918 = vmatprep.subr.mxu0 0.0
        %1919 = vmatpush1.msra.mxu0 0.0
        %1920 = vmatprep.subr.mxu0 0.0
        %1921 = vmatpush1.msra.mxu0 0.0
        %1922 = vmatprep.subr.mxu0 0.0
        %1923 = vmatpush1.msra.mxu0 0.0
        %1924 = vmatprep.mubr.f32.mxu0 0.0
        %1925 = vmatmul.mubr.f32.gmra.mrb[0].mxu0 %v1858
        %v1926 = vpop.f32.mrb[0].mxu0
        %v1927 = vadd.f32 0.0, %v1926
        %v1928 = vpop.f32.mrb[0].mxu0
        %1929 = vdwg.mxu0
        %s1930 = scalar_lea.vmem [#allocation8], 32
        %v1931 = vld [vmem:[%s1930] sm:$0xff]
        %v1932 = vld [vmem:[%s1930 + $0x8] sm:$0xff]
        %v1933 = vld [vmem:[%s1930 + $0x10] sm:$0xff]
        %v1934 = vld [vmem:[%s1930 + $0x18] sm:$0xff]
        %s1935 = scalar_lea.vmem %s10, 1
        %v1936 = vld [vmem:[%s1935] sm:$0x1]
        %v1938 = vlaneseq
        %v1939 = vshrl.u32 %v1938, 7
        %v1940 = vsub.s32 0, %v1939
        %v1941 = vrot.slane %v1936, %v1940
        %v1944 = vsel %vm797, %v1927, 0
        %1946 = vmatprep.subr.mxu0 0.0
        %1947 = vmatpush1.msra.mxu0 %v1931
        %1948 = vmatprep.subr.mxu0 0.0
        %1949 = vmatpush1.msra.mxu0 %v1932
        %1950 = vmatprep.subr.mxu0 0.0
        %1951 = vmatpush1.msra.mxu0 %v1933
        %1952 = vmatprep.subr.mxu0 0.0
        %1953 = vmatpush1.msra.mxu0 %v1934
        %1954 = vmatprep.subr.mxu0 0.0
        %1955 = vmatpush1.msra.mxu0 0.0
        %1956 = vmatprep.subr.mxu0 0.0
        %1957 = vmatpush1.msra.mxu0 0.0
        %1958 = vmatprep.subr.mxu0 0.0
        %1959 = vmatpush1.msra.mxu0 0.0
        %1960 = vmatprep.subr.mxu0 0.0
        %1961 = vmatpush1.msra.mxu0 0.0
        %1962 = vmatprep.subr.mxu0 0.0
        %1963 = vmatpush1.msra.mxu0 0.0
        %1964 = vmatprep.subr.mxu0 0.0
        %1965 = vmatpush1.msra.mxu0 0.0
        %1966 = vmatprep.subr.mxu0 0.0
        %1967 = vmatpush1.msra.mxu0 0.0
        %1968 = vmatprep.subr.mxu0 0.0
        %1969 = vmatpush1.msra.mxu0 0.0
        %1970 = vmatprep.subr.mxu0 0.0
        %1971 = vmatpush1.msra.mxu0 0.0
        %1972 = vmatprep.subr.mxu0 0.0
        %1973 = vmatpush1.msra.mxu0 0.0
        %1974 = vmatprep.subr.mxu0 0.0
        %1975 = vmatpush1.msra.mxu0 0.0
        %1976 = vmatprep.subr.mxu0 0.0
        %1977 = vmatpush1.msra.mxu0 0.0
        %1978 = vmatprep.subr.mxu0 0.0
        %1979 = vmatpush1.msra.mxu0 0.0
        %1980 = vmatprep.subr.mxu0 0.0
        %1981 = vmatpush1.msra.mxu0 0.0
        %1982 = vmatprep.subr.mxu0 0.0
        %1983 = vmatpush1.msra.mxu0 0.0
        %1984 = vmatprep.subr.mxu0 0.0
        %1985 = vmatpush1.msra.mxu0 0.0
        %1986 = vmatprep.subr.mxu0 0.0
        %1987 = vmatpush1.msra.mxu0 0.0
        %1988 = vmatprep.subr.mxu0 0.0
        %1989 = vmatpush1.msra.mxu0 0.0
        %1990 = vmatprep.subr.mxu0 0.0
        %1991 = vmatpush1.msra.mxu0 0.0
        %1992 = vmatprep.subr.mxu0 0.0
        %1993 = vmatpush1.msra.mxu0 0.0
        %1994 = vmatprep.subr.mxu0 0.0
        %1995 = vmatpush1.msra.mxu0 0.0
        %1996 = vmatprep.subr.mxu0 0.0
        %1997 = vmatpush1.msra.mxu0 0.0
        %1998 = vmatprep.subr.mxu0 0.0
        %1999 = vmatpush1.msra.mxu0 0.0
        %2000 = vmatprep.subr.mxu0 0.0
        %2001 = vmatpush1.msra.mxu0 0.0
        %2002 = vmatprep.subr.mxu0 0.0
        %2003 = vmatpush1.msra.mxu0 0.0
        %2004 = vmatprep.subr.mxu0 0.0
        %2005 = vmatpush1.msra.mxu0 0.0
        %2006 = vmatprep.subr.mxu0 0.0
        %2007 = vmatpush1.msra.mxu0 0.0
        %2008 = vmatprep.subr.mxu0 0.0
        %2009 = vmatpush1.msra.mxu0 0.0
        %2010 = vmatprep.mubr.f32.mxu0 0.0
        %2011 = vmatmul.mubr.f32.gmra.mrb[0].mxu0 %v1944
        %v2012 = vpop.f32.mrb[0].mxu0
        %v2013 = vadd.f32 %v1941, %v2012
        %v2014 = vpop.f32.mrb[0].mxu0
        %2015 = vdwg.mxu0
        %s2016 = scalar_lea.vmem [#allocation10], 32
        %v2017 = vld [vmem:[%s2016] sm:$0xff]
        %v2018 = vld [vmem:[%s2016 + $0x8] sm:$0xff]
        %v2019 = vld [vmem:[%s2016 + $0x10] sm:$0xff]
        %v2020 = vld [vmem:[%s2016 + $0x18] sm:$0xff]
        %s2021 = scalar_lea.vmem [#allocation11], 32
        %v2022 = vld [vmem:[%s2021] sm:$0xff]
        %v2023 = vld [vmem:[%s2021 + $0x8] sm:$0xff]
        %v2024 = vld [vmem:[%s2021 + $0x10] sm:$0xff]
        %v2025 = vld [vmem:[%s2021 + $0x18] sm:$0xff]
        %v2027 = vsel %vm797, %v2013, 0
        %2029 = vmatprep.subr.mxu0 0.0
        %2030 = vmatpush1.msra.mxu0 %v2022
        %2031 = vmatprep.subr.mxu0 0.0
        %2032 = vmatpush1.msra.mxu0 %v2023
        %2033 = vmatprep.subr.mxu0 0.0
        %2034 = vmatpush1.msra.mxu0 %v2024
        %2035 = vmatprep.subr.mxu0 0.0
        %2036 = vmatpush1.msra.mxu0 %v2025
        %2037 = vmatprep.subr.mxu0 0.0
        %2038 = vmatpush1.msra.mxu0 0.0
        %2039 = vmatprep.subr.mxu0 0.0
        %2040 = vmatpush1.msra.mxu0 0.0
        %2041 = vmatprep.subr.mxu0 0.0
        %2042 = vmatpush1.msra.mxu0 0.0
        %2043 = vmatprep.subr.mxu0 0.0
        %2044 = vmatpush1.msra.mxu0 0.0
        %2045 = vmatprep.subr.mxu0 0.0
        %2046 = vmatpush1.msra.mxu0 0.0
        %2047 = vmatprep.subr.mxu0 0.0
        %2048 = vmatpush1.msra.mxu0 0.0
        %2049 = vmatprep.subr.mxu0 0.0
        %2050 = vmatpush1.msra.mxu0 0.0
        %2051 = vmatprep.subr.mxu0 0.0
        %2052 = vmatpush1.msra.mxu0 0.0
        %2053 = vmatprep.subr.mxu0 0.0
        %2054 = vmatpush1.msra.mxu0 0.0
        %2055 = vmatprep.subr.mxu0 0.0
        %2056 = vmatpush1.msra.mxu0 0.0
        %2057 = vmatprep.subr.mxu0 0.0
        %2058 = vmatpush1.msra.mxu0 0.0
        %2059 = vmatprep.subr.mxu0 0.0
        %2060 = vmatpush1.msra.mxu0 0.0
        %2061 = vmatprep.subr.mxu0 0.0
        %2062 = vmatpush1.msra.mxu0 0.0
        %2063 = vmatprep.subr.mxu0 0.0
        %2064 = vmatpush1.msra.mxu0 0.0
        %2065 = vmatprep.subr.mxu0 0.0
        %2066 = vmatpush1.msra.mxu0 0.0
        %2067 = vmatprep.subr.mxu0 0.0
        %2068 = vmatpush1.msra.mxu0 0.0
        %2069 = vmatprep.subr.mxu0 0.0
        %2070 = vmatpush1.msra.mxu0 0.0
        %2071 = vmatprep.subr.mxu0 0.0
        %2072 = vmatpush1.msra.mxu0 0.0
        %2073 = vmatprep.subr.mxu0 0.0
        %2074 = vmatpush1.msra.mxu0 0.0
        %2075 = vmatprep.subr.mxu0 0.0
        %2076 = vmatpush1.msra.mxu0 0.0
        %2077 = vmatprep.subr.mxu0 0.0
        %2078 = vmatpush1.msra.mxu0 0.0
        %2079 = vmatprep.subr.mxu0 0.0
        %2080 = vmatpush1.msra.mxu0 0.0
        %2081 = vmatprep.subr.mxu0 0.0
        %2082 = vmatpush1.msra.mxu0 0.0
        %2083 = vmatprep.subr.mxu0 0.0
        %2084 = vmatpush1.msra.mxu0 0.0
        %2085 = vmatprep.subr.mxu0 0.0
        %2086 = vmatpush1.msra.mxu0 0.0
        %2087 = vmatprep.subr.mxu0 0.0
        %2088 = vmatpush1.msra.mxu0 0.0
        %2089 = vmatprep.subr.mxu0 0.0
        %2090 = vmatpush1.msra.mxu0 0.0
        %2091 = vmatprep.subr.mxu0 0.0
        %2092 = vmatpush1.msra.mxu0 0.0
        %2093 = vmatprep.mubr.f32.mxu0 0.0
        %2094 = vmatmul.mubr.f32.gmra.mrb[0].mxu0 %v2027
        %v2095 = vpop.f32.mrb[0].mxu0
        %v2096 = vadd.f32 0.0, %v2095
        %v2097 = vpop.f32.mrb[0].mxu0
        %2098 = vdwg.mxu0
        %2099 = vmatprep.subr.mxu0 0.0
        %2100 = vmatpush1.msra.mxu0 %v2017
        %2101 = vmatprep.subr.mxu0 0.0
        %2102 = vmatpush1.msra.mxu0 %v2018
        %2103 = vmatprep.subr.mxu0 0.0
        %2104 = vmatpush1.msra.mxu0 %v2019
        %2105 = vmatprep.subr.mxu0 0.0
        %2106 = vmatpush1.msra.mxu0 %v2020
        %2107 = vmatprep.subr.mxu0 0.0
        %2108 = vmatpush1.msra.mxu0 0.0
        %2109 = vmatprep.subr.mxu0 0.0
        %2110 = vmatpush1.msra.mxu0 0.0
        %2111 = vmatprep.subr.mxu0 0.0
        %2112 = vmatpush1.msra.mxu0 0.0
        %2113 = vmatprep.subr.mxu0 0.0
        %2114 = vmatpush1.msra.mxu0 0.0
        %2115 = vmatprep.subr.mxu0 0.0
        %2116 = vmatpush1.msra.mxu0 0.0
        %2117 = vmatprep.subr.mxu0 0.0
        %2118 = vmatpush1.msra.mxu0 0.0
        %2119 = vmatprep.subr.mxu0 0.0
        %2120 = vmatpush1.msra.mxu0 0.0
        %2121 = vmatprep.subr.mxu0 0.0
        %2122 = vmatpush1.msra.mxu0 0.0
        %2123 = vmatprep.subr.mxu0 0.0
        %2124 = vmatpush1.msra.mxu0 0.0
        %2125 = vmatprep.subr.mxu0 0.0
        %2126 = vmatpush1.msra.mxu0 0.0
        %2127 = vmatprep.subr.mxu0 0.0
        %2128 = vmatpush1.msra.mxu0 0.0
        %2129 = vmatprep.subr.mxu0 0.0
        %2130 = vmatpush1.msra.mxu0 0.0
        %2131 = vmatprep.subr.mxu0 0.0
        %2132 = vmatpush1.msra.mxu0 0.0
        %2133 = vmatprep.subr.mxu0 0.0
        %2134 = vmatpush1.msra.mxu0 0.0
        %2135 = vmatprep.subr.mxu0 0.0
        %2136 = vmatpush1.msra.mxu0 0.0
        %2137 = vmatprep.subr.mxu0 0.0
        %2138 = vmatpush1.msra.mxu0 0.0
        %2139 = vmatprep.subr.mxu0 0.0
        %2140 = vmatpush1.msra.mxu0 0.0
        %2141 = vmatprep.subr.mxu0 0.0
        %2142 = vmatpush1.msra.mxu0 0.0
        %2143 = vmatprep.subr.mxu0 0.0
        %2144 = vmatpush1.msra.mxu0 0.0
        %2145 = vmatprep.subr.mxu0 0.0
        %2146 = vmatpush1.msra.mxu0 0.0
        %2147 = vmatprep.subr.mxu0 0.0
        %2148 = vmatpush1.msra.mxu0 0.0
        %2149 = vmatprep.subr.mxu0 0.0
        %2150 = vmatpush1.msra.mxu0 0.0
        %2151 = vmatprep.subr.mxu0 0.0
        %2152 = vmatpush1.msra.mxu0 0.0
        %2153 = vmatprep.subr.mxu0 0.0
        %2154 = vmatpush1.msra.mxu0 0.0
        %2155 = vmatprep.subr.mxu0 0.0
        %2156 = vmatpush1.msra.mxu0 0.0
        %2157 = vmatprep.subr.mxu0 0.0
        %2158 = vmatpush1.msra.mxu0 0.0
        %2159 = vmatprep.subr.mxu0 0.0
        %2160 = vmatpush1.msra.mxu0 0.0
        %2161 = vmatprep.subr.mxu0 0.0
        %2162 = vmatpush1.msra.mxu0 0.0
        %2163 = vmatprep.mubr.f32.mxu0 0.0
        %2164 = vmatmul.mubr.f32.gmra.mrb[0].mxu0 %v1606
        %v2165 = vpop.f32.mrb[0].mxu0
        %v2166 = vadd.f32 %v2096, %v2165
        %v2167 = vpop.f32.mrb[0].mxu0
        %2168 = vdwg.mxu0
        %s2169 = scalar_lea.vmem [#allocation13], 1
        %v2170 = vld [vmem:[%s2169] sm:$0x1]
        %v2172 = vlaneseq
        %v2173 = vshrl.u32 %v2172, 7
        %v2174 = vsub.s32 0, %v2173
        %v2175 = vrot.slane %v2170, %v2174
        %v2177 = vadd.f32 %v2166, %v2175
        %v2178 = vsel %vm797, %v2177, 0.0
        %2179 = vadd.xlane.f32.xlu0 %v2178
        %v2180 = vpop.xlane.xlu0 %2179
        %v2181 = vmul.f32 %v2180, %v1452
        %v2182 = vsub.f32 %v2177, %v2181
        %v2183 = vmul.f32 %v2182, %v2182
        %v2184 = vsel %vm797, %v2183, 0.0
        %2185 = vadd.xlane.f32.xlu0 %v2184
        %v2186 = vpop.xlane.xlu0 %2185
        %v2187 = vmul.f32 %v2186, %v1452
        %v2188 = vadd.f32 %v2187, 1e-05
        %v2189 = vrsqrt.pop %v2188
        %v2190 = vmul.f32 %v2182, %v2189
        %s2191 = scalar_lea.vmem [#allocation14], 1
        %v2192 = vld [vmem:[%s2191] sm:$0x1]
        %v2194 = vlaneseq
        %v2195 = vshrl.u32 %v2194, 7
        %v2196 = vsub.s32 0, %v2195
        %v2197 = vrot.slane %v2192, %v2196
        %v2199 = vmul.f32 %v2190, %v2197
        %s2200 = scalar_lea.vmem [#allocation16], 1
        %v2201 = vld [vmem:[%s2200] sm:$0x1]
        %v2203 = vlaneseq
        %v2204 = vshrl.u32 %v2203, 7
        %v2205 = vsub.s32 0, %v2204
        %v2206 = vrot.slane %v2201, %v2205
        %v2208 = vadd.f32 %v2199, %v2206
        %v2209 = vmul.f32 %v2208, 0.5
        %v2210 = vmul.f32 %v2208, 0.70710677
        %vm2211 = vcmp.ge.f32.partialorder %v2210, 0.0
        %v2212 = vsel %vm2211, 1.0, -1.0
        %v2213 = vand.u32 2147483647, %v2210
        %v2214 = vmul.f32 %v2213, 0.3275911
        %v2215 = vadd.f32 %v2214, 1.0
        %v2216 = vrcp.pop %v2215
        %v2217 = vmul.f32 1.0, %v2216
        %v2218 = vmul.f32 %v2217, 1.0614054
        %v2219 = vadd.f32 %v2218, -1.4531521
        %v2220 = vmul.f32 %v2217, %v2219
        %v2221 = vadd.f32 %v2220, 1.4214138
        %v2222 = vmul.f32 %v2217, %v2221
        %v2223 = vadd.f32 %v2222, -0.28449672
        %v2224 = vmul.f32 %v2217, %v2223
        %v2225 = vadd.f32 %v2224, 0.2548296
        %v2226 = vmul.f32 %v2217, %v2225
        %v2227 = vsub.f32 0.0, %v2213
        %v2228 = vmul.f32 %v2227, %v2213
        %v2229 = vmul.f32 %v2228, 1.442695
        %v2230 = vpow.pop %v2229
        %v2231 = vmul.f32 %v2226, %v2230
        %v2232 = vsub.f32 1.0, %v2231
        %v2233 = vmul.f32 %v2212, %v2232
        %v2234 = vadd.f32 %v2233, 1.0
        %v2235 = vmul.f32 %v2209, %v2234
        %s2236 = scalar_lea.vmem [#allocation2], 64
        %v2237 = vld [vmem:[%s2236] sm:$0xff]
        %v2238 = vld [vmem:[%s2236 + $0x8] sm:$0xff]
        %v2239 = vld [vmem:[%s2236 + $0x10] sm:$0xff]
        %v2240 = vld [vmem:[%s2236 + $0x18] sm:$0xff]
        %s2241 = scalar_lea.vmem %s4, 2
        %v2242 = vld [vmem:[%s2241] sm:$0x1]
        %v2244 = vlaneseq
        %v2245 = vshrl.u32 %v2244, 7
        %v2246 = vsub.s32 0, %v2245
        %v2247 = vrot.slane %v2242, %v2246
        %v2250 = vsel %vm797, %v2235, 0
        %2252 = vmatprep.subr.mxu0 0.0
        %2253 = vmatpush1.msra.mxu0 %v2237
        %2254 = vmatprep.subr.mxu0 0.0
        %2255 = vmatpush1.msra.mxu0 %v2238
        %2256 = vmatprep.subr.mxu0 0.0
        %2257 = vmatpush1.msra.mxu0 %v2239
        %2258 = vmatprep.subr.mxu0 0.0
        %2259 = vmatpush1.msra.mxu0 %v2240
        %2260 = vmatprep.subr.mxu0 0.0
        %2261 = vmatpush1.msra.mxu0 0.0
        %2262 = vmatprep.subr.mxu0 0.0
        %2263 = vmatpush1.msra.mxu0 0.0
        %2264 = vmatprep.subr.mxu0 0.0
        %2265 = vmatpush1.msra.mxu0 0.0
        %2266 = vmatprep.subr.mxu0 0.0
        %2267 = vmatpush1.msra.mxu0 0.0
        %2268 = vmatprep.subr.mxu0 0.0
        %2269 = vmatpush1.msra.mxu0 0.0
        %2270 = vmatprep.subr.mxu0 0.0
        %2271 = vmatpush1.msra.mxu0 0.0
        %2272 = vmatprep.subr.mxu0 0.0
        %2273 = vmatpush1.msra.mxu0 0.0
        %2274 = vmatprep.subr.mxu0 0.0
        %2275 = vmatpush1.msra.mxu0 0.0
        %2276 = vmatprep.subr.mxu0 0.0
        %2277 = vmatpush1.msra.mxu0 0.0
        %2278 = vmatprep.subr.mxu0 0.0
        %2279 = vmatpush1.msra.mxu0 0.0
        %2280 = vmatprep.subr.mxu0 0.0
        %2281 = vmatpush1.msra.mxu0 0.0
        %2282 = vmatprep.subr.mxu0 0.0
        %2283 = vmatpush1.msra.mxu0 0.0
        %2284 = vmatprep.subr.mxu0 0.0
        %2285 = vmatpush1.msra.mxu0 0.0
        %2286 = vmatprep.subr.mxu0 0.0
        %2287 = vmatpush1.msra.mxu0 0.0
        %2288 = vmatprep.subr.mxu0 0.0
        %2289 = vmatpush1.msra.mxu0 0.0
        %2290 = vmatprep.subr.mxu0 0.0
        %2291 = vmatpush1.msra.mxu0 0.0
        %2292 = vmatprep.subr.mxu0 0.0
        %2293 = vmatpush1.msra.mxu0 0.0
        %2294 = vmatprep.subr.mxu0 0.0
        %2295 = vmatpush1.msra.mxu0 0.0
        %2296 = vmatprep.subr.mxu0 0.0
        %2297 = vmatpush1.msra.mxu0 0.0
        %2298 = vmatprep.subr.mxu0 0.0
        %2299 = vmatpush1.msra.mxu0 0.0
        %2300 = vmatprep.subr.mxu0 0.0
        %2301 = vmatpush1.msra.mxu0 0.0
        %2302 = vmatprep.subr.mxu0 0.0
        %2303 = vmatpush1.msra.mxu0 0.0
        %2304 = vmatprep.subr.mxu0 0.0
        %2305 = vmatpush1.msra.mxu0 0.0
        %2306 = vmatprep.subr.mxu0 0.0
        %2307 = vmatpush1.msra.mxu0 0.0
        %2308 = vmatprep.subr.mxu0 0.0
        %2309 = vmatpush1.msra.mxu0 0.0
        %2310 = vmatprep.subr.mxu0 0.0
        %2311 = vmatpush1.msra.mxu0 0.0
        %2312 = vmatprep.subr.mxu0 0.0
        %2313 = vmatpush1.msra.mxu0 0.0
        %2314 = vmatprep.subr.mxu0 0.0
        %2315 = vmatpush1.msra.mxu0 0.0
        %2316 = vmatprep.mubr.f32.mxu0 0.0
        %2317 = vmatmul.mubr.f32.gmra.mrb[0].mxu0 %v2250
        %v2318 = vpop.f32.mrb[0].mxu0
        %v2319 = vadd.f32 %v2247, %v2318
        %v2320 = vpop.f32.mrb[0].mxu0
        %2321 = vdwg.mxu0
        %s2322 = scalar_lea.vmem [#allocation5], 64
        %v2323 = vld [vmem:[%s2322] sm:$0xff]
        %v2324 = vld [vmem:[%s2322 + $0x8] sm:$0xff]
        %v2325 = vld [vmem:[%s2322 + $0x10] sm:$0xff]
        %v2326 = vld [vmem:[%s2322 + $0x18] sm:$0xff]
        %s2327 = scalar_lea.vmem %s6, 2
        %v2328 = vld [vmem:[%s2327] sm:$0x1]
        %v2330 = vlaneseq
        %v2331 = vshrl.u32 %v2330, 7
        %v2332 = vsub.s32 0, %v2331
        %v2333 = vrot.slane %v2328, %v2332
        %v2336 = vsel %vm797, %v2319, 0
        %2338 = vmatprep.subr.mxu0 0.0
        %2339 = vmatpush1.msra.mxu0 %v2323
        %2340 = vmatprep.subr.mxu0 0.0
        %2341 = vmatpush1.msra.mxu0 %v2324
        %2342 = vmatprep.subr.mxu0 0.0
        %2343 = vmatpush1.msra.mxu0 %v2325
        %2344 = vmatprep.subr.mxu0 0.0
        %2345 = vmatpush1.msra.mxu0 %v2326
        %2346 = vmatprep.subr.mxu0 0.0
        %2347 = vmatpush1.msra.mxu0 0.0
        %2348 = vmatprep.subr.mxu0 0.0
        %2349 = vmatpush1.msra.mxu0 0.0
        %2350 = vmatprep.subr.mxu0 0.0
        %2351 = vmatpush1.msra.mxu0 0.0
        %2352 = vmatprep.subr.mxu0 0.0
        %2353 = vmatpush1.msra.mxu0 0.0
        %2354 = vmatprep.subr.mxu0 0.0
        %2355 = vmatpush1.msra.mxu0 0.0
        %2356 = vmatprep.subr.mxu0 0.0
        %2357 = vmatpush1.msra.mxu0 0.0
        %2358 = vmatprep.subr.mxu0 0.0
        %2359 = vmatpush1.msra.mxu0 0.0
        %2360 = vmatprep.subr.mxu0 0.0
        %2361 = vmatpush1.msra.mxu0 0.0
        %2362 = vmatprep.subr.mxu0 0.0
        %2363 = vmatpush1.msra.mxu0 0.0
        %2364 = vmatprep.subr.mxu0 0.0
        %2365 = vmatpush1.msra.mxu0 0.0
        %2366 = vmatprep.subr.mxu0 0.0
        %2367 = vmatpush1.msra.mxu0 0.0
        %2368 = vmatprep.subr.mxu0 0.0
        %2369 = vmatpush1.msra.mxu0 0.0
        %2370 = vmatprep.subr.mxu0 0.0
        %2371 = vmatpush1.msra.mxu0 0.0
        %2372 = vmatprep.subr.mxu0 0.0
        %2373 = vmatpush1.msra.mxu0 0.0
        %2374 = vmatprep.subr.mxu0 0.0
        %2375 = vmatpush1.msra.mxu0 0.0
        %2376 = vmatprep.subr.mxu0 0.0
        %2377 = vmatpush1.msra.mxu0 0.0
        %2378 = vmatprep.subr.mxu0 0.0
        %2379 = vmatpush1.msra.mxu0 0.0
        %2380 = vmatprep.subr.mxu0 0.0
        %2381 = vmatpush1.msra.mxu0 0.0
        %2382 = vmatprep.subr.mxu0 0.0
        %2383 = vmatpush1.msra.mxu0 0.0
        %2384 = vmatprep.subr.mxu0 0.0
        %2385 = vmatpush1.msra.mxu0 0.0
        %2386 = vmatprep.subr.mxu0 0.0
        %2387 = vmatpush1.msra.mxu0 0.0
        %2388 = vmatprep.subr.mxu0 0.0
        %2389 = vmatpush1.msra.mxu0 0.0
        %2390 = vmatprep.subr.mxu0 0.0
        %2391 = vmatpush1.msra.mxu0 0.0
        %2392 = vmatprep.subr.mxu0 0.0
        %2393 = vmatpush1.msra.mxu0 0.0
        %2394 = vmatprep.subr.mxu0 0.0
        %2395 = vmatpush1.msra.mxu0 0.0
        %2396 = vmatprep.subr.mxu0 0.0
        %2397 = vmatpush1.msra.mxu0 0.0
        %2398 = vmatprep.subr.mxu0 0.0
        %2399 = vmatpush1.msra.mxu0 0.0
        %2400 = vmatprep.subr.mxu0 0.0
        %2401 = vmatpush1.msra.mxu0 0.0
        %2402 = vmatprep.mubr.f32.mxu0 0.0
        %2403 = vmatmul.mubr.f32.gmra.mrb[0].mxu0 %v2336
        %v2404 = vpop.f32.mrb[0].mxu0
        %v2405 = vadd.f32 %v2333, %v2404
        %v2406 = vpop.f32.mrb[0].mxu0
        %2407 = vdwg.mxu0
        %v2408 = vtanh.pop %v2405
        %s2409 = scalar_lea.vmem [#allocation7], 64
        %v2410 = vld [vmem:[%s2409] sm:$0xff]
        %v2411 = vld [vmem:[%s2409 + $0x8] sm:$0xff]
        %v2412 = vld [vmem:[%s2409 + $0x10] sm:$0xff]
        %v2413 = vld [vmem:[%s2409 + $0x18] sm:$0xff]
        %s2414 = scalar_lea.vmem %s8, 2
        %v2415 = vld [vmem:[%s2414] sm:$0x1]
        %v2417 = vlaneseq
        %v2418 = vshrl.u32 %v2417, 7
        %v2419 = vsub.s32 0, %v2418
        %v2420 = vrot.slane %v2415, %v2419
        %v2423 = vsel %vm797, %v2408, 0
        %2425 = vmatprep.subr.mxu0 0.0
        %2426 = vmatpush1.msra.mxu0 %v2410
        %2427 = vmatprep.subr.mxu0 0.0
        %2428 = vmatpush1.msra.mxu0 %v2411
        %2429 = vmatprep.subr.mxu0 0.0
        %2430 = vmatpush1.msra.mxu0 %v2412
        %2431 = vmatprep.subr.mxu0 0.0
        %2432 = vmatpush1.msra.mxu0 %v2413
        %2433 = vmatprep.subr.mxu0 0.0
        %2434 = vmatpush1.msra.mxu0 0.0
        %2435 = vmatprep.subr.mxu0 0.0
        %2436 = vmatpush1.msra.mxu0 0.0
        %2437 = vmatprep.subr.mxu0 0.0
        %2438 = vmatpush1.msra.mxu0 0.0
        %2439 = vmatprep.subr.mxu0 0.0
        %2440 = vmatpush1.msra.mxu0 0.0
        %2441 = vmatprep.subr.mxu0 0.0
        %2442 = vmatpush1.msra.mxu0 0.0
        %2443 = vmatprep.subr.mxu0 0.0
        %2444 = vmatpush1.msra.mxu0 0.0
        %2445 = vmatprep.subr.mxu0 0.0
        %2446 = vmatpush1.msra.mxu0 0.0
        %2447 = vmatprep.subr.mxu0 0.0
        %2448 = vmatpush1.msra.mxu0 0.0
        %2449 = vmatprep.subr.mxu0 0.0
        %2450 = vmatpush1.msra.mxu0 0.0
        %2451 = vmatprep.subr.mxu0 0.0
        %2452 = vmatpush1.msra.mxu0 0.0
        %2453 = vmatprep.subr.mxu0 0.0
        %2454 = vmatpush1.msra.mxu0 0.0
        %2455 = vmatprep.subr.mxu0 0.0
        %2456 = vmatpush1.msra.mxu0 0.0
        %2457 = vmatprep.subr.mxu0 0.0
        %2458 = vmatpush1.msra.mxu0 0.0
        %2459 = vmatprep.subr.mxu0 0.0
        %2460 = vmatpush1.msra.mxu0 0.0
        %2461 = vmatprep.subr.mxu0 0.0
        %2462 = vmatpush1.msra.mxu0 0.0
        %2463 = vmatprep.subr.mxu0 0.0
        %2464 = vmatpush1.msra.mxu0 0.0
        %2465 = vmatprep.subr.mxu0 0.0
        %2466 = vmatpush1.msra.mxu0 0.0
        %2467 = vmatprep.subr.mxu0 0.0
        %2468 = vmatpush1.msra.mxu0 0.0
        %2469 = vmatprep.subr.mxu0 0.0
        %2470 = vmatpush1.msra.mxu0 0.0
        %2471 = vmatprep.subr.mxu0 0.0
        %2472 = vmatpush1.msra.mxu0 0.0
        %2473 = vmatprep.subr.mxu0 0.0
        %2474 = vmatpush1.msra.mxu0 0.0
        %2475 = vmatprep.subr.mxu0 0.0
        %2476 = vmatpush1.msra.mxu0 0.0
        %2477 = vmatprep.subr.mxu0 0.0
        %2478 = vmatpush1.msra.mxu0 0.0
        %2479 = vmatprep.subr.mxu0 0.0
        %2480 = vmatpush1.msra.mxu0 0.0
        %2481 = vmatprep.subr.mxu0 0.0
        %2482 = vmatpush1.msra.mxu0 0.0
        %2483 = vmatprep.subr.mxu0 0.0
        %2484 = vmatpush1.msra.mxu0 0.0
        %2485 = vmatprep.subr.mxu0 0.0
        %2486 = vmatpush1.msra.mxu0 0.0
        %2487 = vmatprep.subr.mxu0 0.0
        %2488 = vmatpush1.msra.mxu0 0.0
        %2489 = vmatprep.mubr.f32.mxu0 0.0
        %2490 = vmatmul.mubr.f32.gmra.mrb[0].mxu0 %v2423
        %v2491 = vpop.f32.mrb[0].mxu0
        %v2492 = vadd.f32 %v2420, %v2491
        %v2493 = vpop.f32.mrb[0].mxu0
        %2494 = vdwg.mxu0
        %2496 = vrot.lane.b32.xlu0 %v2492, 96
        %v2497 = vpop.permute.xlu0 %2496
        %v2498 = vsel %vm797, %v2492, 0
        %v2500 = vsel %vm797, %v2497, 0
        %2502 = vmatprep.subr.mxu0 0.0
        %2503 = vmatpush1.xpose.msra.mxu0 %v2500
        %2504 = vmatprep.subr.mxu0 0.0
        %2505 = vmatpush1.xpose.msra.mxu0 0.0
        %2506 = vmatprep.subr.mxu0 0.0
        %2507 = vmatpush1.xpose.msra.mxu0 0.0
        %2508 = vmatprep.subr.mxu0 0.0
        %2509 = vmatpush1.xpose.msra.mxu0 0.0
        %2510 = vmatprep.subr.mxu0 0.0
        %2511 = vmatpush1.xpose.msra.mxu0 0.0
        %2512 = vmatprep.subr.mxu0 0.0
        %2513 = vmatpush1.xpose.msra.mxu0 0.0
        %2514 = vmatprep.subr.mxu0 0.0
        %2515 = vmatpush1.xpose.msra.mxu0 0.0
        %2516 = vmatprep.subr.mxu0 0.0
        %2517 = vmatpush1.xpose.msra.mxu0 0.0
        %2518 = vmatprep.subr.mxu0 0.0
        %2519 = vmatpush1.xpose.msra.mxu0 0.0
        %2520 = vmatprep.subr.mxu0 0.0
        %2521 = vmatpush1.xpose.msra.mxu0 0.0
        %2522 = vmatprep.subr.mxu0 0.0
        %2523 = vmatpush1.xpose.msra.mxu0 0.0
        %2524 = vmatprep.subr.mxu0 0.0
        %2525 = vmatpush1.xpose.msra.mxu0 0.0
        %2526 = vmatprep.subr.mxu0 0.0
        %2527 = vmatpush1.xpose.msra.mxu0 0.0
        %2528 = vmatprep.subr.mxu0 0.0
        %2529 = vmatpush1.xpose.msra.mxu0 0.0
        %2530 = vmatprep.subr.mxu0 0.0
        %2531 = vmatpush1.xpose.msra.mxu0 0.0
        %2532 = vmatprep.subr.mxu0 0.0
        %2533 = vmatpush1.xpose.msra.mxu0 0.0
        %2534 = vmatprep.subr.mxu0 0.0
        %2535 = vmatpush1.xpose.msra.mxu0 0.0
        %2536 = vmatprep.subr.mxu0 0.0
        %2537 = vmatpush1.xpose.msra.mxu0 0.0
        %2538 = vmatprep.subr.mxu0 0.0
        %2539 = vmatpush1.xpose.msra.mxu0 0.0
        %2540 = vmatprep.subr.mxu0 0.0
        %2541 = vmatpush1.xpose.msra.mxu0 0.0
        %2542 = vmatprep.subr.mxu0 0.0
        %2543 = vmatpush1.xpose.msra.mxu0 0.0
        %2544 = vmatprep.subr.mxu0 0.0
        %2545 = vmatpush1.xpose.msra.mxu0 0.0
        %2546 = vmatprep.subr.mxu0 0.0
        %2547 = vmatpush1.xpose.msra.mxu0 0.0
        %2548 = vmatprep.subr.mxu0 0.0
        %2549 = vmatpush1.xpose.msra.mxu0 0.0
        %2550 = vmatprep.subr.mxu0 0.0
        %2551 = vmatpush1.xpose.msra.mxu0 0.0
        %2552 = vmatprep.subr.mxu0 0.0
        %2553 = vmatpush1.xpose.msra.mxu0 0.0
        %2554 = vmatprep.subr.mxu0 0.0
        %2555 = vmatpush1.xpose.msra.mxu0 0.0
        %2556 = vmatprep.subr.mxu0 0.0
        %2557 = vmatpush1.xpose.msra.mxu0 0.0
        %2558 = vmatprep.subr.mxu0 0.0
        %2559 = vmatpush1.xpose.msra.mxu0 0.0
        %2560 = vmatprep.subr.mxu0 0.0
        %2561 = vmatpush1.xpose.msra.mxu0 0.0
        %2562 = vmatprep.subr.mxu0 0.0
        %2563 = vmatpush1.xpose.msra.mxu0 0.0
        %2564 = vmatprep.subr.mxu0 0.0
        %2565 = vmatpush1.xpose.msra.mxu0 0.0
        %2566 = vmatprep.mubr.f32.mxu0 0.0
        %2567 = vmatmul.mubr.f32.gmra.mrb[0].mxu0 %v2498
        %v2568 = vpop.f32.mrb[0].mxu0
        %v2569 = vadd.f32 0.0, %v2568
        %v2570 = vpop.f32.mrb[0].mxu0
        %2571 = vdwg.mxu0
        %v2572 = vmul.f32 %v2569, 0.17677669
        %v2573 = vsel %vm1118, %v2572, -inf
        %2574 = vmax.xlane.f32.xlu0 %v2573
        %v2575 = vpop.xlane.xlu0 %2574
        %v2576 = vsub.f32 %v2572, %v2575
        %v2577 = vmul.f32 %v2576, 1.442695
        %v2578 = vpow.pop %v2577
        %v2579 = vsel %vm1118, %v2578, 0.0
        %2580 = vadd.xlane.f32.xlu0 %v2579
        %v2581 = vpop.xlane.xlu0 %2580
        %v2582 = vrcp.pop %v2581
        %v2583 = vmul.f32 %v2578, %v2582
        %2584 = vrot.lane.b32.xlu0 %v2492, 64
        %v2585 = vpop.permute.xlu0 %2584
        %v2588 = vsel %vm1118, %v2583, 0
        %2590 = vmatprep.subr.mxu0 0.0
        %2591 = vmatpush1.msra.mxu0 %v2585
        %2592 = vmatprep.subr.mxu0 0.0
        %2593 = vmatpush1.msra.mxu0 0.0
        %2594 = vmatprep.subr.mxu0 0.0
        %2595 = vmatpush1.msra.mxu0 0.0
        %2596 = vmatprep.subr.mxu0 0.0
        %2597 = vmatpush1.msra.mxu0 0.0
        %2598 = vmatprep.subr.mxu0 0.0
        %2599 = vmatpush1.msra.mxu0 0.0
        %2600 = vmatprep.subr.mxu0 0.0
        %2601 = vmatpush1.msra.mxu0 0.0
        %2602 = vmatprep.subr.mxu0 0.0
        %2603 = vmatpush1.msra.mxu0 0.0
        %2604 = vmatprep.subr.mxu0 0.0
        %2605 = vmatpush1.msra.mxu0 0.0
        %2606 = vmatprep.subr.mxu0 0.0
        %2607 = vmatpush1.msra.mxu0 0.0
        %2608 = vmatprep.subr.mxu0 0.0
        %2609 = vmatpush1.msra.mxu0 0.0
        %2610 = vmatprep.subr.mxu0 0.0
        %2611 = vmatpush1.msra.mxu0 0.0
        %2612 = vmatprep.subr.mxu0 0.0
        %2613 = vmatpush1.msra.mxu0 0.0
        %2614 = vmatprep.subr.mxu0 0.0
        %2615 = vmatpush1.msra.mxu0 0.0
        %2616 = vmatprep.subr.mxu0 0.0
        %2617 = vmatpush1.msra.mxu0 0.0
        %2618 = vmatprep.subr.mxu0 0.0
        %2619 = vmatpush1.msra.mxu0 0.0
        %2620 = vmatprep.subr.mxu0 0.0
        %2621 = vmatpush1.msra.mxu0 0.0
        %2622 = vmatprep.subr.mxu0 0.0
        %2623 = vmatpush1.msra.mxu0 0.0
        %2624 = vmatprep.subr.mxu0 0.0
        %2625 = vmatpush1.msra.mxu0 0.0
        %2626 = vmatprep.subr.mxu0 0.0
        %2627 = vmatpush1.msra.mxu0 0.0
        %2628 = vmatprep.subr.mxu0 0.0
        %2629 = vmatpush1.msra.mxu0 0.0
        %2630 = vmatprep.subr.mxu0 0.0
        %2631 = vmatpush1.msra.mxu0 0.0
        %2632 = vmatprep.subr.mxu0 0.0
        %2633 = vmatpush1.msra.mxu0 0.0
        %2634 = vmatprep.subr.mxu0 0.0
        %2635 = vmatpush1.msra.mxu0 0.0
        %2636 = vmatprep.subr.mxu0 0.0
        %2637 = vmatpush1.msra.mxu0 0.0
        %2638 = vmatprep.subr.mxu0 0.0
        %2639 = vmatpush1.msra.mxu0 0.0
        %2640 = vmatprep.subr.mxu0 0.0
        %2641 = vmatpush1.msra.mxu0 0.0
        %2642 = vmatprep.subr.mxu0 0.0
        %2643 = vmatpush1.msra.mxu0 0.0
        %2644 = vmatprep.subr.mxu0 0.0
        %2645 = vmatpush1.msra.mxu0 0.0
        %2646 = vmatprep.subr.mxu0 0.0
        %2647 = vmatpush1.msra.mxu0 0.0
        %2648 = vmatprep.subr.mxu0 0.0
        %2649 = vmatpush1.msra.mxu0 0.0
        %2650 = vmatprep.subr.mxu0 0.0
        %2651 = vmatpush1.msra.mxu0 0.0
        %2652 = vmatprep.subr.mxu0 0.0
        %2653 = vmatpush1.msra.mxu0 0.0
        %2654 = vmatprep.mubr.f32.mxu0 0.0
        %2655 = vmatmul.mubr.f32.gmra.mrb[0].mxu0 %v2588
        %v2656 = vpop.f32.mrb[0].mxu0
        %v2657 = vadd.f32 0.0, %v2656
        %v2658 = vpop.f32.mrb[0].mxu0
        %2659 = vdwg.mxu0
        %s2660 = scalar_lea.vmem [#allocation8], 64
        %v2661 = vld [vmem:[%s2660] sm:$0xff]
        %v2662 = vld [vmem:[%s2660 + $0x8] sm:$0xff]
        %v2663 = vld [vmem:[%s2660 + $0x10] sm:$0xff]
        %v2664 = vld [vmem:[%s2660 + $0x18] sm:$0xff]
        %s2665 = scalar_lea.vmem %s10, 2
        %v2666 = vld [vmem:[%s2665] sm:$0x1]
        %v2668 = vlaneseq
        %v2669 = vshrl.u32 %v2668, 7
        %v2670 = vsub.s32 0, %v2669
        %v2671 = vrot.slane %v2666, %v2670
        %v2674 = vsel %vm797, %v2657, 0
        %2676 = vmatprep.subr.mxu0 0.0
        %2677 = vmatpush1.msra.mxu0 %v2661
        %2678 = vmatprep.subr.mxu0 0.0
        %2679 = vmatpush1.msra.mxu0 %v2662
        %2680 = vmatprep.subr.mxu0 0.0
        %2681 = vmatpush1.msra.mxu0 %v2663
        %2682 = vmatprep.subr.mxu0 0.0
        %2683 = vmatpush1.msra.mxu0 %v2664
        %2684 = vmatprep.subr.mxu0 0.0
        %2685 = vmatpush1.msra.mxu0 0.0
        %2686 = vmatprep.subr.mxu0 0.0
        %2687 = vmatpush1.msra.mxu0 0.0
        %2688 = vmatprep.subr.mxu0 0.0
        %2689 = vmatpush1.msra.mxu0 0.0
        %2690 = vmatprep.subr.mxu0 0.0
        %2691 = vmatpush1.msra.mxu0 0.0
        %2692 = vmatprep.subr.mxu0 0.0
        %2693 = vmatpush1.msra.mxu0 0.0
        %2694 = vmatprep.subr.mxu0 0.0
        %2695 = vmatpush1.msra.mxu0 0.0
        %2696 = vmatprep.subr.mxu0 0.0
        %2697 = vmatpush1.msra.mxu0 0.0
        %2698 = vmatprep.subr.mxu0 0.0
        %2699 = vmatpush1.msra.mxu0 0.0
        %2700 = vmatprep.subr.mxu0 0.0
        %2701 = vmatpush1.msra.mxu0 0.0
        %2702 = vmatprep.subr.mxu0 0.0
        %2703 = vmatpush1.msra.mxu0 0.0
        %2704 = vmatprep.subr.mxu0 0.0
        %2705 = vmatpush1.msra.mxu0 0.0
        %2706 = vmatprep.subr.mxu0 0.0
        %2707 = vmatpush1.msra.mxu0 0.0
        %2708 = vmatprep.subr.mxu0 0.0
        %2709 = vmatpush1.msra.mxu0 0.0
        %2710 = vmatprep.subr.mxu0 0.0
        %2711 = vmatpush1.msra.mxu0 0.0
        %2712 = vmatprep.subr.mxu0 0.0
        %2713 = vmatpush1.msra.mxu0 0.0
        %2714 = vmatprep.subr.mxu0 0.0
        %2715 = vmatpush1.msra.mxu0 0.0
        %2716 = vmatprep.subr.mxu0 0.0
        %2717 = vmatpush1.msra.mxu0 0.0
        %2718 = vmatprep.subr.mxu0 0.0
        %2719 = vmatpush1.msra.mxu0 0.0
        %2720 = vmatprep.subr.mxu0 0.0
        %2721 = vmatpush1.msra.mxu0 0.0
        %2722 = vmatprep.subr.mxu0 0.0
        %2723 = vmatpush1.msra.mxu0 0.0
        %2724 = vmatprep.subr.mxu0 0.0
        %2725 = vmatpush1.msra.mxu0 0.0
        %2726 = vmatprep.subr.mxu0 0.0
        %2727 = vmatpush1.msra.mxu0 0.0
        %2728 = vmatprep.subr.mxu0 0.0
        %2729 = vmatpush1.msra.mxu0 0.0
        %2730 = vmatprep.subr.mxu0 0.0
        %2731 = vmatpush1.msra.mxu0 0.0
        %2732 = vmatprep.subr.mxu0 0.0
        %2733 = vmatpush1.msra.mxu0 0.0
        %2734 = vmatprep.subr.mxu0 0.0
        %2735 = vmatpush1.msra.mxu0 0.0
        %2736 = vmatprep.subr.mxu0 0.0
        %2737 = vmatpush1.msra.mxu0 0.0
        %2738 = vmatprep.subr.mxu0 0.0
        %2739 = vmatpush1.msra.mxu0 0.0
        %2740 = vmatprep.mubr.f32.mxu0 0.0
        %2741 = vmatmul.mubr.f32.gmra.mrb[0].mxu0 %v2674
        %v2742 = vpop.f32.mrb[0].mxu0
        %v2743 = vadd.f32 %v2671, %v2742
        %v2744 = vpop.f32.mrb[0].mxu0
        %2745 = vdwg.mxu0
        %s2746 = scalar_lea.vmem [#allocation10], 64
        %v2747 = vld [vmem:[%s2746] sm:$0xff]
        %v2748 = vld [vmem:[%s2746 + $0x8] sm:$0xff]
        %v2749 = vld [vmem:[%s2746 + $0x10] sm:$0xff]
        %v2750 = vld [vmem:[%s2746 + $0x18] sm:$0xff]
        %s2751 = scalar_lea.vmem [#allocation11], 64
        %v2752 = vld [vmem:[%s2751] sm:$0xff]
        %v2753 = vld [vmem:[%s2751 + $0x8] sm:$0xff]
        %v2754 = vld [vmem:[%s2751 + $0x10] sm:$0xff]
        %v2755 = vld [vmem:[%s2751 + $0x18] sm:$0xff]
        %v2757 = vsel %vm797, %v2743, 0
        %2759 = vmatprep.subr.mxu0 0.0
        %2760 = vmatpush1.msra.mxu0 %v2752
        %2761 = vmatprep.subr.mxu0 0.0
        %2762 = vmatpush1.msra.mxu0 %v2753
        %2763 = vmatprep.subr.mxu0 0.0
        %2764 = vmatpush1.msra.mxu0 %v2754
        %2765 = vmatprep.subr.mxu0 0.0
        %2766 = vmatpush1.msra.mxu0 %v2755
        %2767 = vmatprep.subr.mxu0 0.0
        %2768 = vmatpush1.msra.mxu0 0.0
        %2769 = vmatprep.subr.mxu0 0.0
        %2770 = vmatpush1.msra.mxu0 0.0
        %2771 = vmatprep.subr.mxu0 0.0
        %2772 = vmatpush1.msra.mxu0 0.0
        %2773 = vmatprep.subr.mxu0 0.0
        %2774 = vmatpush1.msra.mxu0 0.0
        %2775 = vmatprep.subr.mxu0 0.0
        %2776 = vmatpush1.msra.mxu0 0.0
        %2777 = vmatprep.subr.mxu0 0.0
        %2778 = vmatpush1.msra.mxu0 0.0
        %2779 = vmatprep.subr.mxu0 0.0
        %2780 = vmatpush1.msra.mxu0 0.0
        %2781 = vmatprep.subr.mxu0 0.0
        %2782 = vmatpush1.msra.mxu0 0.0
        %2783 = vmatprep.subr.mxu0 0.0
        %2784 = vmatpush1.msra.mxu0 0.0
        %2785 = vmatprep.subr.mxu0 0.0
        %2786 = vmatpush1.msra.mxu0 0.0
        %2787 = vmatprep.subr.mxu0 0.0
        %2788 = vmatpush1.msra.mxu0 0.0
        %2789 = vmatprep.subr.mxu0 0.0
        %2790 = vmatpush1.msra.mxu0 0.0
        %2791 = vmatprep.subr.mxu0 0.0
        %2792 = vmatpush1.msra.mxu0 0.0
        %2793 = vmatprep.subr.mxu0 0.0
        %2794 = vmatpush1.msra.mxu0 0.0
        %2795 = vmatprep.subr.mxu0 0.0
        %2796 = vmatpush1.msra.mxu0 0.0
        %2797 = vmatprep.subr.mxu0 0.0
        %2798 = vmatpush1.msra.mxu0 0.0
        %2799 = vmatprep.subr.mxu0 0.0
        %2800 = vmatpush1.msra.mxu0 0.0
        %2801 = vmatprep.subr.mxu0 0.0
        %2802 = vmatpush1.msra.mxu0 0.0
        %2803 = vmatprep.subr.mxu0 0.0
        %2804 = vmatpush1.msra.mxu0 0.0
        %2805 = vmatprep.subr.mxu0 0.0
        %2806 = vmatpush1.msra.mxu0 0.0
        %2807 = vmatprep.subr.mxu0 0.0
        %2808 = vmatpush1.msra.mxu0 0.0
        %2809 = vmatprep.subr.mxu0 0.0
        %2810 = vmatpush1.msra.mxu0 0.0
        %2811 = vmatprep.subr.mxu0 0.0
        %2812 = vmatpush1.msra.mxu0 0.0
        %2813 = vmatprep.subr.mxu0 0.0
        %2814 = vmatpush1.msra.mxu0 0.0
        %2815 = vmatprep.subr.mxu0 0.0
        %2816 = vmatpush1.msra.mxu0 0.0
        %2817 = vmatprep.subr.mxu0 0.0
        %2818 = vmatpush1.msra.mxu0 0.0
        %2819 = vmatprep.subr.mxu0 0.0
        %2820 = vmatpush1.msra.mxu0 0.0
        %2821 = vmatprep.subr.mxu0 0.0
        %2822 = vmatpush1.msra.mxu0 0.0
        %2823 = vmatprep.mubr.f32.mxu0 0.0
        %2824 = vmatmul.mubr.f32.gmra.mrb[0].mxu0 %v2757
        %v2825 = vpop.f32.mrb[0].mxu0
        %v2826 = vadd.f32 0.0, %v2825
        %v2827 = vpop.f32.mrb[0].mxu0
        %2828 = vdwg.mxu0
        %2829 = vmatprep.subr.mxu0 0.0
        %2830 = vmatpush1.msra.mxu0 %v2747
        %2831 = vmatprep.subr.mxu0 0.0
        %2832 = vmatpush1.msra.mxu0 %v2748
        %2833 = vmatprep.subr.mxu0 0.0
        %2834 = vmatpush1.msra.mxu0 %v2749
        %2835 = vmatprep.subr.mxu0 0.0
        %2836 = vmatpush1.msra.mxu0 %v2750
        %2837 = vmatprep.subr.mxu0 0.0
        %2838 = vmatpush1.msra.mxu0 0.0
        %2839 = vmatprep.subr.mxu0 0.0
        %2840 = vmatpush1.msra.mxu0 0.0
        %2841 = vmatprep.subr.mxu0 0.0
        %2842 = vmatpush1.msra.mxu0 0.0
        %2843 = vmatprep.subr.mxu0 0.0
        %2844 = vmatpush1.msra.mxu0 0.0
        %2845 = vmatprep.subr.mxu0 0.0
        %2846 = vmatpush1.msra.mxu0 0.0
        %2847 = vmatprep.subr.mxu0 0.0
        %2848 = vmatpush1.msra.mxu0 0.0
        %2849 = vmatprep.subr.mxu0 0.0
        %2850 = vmatpush1.msra.mxu0 0.0
        %2851 = vmatprep.subr.mxu0 0.0
        %2852 = vmatpush1.msra.mxu0 0.0
        %2853 = vmatprep.subr.mxu0 0.0
        %2854 = vmatpush1.msra.mxu0 0.0
        %2855 = vmatprep.subr.mxu0 0.0
        %2856 = vmatpush1.msra.mxu0 0.0
        %2857 = vmatprep.subr.mxu0 0.0
        %2858 = vmatpush1.msra.mxu0 0.0
        %2859 = vmatprep.subr.mxu0 0.0
        %2860 = vmatpush1.msra.mxu0 0.0
        %2861 = vmatprep.subr.mxu0 0.0
        %2862 = vmatpush1.msra.mxu0 0.0
        %2863 = vmatprep.subr.mxu0 0.0
        %2864 = vmatpush1.msra.mxu0 0.0
        %2865 = vmatprep.subr.mxu0 0.0
        %2866 = vmatpush1.msra.mxu0 0.0
        %2867 = vmatprep.subr.mxu0 0.0
        %2868 = vmatpush1.msra.mxu0 0.0
        %2869 = vmatprep.subr.mxu0 0.0
        %2870 = vmatpush1.msra.mxu0 0.0
        %2871 = vmatprep.subr.mxu0 0.0
        %2872 = vmatpush1.msra.mxu0 0.0
        %2873 = vmatprep.subr.mxu0 0.0
        %2874 = vmatpush1.msra.mxu0 0.0
        %2875 = vmatprep.subr.mxu0 0.0
        %2876 = vmatpush1.msra.mxu0 0.0
        %2877 = vmatprep.subr.mxu0 0.0
        %2878 = vmatpush1.msra.mxu0 0.0
        %2879 = vmatprep.subr.mxu0 0.0
        %2880 = vmatpush1.msra.mxu0 0.0
        %2881 = vmatprep.subr.mxu0 0.0
        %2882 = vmatpush1.msra.mxu0 0.0
        %2883 = vmatprep.subr.mxu0 0.0
        %2884 = vmatpush1.msra.mxu0 0.0
        %2885 = vmatprep.subr.mxu0 0.0
        %2886 = vmatpush1.msra.mxu0 0.0
        %2887 = vmatprep.subr.mxu0 0.0
        %2888 = vmatpush1.msra.mxu0 0.0
        %2889 = vmatprep.subr.mxu0 0.0
        %2890 = vmatpush1.msra.mxu0 0.0
        %2891 = vmatprep.subr.mxu0 0.0
        %2892 = vmatpush1.msra.mxu0 0.0
        %2893 = vmatprep.mubr.f32.mxu0 0.0
        %2894 = vmatmul.mubr.f32.gmra.mrb[0].mxu0 %v2336
        %v2895 = vpop.f32.mrb[0].mxu0
        %v2896 = vadd.f32 %v2826, %v2895
        %v2897 = vpop.f32.mrb[0].mxu0
        %2898 = vdwg.mxu0
        %s2899 = scalar_lea.vmem [#allocation13], 2
        %v2900 = vld [vmem:[%s2899] sm:$0x1]
        %v2902 = vlaneseq
        %v2903 = vshrl.u32 %v2902, 7
        %v2904 = vsub.s32 0, %v2903
        %v2905 = vrot.slane %v2900, %v2904
        %v2907 = vadd.f32 %v2896, %v2905
        %v2908 = vsel %vm797, %v2907, 0.0
        %2909 = vadd.xlane.f32.xlu0 %v2908
        %v2910 = vpop.xlane.xlu0 %2909
        %v2911 = vmul.f32 %v2910, %v1452
        %v2912 = vsub.f32 %v2907, %v2911
        %v2913 = vmul.f32 %v2912, %v2912
        %v2914 = vsel %vm797, %v2913, 0.0
        %2915 = vadd.xlane.f32.xlu0 %v2914
        %v2916 = vpop.xlane.xlu0 %2915
        %v2917 = vmul.f32 %v2916, %v1452
        %v2918 = vadd.f32 %v2917, 1e-05
        %v2919 = vrsqrt.pop %v2918
        %v2920 = vmul.f32 %v2912, %v2919
        %s2921 = scalar_lea.vmem [#allocation14], 2
        %v2922 = vld [vmem:[%s2921] sm:$0x1]
        %v2924 = vlaneseq
        %v2925 = vshrl.u32 %v2924, 7
        %v2926 = vsub.s32 0, %v2925
        %v2927 = vrot.slane %v2922, %v2926
        %v2929 = vmul.f32 %v2920, %v2927
        %s2930 = scalar_lea.vmem [#allocation16], 2
        %v2931 = vld [vmem:[%s2930] sm:$0x1]
        %v2933 = vlaneseq
        %v2934 = vshrl.u32 %v2933, 7
        %v2935 = vsub.s32 0, %v2934
        %v2936 = vrot.slane %v2931, %v2935
        %v2938 = vadd.f32 %v2929, %v2936
        %v2939 = vmul.f32 %v2938, 0.5
        %v2940 = vmul.f32 %v2938, 0.70710677
        %vm2941 = vcmp.ge.f32.partialorder %v2940, 0.0
        %v2942 = vsel %vm2941, 1.0, -1.0
        %v2943 = vand.u32 2147483647, %v2940
        %v2944 = vmul.f32 %v2943, 0.3275911
        %v2945 = vadd.f32 %v2944, 1.0
        %v2946 = vrcp.pop %v2945
        %v2947 = vmul.f32 1.0, %v2946
        %v2948 = vmul.f32 %v2947, 1.0614054
        %v2949 = vadd.f32 %v2948, -1.4531521
        %v2950 = vmul.f32 %v2947, %v2949
        %v2951 = vadd.f32 %v2950, 1.4214138
        %v2952 = vmul.f32 %v2947, %v2951
        %v2953 = vadd.f32 %v2952, -0.28449672
        %v2954 = vmul.f32 %v2947, %v2953
        %v2955 = vadd.f32 %v2954, 0.2548296
        %v2956 = vmul.f32 %v2947, %v2955
        %v2957 = vsub.f32 0.0, %v2943
        %v2958 = vmul.f32 %v2957, %v2943
        %v2959 = vmul.f32 %v2958, 1.442695
        %v2960 = vpow.pop %v2959
        %v2961 = vmul.f32 %v2956, %v2960
        %v2962 = vsub.f32 1.0, %v2961
        %v2963 = vmul.f32 %v2942, %v2962
        %v2964 = vadd.f32 %v2963, 1.0
        %v2965 = vmul.f32 %v2939, %v2964
        %s2966 = scalar_lea.vmem [#allocation2], 96
        %v2967 = vld [vmem:[%s2966] sm:$0xff]
        %v2968 = vld [vmem:[%s2966 + $0x8] sm:$0xff]
        %v2969 = vld [vmem:[%s2966 + $0x10] sm:$0xff]
        %v2970 = vld [vmem:[%s2966 + $0x18] sm:$0xff]
        %s2971 = scalar_lea.vmem %s4, 3
        %v2972 = vld [vmem:[%s2971] sm:$0x1]
        %v2974 = vlaneseq
        %v2975 = vshrl.u32 %v2974, 7
        %v2976 = vsub.s32 0, %v2975
        %v2977 = vrot.slane %v2972, %v2976
        %v2980 = vsel %vm797, %v2965, 0
        %2982 = vmatprep.subr.mxu0 0.0
        %2983 = vmatpush1.msra.mxu0 %v2967
        %2984 = vmatprep.subr.mxu0 0.0
        %2985 = vmatpush1.msra.mxu0 %v2968
        %2986 = vmatprep.subr.mxu0 0.0
        %2987 = vmatpush1.msra.mxu0 %v2969
        %2988 = vmatprep.subr.mxu0 0.0
        %2989 = vmatpush1.msra.mxu0 %v2970
        %2990 = vmatprep.subr.mxu0 0.0
        %2991 = vmatpush1.msra.mxu0 0.0
        %2992 = vmatprep.subr.mxu0 0.0
        %2993 = vmatpush1.msra.mxu0 0.0
        %2994 = vmatprep.subr.mxu0 0.0
        %2995 = vmatpush1.msra.mxu0 0.0
        %2996 = vmatprep.subr.mxu0 0.0
        %2997 = vmatpush1.msra.mxu0 0.0
        %2998 = vmatprep.subr.mxu0 0.0
        %2999 = vmatpush1.msra.mxu0 0.0
        %3000 = vmatprep.subr.mxu0 0.0
        %3001 = vmatpush1.msra.mxu0 0.0
        %3002 = vmatprep.subr.mxu0 0.0
        %3003 = vmatpush1.msra.mxu0 0.0
        %3004 = vmatprep.subr.mxu0 0.0
        %3005 = vmatpush1.msra.mxu0 0.0
        %3006 = vmatprep.subr.mxu0 0.0
        %3007 = vmatpush1.msra.mxu0 0.0
        %3008 = vmatprep.subr.mxu0 0.0
        %3009 = vmatpush1.msra.mxu0 0.0
        %3010 = vmatprep.subr.mxu0 0.0
        %3011 = vmatpush1.msra.mxu0 0.0
        %3012 = vmatprep.subr.mxu0 0.0
        %3013 = vmatpush1.msra.mxu0 0.0
        %3014 = vmatprep.subr.mxu0 0.0
        %3015 = vmatpush1.msra.mxu0 0.0
        %3016 = vmatprep.subr.mxu0 0.0
        %3017 = vmatpush1.msra.mxu0 0.0
        %3018 = vmatprep.subr.mxu0 0.0
        %3019 = vmatpush1.msra.mxu0 0.0
        %3020 = vmatprep.subr.mxu0 0.0
        %3021 = vmatpush1.msra.mxu0 0.0
        %3022 = vmatprep.subr.mxu0 0.0
        %3023 = vmatpush1.msra.mxu0 0.0
        %3024 = vmatprep.subr.mxu0 0.0
        %3025 = vmatpush1.msra.mxu0 0.0
        %3026 = vmatprep.subr.mxu0 0.0
        %3027 = vmatpush1.msra.mxu0 0.0
        %3028 = vmatprep.subr.mxu0 0.0
        %3029 = vmatpush1.msra.mxu0 0.0
        %3030 = vmatprep.subr.mxu0 0.0
        %3031 = vmatpush1.msra.mxu0 0.0
        %3032 = vmatprep.subr.mxu0 0.0
        %3033 = vmatpush1.msra.mxu0 0.0
        %3034 = vmatprep.subr.mxu0 0.0
        %3035 = vmatpush1.msra.mxu0 0.0
        %3036 = vmatprep.subr.mxu0 0.0
        %3037 = vmatpush1.msra.mxu0 0.0
        %3038 = vmatprep.subr.mxu0 0.0
        %3039 = vmatpush1.msra.mxu0 0.0
        %3040 = vmatprep.subr.mxu0 0.0
        %3041 = vmatpush1.msra.mxu0 0.0
        %3042 = vmatprep.subr.mxu0 0.0
        %3043 = vmatpush1.msra.mxu0 0.0
        %3044 = vmatprep.subr.mxu0 0.0
        %3045 = vmatpush1.msra.mxu0 0.0
        %3046 = vmatprep.mubr.f32.mxu0 0.0
        %3047 = vmatmul.mubr.f32.gmra.mrb[0].mxu0 %v2980
        %v3048 = vpop.f32.mrb[0].mxu0
        %v3049 = vadd.f32 %v2977, %v3048
        %v3050 = vpop.f32.mrb[0].mxu0
        %3051 = vdwg.mxu0
        %s3052 = scalar_lea.vmem [#allocation5], 96
        %v3053 = vld [vmem:[%s3052] sm:$0xff]
        %v3054 = vld [vmem:[%s3052 + $0x8] sm:$0xff]
        %v3055 = vld [vmem:[%s3052 + $0x10] sm:$0xff]
        %v3056 = vld [vmem:[%s3052 + $0x18] sm:$0xff]
        %s3057 = scalar_lea.vmem %s6, 3
        %v3058 = vld [vmem:[%s3057] sm:$0x1]
        %v3060 = vlaneseq
        %v3061 = vshrl.u32 %v3060, 7
        %v3062 = vsub.s32 0, %v3061
        %v3063 = vrot.slane %v3058, %v3062
        %v3066 = vsel %vm797, %v3049, 0
        %3068 = vmatprep.subr.mxu0 0.0
        %3069 = vmatpush1.msra.mxu0 %v3053
        %3070 = vmatprep.subr.mxu0 0.0
        %3071 = vmatpush1.msra.mxu0 %v3054
        %3072 = vmatprep.subr.mxu0 0.0
        %3073 = vmatpush1.msra.mxu0 %v3055
        %3074 = vmatprep.subr.mxu0 0.0
        %3075 = vmatpush1.msra.mxu0 %v3056
        %3076 = vmatprep.subr.mxu0 0.0
        %3077 = vmatpush1.msra.mxu0 0.0
        %3078 = vmatprep.subr.mxu0 0.0
        %3079 = vmatpush1.msra.mxu0 0.0
        %3080 = vmatprep.subr.mxu0 0.0
        %3081 = vmatpush1.msra.mxu0 0.0
        %3082 = vmatprep.subr.mxu0 0.0
        %3083 = vmatpush1.msra.mxu0 0.0
        %3084 = vmatprep.subr.mxu0 0.0
        %3085 = vmatpush1.msra.mxu0 0.0
        %3086 = vmatprep.subr.mxu0 0.0
        %3087 = vmatpush1.msra.mxu0 0.0
        %3088 = vmatprep.subr.mxu0 0.0
        %3089 = vmatpush1.msra.mxu0 0.0
        %3090 = vmatprep.subr.mxu0 0.0
        %3091 = vmatpush1.msra.mxu0 0.0
        %3092 = vmatprep.subr.mxu0 0.0
        %3093 = vmatpush1.msra.mxu0 0.0
        %3094 = vmatprep.subr.mxu0 0.0
        %3095 = vmatpush1.msra.mxu0 0.0
        %3096 = vmatprep.subr.mxu0 0.0
        %3097 = vmatpush1.msra.mxu0 0.0
        %3098 = vmatprep.subr.mxu0 0.0
        %3099 = vmatpush1.msra.mxu0 0.0
        %3100 = vmatprep.subr.mxu0 0.0
        %3101 = vmatpush1.msra.mxu0 0.0
        %3102 = vmatprep.subr.mxu0 0.0
        %3103 = vmatpush1.msra.mxu0 0.0
        %3104 = vmatprep.subr.mxu0 0.0
        %3105 = vmatpush1.msra.mxu0 0.0
        %3106 = vmatprep.subr.mxu0 0.0
        %3107 = vmatpush1.msra.mxu0 0.0
        %3108 = vmatprep.subr.mxu0 0.0
        %3109 = vmatpush1.msra.mxu0 0.0
        %3110 = vmatprep.subr.mxu0 0.0
        %3111 = vmatpush1.msra.mxu0 0.0
        %3112 = vmatprep.subr.mxu0 0.0
        %3113 = vmatpush1.msra.mxu0 0.0
        %3114 = vmatprep.subr.mxu0 0.0
        %3115 = vmatpush1.msra.mxu0 0.0
        %3116 = vmatprep.subr.mxu0 0.0
        %3117 = vmatpush1.msra.mxu0 0.0
        %3118 = vmatprep.subr.mxu0 0.0
        %3119 = vmatpush1.msra.mxu0 0.0
        %3120 = vmatprep.subr.mxu0 0.0
        %3121 = vmatpush1.msra.mxu0 0.0
        %3122 = vmatprep.subr.mxu0 0.0
        %3123 = vmatpush1.msra.mxu0 0.0
        %3124 = vmatprep.subr.mxu0 0.0
        %3125 = vmatpush1.msra.mxu0 0.0
        %3126 = vmatprep.subr.mxu0 0.0
        %3127 = vmatpush1.msra.mxu0 0.0
        %3128 = vmatprep.subr.mxu0 0.0
        %3129 = vmatpush1.msra.mxu0 0.0
        %3130 = vmatprep.subr.mxu0 0.0
        %3131 = vmatpush1.msra.mxu0 0.0
        %3132 = vmatprep.mubr.f32.mxu0 0.0
        %3133 = vmatmul.mubr.f32.gmra.mrb[0].mxu0 %v3066
        %v3134 = vpop.f32.mrb[0].mxu0
        %v3135 = vadd.f32 %v3063, %v3134
        %v3136 = vpop.f32.mrb[0].mxu0
        %3137 = vdwg.mxu0
        %v3138 = vtanh.pop %v3135
        %s3139 = scalar_lea.vmem [#allocation7], 96
        %v3140 = vld [vmem:[%s3139] sm:$0xff]
        %v3141 = vld [vmem:[%s3139 + $0x8] sm:$0xff]
        %v3142 = vld [vmem:[%s3139 + $0x10] sm:$0xff]
        %v3143 = vld [vmem:[%s3139 + $0x18] sm:$0xff]
        %s3144 = scalar_lea.vmem %s8, 3
        %v3145 = vld [vmem:[%s3144] sm:$0x1]
        %v3147 = vlaneseq
        %v3148 = vshrl.u32 %v3147, 7
        %v3149 = vsub.s32 0, %v3148
        %v3150 = vrot.slane %v3145, %v3149
        %v3153 = vsel %vm797, %v3138, 0
        %3155 = vmatprep.subr.mxu0 0.0
        %3156 = vmatpush1.msra.mxu0 %v3140
        %3157 = vmatprep.subr.mxu0 0.0
        %3158 = vmatpush1.msra.mxu0 %v3141
        %3159 = vmatprep.subr.mxu0 0.0
        %3160 = vmatpush1.msra.mxu0 %v3142
        %3161 = vmatprep.subr.mxu0 0.0
        %3162 = vmatpush1.msra.mxu0 %v3143
        %3163 = vmatprep.subr.mxu0 0.0
        %3164 = vmatpush1.msra.mxu0 0.0
        %3165 = vmatprep.subr.mxu0 0.0
        %3166 = vmatpush1.msra.mxu0 0.0
        %3167 = vmatprep.subr.mxu0 0.0
        %3168 = vmatpush1.msra.mxu0 0.0
        %3169 = vmatprep.subr.mxu0 0.0
        %3170 = vmatpush1.msra.mxu0 0.0
        %3171 = vmatprep.subr.mxu0 0.0
        %3172 = vmatpush1.msra.mxu0 0.0
        %3173 = vmatprep.subr.mxu0 0.0
        %3174 = vmatpush1.msra.mxu0 0.0
        %3175 = vmatprep.subr.mxu0 0.0
        %3176 = vmatpush1.msra.mxu0 0.0
        %3177 = vmatprep.subr.mxu0 0.0
        %3178 = vmatpush1.msra.mxu0 0.0
        %3179 = vmatprep.subr.mxu0 0.0
        %3180 = vmatpush1.msra.mxu0 0.0
        %3181 = vmatprep.subr.mxu0 0.0
        %3182 = vmatpush1.msra.mxu0 0.0
        %3183 = vmatprep.subr.mxu0 0.0
        %3184 = vmatpush1.msra.mxu0 0.0
        %3185 = vmatprep.subr.mxu0 0.0
        %3186 = vmatpush1.msra.mxu0 0.0
        %3187 = vmatprep.subr.mxu0 0.0
        %3188 = vmatpush1.msra.mxu0 0.0
        %3189 = vmatprep.subr.mxu0 0.0
        %3190 = vmatpush1.msra.mxu0 0.0
        %3191 = vmatprep.subr.mxu0 0.0
        %3192 = vmatpush1.msra.mxu0 0.0
        %3193 = vmatprep.subr.mxu0 0.0
        %3194 = vmatpush1.msra.mxu0 0.0
        %3195 = vmatprep.subr.mxu0 0.0
        %3196 = vmatpush1.msra.mxu0 0.0
        %3197 = vmatprep.subr.mxu0 0.0
        %3198 = vmatpush1.msra.mxu0 0.0
        %3199 = vmatprep.subr.mxu0 0.0
        %3200 = vmatpush1.msra.mxu0 0.0
        %3201 = vmatprep.subr.mxu0 0.0
        %3202 = vmatpush1.msra.mxu0 0.0
        %3203 = vmatprep.subr.mxu0 0.0
        %3204 = vmatpush1.msra.mxu0 0.0
        %3205 = vmatprep.subr.mxu0 0.0
        %3206 = vmatpush1.msra.mxu0 0.0
        %3207 = vmatprep.subr.mxu0 0.0
        %3208 = vmatpush1.msra.mxu0 0.0
        %3209 = vmatprep.subr.mxu0 0.0
        %3210 = vmatpush1.msra.mxu0 0.0
        %3211 = vmatprep.subr.mxu0 0.0
        %3212 = vmatpush1.msra.mxu0 0.0
        %3213 = vmatprep.subr.mxu0 0.0
        %3214 = vmatpush1.msra.mxu0 0.0
        %3215 = vmatprep.subr.mxu0 0.0
        %3216 = vmatpush1.msra.mxu0 0.0
        %3217 = vmatprep.subr.mxu0 0.0
        %3218 = vmatpush1.msra.mxu0 0.0
        %3219 = vmatprep.mubr.f32.mxu0 0.0
        %3220 = vmatmul.mubr.f32.gmra.mrb[0].mxu0 %v3153
        %v3221 = vpop.f32.mrb[0].mxu0
        %v3222 = vadd.f32 %v3150, %v3221
        %v3223 = vpop.f32.mrb[0].mxu0
        %3224 = vdwg.mxu0
        %3226 = vrot.lane.b32.xlu0 %v3222, 96
        %v3227 = vpop.permute.xlu0 %3226
        %v3228 = vsel %vm797, %v3222, 0
        %v3230 = vsel %vm797, %v3227, 0
        %3232 = vmatprep.subr.mxu0 0.0
        %3233 = vmatpush1.xpose.msra.mxu0 %v3230
        %3234 = vmatprep.subr.mxu0 0.0
        %3235 = vmatpush1.xpose.msra.mxu0 0.0
        %3236 = vmatprep.subr.mxu0 0.0
        %3237 = vmatpush1.xpose.msra.mxu0 0.0
        %3238 = vmatprep.subr.mxu0 0.0
        %3239 = vmatpush1.xpose.msra.mxu0 0.0
        %3240 = vmatprep.subr.mxu0 0.0
        %3241 = vmatpush1.xpose.msra.mxu0 0.0
        %3242 = vmatprep.subr.mxu0 0.0
        %3243 = vmatpush1.xpose.msra.mxu0 0.0
        %3244 = vmatprep.subr.mxu0 0.0
        %3245 = vmatpush1.xpose.msra.mxu0 0.0
        %3246 = vmatprep.subr.mxu0 0.0
        %3247 = vmatpush1.xpose.msra.mxu0 0.0
        %3248 = vmatprep.subr.mxu0 0.0
        %3249 = vmatpush1.xpose.msra.mxu0 0.0
        %3250 = vmatprep.subr.mxu0 0.0
        %3251 = vmatpush1.xpose.msra.mxu0 0.0
        %3252 = vmatprep.subr.mxu0 0.0
        %3253 = vmatpush1.xpose.msra.mxu0 0.0
        %3254 = vmatprep.subr.mxu0 0.0
        %3255 = vmatpush1.xpose.msra.mxu0 0.0
        %3256 = vmatprep.subr.mxu0 0.0
        %3257 = vmatpush1.xpose.msra.mxu0 0.0
        %3258 = vmatprep.subr.mxu0 0.0
        %3259 = vmatpush1.xpose.msra.mxu0 0.0
        %3260 = vmatprep.subr.mxu0 0.0
        %3261 = vmatpush1.xpose.msra.mxu0 0.0
        %3262 = vmatprep.subr.mxu0 0.0
        %3263 = vmatpush1.xpose.msra.mxu0 0.0
        %3264 = vmatprep.subr.mxu0 0.0
        %3265 = vmatpush1.xpose.msra.mxu0 0.0
        %3266 = vmatprep.subr.mxu0 0.0
        %3267 = vmatpush1.xpose.msra.mxu0 0.0
        %3268 = vmatprep.subr.mxu0 0.0
        %3269 = vmatpush1.xpose.msra.mxu0 0.0
        %3270 = vmatprep.subr.mxu0 0.0
        %3271 = vmatpush1.xpose.msra.mxu0 0.0
        %3272 = vmatprep.subr.mxu0 0.0
        %3273 = vmatpush1.xpose.msra.mxu0 0.0
        %3274 = vmatprep.subr.mxu0 0.0
        %3275 = vmatpush1.xpose.msra.mxu0 0.0
        %3276 = vmatprep.subr.mxu0 0.0
        %3277 = vmatpush1.xpose.msra.mxu0 0.0
        %3278 = vmatprep.subr.mxu0 0.0
        %3279 = vmatpush1.xpose.msra.mxu0 0.0
        %3280 = vmatprep.subr.mxu0 0.0
        %3281 = vmatpush1.xpose.msra.mxu0 0.0
        %3282 = vmatprep.subr.mxu0 0.0
        %3283 = vmatpush1.xpose.msra.mxu0 0.0
        %3284 = vmatprep.subr.mxu0 0.0
        %3285 = vmatpush1.xpose.msra.mxu0 0.0
        %3286 = vmatprep.subr.mxu0 0.0
        %3287 = vmatpush1.xpose.msra.mxu0 0.0
        %3288 = vmatprep.subr.mxu0 0.0
        %3289 = vmatpush1.xpose.msra.mxu0 0.0
        %3290 = vmatprep.subr.mxu0 0.0
        %3291 = vmatpush1.xpose.msra.mxu0 0.0
        %3292 = vmatprep.subr.mxu0 0.0
        %3293 = vmatpush1.xpose.msra.mxu0 0.0
        %3294 = vmatprep.subr.mxu0 0.0
        %3295 = vmatpush1.xpose.msra.mxu0 0.0
        %3296 = vmatprep.mubr.f32.mxu0 0.0
        %3297 = vmatmul.mubr.f32.gmra.mrb[0].mxu0 %v3228
        %v3298 = vpop.f32.mrb[0].mxu0
        %v3299 = vadd.f32 0.0, %v3298
        %v3300 = vpop.f32.mrb[0].mxu0
        %3301 = vdwg.mxu0
        %v3302 = vmul.f32 %v3299, 0.17677669
        %v3303 = vsel %vm1118, %v3302, -inf
        %3304 = vmax.xlane.f32.xlu0 %v3303
        %v3305 = vpop.xlane.xlu0 %3304
        %v3306 = vsub.f32 %v3302, %v3305
        %v3307 = vmul.f32 %v3306, 1.442695
        %v3308 = vpow.pop %v3307
        %v3309 = vsel %vm1118, %v3308, 0.0
        %3310 = vadd.xlane.f32.xlu0 %v3309
        %v3311 = vpop.xlane.xlu0 %3310
        %v3312 = vrcp.pop %v3311
        %v3313 = vmul.f32 %v3308, %v3312
        %3314 = vrot.lane.b32.xlu0 %v3222, 64
        %v3315 = vpop.permute.xlu0 %3314
        %v3318 = vsel %vm1118, %v3313, 0
        %3320 = vmatprep.subr.mxu0 0.0
        %3321 = vmatpush1.msra.mxu0 %v3315
        %3322 = vmatprep.subr.mxu0 0.0
        %3323 = vmatpush1.msra.mxu0 0.0
        %3324 = vmatprep.subr.mxu0 0.0
        %3325 = vmatpush1.msra.mxu0 0.0
        %3326 = vmatprep.subr.mxu0 0.0
        %3327 = vmatpush1.msra.mxu0 0.0
        %3328 = vmatprep.subr.mxu0 0.0
        %3329 = vmatpush1.msra.mxu0 0.0
        %3330 = vmatprep.subr.mxu0 0.0
        %3331 = vmatpush1.msra.mxu0 0.0
        %3332 = vmatprep.subr.mxu0 0.0
        %3333 = vmatpush1.msra.mxu0 0.0
        %3334 = vmatprep.subr.mxu0 0.0
        %3335 = vmatpush1.msra.mxu0 0.0
        %3336 = vmatprep.subr.mxu0 0.0
        %3337 = vmatpush1.msra.mxu0 0.0
        %3338 = vmatprep.subr.mxu0 0.0
        %3339 = vmatpush1.msra.mxu0 0.0
        %3340 = vmatprep.subr.mxu0 0.0
        %3341 = vmatpush1.msra.mxu0 0.0
        %3342 = vmatprep.subr.mxu0 0.0
        %3343 = vmatpush1.msra.mxu0 0.0
        %3344 = vmatprep.subr.mxu0 0.0
        %3345 = vmatpush1.msra.mxu0 0.0
        %3346 = vmatprep.subr.mxu0 0.0
        %3347 = vmatpush1.msra.mxu0 0.0
        %3348 = vmatprep.subr.mxu0 0.0
        %3349 = vmatpush1.msra.mxu0 0.0
        %3350 = vmatprep.subr.mxu0 0.0
        %3351 = vmatpush1.msra.mxu0 0.0
        %3352 = vmatprep.subr.mxu0 0.0
        %3353 = vmatpush1.msra.mxu0 0.0
        %3354 = vmatprep.subr.mxu0 0.0
        %3355 = vmatpush1.msra.mxu0 0.0
        %3356 = vmatprep.subr.mxu0 0.0
        %3357 = vmatpush1.msra.mxu0 0.0
        %3358 = vmatprep.subr.mxu0 0.0
        %3359 = vmatpush1.msra.mxu0 0.0
        %3360 = vmatprep.subr.mxu0 0.0
        %3361 = vmatpush1.msra.mxu0 0.0
        %3362 = vmatprep.subr.mxu0 0.0
        %3363 = vmatpush1.msra.mxu0 0.0
        %3364 = vmatprep.subr.mxu0 0.0
        %3365 = vmatpush1.msra.mxu0 0.0
        %3366 = vmatprep.subr.mxu0 0.0
        %3367 = vmatpush1.msra.mxu0 0.0
        %3368 = vmatprep.subr.mxu0 0.0
        %3369 = vmatpush1.msra.mxu0 0.0
        %3370 = vmatprep.subr.mxu0 0.0
        %3371 = vmatpush1.msra.mxu0 0.0
        %3372 = vmatprep.subr.mxu0 0.0
        %3373 = vmatpush1.msra.mxu0 0.0
        %3374 = vmatprep.subr.mxu0 0.0
        %3375 = vmatpush1.msra.mxu0 0.0
        %3376 = vmatprep.subr.mxu0 0.0
        %3377 = vmatpush1.msra.mxu0 0.0
        %3378 = vmatprep.subr.mxu0 0.0
        %3379 = vmatpush1.msra.mxu0 0.0
        %3380 = vmatprep.subr.mxu0 0.0
        %3381 = vmatpush1.msra.mxu0 0.0
        %3382 = vmatprep.subr.mxu0 0.0
        %3383 = vmatpush1.msra.mxu0 0.0
        %3384 = vmatprep.mubr.f32.mxu0 0.0
        %3385 = vmatmul.mubr.f32.gmra.mrb[0].mxu0 %v3318
        %v3386 = vpop.f32.mrb[0].mxu0
        %v3387 = vadd.f32 0.0, %v3386
        %v3388 = vpop.f32.mrb[0].mxu0
        %3389 = vdwg.mxu0
        %s3390 = scalar_lea.vmem [#allocation8], 96
        %v3391 = vld [vmem:[%s3390] sm:$0xff]
        %v3392 = vld [vmem:[%s3390 + $0x8] sm:$0xff]
        %v3393 = vld [vmem:[%s3390 + $0x10] sm:$0xff]
        %v3394 = vld [vmem:[%s3390 + $0x18] sm:$0xff]
        %s3395 = scalar_lea.vmem %s10, 3
        %v3396 = vld [vmem:[%s3395] sm:$0x1]
        %v3398 = vlaneseq
        %v3399 = vshrl.u32 %v3398, 7
        %v3400 = vsub.s32 0, %v3399
        %v3401 = vrot.slane %v3396, %v3400
        %v3404 = vsel %vm797, %v3387, 0
        %3406 = vmatprep.subr.mxu0 0.0
        %3407 = vmatpush1.msra.mxu0 %v3391
        %3408 = vmatprep.subr.mxu0 0.0
        %3409 = vmatpush1.msra.mxu0 %v3392
        %3410 = vmatprep.subr.mxu0 0.0
        %3411 = vmatpush1.msra.mxu0 %v3393
        %3412 = vmatprep.subr.mxu0 0.0
        %3413 = vmatpush1.msra.mxu0 %v3394
        %3414 = vmatprep.subr.mxu0 0.0
        %3415 = vmatpush1.msra.mxu0 0.0
        %3416 = vmatprep.subr.mxu0 0.0
        %3417 = vmatpush1.msra.mxu0 0.0
        %3418 = vmatprep.subr.mxu0 0.0
        %3419 = vmatpush1.msra.mxu0 0.0
        %3420 = vmatprep.subr.mxu0 0.0
        %3421 = vmatpush1.msra.mxu0 0.0
        %3422 = vmatprep.subr.mxu0 0.0
        %3423 = vmatpush1.msra.mxu0 0.0
        %3424 = vmatprep.subr.mxu0 0.0
        %3425 = vmatpush1.msra.mxu0 0.0
        %3426 = vmatprep.subr.mxu0 0.0
        %3427 = vmatpush1.msra.mxu0 0.0
        %3428 = vmatprep.subr.mxu0 0.0
        %3429 = vmatpush1.msra.mxu0 0.0
        %3430 = vmatprep.subr.mxu0 0.0
        %3431 = vmatpush1.msra.mxu0 0.0
        %3432 = vmatprep.subr.mxu0 0.0
        %3433 = vmatpush1.msra.mxu0 0.0
        %3434 = vmatprep.subr.mxu0 0.0
        %3435 = vmatpush1.msra.mxu0 0.0
        %3436 = vmatprep.subr.mxu0 0.0
        %3437 = vmatpush1.msra.mxu0 0.0
        %3438 = vmatprep.subr.mxu0 0.0
        %3439 = vmatpush1.msra.mxu0 0.0
        %3440 = vmatprep.subr.mxu0 0.0
        %3441 = vmatpush1.msra.mxu0 0.0
        %3442 = vmatprep.subr.mxu0 0.0
        %3443 = vmatpush1.msra.mxu0 0.0
        %3444 = vmatprep.subr.mxu0 0.0
        %3445 = vmatpush1.msra.mxu0 0.0
        %3446 = vmatprep.subr.mxu0 0.0
        %3447 = vmatpush1.msra.mxu0 0.0
        %3448 = vmatprep.subr.mxu0 0.0
        %3449 = vmatpush1.msra.mxu0 0.0
        %3450 = vmatprep.subr.mxu0 0.0
        %3451 = vmatpush1.msra.mxu0 0.0
        %3452 = vmatprep.subr.mxu0 0.0
        %3453 = vmatpush1.msra.mxu0 0.0
        %3454 = vmatprep.subr.mxu0 0.0
        %3455 = vmatpush1.msra.mxu0 0.0
        %3456 = vmatprep.subr.mxu0 0.0
        %3457 = vmatpush1.msra.mxu0 0.0
        %3458 = vmatprep.subr.mxu0 0.0
        %3459 = vmatpush1.msra.mxu0 0.0
        %3460 = vmatprep.subr.mxu0 0.0
        %3461 = vmatpush1.msra.mxu0 0.0
        %3462 = vmatprep.subr.mxu0 0.0
        %3463 = vmatpush1.msra.mxu0 0.0
        %3464 = vmatprep.subr.mxu0 0.0
        %3465 = vmatpush1.msra.mxu0 0.0
        %3466 = vmatprep.subr.mxu0 0.0
        %3467 = vmatpush1.msra.mxu0 0.0
        %3468 = vmatprep.subr.mxu0 0.0
        %3469 = vmatpush1.msra.mxu0 0.0
        %3470 = vmatprep.mubr.f32.mxu0 0.0
        %3471 = vmatmul.mubr.f32.gmra.mrb[0].mxu0 %v3404
        %v3472 = vpop.f32.mrb[0].mxu0
        %v3473 = vadd.f32 %v3401, %v3472
        %v3474 = vpop.f32.mrb[0].mxu0
        %3475 = vdwg.mxu0
        %s3476 = scalar_lea.vmem [#allocation10], 96
        %v3477 = vld [vmem:[%s3476] sm:$0xff]
        %v3478 = vld [vmem:[%s3476 + $0x8] sm:$0xff]
        %v3479 = vld [vmem:[%s3476 + $0x10] sm:$0xff]
        %v3480 = vld [vmem:[%s3476 + $0x18] sm:$0xff]
        %s3481 = scalar_lea.vmem [#allocation11], 96
        %v3482 = vld [vmem:[%s3481] sm:$0xff]
        %v3483 = vld [vmem:[%s3481 + $0x8] sm:$0xff]
        %v3484 = vld [vmem:[%s3481 + $0x10] sm:$0xff]
        %v3485 = vld [vmem:[%s3481 + $0x18] sm:$0xff]
        %v3487 = vsel %vm797, %v3473, 0
        %3489 = vmatprep.subr.mxu0 0.0
        %3490 = vmatpush1.msra.mxu0 %v3482
        %3491 = vmatprep.subr.mxu0 0.0
        %3492 = vmatpush1.msra.mxu0 %v3483
        %3493 = vmatprep.subr.mxu0 0.0
        %3494 = vmatpush1.msra.mxu0 %v3484
        %3495 = vmatprep.subr.mxu0 0.0
        %3496 = vmatpush1.msra.mxu0 %v3485
        %3497 = vmatprep.subr.mxu0 0.0
        %3498 = vmatpush1.msra.mxu0 0.0
        %3499 = vmatprep.subr.mxu0 0.0
        %3500 = vmatpush1.msra.mxu0 0.0
        %3501 = vmatprep.subr.mxu0 0.0
        %3502 = vmatpush1.msra.mxu0 0.0
        %3503 = vmatprep.subr.mxu0 0.0
        %3504 = vmatpush1.msra.mxu0 0.0
        %3505 = vmatprep.subr.mxu0 0.0
        %3506 = vmatpush1.msra.mxu0 0.0
        %3507 = vmatprep.subr.mxu0 0.0
        %3508 = vmatpush1.msra.mxu0 0.0
        %3509 = vmatprep.subr.mxu0 0.0
        %3510 = vmatpush1.msra.mxu0 0.0
        %3511 = vmatprep.subr.mxu0 0.0
        %3512 = vmatpush1.msra.mxu0 0.0
        %3513 = vmatprep.subr.mxu0 0.0
        %3514 = vmatpush1.msra.mxu0 0.0
        %3515 = vmatprep.subr.mxu0 0.0
        %3516 = vmatpush1.msra.mxu0 0.0
        %3517 = vmatprep.subr.mxu0 0.0
        %3518 = vmatpush1.msra.mxu0 0.0
        %3519 = vmatprep.subr.mxu0 0.0
        %3520 = vmatpush1.msra.mxu0 0.0
        %3521 = vmatprep.subr.mxu0 0.0
        %3522 = vmatpush1.msra.mxu0 0.0
        %3523 = vmatprep.subr.mxu0 0.0
        %3524 = vmatpush1.msra.mxu0 0.0
        %3525 = vmatprep.subr.mxu0 0.0
        %3526 = vmatpush1.msra.mxu0 0.0
        %3527 = vmatprep.subr.mxu0 0.0
        %3528 = vmatpush1.msra.mxu0 0.0
        %3529 = vmatprep.subr.mxu0 0.0
        %3530 = vmatpush1.msra.mxu0 0.0
        %3531 = vmatprep.subr.mxu0 0.0
        %3532 = vmatpush1.msra.mxu0 0.0
        %3533 = vmatprep.subr.mxu0 0.0
        %3534 = vmatpush1.msra.mxu0 0.0
        %3535 = vmatprep.subr.mxu0 0.0
        %3536 = vmatpush1.msra.mxu0 0.0
        %3537 = vmatprep.subr.mxu0 0.0
        %3538 = vmatpush1.msra.mxu0 0.0
        %3539 = vmatprep.subr.mxu0 0.0
        %3540 = vmatpush1.msra.mxu0 0.0
        %3541 = vmatprep.subr.mxu0 0.0
        %3542 = vmatpush1.msra.mxu0 0.0
        %3543 = vmatprep.subr.mxu0 0.0
        %3544 = vmatpush1.msra.mxu0 0.0
        %3545 = vmatprep.subr.mxu0 0.0
        %3546 = vmatpush1.msra.mxu0 0.0
        %3547 = vmatprep.subr.mxu0 0.0
        %3548 = vmatpush1.msra.mxu0 0.0
        %3549 = vmatprep.subr.mxu0 0.0
        %3550 = vmatpush1.msra.mxu0 0.0
        %3551 = vmatprep.subr.mxu0 0.0
        %3552 = vmatpush1.msra.mxu0 0.0
        %3553 = vmatprep.mubr.f32.mxu0 0.0
        %3554 = vmatmul.mubr.f32.gmra.mrb[0].mxu0 %v3487
        %v3555 = vpop.f32.mrb[0].mxu0
        %v3556 = vadd.f32 0.0, %v3555
        %v3557 = vpop.f32.mrb[0].mxu0
        %3558 = vdwg.mxu0
        %3559 = vmatprep.subr.mxu0 0.0
        %3560 = vmatpush1.msra.mxu0 %v3477
        %3561 = vmatprep.subr.mxu0 0.0
        %3562 = vmatpush1.msra.mxu0 %v3478
        %3563 = vmatprep.subr.mxu0 0.0
        %3564 = vmatpush1.msra.mxu0 %v3479
        %3565 = vmatprep.subr.mxu0 0.0
        %3566 = vmatpush1.msra.mxu0 %v3480
        %3567 = vmatprep.subr.mxu0 0.0
        %3568 = vmatpush1.msra.mxu0 0.0
        %3569 = vmatprep.subr.mxu0 0.0
        %3570 = vmatpush1.msra.mxu0 0.0
        %3571 = vmatprep.subr.mxu0 0.0
        %3572 = vmatpush1.msra.mxu0 0.0
        %3573 = vmatprep.subr.mxu0 0.0
        %3574 = vmatpush1.msra.mxu0 0.0
        %3575 = vmatprep.subr.mxu0 0.0
        %3576 = vmatpush1.msra.mxu0 0.0
        %3577 = vmatprep.subr.mxu0 0.0
        %3578 = vmatpush1.msra.mxu0 0.0
        %3579 = vmatprep.subr.mxu0 0.0
        %3580 = vmatpush1.msra.mxu0 0.0
        %3581 = vmatprep.subr.mxu0 0.0
        %3582 = vmatpush1.msra.mxu0 0.0
        %3583 = vmatprep.subr.mxu0 0.0
        %3584 = vmatpush1.msra.mxu0 0.0
        %3585 = vmatprep.subr.mxu0 0.0
        %3586 = vmatpush1.msra.mxu0 0.0
        %3587 = vmatprep.subr.mxu0 0.0
        %3588 = vmatpush1.msra.mxu0 0.0
        %3589 = vmatprep.subr.mxu0 0.0
        %3590 = vmatpush1.msra.mxu0 0.0
        %3591 = vmatprep.subr.mxu0 0.0
        %3592 = vmatpush1.msra.mxu0 0.0
        %3593 = vmatprep.subr.mxu0 0.0
        %3594 = vmatpush1.msra.mxu0 0.0
        %3595 = vmatprep.subr.mxu0 0.0
        %3596 = vmatpush1.msra.mxu0 0.0
        %3597 = vmatprep.subr.mxu0 0.0
        %3598 = vmatpush1.msra.mxu0 0.0
        %3599 = vmatprep.subr.mxu0 0.0
        %3600 = vmatpush1.msra.mxu0 0.0
        %3601 = vmatprep.subr.mxu0 0.0
        %3602 = vmatpush1.msra.mxu0 0.0
        %3603 = vmatprep.subr.mxu0 0.0
        %3604 = vmatpush1.msra.mxu0 0.0
        %3605 = vmatprep.subr.mxu0 0.0
        %3606 = vmatpush1.msra.mxu0 0.0
        %3607 = vmatprep.subr.mxu0 0.0
        %3608 = vmatpush1.msra.mxu0 0.0
        %3609 = vmatprep.subr.mxu0 0.0
        %3610 = vmatpush1.msra.mxu0 0.0
        %3611 = vmatprep.subr.mxu0 0.0
        %3612 = vmatpush1.msra.mxu0 0.0
        %3613 = vmatprep.subr.mxu0 0.0
        %3614 = vmatpush1.msra.mxu0 0.0
        %3615 = vmatprep.subr.mxu0 0.0
        %3616 = vmatpush1.msra.mxu0 0.0
        %3617 = vmatprep.subr.mxu0 0.0
        %3618 = vmatpush1.msra.mxu0 0.0
        %3619 = vmatprep.subr.mxu0 0.0
        %3620 = vmatpush1.msra.mxu0 0.0
        %3621 = vmatprep.subr.mxu0 0.0
        %3622 = vmatpush1.msra.mxu0 0.0
        %3623 = vmatprep.mubr.f32.mxu0 0.0
        %3624 = vmatmul.mubr.f32.gmra.mrb[0].mxu0 %v3066
        %v3625 = vpop.f32.mrb[0].mxu0
        %v3626 = vadd.f32 %v3556, %v3625
        %v3627 = vpop.f32.mrb[0].mxu0
        %3628 = vdwg.mxu0
        %s3629 = scalar_lea.vmem [#allocation13], 3
        %v3630 = vld [vmem:[%s3629] sm:$0x1]
        %v3632 = vlaneseq
        %v3633 = vshrl.u32 %v3632, 7
        %v3634 = vsub.s32 0, %v3633
        %v3635 = vrot.slane %v3630, %v3634
        %v3637 = vadd.f32 %v3626, %v3635
        %v3638 = vsel %vm797, %v3637, 0.0
        %3639 = vadd.xlane.f32.xlu0 %v3638
        %v3640 = vpop.xlane.xlu0 %3639
        %v3641 = vmul.f32 %v3640, %v1452
        %v3642 = vsub.f32 %v3637, %v3641
        %v3643 = vmul.f32 %v3642, %v3642
        %v3644 = vsel %vm797, %v3643, 0.0
        %3645 = vadd.xlane.f32.xlu0 %v3644
        %v3646 = vpop.xlane.xlu0 %3645
        %v3647 = vmul.f32 %v3646, %v1452
        %v3648 = vadd.f32 %v3647, 1e-05
        %v3649 = vrsqrt.pop %v3648
        %v3650 = vmul.f32 %v3642, %v3649
        %s3651 = scalar_lea.vmem [#allocation14], 3
        %v3652 = vld [vmem:[%s3651] sm:$0x1]
        %v3654 = vlaneseq
        %v3655 = vshrl.u32 %v3654, 7
        %v3656 = vsub.s32 0, %v3655
        %v3657 = vrot.slane %v3652, %v3656
        %v3659 = vmul.f32 %v3650, %v3657
        %s3660 = scalar_lea.vmem [#allocation16], 3
        %v3661 = vld [vmem:[%s3660] sm:$0x1]
        %v3663 = vlaneseq
        %v3664 = vshrl.u32 %v3663, 7
        %v3665 = vsub.s32 0, %v3664
        %v3666 = vrot.slane %v3661, %v3665
        %v3668 = vadd.f32 %v3659, %v3666
        %v3669 = vmul.f32 %v3668, 0.5
        %v3670 = vmul.f32 %v3668, 0.70710677
        %vm3671 = vcmp.ge.f32.partialorder %v3670, 0.0
        %v3672 = vsel %vm3671, 1.0, -1.0
        %v3673 = vand.u32 2147483647, %v3670
        %v3674 = vmul.f32 %v3673, 0.3275911
        %v3675 = vadd.f32 %v3674, 1.0
        %v3676 = vrcp.pop %v3675
        %v3677 = vmul.f32 1.0, %v3676
        %v3678 = vmul.f32 %v3677, 1.0614054
        %v3679 = vadd.f32 %v3678, -1.4531521
        %v3680 = vmul.f32 %v3677, %v3679
        %v3681 = vadd.f32 %v3680, 1.4214138
        %v3682 = vmul.f32 %v3677, %v3681
        %v3683 = vadd.f32 %v3682, -0.28449672
        %v3684 = vmul.f32 %v3677, %v3683
        %v3685 = vadd.f32 %v3684, 0.2548296
        %v3686 = vmul.f32 %v3677, %v3685
        %v3687 = vsub.f32 0.0, %v3673
        %v3688 = vmul.f32 %v3687, %v3673
        %v3689 = vmul.f32 %v3688, 1.442695
        %v3690 = vpow.pop %v3689
        %v3691 = vmul.f32 %v3686, %v3690
        %v3692 = vsub.f32 1.0, %v3691
        %v3693 = vmul.f32 %v3672, %v3692
        %v3694 = vadd.f32 %v3693, 1.0
        %v3695 = vmul.f32 %v3669, %v3694
        %s3696 = scalar_lea.vmem [#allocation2], 128
        %v3697 = vld [vmem:[%s3696] sm:$0xff]
        %v3698 = vld [vmem:[%s3696 + $0x8] sm:$0xff]
        %v3699 = vld [vmem:[%s3696 + $0x10] sm:$0xff]
        %v3700 = vld [vmem:[%s3696 + $0x18] sm:$0xff]
        %s3701 = scalar_lea.vmem %s4, 4
        %v3702 = vld [vmem:[%s3701] sm:$0x1]
        %v3704 = vlaneseq
        %v3705 = vshrl.u32 %v3704, 7
        %v3706 = vsub.s32 0, %v3705
        %v3707 = vrot.slane %v3702, %v3706
        %v3710 = vsel %vm797, %v3695, 0
        %3712 = vmatprep.subr.mxu0 0.0
        %3713 = vmatpush1.msra.mxu0 %v3697
        %3714 = vmatprep.subr.mxu0 0.0
        %3715 = vmatpush1.msra.mxu0 %v3698
        %3716 = vmatprep.subr.mxu0 0.0
        %3717 = vmatpush1.msra.mxu0 %v3699
        %3718 = vmatprep.subr.mxu0 0.0
        %3719 = vmatpush1.msra.mxu0 %v3700
        %3720 = vmatprep.subr.mxu0 0.0
        %3721 = vmatpush1.msra.mxu0 0.0
        %3722 = vmatprep.subr.mxu0 0.0
        %3723 = vmatpush1.msra.mxu0 0.0
        %3724 = vmatprep.subr.mxu0 0.0
        %3725 = vmatpush1.msra.mxu0 0.0
        %3726 = vmatprep.subr.mxu0 0.0
        %3727 = vmatpush1.msra.mxu0 0.0
        %3728 = vmatprep.subr.mxu0 0.0
        %3729 = vmatpush1.msra.mxu0 0.0
        %3730 = vmatprep.subr.mxu0 0.0
        %3731 = vmatpush1.msra.mxu0 0.0
        %3732 = vmatprep.subr.mxu0 0.0
        %3733 = vmatpush1.msra.mxu0 0.0
        %3734 = vmatprep.subr.mxu0 0.0
        %3735 = vmatpush1.msra.mxu0 0.0
        %3736 = vmatprep.subr.mxu0 0.0
        %3737 = vmatpush1.msra.mxu0 0.0
        %3738 = vmatprep.subr.mxu0 0.0
        %3739 = vmatpush1.msra.mxu0 0.0
        %3740 = vmatprep.subr.mxu0 0.0
        %3741 = vmatpush1.msra.mxu0 0.0
        %3742 = vmatprep.subr.mxu0 0.0
        %3743 = vmatpush1.msra.mxu0 0.0
        %3744 = vmatprep.subr.mxu0 0.0
        %3745 = vmatpush1.msra.mxu0 0.0
        %3746 = vmatprep.subr.mxu0 0.0
        %3747 = vmatpush1.msra.mxu0 0.0
        %3748 = vmatprep.subr.mxu0 0.0
        %3749 = vmatpush1.msra.mxu0 0.0
        %3750 = vmatprep.subr.mxu0 0.0
        %3751 = vmatpush1.msra.mxu0 0.0
        %3752 = vmatprep.subr.mxu0 0.0
        %3753 = vmatpush1.msra.mxu0 0.0
        %3754 = vmatprep.subr.mxu0 0.0
        %3755 = vmatpush1.msra.mxu0 0.0
        %3756 = vmatprep.subr.mxu0 0.0
        %3757 = vmatpush1.msra.mxu0 0.0
        %3758 = vmatprep.subr.mxu0 0.0
        %3759 = vmatpush1.msra.mxu0 0.0
        %3760 = vmatprep.subr.mxu0 0.0
        %3761 = vmatpush1.msra.mxu0 0.0
        %3762 = vmatprep.subr.mxu0 0.0
        %3763 = vmatpush1.msra.mxu0 0.0
        %3764 = vmatprep.subr.mxu0 0.0
        %3765 = vmatpush1.msra.mxu0 0.0
        %3766 = vmatprep.subr.mxu0 0.0
        %3767 = vmatpush1.msra.mxu0 0.0
        %3768 = vmatprep.subr.mxu0 0.0
        %3769 = vmatpush1.msra.mxu0 0.0
        %3770 = vmatprep.subr.mxu0 0.0
        %3771 = vmatpush1.msra.mxu0 0.0
        %3772 = vmatprep.subr.mxu0 0.0
        %3773 = vmatpush1.msra.mxu0 0.0
        %3774 = vmatprep.subr.mxu0 0.0
        %3775 = vmatpush1.msra.mxu0 0.0
        %3776 = vmatprep.mubr.f32.mxu0 0.0
        %3777 = vmatmul.mubr.f32.gmra.mrb[0].mxu0 %v3710
        %v3778 = vpop.f32.mrb[0].mxu0
        %v3779 = vadd.f32 %v3707, %v3778
        %v3780 = vpop.f32.mrb[0].mxu0
        %3781 = vdwg.mxu0
        %s3782 = scalar_lea.vmem [#allocation5], 128
        %v3783 = vld [vmem:[%s3782] sm:$0xff]
        %v3784 = vld [vmem:[%s3782 + $0x8] sm:$0xff]
        %v3785 = vld [vmem:[%s3782 + $0x10] sm:$0xff]
        %v3786 = vld [vmem:[%s3782 + $0x18] sm:$0xff]
        %s3787 = scalar_lea.vmem %s6, 4
        %v3788 = vld [vmem:[%s3787] sm:$0x1]
        %v3790 = vlaneseq
        %v3791 = vshrl.u32 %v3790, 7
        %v3792 = vsub.s32 0, %v3791
        %v3793 = vrot.slane %v3788, %v3792
        %v3796 = vsel %vm797, %v3779, 0
        %3798 = vmatprep.subr.mxu0 0.0
        %3799 = vmatpush1.msra.mxu0 %v3783
        %3800 = vmatprep.subr.mxu0 0.0
        %3801 = vmatpush1.msra.mxu0 %v3784
        %3802 = vmatprep.subr.mxu0 0.0
        %3803 = vmatpush1.msra.mxu0 %v3785
        %3804 = vmatprep.subr.mxu0 0.0
        %3805 = vmatpush1.msra.mxu0 %v3786
        %3806 = vmatprep.subr.mxu0 0.0
        %3807 = vmatpush1.msra.mxu0 0.0
        %3808 = vmatprep.subr.mxu0 0.0
        %3809 = vmatpush1.msra.mxu0 0.0
        %3810 = vmatprep.subr.mxu0 0.0
        %3811 = vmatpush1.msra.mxu0 0.0
        %3812 = vmatprep.subr.mxu0 0.0
        %3813 = vmatpush1.msra.mxu0 0.0
        %3814 = vmatprep.subr.mxu0 0.0
        %3815 = vmatpush1.msra.mxu0 0.0
        %3816 = vmatprep.subr.mxu0 0.0
        %3817 = vmatpush1.msra.mxu0 0.0
        %3818 = vmatprep.subr.mxu0 0.0
        %3819 = vmatpush1.msra.mxu0 0.0
        %3820 = vmatprep.subr.mxu0 0.0
        %3821 = vmatpush1.msra.mxu0 0.0
        %3822 = vmatprep.subr.mxu0 0.0
        %3823 = vmatpush1.msra.mxu0 0.0
        %3824 = vmatprep.subr.mxu0 0.0
        %3825 = vmatpush1.msra.mxu0 0.0
        %3826 = vmatprep.subr.mxu0 0.0
        %3827 = vmatpush1.msra.mxu0 0.0
        %3828 = vmatprep.subr.mxu0 0.0
        %3829 = vmatpush1.msra.mxu0 0.0
        %3830 = vmatprep.subr.mxu0 0.0
        %3831 = vmatpush1.msra.mxu0 0.0
        %3832 = vmatprep.subr.mxu0 0.0
        %3833 = vmatpush1.msra.mxu0 0.0
        %3834 = vmatprep.subr.mxu0 0.0
        %3835 = vmatpush1.msra.mxu0 0.0
        %3836 = vmatprep.subr.mxu0 0.0
        %3837 = vmatpush1.msra.mxu0 0.0
        %3838 = vmatprep.subr.mxu0 0.0
        %3839 = vmatpush1.msra.mxu0 0.0
        %3840 = vmatprep.subr.mxu0 0.0
        %3841 = vmatpush1.msra.mxu0 0.0
        %3842 = vmatprep.subr.mxu0 0.0
        %3843 = vmatpush1.msra.mxu0 0.0
        %3844 = vmatprep.subr.mxu0 0.0
        %3845 = vmatpush1.msra.mxu0 0.0
        %3846 = vmatprep.subr.mxu0 0.0
        %3847 = vmatpush1.msra.mxu0 0.0
        %3848 = vmatprep.subr.mxu0 0.0
        %3849 = vmatpush1.msra.mxu0 0.0
        %3850 = vmatprep.subr.mxu0 0.0
        %3851 = vmatpush1.msra.mxu0 0.0
        %3852 = vmatprep.subr.mxu0 0.0
        %3853 = vmatpush1.msra.mxu0 0.0
        %3854 = vmatprep.subr.mxu0 0.0
        %3855 = vmatpush1.msra.mxu0 0.0
        %3856 = vmatprep.subr.mxu0 0.0
        %3857 = vmatpush1.msra.mxu0 0.0
        %3858 = vmatprep.subr.mxu0 0.0
        %3859 = vmatpush1.msra.mxu0 0.0
        %3860 = vmatprep.subr.mxu0 0.0
        %3861 = vmatpush1.msra.mxu0 0.0
        %3862 = vmatprep.mubr.f32.mxu0 0.0
        %3863 = vmatmul.mubr.f32.gmra.mrb[0].mxu0 %v3796
        %v3864 = vpop.f32.mrb[0].mxu0
        %v3865 = vadd.f32 %v3793, %v3864
        %v3866 = vpop.f32.mrb[0].mxu0
        %3867 = vdwg.mxu0
        %v3868 = vtanh.pop %v3865
        %s3869 = scalar_lea.vmem [#allocation7], 128
        %v3870 = vld [vmem:[%s3869] sm:$0xff]
        %v3871 = vld [vmem:[%s3869 + $0x8] sm:$0xff]
        %v3872 = vld [vmem:[%s3869 + $0x10] sm:$0xff]
        %v3873 = vld [vmem:[%s3869 + $0x18] sm:$0xff]
        %s3874 = scalar_lea.vmem %s8, 4
        %v3875 = vld [vmem:[%s3874] sm:$0x1]
        %v3877 = vlaneseq
        %v3878 = vshrl.u32 %v3877, 7
        %v3879 = vsub.s32 0, %v3878
        %v3880 = vrot.slane %v3875, %v3879
        %v3883 = vsel %vm797, %v3868, 0
        %3885 = vmatprep.subr.mxu0 0.0
        %3886 = vmatpush1.msra.mxu0 %v3870
        %3887 = vmatprep.subr.mxu0 0.0
        %3888 = vmatpush1.msra.mxu0 %v3871
        %3889 = vmatprep.subr.mxu0 0.0
        %3890 = vmatpush1.msra.mxu0 %v3872
        %3891 = vmatprep.subr.mxu0 0.0
        %3892 = vmatpush1.msra.mxu0 %v3873
        %3893 = vmatprep.subr.mxu0 0.0
        %3894 = vmatpush1.msra.mxu0 0.0
        %3895 = vmatprep.subr.mxu0 0.0
        %3896 = vmatpush1.msra.mxu0 0.0
        %3897 = vmatprep.subr.mxu0 0.0
        %3898 = vmatpush1.msra.mxu0 0.0
        %3899 = vmatprep.subr.mxu0 0.0
        %3900 = vmatpush1.msra.mxu0 0.0
        %3901 = vmatprep.subr.mxu0 0.0
        %3902 = vmatpush1.msra.mxu0 0.0
        %3903 = vmatprep.subr.mxu0 0.0
        %3904 = vmatpush1.msra.mxu0 0.0
        %3905 = vmatprep.subr.mxu0 0.0
        %3906 = vmatpush1.msra.mxu0 0.0
        %3907 = vmatprep.subr.mxu0 0.0
        %3908 = vmatpush1.msra.mxu0 0.0
        %3909 = vmatprep.subr.mxu0 0.0
        %3910 = vmatpush1.msra.mxu0 0.0
        %3911 = vmatprep.subr.mxu0 0.0
        %3912 = vmatpush1.msra.mxu0 0.0
        %3913 = vmatprep.subr.mxu0 0.0
        %3914 = vmatpush1.msra.mxu0 0.0
        %3915 = vmatprep.subr.mxu0 0.0
        %3916 = vmatpush1.msra.mxu0 0.0
        %3917 = vmatprep.subr.mxu0 0.0
        %3918 = vmatpush1.msra.mxu0 0.0
        %3919 = vmatprep.subr.mxu0 0.0
        %3920 = vmatpush1.msra.mxu0 0.0
        %3921 = vmatprep.subr.mxu0 0.0
        %3922 = vmatpush1.msra.mxu0 0.0
        %3923 = vmatprep.subr.mxu0 0.0
        %3924 = vmatpush1.msra.mxu0 0.0
        %3925 = vmatprep.subr.mxu0 0.0
        %3926 = vmatpush1.msra.mxu0 0.0
        %3927 = vmatprep.subr.mxu0 0.0
        %3928 = vmatpush1.msra.mxu0 0.0
        %3929 = vmatprep.subr.mxu0 0.0
        %3930 = vmatpush1.msra.mxu0 0.0
        %3931 = vmatprep.subr.mxu0 0.0
        %3932 = vmatpush1.msra.mxu0 0.0
        %3933 = vmatprep.subr.mxu0 0.0
        %3934 = vmatpush1.msra.mxu0 0.0
        %3935 = vmatprep.subr.mxu0 0.0
        %3936 = vmatpush1.msra.mxu0 0.0
        %3937 = vmatprep.subr.mxu0 0.0
        %3938 = vmatpush1.msra.mxu0 0.0
        %3939 = vmatprep.subr.mxu0 0.0
        %3940 = vmatpush1.msra.mxu0 0.0
        %3941 = vmatprep.subr.mxu0 0.0
        %3942 = vmatpush1.msra.mxu0 0.0
        %3943 = vmatprep.subr.mxu0 0.0
        %3944 = vmatpush1.msra.mxu0 0.0
        %3945 = vmatprep.subr.mxu0 0.0
        %3946 = vmatpush1.msra.mxu0 0.0
        %3947 = vmatprep.subr.mxu0 0.0
        %3948 = vmatpush1.msra.mxu0 0.0
        %3949 = vmatprep.mubr.f32.mxu0 0.0
        %3950 = vmatmul.mubr.f32.gmra.mrb[0].mxu0 %v3883
        %v3951 = vpop.f32.mrb[0].mxu0
        %v3952 = vadd.f32 %v3880, %v3951
        %v3953 = vpop.f32.mrb[0].mxu0
        %3954 = vdwg.mxu0
        %3956 = vrot.lane.b32.xlu0 %v3952, 96
        %v3957 = vpop.permute.xlu0 %3956
        %v3958 = vsel %vm797, %v3952, 0
        %v3960 = vsel %vm797, %v3957, 0
        %3962 = vmatprep.subr.mxu0 0.0
        %3963 = vmatpush1.xpose.msra.mxu0 %v3960
        %3964 = vmatprep.subr.mxu0 0.0
        %3965 = vmatpush1.xpose.msra.mxu0 0.0
        %3966 = vmatprep.subr.mxu0 0.0
        %3967 = vmatpush1.xpose.msra.mxu0 0.0
        %3968 = vmatprep.subr.mxu0 0.0
        %3969 = vmatpush1.xpose.msra.mxu0 0.0
        %3970 = vmatprep.subr.mxu0 0.0
        %3971 = vmatpush1.xpose.msra.mxu0 0.0
        %3972 = vmatprep.subr.mxu0 0.0
        %3973 = vmatpush1.xpose.msra.mxu0 0.0
        %3974 = vmatprep.subr.mxu0 0.0
        %3975 = vmatpush1.xpose.msra.mxu0 0.0
        %3976 = vmatprep.subr.mxu0 0.0
        %3977 = vmatpush1.xpose.msra.mxu0 0.0
        %3978 = vmatprep.subr.mxu0 0.0
        %3979 = vmatpush1.xpose.msra.mxu0 0.0
        %3980 = vmatprep.subr.mxu0 0.0
        %3981 = vmatpush1.xpose.msra.mxu0 0.0
        %3982 = vmatprep.subr.mxu0 0.0
        %3983 = vmatpush1.xpose.msra.mxu0 0.0
        %3984 = vmatprep.subr.mxu0 0.0
        %3985 = vmatpush1.xpose.msra.mxu0 0.0
        %3986 = vmatprep.subr.mxu0 0.0
        %3987 = vmatpush1.xpose.msra.mxu0 0.0
        %3988 = vmatprep.subr.mxu0 0.0
        %3989 = vmatpush1.xpose.msra.mxu0 0.0
        %3990 = vmatprep.subr.mxu0 0.0
        %3991 = vmatpush1.xpose.msra.mxu0 0.0
        %3992 = vmatprep.subr.mxu0 0.0
        %3993 = vmatpush1.xpose.msra.mxu0 0.0
        %3994 = vmatprep.subr.mxu0 0.0
        %3995 = vmatpush1.xpose.msra.mxu0 0.0
        %3996 = vmatprep.subr.mxu0 0.0
        %3997 = vmatpush1.xpose.msra.mxu0 0.0
        %3998 = vmatprep.subr.mxu0 0.0
        %3999 = vmatpush1.xpose.msra.mxu0 0.0
        %4000 = vmatprep.subr.mxu0 0.0
        %4001 = vmatpush1.xpose.msra.mxu0 0.0
        %4002 = vmatprep.subr.mxu0 0.0
        %4003 = vmatpush1.xpose.msra.mxu0 0.0
        %4004 = vmatprep.subr.mxu0 0.0
        %4005 = vmatpush1.xpose.msra.mxu0 0.0
        %4006 = vmatprep.subr.mxu0 0.0
        %4007 = vmatpush1.xpose.msra.mxu0 0.0
        %4008 = vmatprep.subr.mxu0 0.0
        %4009 = vmatpush1.xpose.msra.mxu0 0.0
        %4010 = vmatprep.subr.mxu0 0.0
        %4011 = vmatpush1.xpose.msra.mxu0 0.0
        %4012 = vmatprep.subr.mxu0 0.0
        %4013 = vmatpush1.xpose.msra.mxu0 0.0
        %4014 = vmatprep.subr.mxu0 0.0
        %4015 = vmatpush1.xpose.msra.mxu0 0.0
        %4016 = vmatprep.subr.mxu0 0.0
        %4017 = vmatpush1.xpose.msra.mxu0 0.0
        %4018 = vmatprep.subr.mxu0 0.0
        %4019 = vmatpush1.xpose.msra.mxu0 0.0
        %4020 = vmatprep.subr.mxu0 0.0
        %4021 = vmatpush1.xpose.msra.mxu0 0.0
        %4022 = vmatprep.subr.mxu0 0.0
        %4023 = vmatpush1.xpose.msra.mxu0 0.0
        %4024 = vmatprep.subr.mxu0 0.0
        %4025 = vmatpush1.xpose.msra.mxu0 0.0
        %4026 = vmatprep.mubr.f32.mxu0 0.0
        %4027 = vmatmul.mubr.f32.gmra.mrb[0].mxu0 %v3958
        %v4028 = vpop.f32.mrb[0].mxu0
        %v4029 = vadd.f32 0.0, %v4028
        %v4030 = vpop.f32.mrb[0].mxu0
        %4031 = vdwg.mxu0
        %v4032 = vmul.f32 %v4029, 0.17677669
        %v4033 = vsel %vm1118, %v4032, -inf
        %4034 = vmax.xlane.f32.xlu0 %v4033
        %v4035 = vpop.xlane.xlu0 %4034
        %v4036 = vsub.f32 %v4032, %v4035
        %v4037 = vmul.f32 %v4036, 1.442695
        %v4038 = vpow.pop %v4037
        %v4039 = vsel %vm1118, %v4038, 0.0
        %4040 = vadd.xlane.f32.xlu0 %v4039
        %v4041 = vpop.xlane.xlu0 %4040
        %v4042 = vrcp.pop %v4041
        %v4043 = vmul.f32 %v4038, %v4042
        %4044 = vrot.lane.b32.xlu0 %v3952, 64
        %v4045 = vpop.permute.xlu0 %4044
        %v4048 = vsel %vm1118, %v4043, 0
        %4050 = vmatprep.subr.mxu0 0.0
        %4051 = vmatpush1.msra.mxu0 %v4045
        %4052 = vmatprep.subr.mxu0 0.0
        %4053 = vmatpush1.msra.mxu0 0.0
        %4054 = vmatprep.subr.mxu0 0.0
        %4055 = vmatpush1.msra.mxu0 0.0
        %4056 = vmatprep.subr.mxu0 0.0
        %4057 = vmatpush1.msra.mxu0 0.0
        %4058 = vmatprep.subr.mxu0 0.0
        %4059 = vmatpush1.msra.mxu0 0.0
        %4060 = vmatprep.subr.mxu0 0.0
        %4061 = vmatpush1.msra.mxu0 0.0
        %4062 = vmatprep.subr.mxu0 0.0
        %4063 = vmatpush1.msra.mxu0 0.0
        %4064 = vmatprep.subr.mxu0 0.0
        %4065 = vmatpush1.msra.mxu0 0.0
        %4066 = vmatprep.subr.mxu0 0.0
        %4067 = vmatpush1.msra.mxu0 0.0
        %4068 = vmatprep.subr.mxu0 0.0
        %4069 = vmatpush1.msra.mxu0 0.0
        %4070 = vmatprep.subr.mxu0 0.0
        %4071 = vmatpush1.msra.mxu0 0.0
        %4072 = vmatprep.subr.mxu0 0.0
        %4073 = vmatpush1.msra.mxu0 0.0
        %4074 = vmatprep.subr.mxu0 0.0
        %4075 = vmatpush1.msra.mxu0 0.0
        %4076 = vmatprep.subr.mxu0 0.0
        %4077 = vmatpush1.msra.mxu0 0.0
        %4078 = vmatprep.subr.mxu0 0.0
        %4079 = vmatpush1.msra.mxu0 0.0
        %4080 = vmatprep.subr.mxu0 0.0
        %4081 = vmatpush1.msra.mxu0 0.0
        %4082 = vmatprep.subr.mxu0 0.0
        %4083 = vmatpush1.msra.mxu0 0.0
        %4084 = vmatprep.subr.mxu0 0.0
        %4085 = vmatpush1.msra.mxu0 0.0
        %4086 = vmatprep.subr.mxu0 0.0
        %4087 = vmatpush1.msra.mxu0 0.0
        %4088 = vmatprep.subr.mxu0 0.0
        %4089 = vmatpush1.msra.mxu0 0.0
        %4090 = vmatprep.subr.mxu0 0.0
        %4091 = vmatpush1.msra.mxu0 0.0
        %4092 = vmatprep.subr.mxu0 0.0
        %4093 = vmatpush1.msra.mxu0 0.0
        %4094 = vmatprep.subr.mxu0 0.0
        %4095 = vmatpush1.msra.mxu0 0.0
        %4096 = vmatprep.subr.mxu0 0.0
        %4097 = vmatpush1.msra.mxu0 0.0
        %4098 = vmatprep.subr.mxu0 0.0
        %4099 = vmatpush1.msra.mxu0 0.0
        %4100 = vmatprep.subr.mxu0 0.0
        %4101 = vmatpush1.msra.mxu0 0.0
        %4102 = vmatprep.subr.mxu0 0.0
        %4103 = vmatpush1.msra.mxu0 0.0
        %4104 = vmatprep.subr.mxu0 0.0
        %4105 = vmatpush1.msra.mxu0 0.0
        %4106 = vmatprep.subr.mxu0 0.0
        %4107 = vmatpush1.msra.mxu0 0.0
        %4108 = vmatprep.subr.mxu0 0.0
        %4109 = vmatpush1.msra.mxu0 0.0
        %4110 = vmatprep.subr.mxu0 0.0
        %4111 = vmatpush1.msra.mxu0 0.0
        %4112 = vmatprep.subr.mxu0 0.0
        %4113 = vmatpush1.msra.mxu0 0.0
        %4114 = vmatprep.mubr.f32.mxu0 0.0
        %4115 = vmatmul.mubr.f32.gmra.mrb[0].mxu0 %v4048
        %v4116 = vpop.f32.mrb[0].mxu0
        %v4117 = vadd.f32 0.0, %v4116
        %v4118 = vpop.f32.mrb[0].mxu0
        %4119 = vdwg.mxu0
        %s4120 = scalar_lea.vmem [#allocation8], 128
        %v4121 = vld [vmem:[%s4120] sm:$0xff]
        %v4122 = vld [vmem:[%s4120 + $0x8] sm:$0xff]
        %v4123 = vld [vmem:[%s4120 + $0x10] sm:$0xff]
        %v4124 = vld [vmem:[%s4120 + $0x18] sm:$0xff]
        %s4125 = scalar_lea.vmem %s10, 4
        %v4126 = vld [vmem:[%s4125] sm:$0x1]
        %v4128 = vlaneseq
        %v4129 = vshrl.u32 %v4128, 7
        %v4130 = vsub.s32 0, %v4129
        %v4131 = vrot.slane %v4126, %v4130
        %v4134 = vsel %vm797, %v4117, 0
        %4136 = vmatprep.subr.mxu0 0.0
        %4137 = vmatpush1.msra.mxu0 %v4121
        %4138 = vmatprep.subr.mxu0 0.0
        %4139 = vmatpush1.msra.mxu0 %v4122
        %4140 = vmatprep.subr.mxu0 0.0
        %4141 = vmatpush1.msra.mxu0 %v4123
        %4142 = vmatprep.subr.mxu0 0.0
        %4143 = vmatpush1.msra.mxu0 %v4124
        %4144 = vmatprep.subr.mxu0 0.0
        %4145 = vmatpush1.msra.mxu0 0.0
        %4146 = vmatprep.subr.mxu0 0.0
        %4147 = vmatpush1.msra.mxu0 0.0
        %4148 = vmatprep.subr.mxu0 0.0
        %4149 = vmatpush1.msra.mxu0 0.0
        %4150 = vmatprep.subr.mxu0 0.0
        %4151 = vmatpush1.msra.mxu0 0.0
        %4152 = vmatprep.subr.mxu0 0.0
        %4153 = vmatpush1.msra.mxu0 0.0
        %4154 = vmatprep.subr.mxu0 0.0
        %4155 = vmatpush1.msra.mxu0 0.0
        %4156 = vmatprep.subr.mxu0 0.0
        %4157 = vmatpush1.msra.mxu0 0.0
        %4158 = vmatprep.subr.mxu0 0.0
        %4159 = vmatpush1.msra.mxu0 0.0
        %4160 = vmatprep.subr.mxu0 0.0
        %4161 = vmatpush1.msra.mxu0 0.0
        %4162 = vmatprep.subr.mxu0 0.0
        %4163 = vmatpush1.msra.mxu0 0.0
        %4164 = vmatprep.subr.mxu0 0.0
        %4165 = vmatpush1.msra.mxu0 0.0
        %4166 = vmatprep.subr.mxu0 0.0
        %4167 = vmatpush1.msra.mxu0 0.0
        %4168 = vmatprep.subr.mxu0 0.0
        %4169 = vmatpush1.msra.mxu0 0.0
        %4170 = vmatprep.subr.mxu0 0.0
        %4171 = vmatpush1.msra.mxu0 0.0
        %4172 = vmatprep.subr.mxu0 0.0
        %4173 = vmatpush1.msra.mxu0 0.0
        %4174 = vmatprep.subr.mxu0 0.0
        %4175 = vmatpush1.msra.mxu0 0.0
        %4176 = vmatprep.subr.mxu0 0.0
        %4177 = vmatpush1.msra.mxu0 0.0
        %4178 = vmatprep.subr.mxu0 0.0
        %4179 = vmatpush1.msra.mxu0 0.0
        %4180 = vmatprep.subr.mxu0 0.0
        %4181 = vmatpush1.msra.mxu0 0.0
        %4182 = vmatprep.subr.mxu0 0.0
        %4183 = vmatpush1.msra.mxu0 0.0
        %4184 = vmatprep.subr.mxu0 0.0
        %4185 = vmatpush1.msra.mxu0 0.0
        %4186 = vmatprep.subr.mxu0 0.0
        %4187 = vmatpush1.msra.mxu0 0.0
        %4188 = vmatprep.subr.mxu0 0.0
        %4189 = vmatpush1.msra.mxu0 0.0
        %4190 = vmatprep.subr.mxu0 0.0
        %4191 = vmatpush1.msra.mxu0 0.0
        %4192 = vmatprep.subr.mxu0 0.0
        %4193 = vmatpush1.msra.mxu0 0.0
        %4194 = vmatprep.subr.mxu0 0.0
        %4195 = vmatpush1.msra.mxu0 0.0
        %4196 = vmatprep.subr.mxu0 0.0
        %4197 = vmatpush1.msra.mxu0 0.0
        %4198 = vmatprep.subr.mxu0 0.0
        %4199 = vmatpush1.msra.mxu0 0.0
        %4200 = vmatprep.mubr.f32.mxu0 0.0
        %4201 = vmatmul.mubr.f32.gmra.mrb[0].mxu0 %v4134
        %v4202 = vpop.f32.mrb[0].mxu0
        %v4203 = vadd.f32 %v4131, %v4202
        %v4204 = vpop.f32.mrb[0].mxu0
        %4205 = vdwg.mxu0
        %s4206 = scalar_lea.vmem [#allocation10], 128
        %v4207 = vld [vmem:[%s4206] sm:$0xff]
        %v4208 = vld [vmem:[%s4206 + $0x8] sm:$0xff]
        %v4209 = vld [vmem:[%s4206 + $0x10] sm:$0xff]
        %v4210 = vld [vmem:[%s4206 + $0x18] sm:$0xff]
        %s4211 = scalar_lea.vmem [#allocation11], 128
        %v4212 = vld [vmem:[%s4211] sm:$0xff]
        %v4213 = vld [vmem:[%s4211 + $0x8] sm:$0xff]
        %v4214 = vld [vmem:[%s4211 + $0x10] sm:$0xff]
        %v4215 = vld [vmem:[%s4211 + $0x18] sm:$0xff]
        %v4217 = vsel %vm797, %v4203, 0
        %4219 = vmatprep.subr.mxu0 0.0
        %4220 = vmatpush1.msra.mxu0 %v4212
        %4221 = vmatprep.subr.mxu0 0.0
        %4222 = vmatpush1.msra.mxu0 %v4213
        %4223 = vmatprep.subr.mxu0 0.0
        %4224 = vmatpush1.msra.mxu0 %v4214
        %4225 = vmatprep.subr.mxu0 0.0
        %4226 = vmatpush1.msra.mxu0 %v4215
        %4227 = vmatprep.subr.mxu0 0.0
        %4228 = vmatpush1.msra.mxu0 0.0
        %4229 = vmatprep.subr.mxu0 0.0
        %4230 = vmatpush1.msra.mxu0 0.0
        %4231 = vmatprep.subr.mxu0 0.0
        %4232 = vmatpush1.msra.mxu0 0.0
        %4233 = vmatprep.subr.mxu0 0.0
        %4234 = vmatpush1.msra.mxu0 0.0
        %4235 = vmatprep.subr.mxu0 0.0
        %4236 = vmatpush1.msra.mxu0 0.0
        %4237 = vmatprep.subr.mxu0 0.0
        %4238 = vmatpush1.msra.mxu0 0.0
        %4239 = vmatprep.subr.mxu0 0.0
        %4240 = vmatpush1.msra.mxu0 0.0
        %4241 = vmatprep.subr.mxu0 0.0
        %4242 = vmatpush1.msra.mxu0 0.0
        %4243 = vmatprep.subr.mxu0 0.0
        %4244 = vmatpush1.msra.mxu0 0.0
        %4245 = vmatprep.subr.mxu0 0.0
        %4246 = vmatpush1.msra.mxu0 0.0
        %4247 = vmatprep.subr.mxu0 0.0
        %4248 = vmatpush1.msra.mxu0 0.0
        %4249 = vmatprep.subr.mxu0 0.0
        %4250 = vmatpush1.msra.mxu0 0.0
        %4251 = vmatprep.subr.mxu0 0.0
        %4252 = vmatpush1.msra.mxu0 0.0
        %4253 = vmatprep.subr.mxu0 0.0
        %4254 = vmatpush1.msra.mxu0 0.0
        %4255 = vmatprep.subr.mxu0 0.0
        %4256 = vmatpush1.msra.mxu0 0.0
        %4257 = vmatprep.subr.mxu0 0.0
        %4258 = vmatpush1.msra.mxu0 0.0
        %4259 = vmatprep.subr.mxu0 0.0
        %4260 = vmatpush1.msra.mxu0 0.0
        %4261 = vmatprep.subr.mxu0 0.0
        %4262 = vmatpush1.msra.mxu0 0.0
        %4263 = vmatprep.subr.mxu0 0.0
        %4264 = vmatpush1.msra.mxu0 0.0
        %4265 = vmatprep.subr.mxu0 0.0
        %4266 = vmatpush1.msra.mxu0 0.0
        %4267 = vmatprep.subr.mxu0 0.0
        %4268 = vmatpush1.msra.mxu0 0.0
        %4269 = vmatprep.subr.mxu0 0.0
        %4270 = vmatpush1.msra.mxu0 0.0
        %4271 = vmatprep.subr.mxu0 0.0
        %4272 = vmatpush1.msra.mxu0 0.0
        %4273 = vmatprep.subr.mxu0 0.0
        %4274 = vmatpush1.msra.mxu0 0.0
        %4275 = vmatprep.subr.mxu0 0.0
        %4276 = vmatpush1.msra.mxu0 0.0
        %4277 = vmatprep.subr.mxu0 0.0
        %4278 = vmatpush1.msra.mxu0 0.0
        %4279 = vmatprep.subr.mxu0 0.0
        %4280 = vmatpush1.msra.mxu0 0.0
        %4281 = vmatprep.subr.mxu0 0.0
        %4282 = vmatpush1.msra.mxu0 0.0
        %4283 = vmatprep.mubr.f32.mxu0 0.0
        %4284 = vmatmul.mubr.f32.gmra.mrb[0].mxu0 %v4217
        %v4285 = vpop.f32.mrb[0].mxu0
        %v4286 = vadd.f32 0.0, %v4285
        %v4287 = vpop.f32.mrb[0].mxu0
        %4288 = vdwg.mxu0
        %4289 = vmatprep.subr.mxu0 0.0
        %4290 = vmatpush1.msra.mxu0 %v4207
        %4291 = vmatprep.subr.mxu0 0.0
        %4292 = vmatpush1.msra.mxu0 %v4208
        %4293 = vmatprep.subr.mxu0 0.0
        %4294 = vmatpush1.msra.mxu0 %v4209
        %4295 = vmatprep.subr.mxu0 0.0
        %4296 = vmatpush1.msra.mxu0 %v4210
        %4297 = vmatprep.subr.mxu0 0.0
        %4298 = vmatpush1.msra.mxu0 0.0
        %4299 = vmatprep.subr.mxu0 0.0
        %4300 = vmatpush1.msra.mxu0 0.0
        %4301 = vmatprep.subr.mxu0 0.0
        %4302 = vmatpush1.msra.mxu0 0.0
        %4303 = vmatprep.subr.mxu0 0.0
        %4304 = vmatpush1.msra.mxu0 0.0
        %4305 = vmatprep.subr.mxu0 0.0
        %4306 = vmatpush1.msra.mxu0 0.0
        %4307 = vmatprep.subr.mxu0 0.0
        %4308 = vmatpush1.msra.mxu0 0.0
        %4309 = vmatprep.subr.mxu0 0.0
        %4310 = vmatpush1.msra.mxu0 0.0
        %4311 = vmatprep.subr.mxu0 0.0
        %4312 = vmatpush1.msra.mxu0 0.0
        %4313 = vmatprep.subr.mxu0 0.0
        %4314 = vmatpush1.msra.mxu0 0.0
        %4315 = vmatprep.subr.mxu0 0.0
        %4316 = vmatpush1.msra.mxu0 0.0
        %4317 = vmatprep.subr.mxu0 0.0
        %4318 = vmatpush1.msra.mxu0 0.0
        %4319 = vmatprep.subr.mxu0 0.0
        %4320 = vmatpush1.msra.mxu0 0.0
        %4321 = vmatprep.subr.mxu0 0.0
        %4322 = vmatpush1.msra.mxu0 0.0
        %4323 = vmatprep.subr.mxu0 0.0
        %4324 = vmatpush1.msra.mxu0 0.0
        %4325 = vmatprep.subr.mxu0 0.0
        %4326 = vmatpush1.msra.mxu0 0.0
        %4327 = vmatprep.subr.mxu0 0.0
        %4328 = vmatpush1.msra.mxu0 0.0
        %4329 = vmatprep.subr.mxu0 0.0
        %4330 = vmatpush1.msra.mxu0 0.0
        %4331 = vmatprep.subr.mxu0 0.0
        %4332 = vmatpush1.msra.mxu0 0.0
        %4333 = vmatprep.subr.mxu0 0.0
        %4334 = vmatpush1.msra.mxu0 0.0
        %4335 = vmatprep.subr.mxu0 0.0
        %4336 = vmatpush1.msra.mxu0 0.0
        %4337 = vmatprep.subr.mxu0 0.0
        %4338 = vmatpush1.msra.mxu0 0.0
        %4339 = vmatprep.subr.mxu0 0.0
        %4340 = vmatpush1.msra.mxu0 0.0
        %4341 = vmatprep.subr.mxu0 0.0
        %4342 = vmatpush1.msra.mxu0 0.0
        %4343 = vmatprep.subr.mxu0 0.0
        %4344 = vmatpush1.msra.mxu0 0.0
        %4345 = vmatprep.subr.mxu0 0.0
        %4346 = vmatpush1.msra.mxu0 0.0
        %4347 = vmatprep.subr.mxu0 0.0
        %4348 = vmatpush1.msra.mxu0 0.0
        %4349 = vmatprep.subr.mxu0 0.0
        %4350 = vmatpush1.msra.mxu0 0.0
        %4351 = vmatprep.subr.mxu0 0.0
        %4352 = vmatpush1.msra.mxu0 0.0
        %4353 = vmatprep.mubr.f32.mxu0 0.0
        %4354 = vmatmul.mubr.f32.gmra.mrb[0].mxu0 %v3796
        %v4355 = vpop.f32.mrb[0].mxu0
        %v4356 = vadd.f32 %v4286, %v4355
        %v4357 = vpop.f32.mrb[0].mxu0
        %4358 = vdwg.mxu0
        %s4359 = scalar_lea.vmem [#allocation13], 4
        %v4360 = vld [vmem:[%s4359] sm:$0x1]
        %v4362 = vlaneseq
        %v4363 = vshrl.u32 %v4362, 7
        %v4364 = vsub.s32 0, %v4363
        %v4365 = vrot.slane %v4360, %v4364
        %v4367 = vadd.f32 %v4356, %v4365
        %v4368 = vsel %vm797, %v4367, 0.0
        %4369 = vadd.xlane.f32.xlu0 %v4368
        %v4370 = vpop.xlane.xlu0 %4369
        %v4371 = vmul.f32 %v4370, %v1452
        %v4372 = vsub.f32 %v4367, %v4371
        %v4373 = vmul.f32 %v4372, %v4372
        %v4374 = vsel %vm797, %v4373, 0.0
        %4375 = vadd.xlane.f32.xlu0 %v4374
        %v4376 = vpop.xlane.xlu0 %4375
        %v4377 = vmul.f32 %v4376, %v1452
        %v4378 = vadd.f32 %v4377, 1e-05
        %v4379 = vrsqrt.pop %v4378
        %v4380 = vmul.f32 %v4372, %v4379
        %s4381 = scalar_lea.vmem [#allocation14], 4
        %v4382 = vld [vmem:[%s4381] sm:$0x1]
        %v4384 = vlaneseq
        %v4385 = vshrl.u32 %v4384, 7
        %v4386 = vsub.s32 0, %v4385
        %v4387 = vrot.slane %v4382, %v4386
        %v4389 = vmul.f32 %v4380, %v4387
        %s4390 = scalar_lea.vmem [#allocation16], 4
        %v4391 = vld [vmem:[%s4390] sm:$0x1]
        %v4393 = vlaneseq
        %v4394 = vshrl.u32 %v4393, 7
        %v4395 = vsub.s32 0, %v4394
        %v4396 = vrot.slane %v4391, %v4395
        %v4398 = vadd.f32 %v4389, %v4396
        %v4399 = vmul.f32 %v4398, 0.5
        %v4400 = vmul.f32 %v4398, 0.70710677
        %vm4401 = vcmp.ge.f32.partialorder %v4400, 0.0
        %v4402 = vsel %vm4401, 1.0, -1.0
        %v4403 = vand.u32 2147483647, %v4400
        %v4404 = vmul.f32 %v4403, 0.3275911
        %v4405 = vadd.f32 %v4404, 1.0
        %v4406 = vrcp.pop %v4405
        %v4407 = vmul.f32 1.0, %v4406
        %v4408 = vmul.f32 %v4407, 1.0614054
        %v4409 = vadd.f32 %v4408, -1.4531521
        %v4410 = vmul.f32 %v4407, %v4409
        %v4411 = vadd.f32 %v4410, 1.4214138
        %v4412 = vmul.f32 %v4407, %v4411
        %v4413 = vadd.f32 %v4412, -0.28449672
        %v4414 = vmul.f32 %v4407, %v4413
        %v4415 = vadd.f32 %v4414, 0.2548296
        %v4416 = vmul.f32 %v4407, %v4415
        %v4417 = vsub.f32 0.0, %v4403
        %v4418 = vmul.f32 %v4417, %v4403
        %v4419 = vmul.f32 %v4418, 1.442695
        %v4420 = vpow.pop %v4419
        %v4421 = vmul.f32 %v4416, %v4420
        %v4422 = vsub.f32 1.0, %v4421
        %v4423 = vmul.f32 %v4402, %v4422
        %v4424 = vadd.f32 %v4423, 1.0
        %v4425 = vmul.f32 %v4399, %v4424
        %s4426 = scalar_lea.vmem [#allocation2], 160
        %v4427 = vld [vmem:[%s4426] sm:$0xff]
        %v4428 = vld [vmem:[%s4426 + $0x8] sm:$0xff]
        %v4429 = vld [vmem:[%s4426 + $0x10] sm:$0xff]
        %v4430 = vld [vmem:[%s4426 + $0x18] sm:$0xff]
        %s4431 = scalar_lea.vmem %s4, 5
        %v4432 = vld [vmem:[%s4431] sm:$0x1]
        %v4434 = vlaneseq
        %v4435 = vshrl.u32 %v4434, 7
        %v4436 = vsub.s32 0, %v4435
        %v4437 = vrot.slane %v4432, %v4436
        %v4440 = vsel %vm797, %v4425, 0
        %4442 = vmatprep.subr.mxu0 0.0
        %4443 = vmatpush1.msra.mxu0 %v4427
        %4444 = vmatprep.subr.mxu0 0.0
        %4445 = vmatpush1.msra.mxu0 %v4428
        %4446 = vmatprep.subr.mxu0 0.0
        %4447 = vmatpush1.msra.mxu0 %v4429
        %4448 = vmatprep.subr.mxu0 0.0
        %4449 = vmatpush1.msra.mxu0 %v4430
        %4450 = vmatprep.subr.mxu0 0.0
        %4451 = vmatpush1.msra.mxu0 0.0
        %4452 = vmatprep.subr.mxu0 0.0
        %4453 = vmatpush1.msra.mxu0 0.0
        %4454 = vmatprep.subr.mxu0 0.0
        %4455 = vmatpush1.msra.mxu0 0.0
        %4456 = vmatprep.subr.mxu0 0.0
        %4457 = vmatpush1.msra.mxu0 0.0
        %4458 = vmatprep.subr.mxu0 0.0
        %4459 = vmatpush1.msra.mxu0 0.0
        %4460 = vmatprep.subr.mxu0 0.0
        %4461 = vmatpush1.msra.mxu0 0.0
        %4462 = vmatprep.subr.mxu0 0.0
        %4463 = vmatpush1.msra.mxu0 0.0
        %4464 = vmatprep.subr.mxu0 0.0
        %4465 = vmatpush1.msra.mxu0 0.0
        %4466 = vmatprep.subr.mxu0 0.0
        %4467 = vmatpush1.msra.mxu0 0.0
        %4468 = vmatprep.subr.mxu0 0.0
        %4469 = vmatpush1.msra.mxu0 0.0
        %4470 = vmatprep.subr.mxu0 0.0
        %4471 = vmatpush1.msra.mxu0 0.0
        %4472 = vmatprep.subr.mxu0 0.0
        %4473 = vmatpush1.msra.mxu0 0.0
        %4474 = vmatprep.subr.mxu0 0.0
        %4475 = vmatpush1.msra.mxu0 0.0
        %4476 = vmatprep.subr.mxu0 0.0
        %4477 = vmatpush1.msra.mxu0 0.0
        %4478 = vmatprep.subr.mxu0 0.0
        %4479 = vmatpush1.msra.mxu0 0.0
        %4480 = vmatprep.subr.mxu0 0.0
        %4481 = vmatpush1.msra.mxu0 0.0
        %4482 = vmatprep.subr.mxu0 0.0
        %4483 = vmatpush1.msra.mxu0 0.0
        %4484 = vmatprep.subr.mxu0 0.0
        %4485 = vmatpush1.msra.mxu0 0.0
        %4486 = vmatprep.subr.mxu0 0.0
        %4487 = vmatpush1.msra.mxu0 0.0
        %4488 = vmatprep.subr.mxu0 0.0
        %4489 = vmatpush1.msra.mxu0 0.0
        %4490 = vmatprep.subr.mxu0 0.0
        %4491 = vmatpush1.msra.mxu0 0.0
        %4492 = vmatprep.subr.mxu0 0.0
        %4493 = vmatpush1.msra.mxu0 0.0
        %4494 = vmatprep.subr.mxu0 0.0
        %4495 = vmatpush1.msra.mxu0 0.0
        %4496 = vmatprep.subr.mxu0 0.0
        %4497 = vmatpush1.msra.mxu0 0.0
        %4498 = vmatprep.subr.mxu0 0.0
        %4499 = vmatpush1.msra.mxu0 0.0
        %4500 = vmatprep.subr.mxu0 0.0
        %4501 = vmatpush1.msra.mxu0 0.0
        %4502 = vmatprep.subr.mxu0 0.0
        %4503 = vmatpush1.msra.mxu0 0.0
        %4504 = vmatprep.subr.mxu0 0.0
        %4505 = vmatpush1.msra.mxu0 0.0
        %4506 = vmatprep.mubr.f32.mxu0 0.0
        %4507 = vmatmul.mubr.f32.gmra.mrb[0].mxu0 %v4440
        %v4508 = vpop.f32.mrb[0].mxu0
        %v4509 = vadd.f32 %v4437, %v4508
        %v4510 = vpop.f32.mrb[0].mxu0
        %4511 = vdwg.mxu0
        %s4512 = scalar_lea.vmem [#allocation5], 160
        %v4513 = vld [vmem:[%s4512] sm:$0xff]
        %v4514 = vld [vmem:[%s4512 + $0x8] sm:$0xff]
        %v4515 = vld [vmem:[%s4512 + $0x10] sm:$0xff]
        %v4516 = vld [vmem:[%s4512 + $0x18] sm:$0xff]
        %s4517 = scalar_lea.vmem %s6, 5
        %v4518 = vld [vmem:[%s4517] sm:$0x1]
        %v4520 = vlaneseq
        %v4521 = vshrl.u32 %v4520, 7
        %v4522 = vsub.s32 0, %v4521
        %v4523 = vrot.slane %v4518, %v4522
        %v4526 = vsel %vm797, %v4509, 0
        %4528 = vmatprep.subr.mxu0 0.0
        %4529 = vmatpush1.msra.mxu0 %v4513
        %4530 = vmatprep.subr.mxu0 0.0
        %4531 = vmatpush1.msra.mxu0 %v4514
        %4532 = vmatprep.subr.mxu0 0.0
        %4533 = vmatpush1.msra.mxu0 %v4515
        %4534 = vmatprep.subr.mxu0 0.0
        %4535 = vmatpush1.msra.mxu0 %v4516
        %4536 = vmatprep.subr.mxu0 0.0
        %4537 = vmatpush1.msra.mxu0 0.0
        %4538 = vmatprep.subr.mxu0 0.0
        %4539 = vmatpush1.msra.mxu0 0.0
        %4540 = vmatprep.subr.mxu0 0.0
        %4541 = vmatpush1.msra.mxu0 0.0
        %4542 = vmatprep.subr.mxu0 0.0
        %4543 = vmatpush1.msra.mxu0 0.0
        %4544 = vmatprep.subr.mxu0 0.0
        %4545 = vmatpush1.msra.mxu0 0.0
        %4546 = vmatprep.subr.mxu0 0.0
        %4547 = vmatpush1.msra.mxu0 0.0
        %4548 = vmatprep.subr.mxu0 0.0
        %4549 = vmatpush1.msra.mxu0 0.0
        %4550 = vmatprep.subr.mxu0 0.0
        %4551 = vmatpush1.msra.mxu0 0.0
        %4552 = vmatprep.subr.mxu0 0.0
        %4553 = vmatpush1.msra.mxu0 0.0
        %4554 = vmatprep.subr.mxu0 0.0
        %4555 = vmatpush1.msra.mxu0 0.0
        %4556 = vmatprep.subr.mxu0 0.0
        %4557 = vmatpush1.msra.mxu0 0.0
        %4558 = vmatprep.subr.mxu0 0.0
        %4559 = vmatpush1.msra.mxu0 0.0
        %4560 = vmatprep.subr.mxu0 0.0
        %4561 = vmatpush1.msra.mxu0 0.0
        %4562 = vmatprep.subr.mxu0 0.0
        %4563 = vmatpush1.msra.mxu0 0.0
        %4564 = vmatprep.subr.mxu0 0.0
        %4565 = vmatpush1.msra.mxu0 0.0
        %4566 = vmatprep.subr.mxu0 0.0
        %4567 = vmatpush1.msra.mxu0 0.0
        %4568 = vmatprep.subr.mxu0 0.0
        %4569 = vmatpush1.msra.mxu0 0.0
        %4570 = vmatprep.subr.mxu0 0.0
        %4571 = vmatpush1.msra.mxu0 0.0
        %4572 = vmatprep.subr.mxu0 0.0
        %4573 = vmatpush1.msra.mxu0 0.0
        %4574 = vmatprep.subr.mxu0 0.0
        %4575 = vmatpush1.msra.mxu0 0.0
        %4576 = vmatprep.subr.mxu0 0.0
        %4577 = vmatpush1.msra.mxu0 0.0
        %4578 = vmatprep.subr.mxu0 0.0
        %4579 = vmatpush1.msra.mxu0 0.0
        %4580 = vmatprep.subr.mxu0 0.0
        %4581 = vmatpush1.msra.mxu0 0.0
        %4582 = vmatprep.subr.mxu0 0.0
        %4583 = vmatpush1.msra.mxu0 0.0
        %4584 = vmatprep.subr.mxu0 0.0
        %4585 = vmatpush1.msra.mxu0 0.0
        %4586 = vmatprep.subr.mxu0 0.0
        %4587 = vmatpush1.msra.mxu0 0.0
        %4588 = vmatprep.subr.mxu0 0.0
        %4589 = vmatpush1.msra.mxu0 0.0
        %4590 = vmatprep.subr.mxu0 0.0
        %4591 = vmatpush1.msra.mxu0 0.0
        %4592 = vmatprep.mubr.f32.mxu0 0.0
        %4593 = vmatmul.mubr.f32.gmra.mrb[0].mxu0 %v4526
        %v4594 = vpop.f32.mrb[0].mxu0
        %v4595 = vadd.f32 %v4523, %v4594
        %v4596 = vpop.f32.mrb[0].mxu0
        %4597 = vdwg.mxu0
        %v4598 = vtanh.pop %v4595
        %s4599 = scalar_lea.vmem [#allocation7], 160
        %v4600 = vld [vmem:[%s4599] sm:$0xff]
        %v4601 = vld [vmem:[%s4599 + $0x8] sm:$0xff]
        %v4602 = vld [vmem:[%s4599 + $0x10] sm:$0xff]
        %v4603 = vld [vmem:[%s4599 + $0x18] sm:$0xff]
        %s4604 = scalar_lea.vmem %s8, 5
        %v4605 = vld [vmem:[%s4604] sm:$0x1]
        %v4607 = vlaneseq
        %v4608 = vshrl.u32 %v4607, 7
        %v4609 = vsub.s32 0, %v4608
        %v4610 = vrot.slane %v4605, %v4609
        %v4613 = vsel %vm797, %v4598, 0
        %4615 = vmatprep.subr.mxu0 0.0
        %4616 = vmatpush1.msra.mxu0 %v4600
        %4617 = vmatprep.subr.mxu0 0.0
        %4618 = vmatpush1.msra.mxu0 %v4601
        %4619 = vmatprep.subr.mxu0 0.0
        %4620 = vmatpush1.msra.mxu0 %v4602
        %4621 = vmatprep.subr.mxu0 0.0
        %4622 = vmatpush1.msra.mxu0 %v4603
        %4623 = vmatprep.subr.mxu0 0.0
        %4624 = vmatpush1.msra.mxu0 0.0
        %4625 = vmatprep.subr.mxu0 0.0
        %4626 = vmatpush1.msra.mxu0 0.0
        %4627 = vmatprep.subr.mxu0 0.0
        %4628 = vmatpush1.msra.mxu0 0.0
        %4629 = vmatprep.subr.mxu0 0.0
        %4630 = vmatpush1.msra.mxu0 0.0
        %4631 = vmatprep.subr.mxu0 0.0
        %4632 = vmatpush1.msra.mxu0 0.0
        %4633 = vmatprep.subr.mxu0 0.0
        %4634 = vmatpush1.msra.mxu0 0.0
        %4635 = vmatprep.subr.mxu0 0.0
        %4636 = vmatpush1.msra.mxu0 0.0
        %4637 = vmatprep.subr.mxu0 0.0
        %4638 = vmatpush1.msra.mxu0 0.0
        %4639 = vmatprep.subr.mxu0 0.0
        %4640 = vmatpush1.msra.mxu0 0.0
        %4641 = vmatprep.subr.mxu0 0.0
        %4642 = vmatpush1.msra.mxu0 0.0
        %4643 = vmatprep.subr.mxu0 0.0
        %4644 = vmatpush1.msra.mxu0 0.0
        %4645 = vmatprep.subr.mxu0 0.0
        %4646 = vmatpush1.msra.mxu0 0.0
        %4647 = vmatprep.subr.mxu0 0.0
        %4648 = vmatpush1.msra.mxu0 0.0
        %4649 = vmatprep.subr.mxu0 0.0
        %4650 = vmatpush1.msra.mxu0 0.0
        %4651 = vmatprep.subr.mxu0 0.0
        %4652 = vmatpush1.msra.mxu0 0.0
        %4653 = vmatprep.subr.mxu0 0.0
        %4654 = vmatpush1.msra.mxu0 0.0
        %4655 = vmatprep.subr.mxu0 0.0
        %4656 = vmatpush1.msra.mxu0 0.0
        %4657 = vmatprep.subr.mxu0 0.0
        %4658 = vmatpush1.msra.mxu0 0.0
        %4659 = vmatprep.subr.mxu0 0.0
        %4660 = vmatpush1.msra.mxu0 0.0
        %4661 = vmatprep.subr.mxu0 0.0
        %4662 = vmatpush1.msra.mxu0 0.0
        %4663 = vmatprep.subr.mxu0 0.0
        %4664 = vmatpush1.msra.mxu0 0.0
        %4665 = vmatprep.subr.mxu0 0.0
        %4666 = vmatpush1.msra.mxu0 0.0
        %4667 = vmatprep.subr.mxu0 0.0
        %4668 = vmatpush1.msra.mxu0 0.0
        %4669 = vmatprep.subr.mxu0 0.0
        %4670 = vmatpush1.msra.mxu0 0.0
        %4671 = vmatprep.subr.mxu0 0.0
        %4672 = vmatpush1.msra.mxu0 0.0
        %4673 = vmatprep.subr.mxu0 0.0
        %4674 = vmatpush1.msra.mxu0 0.0
        %4675 = vmatprep.subr.mxu0 0.0
        %4676 = vmatpush1.msra.mxu0 0.0
        %4677 = vmatprep.subr.mxu0 0.0
        %4678 = vmatpush1.msra.mxu0 0.0
        %4679 = vmatprep.mubr.f32.mxu0 0.0
        %4680 = vmatmul.mubr.f32.gmra.mrb[0].mxu0 %v4613
        %v4681 = vpop.f32.mrb[0].mxu0
        %v4682 = vadd.f32 %v4610, %v4681
        %v4683 = vpop.f32.mrb[0].mxu0
        %4684 = vdwg.mxu0
        %4686 = vrot.lane.b32.xlu0 %v4682, 96
        %v4687 = vpop.permute.xlu0 %4686
        %v4688 = vsel %vm797, %v4682, 0
        %v4690 = vsel %vm797, %v4687, 0
        %4692 = vmatprep.subr.mxu0 0.0
        %4693 = vmatpush1.xpose.msra.mxu0 %v4690
        %4694 = vmatprep.subr.mxu0 0.0
        %4695 = vmatpush1.xpose.msra.mxu0 0.0
        %4696 = vmatprep.subr.mxu0 0.0
        %4697 = vmatpush1.xpose.msra.mxu0 0.0
        %4698 = vmatprep.subr.mxu0 0.0
        %4699 = vmatpush1.xpose.msra.mxu0 0.0
        %4700 = vmatprep.subr.mxu0 0.0
        %4701 = vmatpush1.xpose.msra.mxu0 0.0
        %4702 = vmatprep.subr.mxu0 0.0
        %4703 = vmatpush1.xpose.msra.mxu0 0.0
        %4704 = vmatprep.subr.mxu0 0.0
        %4705 = vmatpush1.xpose.msra.mxu0 0.0
        %4706 = vmatprep.subr.mxu0 0.0
        %4707 = vmatpush1.xpose.msra.mxu0 0.0
        %4708 = vmatprep.subr.mxu0 0.0
        %4709 = vmatpush1.xpose.msra.mxu0 0.0
        %4710 = vmatprep.subr.mxu0 0.0
        %4711 = vmatpush1.xpose.msra.mxu0 0.0
        %4712 = vmatprep.subr.mxu0 0.0
        %4713 = vmatpush1.xpose.msra.mxu0 0.0
        %4714 = vmatprep.subr.mxu0 0.0
        %4715 = vmatpush1.xpose.msra.mxu0 0.0
        %4716 = vmatprep.subr.mxu0 0.0
        %4717 = vmatpush1.xpose.msra.mxu0 0.0
        %4718 = vmatprep.subr.mxu0 0.0
        %4719 = vmatpush1.xpose.msra.mxu0 0.0
        %4720 = vmatprep.subr.mxu0 0.0
        %4721 = vmatpush1.xpose.msra.mxu0 0.0
        %4722 = vmatprep.subr.mxu0 0.0
        %4723 = vmatpush1.xpose.msra.mxu0 0.0
        %4724 = vmatprep.subr.mxu0 0.0
        %4725 = vmatpush1.xpose.msra.mxu0 0.0
        %4726 = vmatprep.subr.mxu0 0.0
        %4727 = vmatpush1.xpose.msra.mxu0 0.0
        %4728 = vmatprep.subr.mxu0 0.0
        %4729 = vmatpush1.xpose.msra.mxu0 0.0
        %4730 = vmatprep.subr.mxu0 0.0
        %4731 = vmatpush1.xpose.msra.mxu0 0.0
        %4732 = vmatprep.subr.mxu0 0.0
        %4733 = vmatpush1.xpose.msra.mxu0 0.0
        %4734 = vmatprep.subr.mxu0 0.0
        %4735 = vmatpush1.xpose.msra.mxu0 0.0
        %4736 = vmatprep.subr.mxu0 0.0
        %4737 = vmatpush1.xpose.msra.mxu0 0.0
        %4738 = vmatprep.subr.mxu0 0.0
        %4739 = vmatpush1.xpose.msra.mxu0 0.0
        %4740 = vmatprep.subr.mxu0 0.0
        %4741 = vmatpush1.xpose.msra.mxu0 0.0
        %4742 = vmatprep.subr.mxu0 0.0
        %4743 = vmatpush1.xpose.msra.mxu0 0.0
        %4744 = vmatprep.subr.mxu0 0.0
        %4745 = vmatpush1.xpose.msra.mxu0 0.0
        %4746 = vmatprep.subr.mxu0 0.0
        %4747 = vmatpush1.xpose.msra.mxu0 0.0
        %4748 = vmatprep.subr.mxu0 0.0
        %4749 = vmatpush1.xpose.msra.mxu0 0.0
        %4750 = vmatprep.subr.mxu0 0.0
        %4751 = vmatpush1.xpose.msra.mxu0 0.0
        %4752 = vmatprep.subr.mxu0 0.0
        %4753 = vmatpush1.xpose.msra.mxu0 0.0
        %4754 = vmatprep.subr.mxu0 0.0
        %4755 = vmatpush1.xpose.msra.mxu0 0.0
        %4756 = vmatprep.mubr.f32.mxu0 0.0
        %4757 = vmatmul.mubr.f32.gmra.mrb[0].mxu0 %v4688
        %v4758 = vpop.f32.mrb[0].mxu0
        %v4759 = vadd.f32 0.0, %v4758
        %v4760 = vpop.f32.mrb[0].mxu0
        %4761 = vdwg.mxu0
        %v4762 = vmul.f32 %v4759, 0.17677669
        %v4763 = vsel %vm1118, %v4762, -inf
        %4764 = vmax.xlane.f32.xlu0 %v4763
        %v4765 = vpop.xlane.xlu0 %4764
        %v4766 = vsub.f32 %v4762, %v4765
        %v4767 = vmul.f32 %v4766, 1.442695
        %v4768 = vpow.pop %v4767
        %v4769 = vsel %vm1118, %v4768, 0.0
        %4770 = vadd.xlane.f32.xlu0 %v4769
        %v4771 = vpop.xlane.xlu0 %4770
        %v4772 = vrcp.pop %v4771
        %v4773 = vmul.f32 %v4768, %v4772
        %4774 = vrot.lane.b32.xlu0 %v4682, 64
        %v4775 = vpop.permute.xlu0 %4774
        %v4778 = vsel %vm1118, %v4773, 0
        %4780 = vmatprep.subr.mxu0 0.0
        %4781 = vmatpush1.msra.mxu0 %v4775
        %4782 = vmatprep.subr.mxu0 0.0
        %4783 = vmatpush1.msra.mxu0 0.0
        %4784 = vmatprep.subr.mxu0 0.0
        %4785 = vmatpush1.msra.mxu0 0.0
        %4786 = vmatprep.subr.mxu0 0.0
        %4787 = vmatpush1.msra.mxu0 0.0
        %4788 = vmatprep.subr.mxu0 0.0
        %4789 = vmatpush1.msra.mxu0 0.0
        %4790 = vmatprep.subr.mxu0 0.0
        %4791 = vmatpush1.msra.mxu0 0.0
        %4792 = vmatprep.subr.mxu0 0.0
        %4793 = vmatpush1.msra.mxu0 0.0
        %4794 = vmatprep.subr.mxu0 0.0
        %4795 = vmatpush1.msra.mxu0 0.0
        %4796 = vmatprep.subr.mxu0 0.0
        %4797 = vmatpush1.msra.mxu0 0.0
        %4798 = vmatprep.subr.mxu0 0.0
        %4799 = vmatpush1.msra.mxu0 0.0
        %4800 = vmatprep.subr.mxu0 0.0
        %4801 = vmatpush1.msra.mxu0 0.0
        %4802 = vmatprep.subr.mxu0 0.0
        %4803 = vmatpush1.msra.mxu0 0.0
        %4804 = vmatprep.subr.mxu0 0.0
        %4805 = vmatpush1.msra.mxu0 0.0
        %4806 = vmatprep.subr.mxu0 0.0
        %4807 = vmatpush1.msra.mxu0 0.0
        %4808 = vmatprep.subr.mxu0 0.0
        %4809 = vmatpush1.msra.mxu0 0.0
        %4810 = vmatprep.subr.mxu0 0.0
        %4811 = vmatpush1.msra.mxu0 0.0
        %4812 = vmatprep.subr.mxu0 0.0
        %4813 = vmatpush1.msra.mxu0 0.0
        %4814 = vmatprep.subr.mxu0 0.0
        %4815 = vmatpush1.msra.mxu0 0.0
        %4816 = vmatprep.subr.mxu0 0.0
        %4817 = vmatpush1.msra.mxu0 0.0
        %4818 = vmatprep.subr.mxu0 0.0
        %4819 = vmatpush1.msra.mxu0 0.0
        %4820 = vmatprep.subr.mxu0 0.0
        %4821 = vmatpush1.msra.mxu0 0.0
        %4822 = vmatprep.subr.mxu0 0.0
        %4823 = vmatpush1.msra.mxu0 0.0
        %4824 = vmatprep.subr.mxu0 0.0
        %4825 = vmatpush1.msra.mxu0 0.0
        %4826 = vmatprep.subr.mxu0 0.0
        %4827 = vmatpush1.msra.mxu0 0.0
        %4828 = vmatprep.subr.mxu0 0.0
        %4829 = vmatpush1.msra.mxu0 0.0
        %4830 = vmatprep.subr.mxu0 0.0
        %4831 = vmatpush1.msra.mxu0 0.0
        %4832 = vmatprep.subr.mxu0 0.0
        %4833 = vmatpush1.msra.mxu0 0.0
        %4834 = vmatprep.subr.mxu0 0.0
        %4835 = vmatpush1.msra.mxu0 0.0
        %4836 = vmatprep.subr.mxu0 0.0
        %4837 = vmatpush1.msra.mxu0 0.0
        %4838 = vmatprep.subr.mxu0 0.0
        %4839 = vmatpush1.msra.mxu0 0.0
        %4840 = vmatprep.subr.mxu0 0.0
        %4841 = vmatpush1.msra.mxu0 0.0
        %4842 = vmatprep.subr.mxu0 0.0
        %4843 = vmatpush1.msra.mxu0 0.0
        %4844 = vmatprep.mubr.f32.mxu0 0.0
        %4845 = vmatmul.mubr.f32.gmra.mrb[0].mxu0 %v4778
        %v4846 = vpop.f32.mrb[0].mxu0
        %v4847 = vadd.f32 0.0, %v4846
        %v4848 = vpop.f32.mrb[0].mxu0
        %4849 = vdwg.mxu0
        %s4850 = scalar_lea.vmem [#allocation8], 160
        %v4851 = vld [vmem:[%s4850] sm:$0xff]
        %v4852 = vld [vmem:[%s4850 + $0x8] sm:$0xff]
        %v4853 = vld [vmem:[%s4850 + $0x10] sm:$0xff]
        %v4854 = vld [vmem:[%s4850 + $0x18] sm:$0xff]
        %s4855 = scalar_lea.vmem %s10, 5
        %v4856 = vld [vmem:[%s4855] sm:$0x1]
        %v4858 = vlaneseq
        %v4859 = vshrl.u32 %v4858, 7
        %v4860 = vsub.s32 0, %v4859
        %v4861 = vrot.slane %v4856, %v4860
        %v4864 = vsel %vm797, %v4847, 0
        %4866 = vmatprep.subr.mxu0 0.0
        %4867 = vmatpush1.msra.mxu0 %v4851
        %4868 = vmatprep.subr.mxu0 0.0
        %4869 = vmatpush1.msra.mxu0 %v4852
        %4870 = vmatprep.subr.mxu0 0.0
        %4871 = vmatpush1.msra.mxu0 %v4853
        %4872 = vmatprep.subr.mxu0 0.0
        %4873 = vmatpush1.msra.mxu0 %v4854
        %4874 = vmatprep.subr.mxu0 0.0
        %4875 = vmatpush1.msra.mxu0 0.0
        %4876 = vmatprep.subr.mxu0 0.0
        %4877 = vmatpush1.msra.mxu0 0.0
        %4878 = vmatprep.subr.mxu0 0.0
        %4879 = vmatpush1.msra.mxu0 0.0
        %4880 = vmatprep.subr.mxu0 0.0
        %4881 = vmatpush1.msra.mxu0 0.0
        %4882 = vmatprep.subr.mxu0 0.0
        %4883 = vmatpush1.msra.mxu0 0.0
        %4884 = vmatprep.subr.mxu0 0.0
        %4885 = vmatpush1.msra.mxu0 0.0
        %4886 = vmatprep.subr.mxu0 0.0
        %4887 = vmatpush1.msra.mxu0 0.0
        %4888 = vmatprep.subr.mxu0 0.0
        %4889 = vmatpush1.msra.mxu0 0.0
        %4890 = vmatprep.subr.mxu0 0.0
        %4891 = vmatpush1.msra.mxu0 0.0
        %4892 = vmatprep.subr.mxu0 0.0
        %4893 = vmatpush1.msra.mxu0 0.0
        %4894 = vmatprep.subr.mxu0 0.0
        %4895 = vmatpush1.msra.mxu0 0.0
        %4896 = vmatprep.subr.mxu0 0.0
        %4897 = vmatpush1.msra.mxu0 0.0
        %4898 = vmatprep.subr.mxu0 0.0
        %4899 = vmatpush1.msra.mxu0 0.0
        %4900 = vmatprep.subr.mxu0 0.0
        %4901 = vmatpush1.msra.mxu0 0.0
        %4902 = vmatprep.subr.mxu0 0.0
        %4903 = vmatpush1.msra.mxu0 0.0
        %4904 = vmatprep.subr.mxu0 0.0
        %4905 = vmatpush1.msra.mxu0 0.0
        %4906 = vmatprep.subr.mxu0 0.0
        %4907 = vmatpush1.msra.mxu0 0.0
        %4908 = vmatprep.subr.mxu0 0.0
        %4909 = vmatpush1.msra.mxu0 0.0
        %4910 = vmatprep.subr.mxu0 0.0
        %4911 = vmatpush1.msra.mxu0 0.0
        %4912 = vmatprep.subr.mxu0 0.0
        %4913 = vmatpush1.msra.mxu0 0.0
        %4914 = vmatprep.subr.mxu0 0.0
        %4915 = vmatpush1.msra.mxu0 0.0
        %4916 = vmatprep.subr.mxu0 0.0
        %4917 = vmatpush1.msra.mxu0 0.0
        %4918 = vmatprep.subr.mxu0 0.0
        %4919 = vmatpush1.msra.mxu0 0.0
        %4920 = vmatprep.subr.mxu0 0.0
        %4921 = vmatpush1.msra.mxu0 0.0
        %4922 = vmatprep.subr.mxu0 0.0
        %4923 = vmatpush1.msra.mxu0 0.0
        %4924 = vmatprep.subr.mxu0 0.0
        %4925 = vmatpush1.msra.mxu0 0.0
        %4926 = vmatprep.subr.mxu0 0.0
        %4927 = vmatpush1.msra.mxu0 0.0
        %4928 = vmatprep.subr.mxu0 0.0
        %4929 = vmatpush1.msra.mxu0 0.0
        %4930 = vmatprep.mubr.f32.mxu0 0.0
        %4931 = vmatmul.mubr.f32.gmra.mrb[0].mxu0 %v4864
        %v4932 = vpop.f32.mrb[0].mxu0
        %v4933 = vadd.f32 %v4861, %v4932
        %v4934 = vpop.f32.mrb[0].mxu0
        %4935 = vdwg.mxu0
        %s4936 = scalar_lea.vmem [#allocation10], 160
        %v4937 = vld [vmem:[%s4936] sm:$0xff]
        %v4938 = vld [vmem:[%s4936 + $0x8] sm:$0xff]
        %v4939 = vld [vmem:[%s4936 + $0x10] sm:$0xff]
        %v4940 = vld [vmem:[%s4936 + $0x18] sm:$0xff]
        %s4941 = scalar_lea.vmem [#allocation11], 160
        %v4942 = vld [vmem:[%s4941] sm:$0xff]
        %v4943 = vld [vmem:[%s4941 + $0x8] sm:$0xff]
        %v4944 = vld [vmem:[%s4941 + $0x10] sm:$0xff]
        %v4945 = vld [vmem:[%s4941 + $0x18] sm:$0xff]
        %v4947 = vsel %vm797, %v4933, 0
        %4949 = vmatprep.subr.mxu0 0.0
        %4950 = vmatpush1.msra.mxu0 %v4942
        %4951 = vmatprep.subr.mxu0 0.0
        %4952 = vmatpush1.msra.mxu0 %v4943
        %4953 = vmatprep.subr.mxu0 0.0
        %4954 = vmatpush1.msra.mxu0 %v4944
        %4955 = vmatprep.subr.mxu0 0.0
        %4956 = vmatpush1.msra.mxu0 %v4945
        %4957 = vmatprep.subr.mxu0 0.0
        %4958 = vmatpush1.msra.mxu0 0.0
        %4959 = vmatprep.subr.mxu0 0.0
        %4960 = vmatpush1.msra.mxu0 0.0
        %4961 = vmatprep.subr.mxu0 0.0
        %4962 = vmatpush1.msra.mxu0 0.0
        %4963 = vmatprep.subr.mxu0 0.0
        %4964 = vmatpush1.msra.mxu0 0.0
        %4965 = vmatprep.subr.mxu0 0.0
        %4966 = vmatpush1.msra.mxu0 0.0
        %4967 = vmatprep.subr.mxu0 0.0
        %4968 = vmatpush1.msra.mxu0 0.0
        %4969 = vmatprep.subr.mxu0 0.0
        %4970 = vmatpush1.msra.mxu0 0.0
        %4971 = vmatprep.subr.mxu0 0.0
        %4972 = vmatpush1.msra.mxu0 0.0
        %4973 = vmatprep.subr.mxu0 0.0
        %4974 = vmatpush1.msra.mxu0 0.0
        %4975 = vmatprep.subr.mxu0 0.0
        %4976 = vmatpush1.msra.mxu0 0.0
        %4977 = vmatprep.subr.mxu0 0.0
        %4978 = vmatpush1.msra.mxu0 0.0
        %4979 = vmatprep.subr.mxu0 0.0
        %4980 = vmatpush1.msra.mxu0 0.0
        %4981 = vmatprep.subr.mxu0 0.0
        %4982 = vmatpush1.msra.mxu0 0.0
        %4983 = vmatprep.subr.mxu0 0.0
        %4984 = vmatpush1.msra.mxu0 0.0
        %4985 = vmatprep.subr.mxu0 0.0
        %4986 = vmatpush1.msra.mxu0 0.0
        %4987 = vmatprep.subr.mxu0 0.0
        %4988 = vmatpush1.msra.mxu0 0.0
        %4989 = vmatprep.subr.mxu0 0.0
        %4990 = vmatpush1.msra.mxu0 0.0
        %4991 = vmatprep.subr.mxu0 0.0
        %4992 = vmatpush1.msra.mxu0 0.0
        %4993 = vmatprep.subr.mxu0 0.0
        %4994 = vmatpush1.msra.mxu0 0.0
        %4995 = vmatprep.subr.mxu0 0.0
        %4996 = vmatpush1.msra.mxu0 0.0
        %4997 = vmatprep.subr.mxu0 0.0
        %4998 = vmatpush1.msra.mxu0 0.0
        %4999 = vmatprep.subr.mxu0 0.0
        %5000 = vmatpush1.msra.mxu0 0.0
        %5001 = vmatprep.subr.mxu0 0.0
        %5002 = vmatpush1.msra.mxu0 0.0
        %5003 = vmatprep.subr.mxu0 0.0
        %5004 = vmatpush1.msra.mxu0 0.0
        %5005 = vmatprep.subr.mxu0 0.0
        %5006 = vmatpush1.msra.mxu0 0.0
        %5007 = vmatprep.subr.mxu0 0.0
        %5008 = vmatpush1.msra.mxu0 0.0
        %5009 = vmatprep.subr.mxu0 0.0
        %5010 = vmatpush1.msra.mxu0 0.0
        %5011 = vmatprep.subr.mxu0 0.0
        %5012 = vmatpush1.msra.mxu0 0.0
        %5013 = vmatprep.mubr.f32.mxu0 0.0
        %5014 = vmatmul.mubr.f32.gmra.mrb[0].mxu0 %v4947
        %v5015 = vpop.f32.mrb[0].mxu0
        %v5016 = vadd.f32 0.0, %v5015
        %v5017 = vpop.f32.mrb[0].mxu0
        %5018 = vdwg.mxu0
        %5019 = vmatprep.subr.mxu0 0.0
        %5020 = vmatpush1.msra.mxu0 %v4937
        %5021 = vmatprep.subr.mxu0 0.0
        %5022 = vmatpush1.msra.mxu0 %v4938
        %5023 = vmatprep.subr.mxu0 0.0
        %5024 = vmatpush1.msra.mxu0 %v4939
        %5025 = vmatprep.subr.mxu0 0.0
        %5026 = vmatpush1.msra.mxu0 %v4940
        %5027 = vmatprep.subr.mxu0 0.0
        %5028 = vmatpush1.msra.mxu0 0.0
        %5029 = vmatprep.subr.mxu0 0.0
        %5030 = vmatpush1.msra.mxu0 0.0
        %5031 = vmatprep.subr.mxu0 0.0
        %5032 = vmatpush1.msra.mxu0 0.0
        %5033 = vmatprep.subr.mxu0 0.0
        %5034 = vmatpush1.msra.mxu0 0.0
        %5035 = vmatprep.subr.mxu0 0.0
        %5036 = vmatpush1.msra.mxu0 0.0
        %5037 = vmatprep.subr.mxu0 0.0
        %5038 = vmatpush1.msra.mxu0 0.0
        %5039 = vmatprep.subr.mxu0 0.0
        %5040 = vmatpush1.msra.mxu0 0.0
        %5041 = vmatprep.subr.mxu0 0.0
        %5042 = vmatpush1.msra.mxu0 0.0
        %5043 = vmatprep.subr.mxu0 0.0
        %5044 = vmatpush1.msra.mxu0 0.0
        %5045 = vmatprep.subr.mxu0 0.0
        %5046 = vmatpush1.msra.mxu0 0.0
        %5047 = vmatprep.subr.mxu0 0.0
        %5048 = vmatpush1.msra.mxu0 0.0
        %5049 = vmatprep.subr.mxu0 0.0
        %5050 = vmatpush1.msra.mxu0 0.0
        %5051 = vmatprep.subr.mxu0 0.0
        %5052 = vmatpush1.msra.mxu0 0.0
        %5053 = vmatprep.subr.mxu0 0.0
        %5054 = vmatpush1.msra.mxu0 0.0
        %5055 = vmatprep.subr.mxu0 0.0
        %5056 = vmatpush1.msra.mxu0 0.0
        %5057 = vmatprep.subr.mxu0 0.0
        %5058 = vmatpush1.msra.mxu0 0.0
        %5059 = vmatprep.subr.mxu0 0.0
        %5060 = vmatpush1.msra.mxu0 0.0
        %5061 = vmatprep.subr.mxu0 0.0
        %5062 = vmatpush1.msra.mxu0 0.0
        %5063 = vmatprep.subr.mxu0 0.0
        %5064 = vmatpush1.msra.mxu0 0.0
        %5065 = vmatprep.subr.mxu0 0.0
        %5066 = vmatpush1.msra.mxu0 0.0
        %5067 = vmatprep.subr.mxu0 0.0
        %5068 = vmatpush1.msra.mxu0 0.0
        %5069 = vmatprep.subr.mxu0 0.0
        %5070 = vmatpush1.msra.mxu0 0.0
        %5071 = vmatprep.subr.mxu0 0.0
        %5072 = vmatpush1.msra.mxu0 0.0
        %5073 = vmatprep.subr.mxu0 0.0
        %5074 = vmatpush1.msra.mxu0 0.0
        %5075 = vmatprep.subr.mxu0 0.0
        %5076 = vmatpush1.msra.mxu0 0.0
        %5077 = vmatprep.subr.mxu0 0.0
        %5078 = vmatpush1.msra.mxu0 0.0
        %5079 = vmatprep.subr.mxu0 0.0
        %5080 = vmatpush1.msra.mxu0 0.0
        %5081 = vmatprep.subr.mxu0 0.0
        %5082 = vmatpush1.msra.mxu0 0.0
        %5083 = vmatprep.mubr.f32.mxu0 0.0
        %5084 = vmatmul.mubr.f32.gmra.mrb[0].mxu0 %v4526
        %v5085 = vpop.f32.mrb[0].mxu0
        %v5086 = vadd.f32 %v5016, %v5085
        %v5087 = vpop.f32.mrb[0].mxu0
        %5088 = vdwg.mxu0
        %s5089 = scalar_lea.vmem [#allocation13], 5
        %v5090 = vld [vmem:[%s5089] sm:$0x1]
        %v5092 = vlaneseq
        %v5093 = vshrl.u32 %v5092, 7
        %v5094 = vsub.s32 0, %v5093
        %v5095 = vrot.slane %v5090, %v5094
        %v5097 = vadd.f32 %v5086, %v5095
        %v5098 = vsel %vm797, %v5097, 0.0
        %5099 = vadd.xlane.f32.xlu0 %v5098
        %v5100 = vpop.xlane.xlu0 %5099
        %v5101 = vmul.f32 %v5100, %v1452
        %v5102 = vsub.f32 %v5097, %v5101
        %v5103 = vmul.f32 %v5102, %v5102
        %v5104 = vsel %vm797, %v5103, 0.0
        %5105 = vadd.xlane.f32.xlu0 %v5104
        %v5106 = vpop.xlane.xlu0 %5105
        %v5107 = vmul.f32 %v5106, %v1452
        %v5108 = vadd.f32 %v5107, 1e-05
        %v5109 = vrsqrt.pop %v5108
        %v5110 = vmul.f32 %v5102, %v5109
        %s5111 = scalar_lea.vmem [#allocation14], 5
        %v5112 = vld [vmem:[%s5111] sm:$0x1]
        %v5114 = vlaneseq
        %v5115 = vshrl.u32 %v5114, 7
        %v5116 = vsub.s32 0, %v5115
        %v5117 = vrot.slane %v5112, %v5116
        %v5119 = vmul.f32 %v5110, %v5117
        %s5120 = scalar_lea.vmem [#allocation16], 5
        %v5121 = vld [vmem:[%s5120] sm:$0x1]
        %v5123 = vlaneseq
        %v5124 = vshrl.u32 %v5123, 7
        %v5125 = vsub.s32 0, %v5124
        %v5126 = vrot.slane %v5121, %v5125
        %v5128 = vadd.f32 %v5119, %v5126
        %v5129 = vmul.f32 %v5128, 0.5
        %v5130 = vmul.f32 %v5128, 0.70710677
        %vm5131 = vcmp.ge.f32.partialorder %v5130, 0.0
        %v5132 = vsel %vm5131, 1.0, -1.0
        %v5133 = vand.u32 2147483647, %v5130
        %v5134 = vmul.f32 %v5133, 0.3275911
        %v5135 = vadd.f32 %v5134, 1.0
        %v5136 = vrcp.pop %v5135
        %v5137 = vmul.f32 1.0, %v5136
        %v5138 = vmul.f32 %v5137, 1.0614054
        %v5139 = vadd.f32 %v5138, -1.4531521
        %v5140 = vmul.f32 %v5137, %v5139
        %v5141 = vadd.f32 %v5140, 1.4214138
        %v5142 = vmul.f32 %v5137, %v5141
        %v5143 = vadd.f32 %v5142, -0.28449672
        %v5144 = vmul.f32 %v5137, %v5143
        %v5145 = vadd.f32 %v5144, 0.2548296
        %v5146 = vmul.f32 %v5137, %v5145
        %v5147 = vsub.f32 0.0, %v5133
        %v5148 = vmul.f32 %v5147, %v5133
        %v5149 = vmul.f32 %v5148, 1.442695
        %v5150 = vpow.pop %v5149
        %v5151 = vmul.f32 %v5146, %v5150
        %v5152 = vsub.f32 1.0, %v5151
        %v5153 = vmul.f32 %v5132, %v5152
        %v5154 = vadd.f32 %v5153, 1.0
        %v5155 = vmul.f32 %v5129, %v5154
        %s5156 = scalar_lea.vmem [#allocation2], 192
        %v5157 = vld [vmem:[%s5156] sm:$0xff]
        %v5158 = vld [vmem:[%s5156 + $0x8] sm:$0xff]
        %v5159 = vld [vmem:[%s5156 + $0x10] sm:$0xff]
        %v5160 = vld [vmem:[%s5156 + $0x18] sm:$0xff]
        %s5161 = scalar_lea.vmem %s4, 6
        %v5162 = vld [vmem:[%s5161] sm:$0x1]
        %v5164 = vlaneseq
        %v5165 = vshrl.u32 %v5164, 7
        %v5166 = vsub.s32 0, %v5165
        %v5167 = vrot.slane %v5162, %v5166
        %v5170 = vsel %vm797, %v5155, 0
        %5172 = vmatprep.subr.mxu0 0.0
        %5173 = vmatpush1.msra.mxu0 %v5157
        %5174 = vmatprep.subr.mxu0 0.0
        %5175 = vmatpush1.msra.mxu0 %v5158
        %5176 = vmatprep.subr.mxu0 0.0
        %5177 = vmatpush1.msra.mxu0 %v5159
        %5178 = vmatprep.subr.mxu0 0.0
        %5179 = vmatpush1.msra.mxu0 %v5160
        %5180 = vmatprep.subr.mxu0 0.0
        %5181 = vmatpush1.msra.mxu0 0.0
        %5182 = vmatprep.subr.mxu0 0.0
        %5183 = vmatpush1.msra.mxu0 0.0
        %5184 = vmatprep.subr.mxu0 0.0
        %5185 = vmatpush1.msra.mxu0 0.0
        %5186 = vmatprep.subr.mxu0 0.0
        %5187 = vmatpush1.msra.mxu0 0.0
        %5188 = vmatprep.subr.mxu0 0.0
        %5189 = vmatpush1.msra.mxu0 0.0
        %5190 = vmatprep.subr.mxu0 0.0
        %5191 = vmatpush1.msra.mxu0 0.0
        %5192 = vmatprep.subr.mxu0 0.0
        %5193 = vmatpush1.msra.mxu0 0.0
        %5194 = vmatprep.subr.mxu0 0.0
        %5195 = vmatpush1.msra.mxu0 0.0
        %5196 = vmatprep.subr.mxu0 0.0
        %5197 = vmatpush1.msra.mxu0 0.0
        %5198 = vmatprep.subr.mxu0 0.0
        %5199 = vmatpush1.msra.mxu0 0.0
        %5200 = vmatprep.subr.mxu0 0.0
        %5201 = vmatpush1.msra.mxu0 0.0
        %5202 = vmatprep.subr.mxu0 0.0
        %5203 = vmatpush1.msra.mxu0 0.0
        %5204 = vmatprep.subr.mxu0 0.0
        %5205 = vmatpush1.msra.mxu0 0.0
        %5206 = vmatprep.subr.mxu0 0.0
        %5207 = vmatpush1.msra.mxu0 0.0
        %5208 = vmatprep.subr.mxu0 0.0
        %5209 = vmatpush1.msra.mxu0 0.0
        %5210 = vmatprep.subr.mxu0 0.0
        %5211 = vmatpush1.msra.mxu0 0.0
        %5212 = vmatprep.subr.mxu0 0.0
        %5213 = vmatpush1.msra.mxu0 0.0
        %5214 = vmatprep.subr.mxu0 0.0
        %5215 = vmatpush1.msra.mxu0 0.0
        %5216 = vmatprep.subr.mxu0 0.0
        %5217 = vmatpush1.msra.mxu0 0.0
        %5218 = vmatprep.subr.mxu0 0.0
        %5219 = vmatpush1.msra.mxu0 0.0
        %5220 = vmatprep.subr.mxu0 0.0
        %5221 = vmatpush1.msra.mxu0 0.0
        %5222 = vmatprep.subr.mxu0 0.0
        %5223 = vmatpush1.msra.mxu0 0.0
        %5224 = vmatprep.subr.mxu0 0.0
        %5225 = vmatpush1.msra.mxu0 0.0
        %5226 = vmatprep.subr.mxu0 0.0
        %5227 = vmatpush1.msra.mxu0 0.0
        %5228 = vmatprep.subr.mxu0 0.0
        %5229 = vmatpush1.msra.mxu0 0.0
        %5230 = vmatprep.subr.mxu0 0.0
        %5231 = vmatpush1.msra.mxu0 0.0
        %5232 = vmatprep.subr.mxu0 0.0
        %5233 = vmatpush1.msra.mxu0 0.0
        %5234 = vmatprep.subr.mxu0 0.0
        %5235 = vmatpush1.msra.mxu0 0.0
        %5236 = vmatprep.mubr.f32.mxu0 0.0
        %5237 = vmatmul.mubr.f32.gmra.mrb[0].mxu0 %v5170
        %v5238 = vpop.f32.mrb[0].mxu0
        %v5239 = vadd.f32 %v5167, %v5238
        %v5240 = vpop.f32.mrb[0].mxu0
        %5241 = vdwg.mxu0
        %s5242 = scalar_lea.vmem [#allocation5], 192
        %v5243 = vld [vmem:[%s5242] sm:$0xff]
        %v5244 = vld [vmem:[%s5242 + $0x8] sm:$0xff]
        %v5245 = vld [vmem:[%s5242 + $0x10] sm:$0xff]
        %v5246 = vld [vmem:[%s5242 + $0x18] sm:$0xff]
        %s5247 = scalar_lea.vmem %s6, 6
        %v5248 = vld [vmem:[%s5247] sm:$0x1]
        %v5250 = vlaneseq
        %v5251 = vshrl.u32 %v5250, 7
        %v5252 = vsub.s32 0, %v5251
        %v5253 = vrot.slane %v5248, %v5252
        %v5256 = vsel %vm797, %v5239, 0
        %5258 = vmatprep.subr.mxu0 0.0
        %5259 = vmatpush1.msra.mxu0 %v5243
        %5260 = vmatprep.subr.mxu0 0.0
        %5261 = vmatpush1.msra.mxu0 %v5244
        %5262 = vmatprep.subr.mxu0 0.0
        %5263 = vmatpush1.msra.mxu0 %v5245
        %5264 = vmatprep.subr.mxu0 0.0
        %5265 = vmatpush1.msra.mxu0 %v5246
        %5266 = vmatprep.subr.mxu0 0.0
        %5267 = vmatpush1.msra.mxu0 0.0
        %5268 = vmatprep.subr.mxu0 0.0
        %5269 = vmatpush1.msra.mxu0 0.0
        %5270 = vmatprep.subr.mxu0 0.0
        %5271 = vmatpush1.msra.mxu0 0.0
        %5272 = vmatprep.subr.mxu0 0.0
        %5273 = vmatpush1.msra.mxu0 0.0
        %5274 = vmatprep.subr.mxu0 0.0
        %5275 = vmatpush1.msra.mxu0 0.0
        %5276 = vmatprep.subr.mxu0 0.0
        %5277 = vmatpush1.msra.mxu0 0.0
        %5278 = vmatprep.subr.mxu0 0.0
        %5279 = vmatpush1.msra.mxu0 0.0
        %5280 = vmatprep.subr.mxu0 0.0
        %5281 = vmatpush1.msra.mxu0 0.0
        %5282 = vmatprep.subr.mxu0 0.0
        %5283 = vmatpush1.msra.mxu0 0.0
        %5284 = vmatprep.subr.mxu0 0.0
        %5285 = vmatpush1.msra.mxu0 0.0
        %5286 = vmatprep.subr.mxu0 0.0
        %5287 = vmatpush1.msra.mxu0 0.0
        %5288 = vmatprep.subr.mxu0 0.0
        %5289 = vmatpush1.msra.mxu0 0.0
        %5290 = vmatprep.subr.mxu0 0.0
        %5291 = vmatpush1.msra.mxu0 0.0
        %5292 = vmatprep.subr.mxu0 0.0
        %5293 = vmatpush1.msra.mxu0 0.0
        %5294 = vmatprep.subr.mxu0 0.0
        %5295 = vmatpush1.msra.mxu0 0.0
        %5296 = vmatprep.subr.mxu0 0.0
        %5297 = vmatpush1.msra.mxu0 0.0
        %5298 = vmatprep.subr.mxu0 0.0
        %5299 = vmatpush1.msra.mxu0 0.0
        %5300 = vmatprep.subr.mxu0 0.0
        %5301 = vmatpush1.msra.mxu0 0.0
        %5302 = vmatprep.subr.mxu0 0.0
        %5303 = vmatpush1.msra.mxu0 0.0
        %5304 = vmatprep.subr.mxu0 0.0
        %5305 = vmatpush1.msra.mxu0 0.0
        %5306 = vmatprep.subr.mxu0 0.0
        %5307 = vmatpush1.msra.mxu0 0.0
        %5308 = vmatprep.subr.mxu0 0.0
        %5309 = vmatpush1.msra.mxu0 0.0
        %5310 = vmatprep.subr.mxu0 0.0
        %5311 = vmatpush1.msra.mxu0 0.0
        %5312 = vmatprep.subr.mxu0 0.0
        %5313 = vmatpush1.msra.mxu0 0.0
        %5314 = vmatprep.subr.mxu0 0.0
        %5315 = vmatpush1.msra.mxu0 0.0
        %5316 = vmatprep.subr.mxu0 0.0
        %5317 = vmatpush1.msra.mxu0 0.0
        %5318 = vmatprep.subr.mxu0 0.0
        %5319 = vmatpush1.msra.mxu0 0.0
        %5320 = vmatprep.subr.mxu0 0.0
        %5321 = vmatpush1.msra.mxu0 0.0
        %5322 = vmatprep.mubr.f32.mxu0 0.0
        %5323 = vmatmul.mubr.f32.gmra.mrb[0].mxu0 %v5256
        %v5324 = vpop.f32.mrb[0].mxu0
        %v5325 = vadd.f32 %v5253, %v5324
        %v5326 = vpop.f32.mrb[0].mxu0
        %5327 = vdwg.mxu0
        %v5328 = vtanh.pop %v5325
        %s5329 = scalar_lea.vmem [#allocation7], 192
        %v5330 = vld [vmem:[%s5329] sm:$0xff]
        %v5331 = vld [vmem:[%s5329 + $0x8] sm:$0xff]
        %v5332 = vld [vmem:[%s5329 + $0x10] sm:$0xff]
        %v5333 = vld [vmem:[%s5329 + $0x18] sm:$0xff]
        %s5334 = scalar_lea.vmem %s8, 6
        %v5335 = vld [vmem:[%s5334] sm:$0x1]
        %v5337 = vlaneseq
        %v5338 = vshrl.u32 %v5337, 7
        %v5339 = vsub.s32 0, %v5338
        %v5340 = vrot.slane %v5335, %v5339
        %v5343 = vsel %vm797, %v5328, 0
        %5345 = vmatprep.subr.mxu0 0.0
        %5346 = vmatpush1.msra.mxu0 %v5330
        %5347 = vmatprep.subr.mxu0 0.0
        %5348 = vmatpush1.msra.mxu0 %v5331
        %5349 = vmatprep.subr.mxu0 0.0
        %5350 = vmatpush1.msra.mxu0 %v5332
        %5351 = vmatprep.subr.mxu0 0.0
        %5352 = vmatpush1.msra.mxu0 %v5333
        %5353 = vmatprep.subr.mxu0 0.0
        %5354 = vmatpush1.msra.mxu0 0.0
        %5355 = vmatprep.subr.mxu0 0.0
        %5356 = vmatpush1.msra.mxu0 0.0
        %5357 = vmatprep.subr.mxu0 0.0
        %5358 = vmatpush1.msra.mxu0 0.0
        %5359 = vmatprep.subr.mxu0 0.0
        %5360 = vmatpush1.msra.mxu0 0.0
        %5361 = vmatprep.subr.mxu0 0.0
        %5362 = vmatpush1.msra.mxu0 0.0
        %5363 = vmatprep.subr.mxu0 0.0
        %5364 = vmatpush1.msra.mxu0 0.0
        %5365 = vmatprep.subr.mxu0 0.0
        %5366 = vmatpush1.msra.mxu0 0.0
        %5367 = vmatprep.subr.mxu0 0.0
        %5368 = vmatpush1.msra.mxu0 0.0
        %5369 = vmatprep.subr.mxu0 0.0
        %5370 = vmatpush1.msra.mxu0 0.0
        %5371 = vmatprep.subr.mxu0 0.0
        %5372 = vmatpush1.msra.mxu0 0.0
        %5373 = vmatprep.subr.mxu0 0.0
        %5374 = vmatpush1.msra.mxu0 0.0
        %5375 = vmatprep.subr.mxu0 0.0
        %5376 = vmatpush1.msra.mxu0 0.0
        %5377 = vmatprep.subr.mxu0 0.0
        %5378 = vmatpush1.msra.mxu0 0.0
        %5379 = vmatprep.subr.mxu0 0.0
        %5380 = vmatpush1.msra.mxu0 0.0
        %5381 = vmatprep.subr.mxu0 0.0
        %5382 = vmatpush1.msra.mxu0 0.0
        %5383 = vmatprep.subr.mxu0 0.0
        %5384 = vmatpush1.msra.mxu0 0.0
        %5385 = vmatprep.subr.mxu0 0.0
        %5386 = vmatpush1.msra.mxu0 0.0
        %5387 = vmatprep.subr.mxu0 0.0
        %5388 = vmatpush1.msra.mxu0 0.0
        %5389 = vmatprep.subr.mxu0 0.0
        %5390 = vmatpush1.msra.mxu0 0.0
        %5391 = vmatprep.subr.mxu0 0.0
        %5392 = vmatpush1.msra.mxu0 0.0
        %5393 = vmatprep.subr.mxu0 0.0
        %5394 = vmatpush1.msra.mxu0 0.0
        %5395 = vmatprep.subr.mxu0 0.0
        %5396 = vmatpush1.msra.mxu0 0.0
        %5397 = vmatprep.subr.mxu0 0.0
        %5398 = vmatpush1.msra.mxu0 0.0
        %5399 = vmatprep.subr.mxu0 0.0
        %5400 = vmatpush1.msra.mxu0 0.0
        %5401 = vmatprep.subr.mxu0 0.0
        %5402 = vmatpush1.msra.mxu0 0.0
        %5403 = vmatprep.subr.mxu0 0.0
        %5404 = vmatpush1.msra.mxu0 0.0
        %5405 = vmatprep.subr.mxu0 0.0
        %5406 = vmatpush1.msra.mxu0 0.0
        %5407 = vmatprep.subr.mxu0 0.0
        %5408 = vmatpush1.msra.mxu0 0.0
        %5409 = vmatprep.mubr.f32.mxu0 0.0
        %5410 = vmatmul.mubr.f32.gmra.mrb[0].mxu0 %v5343
        %v5411 = vpop.f32.mrb[0].mxu0
        %v5412 = vadd.f32 %v5340, %v5411
        %v5413 = vpop.f32.mrb[0].mxu0
        %5414 = vdwg.mxu0
        %5416 = vrot.lane.b32.xlu0 %v5412, 96
        %v5417 = vpop.permute.xlu0 %5416
        %v5418 = vsel %vm797, %v5412, 0
        %v5420 = vsel %vm797, %v5417, 0
        %5422 = vmatprep.subr.mxu0 0.0
        %5423 = vmatpush1.xpose.msra.mxu0 %v5420
        %5424 = vmatprep.subr.mxu0 0.0
        %5425 = vmatpush1.xpose.msra.mxu0 0.0
        %5426 = vmatprep.subr.mxu0 0.0
        %5427 = vmatpush1.xpose.msra.mxu0 0.0
        %5428 = vmatprep.subr.mxu0 0.0
        %5429 = vmatpush1.xpose.msra.mxu0 0.0
        %5430 = vmatprep.subr.mxu0 0.0
        %5431 = vmatpush1.xpose.msra.mxu0 0.0
        %5432 = vmatprep.subr.mxu0 0.0
        %5433 = vmatpush1.xpose.msra.mxu0 0.0
        %5434 = vmatprep.subr.mxu0 0.0
        %5435 = vmatpush1.xpose.msra.mxu0 0.0
        %5436 = vmatprep.subr.mxu0 0.0
        %5437 = vmatpush1.xpose.msra.mxu0 0.0
        %5438 = vmatprep.subr.mxu0 0.0
        %5439 = vmatpush1.xpose.msra.mxu0 0.0
        %5440 = vmatprep.subr.mxu0 0.0
        %5441 = vmatpush1.xpose.msra.mxu0 0.0
        %5442 = vmatprep.subr.mxu0 0.0
        %5443 = vmatpush1.xpose.msra.mxu0 0.0
        %5444 = vmatprep.subr.mxu0 0.0
        %5445 = vmatpush1.xpose.msra.mxu0 0.0
        %5446 = vmatprep.subr.mxu0 0.0
        %5447 = vmatpush1.xpose.msra.mxu0 0.0
        %5448 = vmatprep.subr.mxu0 0.0
        %5449 = vmatpush1.xpose.msra.mxu0 0.0
        %5450 = vmatprep.subr.mxu0 0.0
        %5451 = vmatpush1.xpose.msra.mxu0 0.0
        %5452 = vmatprep.subr.mxu0 0.0
        %5453 = vmatpush1.xpose.msra.mxu0 0.0
        %5454 = vmatprep.subr.mxu0 0.0
        %5455 = vmatpush1.xpose.msra.mxu0 0.0
        %5456 = vmatprep.subr.mxu0 0.0
        %5457 = vmatpush1.xpose.msra.mxu0 0.0
        %5458 = vmatprep.subr.mxu0 0.0
        %5459 = vmatpush1.xpose.msra.mxu0 0.0
        %5460 = vmatprep.subr.mxu0 0.0
        %5461 = vmatpush1.xpose.msra.mxu0 0.0
        %5462 = vmatprep.subr.mxu0 0.0
        %5463 = vmatpush1.xpose.msra.mxu0 0.0
        %5464 = vmatprep.subr.mxu0 0.0
        %5465 = vmatpush1.xpose.msra.mxu0 0.0
        %5466 = vmatprep.subr.mxu0 0.0
        %5467 = vmatpush1.xpose.msra.mxu0 0.0
        %5468 = vmatprep.subr.mxu0 0.0
        %5469 = vmatpush1.xpose.msra.mxu0 0.0
        %5470 = vmatprep.subr.mxu0 0.0
        %5471 = vmatpush1.xpose.msra.mxu0 0.0
        %5472 = vmatprep.subr.mxu0 0.0
        %5473 = vmatpush1.xpose.msra.mxu0 0.0
        %5474 = vmatprep.subr.mxu0 0.0
        %5475 = vmatpush1.xpose.msra.mxu0 0.0
        %5476 = vmatprep.subr.mxu0 0.0
        %5477 = vmatpush1.xpose.msra.mxu0 0.0
        %5478 = vmatprep.subr.mxu0 0.0
        %5479 = vmatpush1.xpose.msra.mxu0 0.0
        %5480 = vmatprep.subr.mxu0 0.0
        %5481 = vmatpush1.xpose.msra.mxu0 0.0
        %5482 = vmatprep.subr.mxu0 0.0
        %5483 = vmatpush1.xpose.msra.mxu0 0.0
        %5484 = vmatprep.subr.mxu0 0.0
        %5485 = vmatpush1.xpose.msra.mxu0 0.0
        %5486 = vmatprep.mubr.f32.mxu0 0.0
        %5487 = vmatmul.mubr.f32.gmra.mrb[0].mxu0 %v5418
        %v5488 = vpop.f32.mrb[0].mxu0
        %v5489 = vadd.f32 0.0, %v5488
        %v5490 = vpop.f32.mrb[0].mxu0
        %5491 = vdwg.mxu0
        %v5492 = vmul.f32 %v5489, 0.17677669
        %v5493 = vsel %vm1118, %v5492, -inf
        %5494 = vmax.xlane.f32.xlu0 %v5493
        %v5495 = vpop.xlane.xlu0 %5494
        %v5496 = vsub.f32 %v5492, %v5495
        %v5497 = vmul.f32 %v5496, 1.442695
        %v5498 = vpow.pop %v5497
        %v5499 = vsel %vm1118, %v5498, 0.0
        %5500 = vadd.xlane.f32.xlu0 %v5499
        %v5501 = vpop.xlane.xlu0 %5500
        %v5502 = vrcp.pop %v5501
        %v5503 = vmul.f32 %v5498, %v5502
        %5504 = vrot.lane.b32.xlu0 %v5412, 64
        %v5505 = vpop.permute.xlu0 %5504
        %v5508 = vsel %vm1118, %v5503, 0
        %5510 = vmatprep.subr.mxu0 0.0
        %5511 = vmatpush1.msra.mxu0 %v5505
        %5512 = vmatprep.subr.mxu0 0.0
        %5513 = vmatpush1.msra.mxu0 0.0
        %5514 = vmatprep.subr.mxu0 0.0
        %5515 = vmatpush1.msra.mxu0 0.0
        %5516 = vmatprep.subr.mxu0 0.0
        %5517 = vmatpush1.msra.mxu0 0.0
        %5518 = vmatprep.subr.mxu0 0.0
        %5519 = vmatpush1.msra.mxu0 0.0
        %5520 = vmatprep.subr.mxu0 0.0
        %5521 = vmatpush1.msra.mxu0 0.0
        %5522 = vmatprep.subr.mxu0 0.0
        %5523 = vmatpush1.msra.mxu0 0.0
        %5524 = vmatprep.subr.mxu0 0.0
        %5525 = vmatpush1.msra.mxu0 0.0
        %5526 = vmatprep.subr.mxu0 0.0
        %5527 = vmatpush1.msra.mxu0 0.0
        %5528 = vmatprep.subr.mxu0 0.0
        %5529 = vmatpush1.msra.mxu0 0.0
        %5530 = vmatprep.subr.mxu0 0.0
        %5531 = vmatpush1.msra.mxu0 0.0
        %5532 = vmatprep.subr.mxu0 0.0
        %5533 = vmatpush1.msra.mxu0 0.0
        %5534 = vmatprep.subr.mxu0 0.0
        %5535 = vmatpush1.msra.mxu0 0.0
        %5536 = vmatprep.subr.mxu0 0.0
        %5537 = vmatpush1.msra.mxu0 0.0
        %5538 = vmatprep.subr.mxu0 0.0
        %5539 = vmatpush1.msra.mxu0 0.0
        %5540 = vmatprep.subr.mxu0 0.0
        %5541 = vmatpush1.msra.mxu0 0.0
        %5542 = vmatprep.subr.mxu0 0.0
        %5543 = vmatpush1.msra.mxu0 0.0
        %5544 = vmatprep.subr.mxu0 0.0
        %5545 = vmatpush1.msra.mxu0 0.0
        %5546 = vmatprep.subr.mxu0 0.0
        %5547 = vmatpush1.msra.mxu0 0.0
        %5548 = vmatprep.subr.mxu0 0.0
        %5549 = vmatpush1.msra.mxu0 0.0
        %5550 = vmatprep.subr.mxu0 0.0
        %5551 = vmatpush1.msra.mxu0 0.0
        %5552 = vmatprep.subr.mxu0 0.0
        %5553 = vmatpush1.msra.mxu0 0.0
        %5554 = vmatprep.subr.mxu0 0.0
        %5555 = vmatpush1.msra.mxu0 0.0
        %5556 = vmatprep.subr.mxu0 0.0
        %5557 = vmatpush1.msra.mxu0 0.0
        %5558 = vmatprep.subr.mxu0 0.0
        %5559 = vmatpush1.msra.mxu0 0.0
        %5560 = vmatprep.subr.mxu0 0.0
        %5561 = vmatpush1.msra.mxu0 0.0
        %5562 = vmatprep.subr.mxu0 0.0
        %5563 = vmatpush1.msra.mxu0 0.0
        %5564 = vmatprep.subr.mxu0 0.0
        %5565 = vmatpush1.msra.mxu0 0.0
        %5566 = vmatprep.subr.mxu0 0.0
        %5567 = vmatpush1.msra.mxu0 0.0
        %5568 = vmatprep.subr.mxu0 0.0
        %5569 = vmatpush1.msra.mxu0 0.0
        %5570 = vmatprep.subr.mxu0 0.0
        %5571 = vmatpush1.msra.mxu0 0.0
        %5572 = vmatprep.subr.mxu0 0.0
        %5573 = vmatpush1.msra.mxu0 0.0
        %5574 = vmatprep.mubr.f32.mxu0 0.0
        %5575 = vmatmul.mubr.f32.gmra.mrb[0].mxu0 %v5508
        %v5576 = vpop.f32.mrb[0].mxu0
        %v5577 = vadd.f32 0.0, %v5576
        %v5578 = vpop.f32.mrb[0].mxu0
        %5579 = vdwg.mxu0
        %s5580 = scalar_lea.vmem [#allocation8], 192
        %v5581 = vld [vmem:[%s5580] sm:$0xff]
        %v5582 = vld [vmem:[%s5580 + $0x8] sm:$0xff]
        %v5583 = vld [vmem:[%s5580 + $0x10] sm:$0xff]
        %v5584 = vld [vmem:[%s5580 + $0x18] sm:$0xff]
        %s5585 = scalar_lea.vmem %s10, 6
        %v5586 = vld [vmem:[%s5585] sm:$0x1]
        %v5588 = vlaneseq
        %v5589 = vshrl.u32 %v5588, 7
        %v5590 = vsub.s32 0, %v5589
        %v5591 = vrot.slane %v5586, %v5590
        %v5594 = vsel %vm797, %v5577, 0
        %5596 = vmatprep.subr.mxu0 0.0
        %5597 = vmatpush1.msra.mxu0 %v5581
        %5598 = vmatprep.subr.mxu0 0.0
        %5599 = vmatpush1.msra.mxu0 %v5582
        %5600 = vmatprep.subr.mxu0 0.0
        %5601 = vmatpush1.msra.mxu0 %v5583
        %5602 = vmatprep.subr.mxu0 0.0
        %5603 = vmatpush1.msra.mxu0 %v5584
        %5604 = vmatprep.subr.mxu0 0.0
        %5605 = vmatpush1.msra.mxu0 0.0
        %5606 = vmatprep.subr.mxu0 0.0
        %5607 = vmatpush1.msra.mxu0 0.0
        %5608 = vmatprep.subr.mxu0 0.0
        %5609 = vmatpush1.msra.mxu0 0.0
        %5610 = vmatprep.subr.mxu0 0.0
        %5611 = vmatpush1.msra.mxu0 0.0
        %5612 = vmatprep.subr.mxu0 0.0
        %5613 = vmatpush1.msra.mxu0 0.0
        %5614 = vmatprep.subr.mxu0 0.0
        %5615 = vmatpush1.msra.mxu0 0.0
        %5616 = vmatprep.subr.mxu0 0.0
        %5617 = vmatpush1.msra.mxu0 0.0
        %5618 = vmatprep.subr.mxu0 0.0
        %5619 = vmatpush1.msra.mxu0 0.0
        %5620 = vmatprep.subr.mxu0 0.0
        %5621 = vmatpush1.msra.mxu0 0.0
        %5622 = vmatprep.subr.mxu0 0.0
        %5623 = vmatpush1.msra.mxu0 0.0
        %5624 = vmatprep.subr.mxu0 0.0
        %5625 = vmatpush1.msra.mxu0 0.0
        %5626 = vmatprep.subr.mxu0 0.0
        %5627 = vmatpush1.msra.mxu0 0.0
        %5628 = vmatprep.subr.mxu0 0.0
        %5629 = vmatpush1.msra.mxu0 0.0
        %5630 = vmatprep.subr.mxu0 0.0
        %5631 = vmatpush1.msra.mxu0 0.0
        %5632 = vmatprep.subr.mxu0 0.0
        %5633 = vmatpush1.msra.mxu0 0.0
        %5634 = vmatprep.subr.mxu0 0.0
        %5635 = vmatpush1.msra.mxu0 0.0
        %5636 = vmatprep.subr.mxu0 0.0
        %5637 = vmatpush1.msra.mxu0 0.0
        %5638 = vmatprep.subr.mxu0 0.0
        %5639 = vmatpush1.msra.mxu0 0.0
        %5640 = vmatprep.subr.mxu0 0.0
        %5641 = vmatpush1.msra.mxu0 0.0
        %5642 = vmatprep.subr.mxu0 0.0
        %5643 = vmatpush1.msra.mxu0 0.0
        %5644 = vmatprep.subr.mxu0 0.0
        %5645 = vmatpush1.msra.mxu0 0.0
        %5646 = vmatprep.subr.mxu0 0.0
        %5647 = vmatpush1.msra.mxu0 0.0
        %5648 = vmatprep.subr.mxu0 0.0
        %5649 = vmatpush1.msra.mxu0 0.0
        %5650 = vmatprep.subr.mxu0 0.0
        %5651 = vmatpush1.msra.mxu0 0.0
        %5652 = vmatprep.subr.mxu0 0.0
        %5653 = vmatpush1.msra.mxu0 0.0
        %5654 = vmatprep.subr.mxu0 0.0
        %5655 = vmatpush1.msra.mxu0 0.0
        %5656 = vmatprep.subr.mxu0 0.0
        %5657 = vmatpush1.msra.mxu0 0.0
        %5658 = vmatprep.subr.mxu0 0.0
        %5659 = vmatpush1.msra.mxu0 0.0
        %5660 = vmatprep.mubr.f32.mxu0 0.0
        %5661 = vmatmul.mubr.f32.gmra.mrb[0].mxu0 %v5594
        %v5662 = vpop.f32.mrb[0].mxu0
        %v5663 = vadd.f32 %v5591, %v5662
        %v5664 = vpop.f32.mrb[0].mxu0
        %5665 = vdwg.mxu0
        %s5666 = scalar_lea.vmem [#allocation10], 192
        %v5667 = vld [vmem:[%s5666] sm:$0xff]
        %v5668 = vld [vmem:[%s5666 + $0x8] sm:$0xff]
        %v5669 = vld [vmem:[%s5666 + $0x10] sm:$0xff]
        %v5670 = vld [vmem:[%s5666 + $0x18] sm:$0xff]
        %s5671 = scalar_lea.vmem [#allocation11], 192
        %v5672 = vld [vmem:[%s5671] sm:$0xff]
        %v5673 = vld [vmem:[%s5671 + $0x8] sm:$0xff]
        %v5674 = vld [vmem:[%s5671 + $0x10] sm:$0xff]
        %v5675 = vld [vmem:[%s5671 + $0x18] sm:$0xff]
        %v5677 = vsel %vm797, %v5663, 0
        %5679 = vmatprep.subr.mxu0 0.0
        %5680 = vmatpush1.msra.mxu0 %v5672
        %5681 = vmatprep.subr.mxu0 0.0
        %5682 = vmatpush1.msra.mxu0 %v5673
        %5683 = vmatprep.subr.mxu0 0.0
        %5684 = vmatpush1.msra.mxu0 %v5674
        %5685 = vmatprep.subr.mxu0 0.0
        %5686 = vmatpush1.msra.mxu0 %v5675
        %5687 = vmatprep.subr.mxu0 0.0
        %5688 = vmatpush1.msra.mxu0 0.0
        %5689 = vmatprep.subr.mxu0 0.0
        %5690 = vmatpush1.msra.mxu0 0.0
        %5691 = vmatprep.subr.mxu0 0.0
        %5692 = vmatpush1.msra.mxu0 0.0
        %5693 = vmatprep.subr.mxu0 0.0
        %5694 = vmatpush1.msra.mxu0 0.0
        %5695 = vmatprep.subr.mxu0 0.0
        %5696 = vmatpush1.msra.mxu0 0.0
        %5697 = vmatprep.subr.mxu0 0.0
        %5698 = vmatpush1.msra.mxu0 0.0
        %5699 = vmatprep.subr.mxu0 0.0
        %5700 = vmatpush1.msra.mxu0 0.0
        %5701 = vmatprep.subr.mxu0 0.0
        %5702 = vmatpush1.msra.mxu0 0.0
        %5703 = vmatprep.subr.mxu0 0.0
        %5704 = vmatpush1.msra.mxu0 0.0
        %5705 = vmatprep.subr.mxu0 0.0
        %5706 = vmatpush1.msra.mxu0 0.0
        %5707 = vmatprep.subr.mxu0 0.0
        %5708 = vmatpush1.msra.mxu0 0.0
        %5709 = vmatprep.subr.mxu0 0.0
        %5710 = vmatpush1.msra.mxu0 0.0
        %5711 = vmatprep.subr.mxu0 0.0
        %5712 = vmatpush1.msra.mxu0 0.0
        %5713 = vmatprep.subr.mxu0 0.0
        %5714 = vmatpush1.msra.mxu0 0.0
        %5715 = vmatprep.subr.mxu0 0.0
        %5716 = vmatpush1.msra.mxu0 0.0
        %5717 = vmatprep.subr.mxu0 0.0
        %5718 = vmatpush1.msra.mxu0 0.0
        %5719 = vmatprep.subr.mxu0 0.0
        %5720 = vmatpush1.msra.mxu0 0.0
        %5721 = vmatprep.subr.mxu0 0.0
        %5722 = vmatpush1.msra.mxu0 0.0
        %5723 = vmatprep.subr.mxu0 0.0
        %5724 = vmatpush1.msra.mxu0 0.0
        %5725 = vmatprep.subr.mxu0 0.0
        %5726 = vmatpush1.msra.mxu0 0.0
        %5727 = vmatprep.subr.mxu0 0.0
        %5728 = vmatpush1.msra.mxu0 0.0
        %5729 = vmatprep.subr.mxu0 0.0
        %5730 = vmatpush1.msra.mxu0 0.0
        %5731 = vmatprep.subr.mxu0 0.0
        %5732 = vmatpush1.msra.mxu0 0.0
        %5733 = vmatprep.subr.mxu0 0.0
        %5734 = vmatpush1.msra.mxu0 0.0
        %5735 = vmatprep.subr.mxu0 0.0
        %5736 = vmatpush1.msra.mxu0 0.0
        %5737 = vmatprep.subr.mxu0 0.0
        %5738 = vmatpush1.msra.mxu0 0.0
        %5739 = vmatprep.subr.mxu0 0.0
        %5740 = vmatpush1.msra.mxu0 0.0
        %5741 = vmatprep.subr.mxu0 0.0
        %5742 = vmatpush1.msra.mxu0 0.0
        %5743 = vmatprep.mubr.f32.mxu0 0.0
        %5744 = vmatmul.mubr.f32.gmra.mrb[0].mxu0 %v5677
        %v5745 = vpop.f32.mrb[0].mxu0
        %v5746 = vadd.f32 0.0, %v5745
        %v5747 = vpop.f32.mrb[0].mxu0
        %5748 = vdwg.mxu0
        %5749 = vmatprep.subr.mxu0 0.0
        %5750 = vmatpush1.msra.mxu0 %v5667
        %5751 = vmatprep.subr.mxu0 0.0
        %5752 = vmatpush1.msra.mxu0 %v5668
        %5753 = vmatprep.subr.mxu0 0.0
        %5754 = vmatpush1.msra.mxu0 %v5669
        %5755 = vmatprep.subr.mxu0 0.0
        %5756 = vmatpush1.msra.mxu0 %v5670
        %5757 = vmatprep.subr.mxu0 0.0
        %5758 = vmatpush1.msra.mxu0 0.0
        %5759 = vmatprep.subr.mxu0 0.0
        %5760 = vmatpush1.msra.mxu0 0.0
        %5761 = vmatprep.subr.mxu0 0.0
        %5762 = vmatpush1.msra.mxu0 0.0
        %5763 = vmatprep.subr.mxu0 0.0
        %5764 = vmatpush1.msra.mxu0 0.0
        %5765 = vmatprep.subr.mxu0 0.0
        %5766 = vmatpush1.msra.mxu0 0.0
        %5767 = vmatprep.subr.mxu0 0.0
        %5768 = vmatpush1.msra.mxu0 0.0
        %5769 = vmatprep.subr.mxu0 0.0
        %5770 = vmatpush1.msra.mxu0 0.0
        %5771 = vmatprep.subr.mxu0 0.0
        %5772 = vmatpush1.msra.mxu0 0.0
        %5773 = vmatprep.subr.mxu0 0.0
        %5774 = vmatpush1.msra.mxu0 0.0
        %5775 = vmatprep.subr.mxu0 0.0
        %5776 = vmatpush1.msra.mxu0 0.0
        %5777 = vmatprep.subr.mxu0 0.0
        %5778 = vmatpush1.msra.mxu0 0.0
        %5779 = vmatprep.subr.mxu0 0.0
        %5780 = vmatpush1.msra.mxu0 0.0
        %5781 = vmatprep.subr.mxu0 0.0
        %5782 = vmatpush1.msra.mxu0 0.0
        %5783 = vmatprep.subr.mxu0 0.0
        %5784 = vmatpush1.msra.mxu0 0.0
        %5785 = vmatprep.subr.mxu0 0.0
        %5786 = vmatpush1.msra.mxu0 0.0
        %5787 = vmatprep.subr.mxu0 0.0
        %5788 = vmatpush1.msra.mxu0 0.0
        %5789 = vmatprep.subr.mxu0 0.0
        %5790 = vmatpush1.msra.mxu0 0.0
        %5791 = vmatprep.subr.mxu0 0.0
        %5792 = vmatpush1.msra.mxu0 0.0
        %5793 = vmatprep.subr.mxu0 0.0
        %5794 = vmatpush1.msra.mxu0 0.0
        %5795 = vmatprep.subr.mxu0 0.0
        %5796 = vmatpush1.msra.mxu0 0.0
        %5797 = vmatprep.subr.mxu0 0.0
        %5798 = vmatpush1.msra.mxu0 0.0
        %5799 = vmatprep.subr.mxu0 0.0
        %5800 = vmatpush1.msra.mxu0 0.0
        %5801 = vmatprep.subr.mxu0 0.0
        %5802 = vmatpush1.msra.mxu0 0.0
        %5803 = vmatprep.subr.mxu0 0.0
        %5804 = vmatpush1.msra.mxu0 0.0
        %5805 = vmatprep.subr.mxu0 0.0
        %5806 = vmatpush1.msra.mxu0 0.0
        %5807 = vmatprep.subr.mxu0 0.0
        %5808 = vmatpush1.msra.mxu0 0.0
        %5809 = vmatprep.subr.mxu0 0.0
        %5810 = vmatpush1.msra.mxu0 0.0
        %5811 = vmatprep.subr.mxu0 0.0
        %5812 = vmatpush1.msra.mxu0 0.0
        %5813 = vmatprep.mubr.f32.mxu0 0.0
        %5814 = vmatmul.mubr.f32.gmra.mrb[0].mxu0 %v5256
        %v5815 = vpop.f32.mrb[0].mxu0
        %v5816 = vadd.f32 %v5746, %v5815
        %v5817 = vpop.f32.mrb[0].mxu0
        %5818 = vdwg.mxu0
        %s5819 = scalar_lea.vmem [#allocation13], 6
        %v5820 = vld [vmem:[%s5819] sm:$0x1]
        %v5822 = vlaneseq
        %v5823 = vshrl.u32 %v5822, 7
        %v5824 = vsub.s32 0, %v5823
        %v5825 = vrot.slane %v5820, %v5824
        %v5827 = vadd.f32 %v5816, %v5825
        %v5828 = vsel %vm797, %v5827, 0.0
        %5829 = vadd.xlane.f32.xlu0 %v5828
        %v5830 = vpop.xlane.xlu0 %5829
        %v5831 = vmul.f32 %v5830, %v1452
        %v5832 = vsub.f32 %v5827, %v5831
        %v5833 = vmul.f32 %v5832, %v5832
        %v5834 = vsel %vm797, %v5833, 0.0
        %5835 = vadd.xlane.f32.xlu0 %v5834
        %v5836 = vpop.xlane.xlu0 %5835
        %v5837 = vmul.f32 %v5836, %v1452
        %v5838 = vadd.f32 %v5837, 1e-05
        %v5839 = vrsqrt.pop %v5838
        %v5840 = vmul.f32 %v5832, %v5839
        %s5841 = scalar_lea.vmem [#allocation14], 6
        %v5842 = vld [vmem:[%s5841] sm:$0x1]
        %v5844 = vlaneseq
        %v5845 = vshrl.u32 %v5844, 7
        %v5846 = vsub.s32 0, %v5845
        %v5847 = vrot.slane %v5842, %v5846
        %v5849 = vmul.f32 %v5840, %v5847
        %s5850 = scalar_lea.vmem [#allocation16], 6
        %v5851 = vld [vmem:[%s5850] sm:$0x1]
        %v5853 = vlaneseq
        %v5854 = vshrl.u32 %v5853, 7
        %v5855 = vsub.s32 0, %v5854
        %v5856 = vrot.slane %v5851, %v5855
        %v5858 = vadd.f32 %v5849, %v5856
        %v5859 = vmul.f32 %v5858, 0.5
        %v5860 = vmul.f32 %v5858, 0.70710677
        %vm5861 = vcmp.ge.f32.partialorder %v5860, 0.0
        %v5862 = vsel %vm5861, 1.0, -1.0
        %v5863 = vand.u32 2147483647, %v5860
        %v5864 = vmul.f32 %v5863, 0.3275911
        %v5865 = vadd.f32 %v5864, 1.0
        %v5866 = vrcp.pop %v5865
        %v5867 = vmul.f32 1.0, %v5866
        %v5868 = vmul.f32 %v5867, 1.0614054
        %v5869 = vadd.f32 %v5868, -1.4531521
        %v5870 = vmul.f32 %v5867, %v5869
        %v5871 = vadd.f32 %v5870, 1.4214138
        %v5872 = vmul.f32 %v5867, %v5871
        %v5873 = vadd.f32 %v5872, -0.28449672
        %v5874 = vmul.f32 %v5867, %v5873
        %v5875 = vadd.f32 %v5874, 0.2548296
        %v5876 = vmul.f32 %v5867, %v5875
        %v5877 = vsub.f32 0.0, %v5863
        %v5878 = vmul.f32 %v5877, %v5863
        %v5879 = vmul.f32 %v5878, 1.442695
        %v5880 = vpow.pop %v5879
        %v5881 = vmul.f32 %v5876, %v5880
        %v5882 = vsub.f32 1.0, %v5881
        %v5883 = vmul.f32 %v5862, %v5882
        %v5884 = vadd.f32 %v5883, 1.0
        %v5885 = vmul.f32 %v5859, %v5884
        %s5886 = scalar_lea.vmem [#allocation2], 224
        %v5887 = vld [vmem:[%s5886] sm:$0xff]
        %v5888 = vld [vmem:[%s5886 + $0x8] sm:$0xff]
        %v5889 = vld [vmem:[%s5886 + $0x10] sm:$0xff]
        %v5890 = vld [vmem:[%s5886 + $0x18] sm:$0xff]
        %s5891 = scalar_lea.vmem %s4, 7
        %v5892 = vld [vmem:[%s5891] sm:$0x1]
        %v5894 = vlaneseq
        %v5895 = vshrl.u32 %v5894, 7
        %v5896 = vsub.s32 0, %v5895
        %v5897 = vrot.slane %v5892, %v5896
        %v5900 = vsel %vm797, %v5885, 0
        %5902 = vmatprep.subr.mxu0 0.0
        %5903 = vmatpush1.msra.mxu0 %v5887
        %5904 = vmatprep.subr.mxu0 0.0
        %5905 = vmatpush1.msra.mxu0 %v5888
        %5906 = vmatprep.subr.mxu0 0.0
        %5907 = vmatpush1.msra.mxu0 %v5889
        %5908 = vmatprep.subr.mxu0 0.0
        %5909 = vmatpush1.msra.mxu0 %v5890
        %5910 = vmatprep.subr.mxu0 0.0
        %5911 = vmatpush1.msra.mxu0 0.0
        %5912 = vmatprep.subr.mxu0 0.0
        %5913 = vmatpush1.msra.mxu0 0.0
        %5914 = vmatprep.subr.mxu0 0.0
        %5915 = vmatpush1.msra.mxu0 0.0
        %5916 = vmatprep.subr.mxu0 0.0
        %5917 = vmatpush1.msra.mxu0 0.0
        %5918 = vmatprep.subr.mxu0 0.0
        %5919 = vmatpush1.msra.mxu0 0.0
        %5920 = vmatprep.subr.mxu0 0.0
        %5921 = vmatpush1.msra.mxu0 0.0
        %5922 = vmatprep.subr.mxu0 0.0
        %5923 = vmatpush1.msra.mxu0 0.0
        %5924 = vmatprep.subr.mxu0 0.0
        %5925 = vmatpush1.msra.mxu0 0.0
        %5926 = vmatprep.subr.mxu0 0.0
        %5927 = vmatpush1.msra.mxu0 0.0
        %5928 = vmatprep.subr.mxu0 0.0
        %5929 = vmatpush1.msra.mxu0 0.0
        %5930 = vmatprep.subr.mxu0 0.0
        %5931 = vmatpush1.msra.mxu0 0.0
        %5932 = vmatprep.subr.mxu0 0.0
        %5933 = vmatpush1.msra.mxu0 0.0
        %5934 = vmatprep.subr.mxu0 0.0
        %5935 = vmatpush1.msra.mxu0 0.0
        %5936 = vmatprep.subr.mxu0 0.0
        %5937 = vmatpush1.msra.mxu0 0.0
        %5938 = vmatprep.subr.mxu0 0.0
        %5939 = vmatpush1.msra.mxu0 0.0
        %5940 = vmatprep.subr.mxu0 0.0
        %5941 = vmatpush1.msra.mxu0 0.0
        %5942 = vmatprep.subr.mxu0 0.0
        %5943 = vmatpush1.msra.mxu0 0.0
        %5944 = vmatprep.subr.mxu0 0.0
        %5945 = vmatpush1.msra.mxu0 0.0
        %5946 = vmatprep.subr.mxu0 0.0
        %5947 = vmatpush1.msra.mxu0 0.0
        %5948 = vmatprep.subr.mxu0 0.0
        %5949 = vmatpush1.msra.mxu0 0.0
        %5950 = vmatprep.subr.mxu0 0.0
        %5951 = vmatpush1.msra.mxu0 0.0
        %5952 = vmatprep.subr.mxu0 0.0
        %5953 = vmatpush1.msra.mxu0 0.0
        %5954 = vmatprep.subr.mxu0 0.0
        %5955 = vmatpush1.msra.mxu0 0.0
        %5956 = vmatprep.subr.mxu0 0.0
        %5957 = vmatpush1.msra.mxu0 0.0
        %5958 = vmatprep.subr.mxu0 0.0
        %5959 = vmatpush1.msra.mxu0 0.0
        %5960 = vmatprep.subr.mxu0 0.0
        %5961 = vmatpush1.msra.mxu0 0.0
        %5962 = vmatprep.subr.mxu0 0.0
        %5963 = vmatpush1.msra.mxu0 0.0
        %5964 = vmatprep.subr.mxu0 0.0
        %5965 = vmatpush1.msra.mxu0 0.0
        %5966 = vmatprep.mubr.f32.mxu0 0.0
        %5967 = vmatmul.mubr.f32.gmra.mrb[0].mxu0 %v5900
        %v5968 = vpop.f32.mrb[0].mxu0
        %v5969 = vadd.f32 %v5897, %v5968
        %v5970 = vpop.f32.mrb[0].mxu0
        %5971 = vdwg.mxu0
        %s5972 = scalar_lea.vmem [#allocation5], 224
        %v5973 = vld [vmem:[%s5972] sm:$0xff]
        %v5974 = vld [vmem:[%s5972 + $0x8] sm:$0xff]
        %v5975 = vld [vmem:[%s5972 + $0x10] sm:$0xff]
        %v5976 = vld [vmem:[%s5972 + $0x18] sm:$0xff]
        %s5977 = scalar_lea.vmem %s6, 7
        %v5978 = vld [vmem:[%s5977] sm:$0x1]
        %v5980 = vlaneseq
        %v5981 = vshrl.u32 %v5980, 7
        %v5982 = vsub.s32 0, %v5981
        %v5983 = vrot.slane %v5978, %v5982
        %v5986 = vsel %vm797, %v5969, 0
        %5988 = vmatprep.subr.mxu0 0.0
        %5989 = vmatpush1.msra.mxu0 %v5973
        %5990 = vmatprep.subr.mxu0 0.0
        %5991 = vmatpush1.msra.mxu0 %v5974
        %5992 = vmatprep.subr.mxu0 0.0
        %5993 = vmatpush1.msra.mxu0 %v5975
        %5994 = vmatprep.subr.mxu0 0.0
        %5995 = vmatpush1.msra.mxu0 %v5976
        %5996 = vmatprep.subr.mxu0 0.0
        %5997 = vmatpush1.msra.mxu0 0.0
        %5998 = vmatprep.subr.mxu0 0.0
        %5999 = vmatpush1.msra.mxu0 0.0
        %6000 = vmatprep.subr.mxu0 0.0
        %6001 = vmatpush1.msra.mxu0 0.0
        %6002 = vmatprep.subr.mxu0 0.0
        %6003 = vmatpush1.msra.mxu0 0.0
        %6004 = vmatprep.subr.mxu0 0.0
        %6005 = vmatpush1.msra.mxu0 0.0
        %6006 = vmatprep.subr.mxu0 0.0
        %6007 = vmatpush1.msra.mxu0 0.0
        %6008 = vmatprep.subr.mxu0 0.0
        %6009 = vmatpush1.msra.mxu0 0.0
        %6010 = vmatprep.subr.mxu0 0.0
        %6011 = vmatpush1.msra.mxu0 0.0
        %6012 = vmatprep.subr.mxu0 0.0
        %6013 = vmatpush1.msra.mxu0 0.0
        %6014 = vmatprep.subr.mxu0 0.0
        %6015 = vmatpush1.msra.mxu0 0.0
        %6016 = vmatprep.subr.mxu0 0.0
        %6017 = vmatpush1.msra.mxu0 0.0
        %6018 = vmatprep.subr.mxu0 0.0
        %6019 = vmatpush1.msra.mxu0 0.0
        %6020 = vmatprep.subr.mxu0 0.0
        %6021 = vmatpush1.msra.mxu0 0.0
        %6022 = vmatprep.subr.mxu0 0.0
        %6023 = vmatpush1.msra.mxu0 0.0
        %6024 = vmatprep.subr.mxu0 0.0
        %6025 = vmatpush1.msra.mxu0 0.0
        %6026 = vmatprep.subr.mxu0 0.0
        %6027 = vmatpush1.msra.mxu0 0.0
        %6028 = vmatprep.subr.mxu0 0.0
        %6029 = vmatpush1.msra.mxu0 0.0
        %6030 = vmatprep.subr.mxu0 0.0
        %6031 = vmatpush1.msra.mxu0 0.0
        %6032 = vmatprep.subr.mxu0 0.0
        %6033 = vmatpush1.msra.mxu0 0.0
        %6034 = vmatprep.subr.mxu0 0.0
        %6035 = vmatpush1.msra.mxu0 0.0
        %6036 = vmatprep.subr.mxu0 0.0
        %6037 = vmatpush1.msra.mxu0 0.0
        %6038 = vmatprep.subr.mxu0 0.0
        %6039 = vmatpush1.msra.mxu0 0.0
        %6040 = vmatprep.subr.mxu0 0.0
        %6041 = vmatpush1.msra.mxu0 0.0
        %6042 = vmatprep.subr.mxu0 0.0
        %6043 = vmatpush1.msra.mxu0 0.0
        %6044 = vmatprep.subr.mxu0 0.0
        %6045 = vmatpush1.msra.mxu0 0.0
        %6046 = vmatprep.subr.mxu0 0.0
        %6047 = vmatpush1.msra.mxu0 0.0
        %6048 = vmatprep.subr.mxu0 0.0
        %6049 = vmatpush1.msra.mxu0 0.0
        %6050 = vmatprep.subr.mxu0 0.0
        %6051 = vmatpush1.msra.mxu0 0.0
        %6052 = vmatprep.mubr.f32.mxu0 0.0
        %6053 = vmatmul.mubr.f32.gmra.mrb[0].mxu0 %v5986
        %v6054 = vpop.f32.mrb[0].mxu0
        %v6055 = vadd.f32 %v5983, %v6054
        %v6056 = vpop.f32.mrb[0].mxu0
        %6057 = vdwg.mxu0
        %v6058 = vtanh.pop %v6055
        %s6059 = scalar_lea.vmem [#allocation7], 224
        %v6060 = vld [vmem:[%s6059] sm:$0xff]
        %v6061 = vld [vmem:[%s6059 + $0x8] sm:$0xff]
        %v6062 = vld [vmem:[%s6059 + $0x10] sm:$0xff]
        %v6063 = vld [vmem:[%s6059 + $0x18] sm:$0xff]
        %s6064 = scalar_lea.vmem %s8, 7
        %v6065 = vld [vmem:[%s6064] sm:$0x1]
        %v6067 = vlaneseq
        %v6068 = vshrl.u32 %v6067, 7
        %v6069 = vsub.s32 0, %v6068
        %v6070 = vrot.slane %v6065, %v6069
        %v6073 = vsel %vm797, %v6058, 0
        %6075 = vmatprep.subr.mxu0 0.0
        %6076 = vmatpush1.msra.mxu0 %v6060
        %6077 = vmatprep.subr.mxu0 0.0
        %6078 = vmatpush1.msra.mxu0 %v6061
        %6079 = vmatprep.subr.mxu0 0.0
        %6080 = vmatpush1.msra.mxu0 %v6062
        %6081 = vmatprep.subr.mxu0 0.0
        %6082 = vmatpush1.msra.mxu0 %v6063
        %6083 = vmatprep.subr.mxu0 0.0
        %6084 = vmatpush1.msra.mxu0 0.0
        %6085 = vmatprep.subr.mxu0 0.0
        %6086 = vmatpush1.msra.mxu0 0.0
        %6087 = vmatprep.subr.mxu0 0.0
        %6088 = vmatpush1.msra.mxu0 0.0
        %6089 = vmatprep.subr.mxu0 0.0
        %6090 = vmatpush1.msra.mxu0 0.0
        %6091 = vmatprep.subr.mxu0 0.0
        %6092 = vmatpush1.msra.mxu0 0.0
        %6093 = vmatprep.subr.mxu0 0.0
        %6094 = vmatpush1.msra.mxu0 0.0
        %6095 = vmatprep.subr.mxu0 0.0
        %6096 = vmatpush1.msra.mxu0 0.0
        %6097 = vmatprep.subr.mxu0 0.0
        %6098 = vmatpush1.msra.mxu0 0.0
        %6099 = vmatprep.subr.mxu0 0.0
        %6100 = vmatpush1.msra.mxu0 0.0
        %6101 = vmatprep.subr.mxu0 0.0
        %6102 = vmatpush1.msra.mxu0 0.0
        %6103 = vmatprep.subr.mxu0 0.0
        %6104 = vmatpush1.msra.mxu0 0.0
        %6105 = vmatprep.subr.mxu0 0.0
        %6106 = vmatpush1.msra.mxu0 0.0
        %6107 = vmatprep.subr.mxu0 0.0
        %6108 = vmatpush1.msra.mxu0 0.0
        %6109 = vmatprep.subr.mxu0 0.0
        %6110 = vmatpush1.msra.mxu0 0.0
        %6111 = vmatprep.subr.mxu0 0.0
        %6112 = vmatpush1.msra.mxu0 0.0
        %6113 = vmatprep.subr.mxu0 0.0
        %6114 = vmatpush1.msra.mxu0 0.0
        %6115 = vmatprep.subr.mxu0 0.0
        %6116 = vmatpush1.msra.mxu0 0.0
        %6117 = vmatprep.subr.mxu0 0.0
        %6118 = vmatpush1.msra.mxu0 0.0
        %6119 = vmatprep.subr.mxu0 0.0
        %6120 = vmatpush1.msra.mxu0 0.0
        %6121 = vmatprep.subr.mxu0 0.0
        %6122 = vmatpush1.msra.mxu0 0.0
        %6123 = vmatprep.subr.mxu0 0.0
        %6124 = vmatpush1.msra.mxu0 0.0
        %6125 = vmatprep.subr.mxu0 0.0
        %6126 = vmatpush1.msra.mxu0 0.0
        %6127 = vmatprep.subr.mxu0 0.0
        %6128 = vmatpush1.msra.mxu0 0.0
        %6129 = vmatprep.subr.mxu0 0.0
        %6130 = vmatpush1.msra.mxu0 0.0
        %6131 = vmatprep.subr.mxu0 0.0
        %6132 = vmatpush1.msra.mxu0 0.0
        %6133 = vmatprep.subr.mxu0 0.0
        %6134 = vmatpush1.msra.mxu0 0.0
        %6135 = vmatprep.subr.mxu0 0.0
        %6136 = vmatpush1.msra.mxu0 0.0
        %6137 = vmatprep.subr.mxu0 0.0
        %6138 = vmatpush1.msra.mxu0 0.0
        %6139 = vmatprep.mubr.f32.mxu0 0.0
        %6140 = vmatmul.mubr.f32.gmra.mrb[0].mxu0 %v6073
        %v6141 = vpop.f32.mrb[0].mxu0
        %v6142 = vadd.f32 %v6070, %v6141
        %v6143 = vpop.f32.mrb[0].mxu0
        %6144 = vdwg.mxu0
        %6146 = vrot.lane.b32.xlu0 %v6142, 96
        %v6147 = vpop.permute.xlu0 %6146
        %v6148 = vsel %vm797, %v6142, 0
        %v6150 = vsel %vm797, %v6147, 0
        %6152 = vmatprep.subr.mxu0 0.0
        %6153 = vmatpush1.xpose.msra.mxu0 %v6150
        %6154 = vmatprep.subr.mxu0 0.0
        %6155 = vmatpush1.xpose.msra.mxu0 0.0
        %6156 = vmatprep.subr.mxu0 0.0
        %6157 = vmatpush1.xpose.msra.mxu0 0.0
        %6158 = vmatprep.subr.mxu0 0.0
        %6159 = vmatpush1.xpose.msra.mxu0 0.0
        %6160 = vmatprep.subr.mxu0 0.0
        %6161 = vmatpush1.xpose.msra.mxu0 0.0
        %6162 = vmatprep.subr.mxu0 0.0
        %6163 = vmatpush1.xpose.msra.mxu0 0.0
        %6164 = vmatprep.subr.mxu0 0.0
        %6165 = vmatpush1.xpose.msra.mxu0 0.0
        %6166 = vmatprep.subr.mxu0 0.0
        %6167 = vmatpush1.xpose.msra.mxu0 0.0
        %6168 = vmatprep.subr.mxu0 0.0
        %6169 = vmatpush1.xpose.msra.mxu0 0.0
        %6170 = vmatprep.subr.mxu0 0.0
        %6171 = vmatpush1.xpose.msra.mxu0 0.0
        %6172 = vmatprep.subr.mxu0 0.0
        %6173 = vmatpush1.xpose.msra.mxu0 0.0
        %6174 = vmatprep.subr.mxu0 0.0
        %6175 = vmatpush1.xpose.msra.mxu0 0.0
        %6176 = vmatprep.subr.mxu0 0.0
        %6177 = vmatpush1.xpose.msra.mxu0 0.0
        %6178 = vmatprep.subr.mxu0 0.0
        %6179 = vmatpush1.xpose.msra.mxu0 0.0
        %6180 = vmatprep.subr.mxu0 0.0
        %6181 = vmatpush1.xpose.msra.mxu0 0.0
        %6182 = vmatprep.subr.mxu0 0.0
        %6183 = vmatpush1.xpose.msra.mxu0 0.0
        %6184 = vmatprep.subr.mxu0 0.0
        %6185 = vmatpush1.xpose.msra.mxu0 0.0
        %6186 = vmatprep.subr.mxu0 0.0
        %6187 = vmatpush1.xpose.msra.mxu0 0.0
        %6188 = vmatprep.subr.mxu0 0.0
        %6189 = vmatpush1.xpose.msra.mxu0 0.0
        %6190 = vmatprep.subr.mxu0 0.0
        %6191 = vmatpush1.xpose.msra.mxu0 0.0
        %6192 = vmatprep.subr.mxu0 0.0
        %6193 = vmatpush1.xpose.msra.mxu0 0.0
        %6194 = vmatprep.subr.mxu0 0.0
        %6195 = vmatpush1.xpose.msra.mxu0 0.0
        %6196 = vmatprep.subr.mxu0 0.0
        %6197 = vmatpush1.xpose.msra.mxu0 0.0
        %6198 = vmatprep.subr.mxu0 0.0
        %6199 = vmatpush1.xpose.msra.mxu0 0.0
        %6200 = vmatprep.subr.mxu0 0.0
        %6201 = vmatpush1.xpose.msra.mxu0 0.0
        %6202 = vmatprep.subr.mxu0 0.0
        %6203 = vmatpush1.xpose.msra.mxu0 0.0
        %6204 = vmatprep.subr.mxu0 0.0
        %6205 = vmatpush1.xpose.msra.mxu0 0.0
        %6206 = vmatprep.subr.mxu0 0.0
        %6207 = vmatpush1.xpose.msra.mxu0 0.0
        %6208 = vmatprep.subr.mxu0 0.0
        %6209 = vmatpush1.xpose.msra.mxu0 0.0
        %6210 = vmatprep.subr.mxu0 0.0
        %6211 = vmatpush1.xpose.msra.mxu0 0.0
        %6212 = vmatprep.subr.mxu0 0.0
        %6213 = vmatpush1.xpose.msra.mxu0 0.0
        %6214 = vmatprep.subr.mxu0 0.0
        %6215 = vmatpush1.xpose.msra.mxu0 0.0
        %6216 = vmatprep.mubr.f32.mxu0 0.0
        %6217 = vmatmul.mubr.f32.gmra.mrb[0].mxu0 %v6148
        %v6218 = vpop.f32.mrb[0].mxu0
        %v6219 = vadd.f32 0.0, %v6218
        %v6220 = vpop.f32.mrb[0].mxu0
        %6221 = vdwg.mxu0
        %v6222 = vmul.f32 %v6219, 0.17677669
        %v6223 = vsel %vm1118, %v6222, -inf
        %6224 = vmax.xlane.f32.xlu0 %v6223
        %v6225 = vpop.xlane.xlu0 %6224
        %v6226 = vsub.f32 %v6222, %v6225
        %v6227 = vmul.f32 %v6226, 1.442695
        %v6228 = vpow.pop %v6227
        %v6229 = vsel %vm1118, %v6228, 0.0
        %6230 = vadd.xlane.f32.xlu0 %v6229
        %v6231 = vpop.xlane.xlu0 %6230
        %v6232 = vrcp.pop %v6231
        %v6233 = vmul.f32 %v6228, %v6232
        %6234 = vrot.lane.b32.xlu0 %v6142, 64
        %v6235 = vpop.permute.xlu0 %6234
        %v6238 = vsel %vm1118, %v6233, 0
        %6240 = vmatprep.subr.mxu0 0.0
        %6241 = vmatpush1.msra.mxu0 %v6235
        %6242 = vmatprep.subr.mxu0 0.0
        %6243 = vmatpush1.msra.mxu0 0.0
        %6244 = vmatprep.subr.mxu0 0.0
        %6245 = vmatpush1.msra.mxu0 0.0
        %6246 = vmatprep.subr.mxu0 0.0
        %6247 = vmatpush1.msra.mxu0 0.0
        %6248 = vmatprep.subr.mxu0 0.0
        %6249 = vmatpush1.msra.mxu0 0.0
        %6250 = vmatprep.subr.mxu0 0.0
        %6251 = vmatpush1.msra.mxu0 0.0
        %6252 = vmatprep.subr.mxu0 0.0
        %6253 = vmatpush1.msra.mxu0 0.0
        %6254 = vmatprep.subr.mxu0 0.0
        %6255 = vmatpush1.msra.mxu0 0.0
        %6256 = vmatprep.subr.mxu0 0.0
        %6257 = vmatpush1.msra.mxu0 0.0
        %6258 = vmatprep.subr.mxu0 0.0
        %6259 = vmatpush1.msra.mxu0 0.0
        %6260 = vmatprep.subr.mxu0 0.0
        %6261 = vmatpush1.msra.mxu0 0.0
        %6262 = vmatprep.subr.mxu0 0.0
        %6263 = vmatpush1.msra.mxu0 0.0
        %6264 = vmatprep.subr.mxu0 0.0
        %6265 = vmatpush1.msra.mxu0 0.0
        %6266 = vmatprep.subr.mxu0 0.0
        %6267 = vmatpush1.msra.mxu0 0.0
        %6268 = vmatprep.subr.mxu0 0.0
        %6269 = vmatpush1.msra.mxu0 0.0
        %6270 = vmatprep.subr.mxu0 0.0
        %6271 = vmatpush1.msra.mxu0 0.0
        %6272 = vmatprep.subr.mxu0 0.0
        %6273 = vmatpush1.msra.mxu0 0.0
        %6274 = vmatprep.subr.mxu0 0.0
        %6275 = vmatpush1.msra.mxu0 0.0
        %6276 = vmatprep.subr.mxu0 0.0
        %6277 = vmatpush1.msra.mxu0 0.0
        %6278 = vmatprep.subr.mxu0 0.0
        %6279 = vmatpush1.msra.mxu0 0.0
        %6280 = vmatprep.subr.mxu0 0.0
        %6281 = vmatpush1.msra.mxu0 0.0
        %6282 = vmatprep.subr.mxu0 0.0
        %6283 = vmatpush1.msra.mxu0 0.0
        %6284 = vmatprep.subr.mxu0 0.0
        %6285 = vmatpush1.msra.mxu0 0.0
        %6286 = vmatprep.subr.mxu0 0.0
        %6287 = vmatpush1.msra.mxu0 0.0
        %6288 = vmatprep.subr.mxu0 0.0
        %6289 = vmatpush1.msra.mxu0 0.0
        %6290 = vmatprep.subr.mxu0 0.0
        %6291 = vmatpush1.msra.mxu0 0.0
        %6292 = vmatprep.subr.mxu0 0.0
        %6293 = vmatpush1.msra.mxu0 0.0
        %6294 = vmatprep.subr.mxu0 0.0
        %6295 = vmatpush1.msra.mxu0 0.0
        %6296 = vmatprep.subr.mxu0 0.0
        %6297 = vmatpush1.msra.mxu0 0.0
        %6298 = vmatprep.subr.mxu0 0.0
        %6299 = vmatpush1.msra.mxu0 0.0
        %6300 = vmatprep.subr.mxu0 0.0
        %6301 = vmatpush1.msra.mxu0 0.0
        %6302 = vmatprep.subr.mxu0 0.0
        %6303 = vmatpush1.msra.mxu0 0.0
        %6304 = vmatprep.mubr.f32.mxu0 0.0
        %6305 = vmatmul.mubr.f32.gmra.mrb[0].mxu0 %v6238
        %v6306 = vpop.f32.mrb[0].mxu0
        %v6307 = vadd.f32 0.0, %v6306
        %v6308 = vpop.f32.mrb[0].mxu0
        %6309 = vdwg.mxu0
        %s6310 = scalar_lea.vmem [#allocation8], 224
        %v6311 = vld [vmem:[%s6310] sm:$0xff]
        %v6312 = vld [vmem:[%s6310 + $0x8] sm:$0xff]
        %v6313 = vld [vmem:[%s6310 + $0x10] sm:$0xff]
        %v6314 = vld [vmem:[%s6310 + $0x18] sm:$0xff]
        %s6315 = scalar_lea.vmem %s10, 7
        %v6316 = vld [vmem:[%s6315] sm:$0x1]
        %v6318 = vlaneseq
        %v6319 = vshrl.u32 %v6318, 7
        %v6320 = vsub.s32 0, %v6319
        %v6321 = vrot.slane %v6316, %v6320
        %v6324 = vsel %vm797, %v6307, 0
        %6326 = vmatprep.subr.mxu0 0.0
        %6327 = vmatpush1.msra.mxu0 %v6311
        %6328 = vmatprep.subr.mxu0 0.0
        %6329 = vmatpush1.msra.mxu0 %v6312
        %6330 = vmatprep.subr.mxu0 0.0
        %6331 = vmatpush1.msra.mxu0 %v6313
        %6332 = vmatprep.subr.mxu0 0.0
        %6333 = vmatpush1.msra.mxu0 %v6314
        %6334 = vmatprep.subr.mxu0 0.0
        %6335 = vmatpush1.msra.mxu0 0.0
        %6336 = vmatprep.subr.mxu0 0.0
        %6337 = vmatpush1.msra.mxu0 0.0
        %6338 = vmatprep.subr.mxu0 0.0
        %6339 = vmatpush1.msra.mxu0 0.0
        %6340 = vmatprep.subr.mxu0 0.0
        %6341 = vmatpush1.msra.mxu0 0.0
        %6342 = vmatprep.subr.mxu0 0.0
        %6343 = vmatpush1.msra.mxu0 0.0
        %6344 = vmatprep.subr.mxu0 0.0
        %6345 = vmatpush1.msra.mxu0 0.0
        %6346 = vmatprep.subr.mxu0 0.0
        %6347 = vmatpush1.msra.mxu0 0.0
        %6348 = vmatprep.subr.mxu0 0.0
        %6349 = vmatpush1.msra.mxu0 0.0
        %6350 = vmatprep.subr.mxu0 0.0
        %6351 = vmatpush1.msra.mxu0 0.0
        %6352 = vmatprep.subr.mxu0 0.0
        %6353 = vmatpush1.msra.mxu0 0.0
        %6354 = vmatprep.subr.mxu0 0.0
        %6355 = vmatpush1.msra.mxu0 0.0
        %6356 = vmatprep.subr.mxu0 0.0
        %6357 = vmatpush1.msra.mxu0 0.0
        %6358 = vmatprep.subr.mxu0 0.0
        %6359 = vmatpush1.msra.mxu0 0.0
        %6360 = vmatprep.subr.mxu0 0.0
        %6361 = vmatpush1.msra.mxu0 0.0
        %6362 = vmatprep.subr.mxu0 0.0
        %6363 = vmatpush1.msra.mxu0 0.0
        %6364 = vmatprep.subr.mxu0 0.0
        %6365 = vmatpush1.msra.mxu0 0.0
        %6366 = vmatprep.subr.mxu0 0.0
        %6367 = vmatpush1.msra.mxu0 0.0
        %6368 = vmatprep.subr.mxu0 0.0
        %6369 = vmatpush1.msra.mxu0 0.0
        %6370 = vmatprep.subr.mxu0 0.0
        %6371 = vmatpush1.msra.mxu0 0.0
        %6372 = vmatprep.subr.mxu0 0.0
        %6373 = vmatpush1.msra.mxu0 0.0
        %6374 = vmatprep.subr.mxu0 0.0
        %6375 = vmatpush1.msra.mxu0 0.0
        %6376 = vmatprep.subr.mxu0 0.0
        %6377 = vmatpush1.msra.mxu0 0.0
        %6378 = vmatprep.subr.mxu0 0.0
        %6379 = vmatpush1.msra.mxu0 0.0
        %6380 = vmatprep.subr.mxu0 0.0
        %6381 = vmatpush1.msra.mxu0 0.0
        %6382 = vmatprep.subr.mxu0 0.0
        %6383 = vmatpush1.msra.mxu0 0.0
        %6384 = vmatprep.subr.mxu0 0.0
        %6385 = vmatpush1.msra.mxu0 0.0
        %6386 = vmatprep.subr.mxu0 0.0
        %6387 = vmatpush1.msra.mxu0 0.0
        %6388 = vmatprep.subr.mxu0 0.0
        %6389 = vmatpush1.msra.mxu0 0.0
        %6390 = vmatprep.mubr.f32.mxu0 0.0
        %6391 = vmatmul.mubr.f32.gmra.mrb[0].mxu0 %v6324
        %v6392 = vpop.f32.mrb[0].mxu0
        %v6393 = vadd.f32 %v6321, %v6392
        %v6394 = vpop.f32.mrb[0].mxu0
        %6395 = vdwg.mxu0
        %s6396 = scalar_lea.vmem [#allocation10], 224
        %v6397 = vld [vmem:[%s6396] sm:$0xff]
        %v6398 = vld [vmem:[%s6396 + $0x8] sm:$0xff]
        %v6399 = vld [vmem:[%s6396 + $0x10] sm:$0xff]
        %v6400 = vld [vmem:[%s6396 + $0x18] sm:$0xff]
        %s6401 = scalar_lea.vmem [#allocation11], 224
        %v6402 = vld [vmem:[%s6401] sm:$0xff]
        %v6403 = vld [vmem:[%s6401 + $0x8] sm:$0xff]
        %v6404 = vld [vmem:[%s6401 + $0x10] sm:$0xff]
        %v6405 = vld [vmem:[%s6401 + $0x18] sm:$0xff]
        %v6407 = vsel %vm797, %v6393, 0
        %6409 = vmatprep.subr.mxu0 0.0
        %6410 = vmatpush1.msra.mxu0 %v6402
        %6411 = vmatprep.subr.mxu0 0.0
        %6412 = vmatpush1.msra.mxu0 %v6403
        %6413 = vmatprep.subr.mxu0 0.0
        %6414 = vmatpush1.msra.mxu0 %v6404
        %6415 = vmatprep.subr.mxu0 0.0
        %6416 = vmatpush1.msra.mxu0 %v6405
        %6417 = vmatprep.subr.mxu0 0.0
        %6418 = vmatpush1.msra.mxu0 0.0
        %6419 = vmatprep.subr.mxu0 0.0
        %6420 = vmatpush1.msra.mxu0 0.0
        %6421 = vmatprep.subr.mxu0 0.0
        %6422 = vmatpush1.msra.mxu0 0.0
        %6423 = vmatprep.subr.mxu0 0.0
        %6424 = vmatpush1.msra.mxu0 0.0
        %6425 = vmatprep.subr.mxu0 0.0
        %6426 = vmatpush1.msra.mxu0 0.0
        %6427 = vmatprep.subr.mxu0 0.0
        %6428 = vmatpush1.msra.mxu0 0.0
        %6429 = vmatprep.subr.mxu0 0.0
        %6430 = vmatpush1.msra.mxu0 0.0
        %6431 = vmatprep.subr.mxu0 0.0
        %6432 = vmatpush1.msra.mxu0 0.0
        %6433 = vmatprep.subr.mxu0 0.0
        %6434 = vmatpush1.msra.mxu0 0.0
        %6435 = vmatprep.subr.mxu0 0.0
        %6436 = vmatpush1.msra.mxu0 0.0
        %6437 = vmatprep.subr.mxu0 0.0
        %6438 = vmatpush1.msra.mxu0 0.0
        %6439 = vmatprep.subr.mxu0 0.0
        %6440 = vmatpush1.msra.mxu0 0.0
        %6441 = vmatprep.subr.mxu0 0.0
        %6442 = vmatpush1.msra.mxu0 0.0
        %6443 = vmatprep.subr.mxu0 0.0
        %6444 = vmatpush1.msra.mxu0 0.0
        %6445 = vmatprep.subr.mxu0 0.0
        %6446 = vmatpush1.msra.mxu0 0.0
        %6447 = vmatprep.subr.mxu0 0.0
        %6448 = vmatpush1.msra.mxu0 0.0
        %6449 = vmatprep.subr.mxu0 0.0
        %6450 = vmatpush1.msra.mxu0 0.0
        %6451 = vmatprep.subr.mxu0 0.0
        %6452 = vmatpush1.msra.mxu0 0.0
        %6453 = vmatprep.subr.mxu0 0.0
        %6454 = vmatpush1.msra.mxu0 0.0
        %6455 = vmatprep.subr.mxu0 0.0
        %6456 = vmatpush1.msra.mxu0 0.0
        %6457 = vmatprep.subr.mxu0 0.0
        %6458 = vmatpush1.msra.mxu0 0.0
        %6459 = vmatprep.subr.mxu0 0.0
        %6460 = vmatpush1.msra.mxu0 0.0
        %6461 = vmatprep.subr.mxu0 0.0
        %6462 = vmatpush1.msra.mxu0 0.0
        %6463 = vmatprep.subr.mxu0 0.0
        %6464 = vmatpush1.msra.mxu0 0.0
        %6465 = vmatprep.subr.mxu0 0.0
        %6466 = vmatpush1.msra.mxu0 0.0
        %6467 = vmatprep.subr.mxu0 0.0
        %6468 = vmatpush1.msra.mxu0 0.0
        %6469 = vmatprep.subr.mxu0 0.0
        %6470 = vmatpush1.msra.mxu0 0.0
        %6471 = vmatprep.subr.mxu0 0.0
        %6472 = vmatpush1.msra.mxu0 0.0
        %6473 = vmatprep.mubr.f32.mxu0 0.0
        %6474 = vmatmul.mubr.f32.gmra.mrb[0].mxu0 %v6407
        %v6475 = vpop.f32.mrb[0].mxu0
        %v6476 = vadd.f32 0.0, %v6475
        %v6477 = vpop.f32.mrb[0].mxu0
        %6478 = vdwg.mxu0
        %6479 = vmatprep.subr.mxu0 0.0
        %6480 = vmatpush1.msra.mxu0 %v6397
        %6481 = vmatprep.subr.mxu0 0.0
        %6482 = vmatpush1.msra.mxu0 %v6398
        %6483 = vmatprep.subr.mxu0 0.0
        %6484 = vmatpush1.msra.mxu0 %v6399
        %6485 = vmatprep.subr.mxu0 0.0
        %6486 = vmatpush1.msra.mxu0 %v6400
        %6487 = vmatprep.subr.mxu0 0.0
        %6488 = vmatpush1.msra.mxu0 0.0
        %6489 = vmatprep.subr.mxu0 0.0
        %6490 = vmatpush1.msra.mxu0 0.0
        %6491 = vmatprep.subr.mxu0 0.0
        %6492 = vmatpush1.msra.mxu0 0.0
        %6493 = vmatprep.subr.mxu0 0.0
        %6494 = vmatpush1.msra.mxu0 0.0
        %6495 = vmatprep.subr.mxu0 0.0
        %6496 = vmatpush1.msra.mxu0 0.0
        %6497 = vmatprep.subr.mxu0 0.0
        %6498 = vmatpush1.msra.mxu0 0.0
        %6499 = vmatprep.subr.mxu0 0.0
        %6500 = vmatpush1.msra.mxu0 0.0
        %6501 = vmatprep.subr.mxu0 0.0
        %6502 = vmatpush1.msra.mxu0 0.0
        %6503 = vmatprep.subr.mxu0 0.0
        %6504 = vmatpush1.msra.mxu0 0.0
        %6505 = vmatprep.subr.mxu0 0.0
        %6506 = vmatpush1.msra.mxu0 0.0
        %6507 = vmatprep.subr.mxu0 0.0
        %6508 = vmatpush1.msra.mxu0 0.0
        %6509 = vmatprep.subr.mxu0 0.0
        %6510 = vmatpush1.msra.mxu0 0.0
        %6511 = vmatprep.subr.mxu0 0.0
        %6512 = vmatpush1.msra.mxu0 0.0
        %6513 = vmatprep.subr.mxu0 0.0
        %6514 = vmatpush1.msra.mxu0 0.0
        %6515 = vmatprep.subr.mxu0 0.0
        %6516 = vmatpush1.msra.mxu0 0.0
        %6517 = vmatprep.subr.mxu0 0.0
        %6518 = vmatpush1.msra.mxu0 0.0
        %6519 = vmatprep.subr.mxu0 0.0
        %6520 = vmatpush1.msra.mxu0 0.0
        %6521 = vmatprep.subr.mxu0 0.0
        %6522 = vmatpush1.msra.mxu0 0.0
        %6523 = vmatprep.subr.mxu0 0.0
        %6524 = vmatpush1.msra.mxu0 0.0
        %6525 = vmatprep.subr.mxu0 0.0
        %6526 = vmatpush1.msra.mxu0 0.0
        %6527 = vmatprep.subr.mxu0 0.0
        %6528 = vmatpush1.msra.mxu0 0.0
        %6529 = vmatprep.subr.mxu0 0.0
        %6530 = vmatpush1.msra.mxu0 0.0
        %6531 = vmatprep.subr.mxu0 0.0
        %6532 = vmatpush1.msra.mxu0 0.0
        %6533 = vmatprep.subr.mxu0 0.0
        %6534 = vmatpush1.msra.mxu0 0.0
        %6535 = vmatprep.subr.mxu0 0.0
        %6536 = vmatpush1.msra.mxu0 0.0
        %6537 = vmatprep.subr.mxu0 0.0
        %6538 = vmatpush1.msra.mxu0 0.0
        %6539 = vmatprep.subr.mxu0 0.0
        %6540 = vmatpush1.msra.mxu0 0.0
        %6541 = vmatprep.subr.mxu0 0.0
        %6542 = vmatpush1.msra.mxu0 0.0
        %6543 = vmatprep.mubr.f32.mxu0 0.0
        %6544 = vmatmul.mubr.f32.gmra.mrb[0].mxu0 %v5986
        %v6545 = vpop.f32.mrb[0].mxu0
        %v6546 = vadd.f32 %v6476, %v6545
        %v6547 = vpop.f32.mrb[0].mxu0
        %6548 = vdwg.mxu0
        %s6549 = scalar_lea.vmem [#allocation13], 7
        %v6550 = vld [vmem:[%s6549] sm:$0x1]
        %v6552 = vlaneseq
        %v6553 = vshrl.u32 %v6552, 7
        %v6554 = vsub.s32 0, %v6553
        %v6555 = vrot.slane %v6550, %v6554
        %v6557 = vadd.f32 %v6546, %v6555
        %v6558 = vsel %vm797, %v6557, 0.0
        %6559 = vadd.xlane.f32.xlu0 %v6558
        %v6560 = vpop.xlane.xlu0 %6559
        %v6561 = vmul.f32 %v6560, %v1452
        %v6562 = vsub.f32 %v6557, %v6561
        %v6563 = vmul.f32 %v6562, %v6562
        %v6564 = vsel %vm797, %v6563, 0.0
        %6565 = vadd.xlane.f32.xlu0 %v6564
        %v6566 = vpop.xlane.xlu0 %6565
        %v6567 = vmul.f32 %v6566, %v1452
        %v6568 = vadd.f32 %v6567, 1e-05
        %v6569 = vrsqrt.pop %v6568
        %v6570 = vmul.f32 %v6562, %v6569
        %s6571 = scalar_lea.vmem [#allocation14], 7
        %v6572 = vld [vmem:[%s6571] sm:$0x1]
        %v6574 = vlaneseq
        %v6575 = vshrl.u32 %v6574, 7
        %v6576 = vsub.s32 0, %v6575
        %v6577 = vrot.slane %v6572, %v6576
        %v6579 = vmul.f32 %v6570, %v6577
        %s6580 = scalar_lea.vmem [#allocation16], 7
        %v6581 = vld [vmem:[%s6580] sm:$0x1]
        %v6583 = vlaneseq
        %v6584 = vshrl.u32 %v6583, 7
        %v6585 = vsub.s32 0, %v6584
        %v6586 = vrot.slane %v6581, %v6585
        %v6588 = vadd.f32 %v6579, %v6586
        %v6589 = vmul.f32 %v6588, 0.5
        %v6590 = vmul.f32 %v6588, 0.70710677
        %vm6591 = vcmp.ge.f32.partialorder %v6590, 0.0
        %v6592 = vsel %vm6591, 1.0, -1.0
        %v6593 = vand.u32 2147483647, %v6590
        %v6594 = vmul.f32 %v6593, 0.3275911
        %v6595 = vadd.f32 %v6594, 1.0
        %v6596 = vrcp.pop %v6595
        %v6597 = vmul.f32 1.0, %v6596
        %v6598 = vmul.f32 %v6597, 1.0614054
        %v6599 = vadd.f32 %v6598, -1.4531521
        %v6600 = vmul.f32 %v6597, %v6599
        %v6601 = vadd.f32 %v6600, 1.4214138
        %v6602 = vmul.f32 %v6597, %v6601
        %v6603 = vadd.f32 %v6602, -0.28449672
        %v6604 = vmul.f32 %v6597, %v6603
        %v6605 = vadd.f32 %v6604, 0.2548296
        %v6606 = vmul.f32 %v6597, %v6605
        %v6607 = vsub.f32 0.0, %v6593
        %v6608 = vmul.f32 %v6607, %v6593
        %v6609 = vmul.f32 %v6608, 1.442695
        %v6610 = vpow.pop %v6609
        %v6611 = vmul.f32 %v6606, %v6610
        %v6612 = vsub.f32 1.0, %v6611
        %v6613 = vmul.f32 %v6592, %v6612
        %v6614 = vadd.f32 %v6613, 1.0
        %v6615 = vmul.f32 %v6589, %v6614
        %v6616 = vld [vmem:[%s16] sm:$0xff]
        %v6617 = vld [vmem:[%s16 + $0x8] sm:$0xff]
        %v6618 = vld [vmem:[%s16 + $0x10] sm:$0xff]
        %v6619 = vld [vmem:[%s16 + $0x18] sm:$0xff]
        %v6620 = vld [vmem:[%s17] sm:$0x1]
        %v6622 = vlaneseq
        %v6623 = vshrl.u32 %v6622, 7
        %v6624 = vsub.s32 0, %v6623
        %v6625 = vrot.slane %v6620, %v6624
        %v6628 = vsel %vm797, %v6615, 0
        %6630 = vmatprep.subr.mxu0 0.0
        %6631 = vmatpush1.msra.mxu0 %v6616
        %6632 = vmatprep.subr.mxu0 0.0
        %6633 = vmatpush1.msra.mxu0 %v6617
        %6634 = vmatprep.subr.mxu0 0.0
        %6635 = vmatpush1.msra.mxu0 %v6618
        %6636 = vmatprep.subr.mxu0 0.0
        %6637 = vmatpush1.msra.mxu0 %v6619
        %6638 = vmatprep.subr.mxu0 0.0
        %6639 = vmatpush1.msra.mxu0 0.0
        %6640 = vmatprep.subr.mxu0 0.0
        %6641 = vmatpush1.msra.mxu0 0.0
        %6642 = vmatprep.subr.mxu0 0.0
        %6643 = vmatpush1.msra.mxu0 0.0
        %6644 = vmatprep.subr.mxu0 0.0
        %6645 = vmatpush1.msra.mxu0 0.0
        %6646 = vmatprep.subr.mxu0 0.0
        %6647 = vmatpush1.msra.mxu0 0.0
        %6648 = vmatprep.subr.mxu0 0.0
        %6649 = vmatpush1.msra.mxu0 0.0
        %6650 = vmatprep.subr.mxu0 0.0
        %6651 = vmatpush1.msra.mxu0 0.0
        %6652 = vmatprep.subr.mxu0 0.0
        %6653 = vmatpush1.msra.mxu0 0.0
        %6654 = vmatprep.subr.mxu0 0.0
        %6655 = vmatpush1.msra.mxu0 0.0
        %6656 = vmatprep.subr.mxu0 0.0
        %6657 = vmatpush1.msra.mxu0 0.0
        %6658 = vmatprep.subr.mxu0 0.0
        %6659 = vmatpush1.msra.mxu0 0.0
        %6660 = vmatprep.subr.mxu0 0.0
        %6661 = vmatpush1.msra.mxu0 0.0
        %6662 = vmatprep.subr.mxu0 0.0
        %6663 = vmatpush1.msra.mxu0 0.0
        %6664 = vmatprep.subr.mxu0 0.0
        %6665 = vmatpush1.msra.mxu0 0.0
        %6666 = vmatprep.subr.mxu0 0.0
        %6667 = vmatpush1.msra.mxu0 0.0
        %6668 = vmatprep.subr.mxu0 0.0
        %6669 = vmatpush1.msra.mxu0 0.0
        %6670 = vmatprep.subr.mxu0 0.0
        %6671 = vmatpush1.msra.mxu0 0.0
        %6672 = vmatprep.subr.mxu0 0.0
        %6673 = vmatpush1.msra.mxu0 0.0
        %6674 = vmatprep.subr.mxu0 0.0
        %6675 = vmatpush1.msra.mxu0 0.0
        %6676 = vmatprep.subr.mxu0 0.0
        %6677 = vmatpush1.msra.mxu0 0.0
        %6678 = vmatprep.subr.mxu0 0.0
        %6679 = vmatpush1.msra.mxu0 0.0
        %6680 = vmatprep.subr.mxu0 0.0
        %6681 = vmatpush1.msra.mxu0 0.0
        %6682 = vmatprep.subr.mxu0 0.0
        %6683 = vmatpush1.msra.mxu0 0.0
        %6684 = vmatprep.subr.mxu0 0.0
        %6685 = vmatpush1.msra.mxu0 0.0
        %6686 = vmatprep.subr.mxu0 0.0
        %6687 = vmatpush1.msra.mxu0 0.0
        %6688 = vmatprep.subr.mxu0 0.0
        %6689 = vmatpush1.msra.mxu0 0.0
        %6690 = vmatprep.subr.mxu0 0.0
        %6691 = vmatpush1.msra.mxu0 0.0
        %6692 = vmatprep.subr.mxu0 0.0
        %6693 = vmatpush1.msra.mxu0 0.0
        %6694 = vmatprep.mubr.f32.mxu0 0.0
        %6695 = vmatmul.mubr.f32.gmra.mrb[0].mxu0 %v6628
        %v6696 = vpop.f32.mrb[0].mxu0
        %v6697 = vadd.f32 %v6625, %v6696
        %v6698 = vpop.f32.mrb[0].mxu0
        %6699 = vdwg.mxu0
        %6700 = vst.msk [vmem:[%s697] sm:$0xff] %vm712, %v6697
        %s6701 = sand.u32 %s428, 1
        %s6702 = scalar_lea.sflag [#allocation4], %s6701
        %s6703 = sand.u32 %s428, 1
        %s6704 = smul.addr %s6703, 8
        %s6705 = scalar_lea.vmem [#allocation17], %s6704
        // Predicated region
        $region129: #{body_forward_fused.1} parent=91 // pred_check
          %p6706 = pneg %p438
        $region130: #{body_forward_fused.1} parent=91 // pred_check_branch
          %6708 = sbr.rel (%p6706) target = $region132
        $region131: #{body_forward_fused.1} parent=91 // pred_region
          %s6710 = ssub.s32 128, 128
          %6711 = vsyncadd %s6702, %s6710
          %s6712 = smul.addr %s37, 128
          %s6713 = scalar_lea.hbm %s18, %s6712
          %s6715 = sshll.u32 %s6705, 4
          %s6716 = int_to_ptr.vmem [resolvable:$true] %s6715
          %6718 = dma.vmem_to_hbm [thread:$0]  %s6716, 128, %s6713, %s6702
        $region132: #{body_forward_fused.1} parent=91 // pred_fallthru
          _
      $region92: #{body_forward_fused.1} parent=5 // pred_fallthru
        _
      %p6719 = scmp.le.s32.totalorder 2, %s32
      // Predicated region
      $region133: #{body_forward_fused.1} parent=5 // pred_check
        %p6720 = pneg %p6719
      $region134: #{body_forward_fused.1} parent=5 // pred_check_branch
        %6722 = sbr.rel (%p6720) target = $region136
      $region135: #{body_forward_fused.1} parent=5 // pred_region
        %s6723 = ssub.s32 %s32, 2
        // Predicated region
        $region137: #{body_forward_fused.1} parent=135 // pred_check
          %p6724 = pneg %p444
        $region138: #{body_forward_fused.1} parent=135 // pred_check_branch
          %6726 = sbr.rel (%p6724) target = $region140
        $region139: #{body_forward_fused.1} parent=135 // pred_region
          %s6727 = sand.u32 %s429, 1
          %s6728 = scalar_lea.sflag [#allocation4], %s6727
          %s6729 = sand.u32 %s429, 1
          %s6730 = smul.addr %s6729, 8
          %s6731 = scalar_lea.vmem [#allocation17], %s6730
          %6732 = dma.done %s6728, 128
        $region140: #{body_forward_fused.1} parent=135 // pred_fallthru
          _
      $region136: #{body_forward_fused.1} parent=5 // pred_fallthru
        _
    $region6: #{body_forward_fused.1} parent=1 // loop_footer
      %s36 = sadd.s32 1, %s32
    $region7: #{body_forward_fused.1} parent=1 // loop_footer_branch
      %31 = sbr.rel target = $region3
    $region8: #{body_forward_fused.1} parent=1 // loop_exit
      _
    %6733 = vsyncpa [#allocation3], 1
    %s6734 = scalar_lea.sflag [#allocation3], 1
    %6735 = vsyncpa %s6734, 1
    %6736 = vsyncpa [#allocation6], 1
    %6737 = vsyncpa [#allocation9], 1
    %6738 = vsyncpa [#allocation12], 1
    %6739 = vsyncpa [#allocation15], 1
    %6740 = vsyncpa [#allocation4], 1
    %s6741 = scalar_lea.sflag [#allocation4], 1
    %6742 = vsyncpa %s6741, 1

</llo_original>
